<compile_context>
chip_gen: v7x
topology: tpu7x:2x2x1
jax: 0.10.0
libtpu: 0.0.40
codegen_flags: <defaults>
</compile_context>

<pallas_src>
import jax
import jax.numpy as jnp
from jax import lax
from jax.experimental import pallas as pl
from jax.experimental.pallas import tpu as pltpu

# ---- fixed shapes implied by the module ------------------------------------
H = W = 14                      # grid_size = (14, 14)
NPATCH = H * W                  # 196 patch tokens
NTOK = NPATCH + 1               # 197 (CLS + patches)
CIN = 384                       # ViT-small feature dim
COUT = 5                        # round(1024 / 196)
NTAP = 9                        # 3x3 conv taps
NCOL = NTAP * COUT              # 45 columns of the tap-concatenated weight
PAD = 16                        # zero-row margin around the per-sample tap matmul
N_VALID = NPATCH * COUT         # 980 elements per sample entering GroupNorm
MLP_IN = 2 * N_VALID            # 1960 (obs branch + goal branch)
NUM_ACT = 4
EPS = 1e-5                      # GroupNorm eps (PyTorch default)


# ---------------------------------------------------------------------------
# CompressionLayer: Conv2d(384->5, 3x3, pad=1, no bias) + GroupNorm(1) + ReLU
# One (197,384)x(384,45) matmul per sample; taps accumulated as masked,
# shifted-row adds of the narrow (196,5) column groups (VPU), f32 throughout.
# ---------------------------------------------------------------------------
def compression_kernel(obs_ref, goal_ref, wcat_ref, mask_ref,
                       gamma_ref, beta_ref, out_ref):
    # obs/goal_ref: (1, 197, 384) f32   raw ViT features for this batch element
    # wcat_ref:     (384, 45)     bf16  conv taps, column t*5+cout, t = dh*3+dw
    # mask_ref:     (196, 45)     f32   per-tap conv-halo validity (0/1)
    # gamma/beta:   (1, 5)        f32   GroupNorm affine
    # out_ref:      (1, 2, 196, 5) f32  conv+GN+ReLU for [obs, goal]
    wcat = wcat_ref[...]
    mask = mask_ref[...]
    gamma = gamma_ref[...]
    beta = beta_ref[...]
    zpad = jnp.zeros((PAD, NCOL), jnp.float32)
    inv_n = 1.0 / float(N_VALID)

    for s, ref in enumerate((obs_ref, goal_ref)):
        x = ref[0].astype(jnp.bfloat16)                              # (197, 384)
        # one MXU matmul for all 9 taps; CLS row computed but always masked out
        y = jnp.dot(x, wcat, preferred_element_type=jnp.float32)    # (197, 45)
        ypad = jnp.concatenate([zpad, y, zpad], axis=0)              # (229, 45)

        acc = jnp.zeros((NPATCH, COUT), jnp.float32)
        for t in range(NTAP):
            dh, dw = t // 3, t % 3
            off = (dh - 1) * W + (dw - 1)            # patch-index shift of this tap
            start = PAD + 1 + off                    # +1 skips the CLS row
            seg = ypad[start:start + NPATCH, t * COUT:(t + 1) * COUT]
            acc = acc + seg * mask[:, t * COUT:(t + 1) * COUT]

        # GroupNorm(num_groups=1): stats over this sample's 980 conv outputs.
        mean = jnp.sum(acc) * inv_n
        cent = acc - mean
        var = jnp.sum(cent * cent) * inv_n
        z = cent * lax.rsqrt(var + EPS) * gamma + beta
        out_ref[0, s] = jnp.maximum(z, 0.0)                          # ReLU


def compression_call(obs, goal, wcat, masks, gamma, beta):
    """obs/goal: (B, 197, 384) f32 ViT features -> (B, 2, 196, 5) f32."""
    b = obs.shape[0]
    flops = 2 * b * 2 * (NTOK * CIN * NCOL)
    bytes_acc = (2 * b * NTOK * CIN * 4 + wcat.size * 2 + masks.size * 4
                 + b * 2 * NPATCH * COUT * 4)
    return pl.pallas_call(
        compression_kernel,
        out_shape=jax.ShapeDtypeStruct((b, 2, NPATCH, COUT), jnp.float32),
        grid_spec=pltpu.PrefetchScalarGridSpec(
            num_scalar_prefetch=0,
            grid=(b,),
            in_specs=[
                pl.BlockSpec((1, NTOK, CIN), lambda i: (i, 0, 0)),
                pl.BlockSpec((1, NTOK, CIN), lambda i: (i, 0, 0)),
                pl.BlockSpec((CIN, NCOL), lambda i: (0, 0)),
                pl.BlockSpec((NPATCH, NCOL), lambda i: (0, 0)),
                pl.BlockSpec((1, COUT), lambda i: (0, 0)),
                pl.BlockSpec((1, COUT), lambda i: (0, 0)),
            ],
            out_specs=pl.BlockSpec((1, 2, NPATCH, COUT), lambda i: (i, 0, 0, 0)),
        ),
        compiler_params=pltpu.CompilerParams(dimension_semantics=("parallel",)),
        cost_estimate=pl.CostEstimate(flops=flops, transcendentals=2 * b,
                                      bytes_accessed=bytes_acc),
    )(obs, goal, wcat, masks, gamma, beta)


# ---------------------------------------------------------------------------
# CategoricalNet: Linear(1960,512)+ReLU -> Linear(512,256)+ReLU -> Linear(256,4)
# Weights bf16 (w1 pre-permuted to the compression kernel's activation order),
# matmuls accumulate in f32; biases/ReLU in f32. Dropout = identity (eval).
# ---------------------------------------------------------------------------
def mlp_kernel(x_ref, w1_ref, b1_ref, w2_ref, b2_ref, w3_ref, b3_ref, out_ref):
    x = x_ref[...].astype(jnp.bfloat16)
    h = jnp.dot(x, w1_ref[...], preferred_element_type=jnp.float32) + b1_ref[...]
    h = jnp.maximum(h, 0.0).astype(jnp.bfloat16)
    h = jnp.dot(h, w2_ref[...], preferred_element_type=jnp.float32) + b2_ref[...]
    h = jnp.maximum(h, 0.0).astype(jnp.bfloat16)
    out_ref[...] = (
        jnp.dot(h, w3_ref[...], preferred_element_type=jnp.float32) + b3_ref[...]
    )


def categorical_net(x, w1, b1, w2, b2, w3, b3):
    batch = x.shape[0]
    vmem = pl.BlockSpec(memory_space=pltpu.MemorySpace.VMEM)
    flops = 2 * batch * (MLP_IN * 512 + 512 * 256 + 256 * NUM_ACT)
    bytes_acc = (x.size * 4 + w1.size * 2 + w2.size * 2 + w3.size * 2
                 + (512 + 256 + NUM_ACT) * 4 + batch * NUM_ACT * 4)
    return pl.pallas_call(
        mlp_kernel,
        out_shape=jax.ShapeDtypeStruct((batch, NUM_ACT), jnp.float32),
        in_specs=[vmem] * 7,
        out_specs=vmem,
        cost_estimate=pl.CostEstimate(flops=flops, transcendentals=0,
                                      bytes_accessed=bytes_acc),
    )(x, w1, b1, w2, b2, w3, b3)


# ---------------------------------------------------------------------------
# Full OVRL forward (post-ViT part)
# ---------------------------------------------------------------------------
def ovrl_forward(obs_feats, goal_feats, params, sample_key):
    b = obs_feats.shape[0]
    comp = compression_call(obs_feats, goal_feats, params["conv_w"],
                            params["tap_mask"], params["gn_g"], params["gn_b"])
    combined = comp.reshape(b, MLP_IN)        # layout fold lives in w1 permutation
    logits = categorical_net(
        combined,
        params["w1"], params["b1"],
        params["w2"], params["b2"],
        params["w3"], params["b3"],
    )
    action = jax.random.categorical(sample_key, logits, axis=-1)
    return action, logits


# ---------------------------------------------------------------------------
# One-time parameter / constant construction (outside jit)
# ---------------------------------------------------------------------------
def build_tap_masks():
    """(196, 45) f32: column t*5+c is 1 where conv tap t is inside the 14x14 grid."""
    q = jnp.arange(NPATCH)
    h, w = q // W, q % W
    cols = []
    for t in range(NTAP):
        dh, dw = t // 3, t % 3
        valid = ((h + dh - 1 >= 0) & (h + dh - 1 < H) &
                 (w + dw - 1 >= 0) & (w + dw - 1 < W))
        cols.append(jnp.repeat(valid[:, None].astype(jnp.float32), COUT, axis=1))
    return jnp.concatenate(cols, axis=1)


def permute_w1(w1):
    """Map w1 rows (PyTorch order: branch*980 + c*196 + q, q = h*14+w) onto the
    kernel's activation order (branch*980 + q*5 + c)."""
    br = jnp.arange(2)[:, None, None]
    q = jnp.arange(NPATCH)[None, :, None]
    c = jnp.arange(COUT)[None, None, :]
    perm = (br * N_VALID + c * NPATCH + q).reshape(-1)
    return w1[perm]


def init_params(key):
    ks = jax.random.split(key, 7)
    # Conv2d weight, torch layout (Cout, Cin, 3, 3) -> tap-concatenated (Cin, 45)
    conv_w = jax.random.normal(ks[0], (COUT, CIN, 3, 3), jnp.float32) * 0.02
    wcat = jnp.transpose(conv_w, (1, 2, 3, 0)).reshape(CIN, NCOL).astype(jnp.bfloat16)
    # Linear weights stored as (in, out) = torch_weight.T
    w1 = jax.random.normal(ks[1], (MLP_IN, 512), jnp.float32) * 0.02
    return {
        "conv_w": wcat,
        "tap_mask": build_tap_masks(),
        "gn_g": jnp.ones((1, COUT), jnp.float32),     # GroupNorm default init
        "gn_b": jnp.zeros((1, COUT), jnp.float32),
        "w1": permute_w1(w1).astype(jnp.bfloat16),    # (1960, 512), layout-folded
        "b1": jax.random.normal(ks[2], (1, 512), jnp.float32) * 0.01,
        "w2": (jax.random.normal(ks[3], (512, 256), jnp.float32) * 0.02
               ).astype(jnp.bfloat16),
        "b2": jax.random.normal(ks[4], (1, 256), jnp.float32) * 0.01,
        "w3": (jax.random.normal(ks[5], (256, NUM_ACT), jnp.float32) * 0.02
               ).astype(jnp.bfloat16),
        "b3": jax.random.normal(ks[6], (1, NUM_ACT), jnp.float32) * 0.01,
    }


if __name__ == "__main__":
    key = jax.random.PRNGKey(0)
    k_params, k_obs, k_goal, k_sample = jax.random.split(key, 4)

    params = init_params(k_params)

    B = 2
    obs_feats = jax.random.normal(k_obs, (B, NTOK, CIN), jnp.float32)
    goal_feats = jax.random.normal(k_goal, (B, NTOK, CIN), jnp.float32)

    fwd = jax.jit(ovrl_forward)
    action, logits = fwd(obs_feats, goal_feats, params, k_sample)
    jax.block_until_ready((action, logits))

    assert action.shape == (B,)
    assert logits.shape == (B, NUM_ACT)
    assert bool(jnp.all(jnp.isfinite(logits)))
    print("KERNEL_OK")
</pallas_src>

<mosaic_0001>
module attributes {stable_mosaic.version = 11 : i64} {
  func.func @compression_kernel(%arg0: i32, %arg1: memref<1x197x384xf32, #tpu.memory_space<vmem>>, %arg2: memref<1x197x384xf32, #tpu.memory_space<vmem>>, %arg3: memref<384x45xbf16, #tpu.memory_space<vmem>>, %arg4: memref<196x45xf32, #tpu.memory_space<vmem>>, %arg5: memref<1x5xf32, #tpu.memory_space<vmem>>, %arg6: memref<1x5xf32, #tpu.memory_space<vmem>>, %arg7: memref<1x2x196x5xf32, #tpu.memory_space<vmem>>) attributes {dimension_semantics = [#tpu.dimension_semantics<parallel>], iteration_bounds = array<i64: 2>, scalar_prefetch = 0 : i64, scratch_operands = 0 : i64, tpu.core_type = #tpu.core_type<tc>, window_params = [{transform_indices = @transform_0, window_bounds = array<i64: 1, 197, 384>}, {transform_indices = @transform_1, window_bounds = array<i64: 1, 197, 384>}, {pipeline_mode = #tpu.pipeline_mode<synchronous>, transform_indices = @transform_2, window_bounds = array<i64: 384, 45>}, {pipeline_mode = #tpu.pipeline_mode<synchronous>, transform_indices = @transform_3, window_bounds = array<i64: 196, 45>}, {pipeline_mode = #tpu.pipeline_mode<synchronous>, transform_indices = @transform_4, window_bounds = array<i64: 1, 5>}, {pipeline_mode = #tpu.pipeline_mode<synchronous>, transform_indices = @transform_5, window_bounds = array<i64: 1, 5>}, {transform_indices = @transform_6, window_bounds = array<i64: 1, 2, 196, 5>}]} {
    %c0 = arith.constant 0 : index
    %c0_0 = arith.constant 0 : index
    %0 = vector.load %arg3[%c0, %c0_0] : memref<384x45xbf16, #tpu.memory_space<vmem>>, vector<384x45xbf16>
    %c0_1 = arith.constant 0 : index
    %c0_2 = arith.constant 0 : index
    %1 = vector.load %arg4[%c0_1, %c0_2] : memref<196x45xf32, #tpu.memory_space<vmem>>, vector<196x45xf32>
    %c0_3 = arith.constant 0 : index
    %c0_4 = arith.constant 0 : index
    %2 = vector.load %arg5[%c0_3, %c0_4] : memref<1x5xf32, #tpu.memory_space<vmem>>, vector<1x5xf32>
    %c0_5 = arith.constant 0 : index
    %c0_6 = arith.constant 0 : index
    %3 = vector.load %arg6[%c0_5, %c0_6] : memref<1x5xf32, #tpu.memory_space<vmem>>, vector<1x5xf32>
    %cst = arith.constant 0.000000e+00 : f32
    %4 = vector.broadcast %cst : f32 to vector<16x45xf32>
    %c0_7 = arith.constant 0 : index
    %c0_8 = arith.constant 0 : index
    %c0_9 = arith.constant 0 : index
    %5 = vector.load %arg1[%c0_7, %c0_8, %c0_9] : memref<1x197x384xf32, #tpu.memory_space<vmem>>, vector<1x197x384xf32>
    %6 = vector.shape_cast %5 : vector<1x197x384xf32> to vector<197x384xf32>
    %7 = arith.truncf %6 : vector<197x384xf32> to vector<197x384xbf16>
    %cst_10 = arith.constant dense<0.000000e+00> : vector<197x45xf32>
    %8 = tpu.matmul %7, %0, %cst_10 {dimension_numbers = #tpu.dot_dimension_numbers<[1], [0], [0], [1], [0, 0, 1, 1], [], []>} : vector<197x384xbf16>, vector<384x45xbf16>, vector<197x45xf32> -> vector<197x45xf32>
    %9 = tpu.concatenate %4, %8, %4 in 0 : vector<16x45xf32>, vector<197x45xf32>, vector<16x45xf32> -> vector<229x45xf32>
    %cst_11 = arith.constant 0.000000e+00 : f32
    %10 = vector.broadcast %cst_11 : f32 to vector<196x5xf32>
    %11 = vector.extract_strided_slice %9 {offsets = [2, 0], sizes = [196, 5], strides = [1, 1]} : vector<229x45xf32> to vector<196x5xf32>
    %12 = vector.extract_strided_slice %1 {offsets = [0, 0], sizes = [196, 5], strides = [1, 1]} : vector<196x45xf32> to vector<196x5xf32>
    %13 = arith.mulf %11, %12 : vector<196x5xf32>
    %14 = arith.addf %10, %13 : vector<196x5xf32>
    %15 = vector.extract_strided_slice %9 {offsets = [3, 5], sizes = [196, 5], strides = [1, 1]} : vector<229x45xf32> to vector<196x5xf32>
    %16 = vector.extract_strided_slice %1 {offsets = [0, 5], sizes = [196, 5], strides = [1, 1]} : vector<196x45xf32> to vector<196x5xf32>
    %17 = arith.mulf %15, %16 : vector<196x5xf32>
    %18 = arith.addf %14, %17 : vector<196x5xf32>
    %19 = vector.extract_strided_slice %9 {offsets = [4, 10], sizes = [196, 5], strides = [1, 1]} : vector<229x45xf32> to vector<196x5xf32>
    %20 = vector.extract_strided_slice %1 {offsets = [0, 10], sizes = [196, 5], strides = [1, 1]} : vector<196x45xf32> to vector<196x5xf32>
    %21 = arith.mulf %19, %20 : vector<196x5xf32>
    %22 = arith.addf %18, %21 : vector<196x5xf32>
    %23 = vector.extract_strided_slice %9 {offsets = [16, 15], sizes = [196, 5], strides = [1, 1]} : vector<229x45xf32> to vector<196x5xf32>
    %24 = vector.extract_strided_slice %1 {offsets = [0, 15], sizes = [196, 5], strides = [1, 1]} : vector<196x45xf32> to vector<196x5xf32>
    %25 = arith.mulf %23, %24 : vector<196x5xf32>
    %26 = arith.addf %22, %25 : vector<196x5xf32>
    %27 = vector.extract_strided_slice %9 {offsets = [17, 20], sizes = [196, 5], strides = [1, 1]} : vector<229x45xf32> to vector<196x5xf32>
    %28 = vector.extract_strided_slice %1 {offsets = [0, 20], sizes = [196, 5], strides = [1, 1]} : vector<196x45xf32> to vector<196x5xf32>
    %29 = arith.mulf %27, %28 : vector<196x5xf32>
    %30 = arith.addf %26, %29 : vector<196x5xf32>
    %31 = vector.extract_strided_slice %9 {offsets = [18, 25], sizes = [196, 5], strides = [1, 1]} : vector<229x45xf32> to vector<196x5xf32>
    %32 = vector.extract_strided_slice %1 {offsets = [0, 25], sizes = [196, 5], strides = [1, 1]} : vector<196x45xf32> to vector<196x5xf32>
    %33 = arith.mulf %31, %32 : vector<196x5xf32>
    %34 = arith.addf %30, %33 : vector<196x5xf32>
    %35 = vector.extract_strided_slice %9 {offsets = [30, 30], sizes = [196, 5], strides = [1, 1]} : vector<229x45xf32> to vector<196x5xf32>
    %36 = vector.extract_strided_slice %1 {offsets = [0, 30], sizes = [196, 5], strides = [1, 1]} : vector<196x45xf32> to vector<196x5xf32>
    %37 = arith.mulf %35, %36 : vector<196x5xf32>
    %38 = arith.addf %34, %37 : vector<196x5xf32>
    %39 = vector.extract_strided_slice %9 {offsets = [31, 35], sizes = [196, 5], strides = [1, 1]} : vector<229x45xf32> to vector<196x5xf32>
    %40 = vector.extract_strided_slice %1 {offsets = [0, 35], sizes = [196, 5], strides = [1, 1]} : vector<196x45xf32> to vector<196x5xf32>
    %41 = arith.mulf %39, %40 : vector<196x5xf32>
    %42 = arith.addf %38, %41 : vector<196x5xf32>
    %43 = vector.extract_strided_slice %9 {offsets = [32, 40], sizes = [196, 5], strides = [1, 1]} : vector<229x45xf32> to vector<196x5xf32>
    %44 = vector.extract_strided_slice %1 {offsets = [0, 40], sizes = [196, 5], strides = [1, 1]} : vector<196x45xf32> to vector<196x5xf32>
    %45 = arith.mulf %43, %44 : vector<196x5xf32>
    %46 = arith.addf %42, %45 : vector<196x5xf32>
    %47 = vector.shape_cast %46 : vector<196x5xf32> to vector<1x196x5xf32>
    %cst_12 = arith.constant dense<0.000000e+00> : vector<1xf32>
    %48 = vector.multi_reduction <add>, %47, %cst_12 [1, 2] : vector<1x196x5xf32> to vector<1xf32>
    %49 = vector.shape_cast %48 : vector<1xf32> to vector<1x1x1xf32>
    %50 = vector.extract %49[0, 0, 0] : f32 from vector<1x1x1xf32>
    %cst_13 = arith.constant 0.00102040812 : f32
    %51 = arith.mulf %50, %cst_13 : f32
    %52 = vector.broadcast %51 : f32 to vector<196x5xf32>
    %53 = arith.subf %46, %52 : vector<196x5xf32>
    %54 = arith.mulf %53, %53 : vector<196x5xf32>
    %55 = vector.shape_cast %54 : vector<196x5xf32> to vector<1x196x5xf32>
    %cst_14 = arith.constant dense<0.000000e+00> : vector<1xf32>
    %56 = vector.multi_reduction <add>, %55, %cst_14 [1, 2] : vector<1x196x5xf32> to vector<1xf32>
    %57 = vector.shape_cast %56 : vector<1xf32> to vector<1x1x1xf32>
    %58 = vector.extract %57[0, 0, 0] : f32 from vector<1x1x1xf32>
    %cst_15 = arith.constant 0.00102040812 : f32
    %59 = arith.mulf %58, %cst_15 : f32
    %cst_16 = arith.constant 9.99999974E-6 : f32
    %60 = arith.addf %59, %cst_16 : f32
    %61 = math.rsqrt %60 : f32
    %62 = vector.broadcast %61 : f32 to vector<196x5xf32>
    %63 = arith.mulf %53, %62 : vector<196x5xf32>
    %64 = vector.broadcast %2 : vector<1x5xf32> to vector<196x5xf32>
    %65 = arith.mulf %63, %64 : vector<196x5xf32>
    %66 = vector.broadcast %3 : vector<1x5xf32> to vector<196x5xf32>
    %67 = arith.addf %65, %66 : vector<196x5xf32>
    %cst_17 = arith.constant 0.000000e+00 : f32
    %68 = vector.broadcast %cst_17 : f32 to vector<196x5xf32>
    %69 = arith.maximumf %67, %68 : vector<196x5xf32>
    %c0_18 = arith.constant 0 : index
    %c0_19 = arith.constant 0 : index
    %c0_20 = arith.constant 0 : index
    %c0_21 = arith.constant 0 : index
    %70 = vector.load %arg7[%c0_18, %c0_19, %c0_20, %c0_21] : memref<1x2x196x5xf32, #tpu.memory_space<vmem>>, vector<1x1x196x5xf32>
    %71 = vector.shape_cast %70 : vector<1x1x196x5xf32> to vector<196x5xf32>
    %72 = vector.shape_cast %69 : vector<196x5xf32> to vector<1x1x196x5xf32>
    tpu.vector_store %arg7[%c0_18, %c0_19, %c0_20, %c0_21], %72 {strides = array<i32>} : memref<1x2x196x5xf32, #tpu.memory_space<vmem>>, vector<1x1x196x5xf32>,
    %c0_22 = arith.constant 0 : index
    %c0_23 = arith.constant 0 : index
    %c0_24 = arith.constant 0 : index
    %73 = vector.load %arg2[%c0_22, %c0_23, %c0_24] : memref<1x197x384xf32, #tpu.memory_space<vmem>>, vector<1x197x384xf32>
    %74 = vector.shape_cast %73 : vector<1x197x384xf32> to vector<197x384xf32>
    %75 = arith.truncf %74 : vector<197x384xf32> to vector<197x384xbf16>
    %cst_25 = arith.constant dense<0.000000e+00> : vector<197x45xf32>
    %76 = tpu.matmul %75, %0, %cst_25 {dimension_numbers = #tpu.dot_dimension_numbers<[1], [0], [0], [1], [0, 0, 1, 1], [], []>} : vector<197x384xbf16>, vector<384x45xbf16>, vector<197x45xf32> -> vector<197x45xf32>
    %77 = tpu.concatenate %4, %76, %4 in 0 : vector<16x45xf32>, vector<197x45xf32>, vector<16x45xf32> -> vector<229x45xf32>
    %cst_26 = arith.constant 0.000000e+00 : f32
    %78 = vector.broadcast %cst_26 : f32 to vector<196x5xf32>
    %79 = vector.extract_strided_slice %77 {offsets = [2, 0], sizes = [196, 5], strides = [1, 1]} : vector<229x45xf32> to vector<196x5xf32>
    %80 = vector.extract_strided_slice %1 {offsets = [0, 0], sizes = [196, 5], strides = [1, 1]} : vector<196x45xf32> to vector<196x5xf32>
    %81 = arith.mulf %79, %80 : vector<196x5xf32>
    %82 = arith.addf %78, %81 : vector<196x5xf32>
    %83 = vector.extract_strided_slice %77 {offsets = [3, 5], sizes = [196, 5], strides = [1, 1]} : vector<229x45xf32> to vector<196x5xf32>
    %84 = vector.extract_strided_slice %1 {offsets = [0, 5], sizes = [196, 5], strides = [1, 1]} : vector<196x45xf32> to vector<196x5xf32>
    %85 = arith.mulf %83, %84 : vector<196x5xf32>
    %86 = arith.addf %82, %85 : vector<196x5xf32>
    %87 = vector.extract_strided_slice %77 {offsets = [4, 10], sizes = [196, 5], strides = [1, 1]} : vector<229x45xf32> to vector<196x5xf32>
    %88 = vector.extract_strided_slice %1 {offsets = [0, 10], sizes = [196, 5], strides = [1, 1]} : vector<196x45xf32> to vector<196x5xf32>
    %89 = arith.mulf %87, %88 : vector<196x5xf32>
    %90 = arith.addf %86, %89 : vector<196x5xf32>
    %91 = vector.extract_strided_slice %77 {offsets = [16, 15], sizes = [196, 5], strides = [1, 1]} : vector<229x45xf32> to vector<196x5xf32>
    %92 = vector.extract_strided_slice %1 {offsets = [0, 15], sizes = [196, 5], strides = [1, 1]} : vector<196x45xf32> to vector<196x5xf32>
    %93 = arith.mulf %91, %92 : vector<196x5xf32>
    %94 = arith.addf %90, %93 : vector<196x5xf32>
    %95 = vector.extract_strided_slice %77 {offsets = [17, 20], sizes = [196, 5], strides = [1, 1]} : vector<229x45xf32> to vector<196x5xf32>
    %96 = vector.extract_strided_slice %1 {offsets = [0, 20], sizes = [196, 5], strides = [1, 1]} : vector<196x45xf32> to vector<196x5xf32>
    %97 = arith.mulf %95, %96 : vector<196x5xf32>
    %98 = arith.addf %94, %97 : vector<196x5xf32>
    %99 = vector.extract_strided_slice %77 {offsets = [18, 25], sizes = [196, 5], strides = [1, 1]} : vector<229x45xf32> to vector<196x5xf32>
    %100 = vector.extract_strided_slice %1 {offsets = [0, 25], sizes = [196, 5], strides = [1, 1]} : vector<196x45xf32> to vector<196x5xf32>
    %101 = arith.mulf %99, %100 : vector<196x5xf32>
    %102 = arith.addf %98, %101 : vector<196x5xf32>
    %103 = vector.extract_strided_slice %77 {offsets = [30, 30], sizes = [196, 5], strides = [1, 1]} : vector<229x45xf32> to vector<196x5xf32>
    %104 = vector.extract_strided_slice %1 {offsets = [0, 30], sizes = [196, 5], strides = [1, 1]} : vector<196x45xf32> to vector<196x5xf32>
    %105 = arith.mulf %103, %104 : vector<196x5xf32>
    %106 = arith.addf %102, %105 : vector<196x5xf32>
    %107 = vector.extract_strided_slice %77 {offsets = [31, 35], sizes = [196, 5], strides = [1, 1]} : vector<229x45xf32> to vector<196x5xf32>
    %108 = vector.extract_strided_slice %1 {offsets = [0, 35], sizes = [196, 5], strides = [1, 1]} : vector<196x45xf32> to vector<196x5xf32>
    %109 = arith.mulf %107, %108 : vector<196x5xf32>
    %110 = arith.addf %106, %109 : vector<196x5xf32>
    %111 = vector.extract_strided_slice %77 {offsets = [32, 40], sizes = [196, 5], strides = [1, 1]} : vector<229x45xf32> to vector<196x5xf32>
    %112 = vector.extract_strided_slice %1 {offsets = [0, 40], sizes = [196, 5], strides = [1, 1]} : vector<196x45xf32> to vector<196x5xf32>
    %113 = arith.mulf %111, %112 : vector<196x5xf32>
    %114 = arith.addf %110, %113 : vector<196x5xf32>
    %115 = vector.shape_cast %114 : vector<196x5xf32> to vector<1x196x5xf32>
    %cst_27 = arith.constant dense<0.000000e+00> : vector<1xf32>
    %116 = vector.multi_reduction <add>, %115, %cst_27 [1, 2] : vector<1x196x5xf32> to vector<1xf32>
    %117 = vector.shape_cast %116 : vector<1xf32> to vector<1x1x1xf32>
    %118 = vector.extract %117[0, 0, 0] : f32 from vector<1x1x1xf32>
    %cst_28 = arith.constant 0.00102040812 : f32
    %119 = arith.mulf %118, %cst_28 : f32
    %120 = vector.broadcast %119 : f32 to vector<196x5xf32>
    %121 = arith.subf %114, %120 : vector<196x5xf32>
    %122 = arith.mulf %121, %121 : vector<196x5xf32>
    %123 = vector.shape_cast %122 : vector<196x5xf32> to vector<1x196x5xf32>
    %cst_29 = arith.constant dense<0.000000e+00> : vector<1xf32>
    %124 = vector.multi_reduction <add>, %123, %cst_29 [1, 2] : vector<1x196x5xf32> to vector<1xf32>
    %125 = vector.shape_cast %124 : vector<1xf32> to vector<1x1x1xf32>
    %126 = vector.extract %125[0, 0, 0] : f32 from vector<1x1x1xf32>
    %cst_30 = arith.constant 0.00102040812 : f32
    %127 = arith.mulf %126, %cst_30 : f32
    %cst_31 = arith.constant 9.99999974E-6 : f32
    %128 = arith.addf %127, %cst_31 : f32
    %129 = math.rsqrt %128 : f32
    %130 = vector.broadcast %129 : f32 to vector<196x5xf32>
    %131 = arith.mulf %121, %130 : vector<196x5xf32>
    %132 = vector.broadcast %2 : vector<1x5xf32> to vector<196x5xf32>
    %133 = arith.mulf %131, %132 : vector<196x5xf32>
    %134 = vector.broadcast %3 : vector<1x5xf32> to vector<196x5xf32>
    %135 = arith.addf %133, %134 : vector<196x5xf32>
    %cst_32 = arith.constant 0.000000e+00 : f32
    %136 = vector.broadcast %cst_32 : f32 to vector<196x5xf32>
    %137 = arith.maximumf %135, %136 : vector<196x5xf32>
    %c0_33 = arith.constant 0 : index
    %c1 = arith.constant 1 : index
    %c0_34 = arith.constant 0 : index
    %c0_35 = arith.constant 0 : index
    %138 = vector.load %arg7[%c0_33, %c1, %c0_34, %c0_35] : memref<1x2x196x5xf32, #tpu.memory_space<vmem>>, vector<1x1x196x5xf32>
    %139 = vector.shape_cast %138 : vector<1x1x196x5xf32> to vector<196x5xf32>
    %140 = vector.shape_cast %137 : vector<196x5xf32> to vector<1x1x196x5xf32>
    tpu.vector_store %arg7[%c0_33, %c1, %c0_34, %c0_35], %140 {strides = array<i32>} : memref<1x2x196x5xf32, #tpu.memory_space<vmem>>, vector<1x1x196x5xf32>,
    return
  }
  func.func @transform_0(%arg0: i32) -> (i32, i32, i32) {
    %c0_i32 = arith.constant 0 : i32
    %c0_i32_0 = arith.constant 0 : i32
    %c0_i32_1 = arith.constant 0 : i32
    return %arg0, %c0_i32, %c0_i32_0 : i32, i32, i32
  }
  func.func @transform_1(%arg0: i32) -> (i32, i32, i32) {
    %c0_i32 = arith.constant 0 : i32
    %c0_i32_0 = arith.constant 0 : i32
    %c0_i32_1 = arith.constant 0 : i32
    return %arg0, %c0_i32, %c0_i32_0 : i32, i32, i32
  }
  func.func @transform_2(%arg0: i32) -> (i32, i32) {
    %c0_i32 = arith.constant 0 : i32
    %c0_i32_0 = arith.constant 0 : i32
    %c0_i32_1 = arith.constant 0 : i32
    return %c0_i32, %c0_i32_0 : i32, i32
  }
  func.func @transform_3(%arg0: i32) -> (i32, i32) {
    %c0_i32 = arith.constant 0 : i32
    %c0_i32_0 = arith.constant 0 : i32
    %c0_i32_1 = arith.constant 0 : i32
    return %c0_i32, %c0_i32_0 : i32, i32
  }
  func.func @transform_4(%arg0: i32) -> (i32, i32) {
    %c0_i32 = arith.constant 0 : i32
    %c0_i32_0 = arith.constant 0 : i32
    %c0_i32_1 = arith.constant 0 : i32
    return %c0_i32, %c0_i32_0 : i32, i32
  }
  func.func @transform_5(%arg0: i32) -> (i32, i32) {
    %c0_i32 = arith.constant 0 : i32
    %c0_i32_0 = arith.constant 0 : i32
    %c0_i32_1 = arith.constant 0 : i32
    return %c0_i32, %c0_i32_0 : i32, i32
  }
  func.func @transform_6(%arg0: i32) -> (i32, i32, i32, i32) {
    %c0_i32 = arith.constant 0 : i32
    %c0_i32_0 = arith.constant 0 : i32
    %c0_i32_1 = arith.constant 0 : i32
    %c0_i32_2 = arith.constant 0 : i32
    return %arg0, %c0_i32, %c0_i32_0, %c0_i32_1 : i32, i32, i32, i32
  }
}

module attributes {stable_mosaic.version = 11 : i64} {
  func.func @mlp_kernel(%arg0: memref<2x1960xf32, #tpu.memory_space<vmem>>, %arg1: memref<1960x512xbf16, #tpu.memory_space<vmem>>, %arg2: memref<1x512xf32, #tpu.memory_space<vmem>>, %arg3: memref<512x256xbf16, #tpu.memory_space<vmem>>, %arg4: memref<1x256xf32, #tpu.memory_space<vmem>>, %arg5: memref<256x4xbf16, #tpu.memory_space<vmem>>, %arg6: memref<1x4xf32, #tpu.memory_space<vmem>>, %arg7: memref<2x4xf32, #tpu.memory_space<vmem>>) attributes {dimension_semantics = [], scalar_prefetch = 0 : i64, scratch_operands = 0 : i64, tpu.core_type = #tpu.core_type<tc>} {
    %c0 = arith.constant 0 : index
    %c0_0 = arith.constant 0 : index
    %0 = vector.load %arg0[%c0, %c0_0] : memref<2x1960xf32, #tpu.memory_space<vmem>>, vector<2x1960xf32>
    %1 = arith.truncf %0 : vector<2x1960xf32> to vector<2x1960xbf16>
    %c0_1 = arith.constant 0 : index
    %c0_2 = arith.constant 0 : index
    %2 = vector.load %arg1[%c0_1, %c0_2] : memref<1960x512xbf16, #tpu.memory_space<vmem>>, vector<1960x512xbf16>
    %cst = arith.constant dense<0.000000e+00> : vector<2x512xf32>
    %3 = tpu.matmul %1, %2, %cst {dimension_numbers = #tpu.dot_dimension_numbers<[1], [0], [0], [1], [0, 0, 1, 1], [], []>} : vector<2x1960xbf16>, vector<1960x512xbf16>, vector<2x512xf32> -> vector<2x512xf32>
    %c0_3 = arith.constant 0 : index
    %c0_4 = arith.constant 0 : index
    %4 = vector.load %arg2[%c0_3, %c0_4] : memref<1x512xf32, #tpu.memory_space<vmem>>, vector<1x512xf32>
    %5 = vector.broadcast %4 : vector<1x512xf32> to vector<2x512xf32>
    %6 = arith.addf %3, %5 : vector<2x512xf32>
    %cst_5 = arith.constant 0.000000e+00 : f32
    %7 = vector.broadcast %cst_5 : f32 to vector<2x512xf32>
    %8 = arith.maximumf %6, %7 : vector<2x512xf32>
    %9 = arith.truncf %8 : vector<2x512xf32> to vector<2x512xbf16>
    %c0_6 = arith.constant 0 : index
    %c0_7 = arith.constant 0 : index
    %10 = vector.load %arg3[%c0_6, %c0_7] : memref<512x256xbf16, #tpu.memory_space<vmem>>, vector<512x256xbf16>
    %cst_8 = arith.constant dense<0.000000e+00> : vector<2x256xf32>
    %11 = tpu.matmul %9, %10, %cst_8 {dimension_numbers = #tpu.dot_dimension_numbers<[1], [0], [0], [1], [0, 0, 1, 1], [], []>} : vector<2x512xbf16>, vector<512x256xbf16>, vector<2x256xf32> -> vector<2x256xf32>
    %c0_9 = arith.constant 0 : index
    %c0_10 = arith.constant 0 : index
    %12 = vector.load %arg4[%c0_9, %c0_10] : memref<1x256xf32, #tpu.memory_space<vmem>>, vector<1x256xf32>
    %13 = vector.broadcast %12 : vector<1x256xf32> to vector<2x256xf32>
    %14 = arith.addf %11, %13 : vector<2x256xf32>
    %cst_11 = arith.constant 0.000000e+00 : f32
    %15 = vector.broadcast %cst_11 : f32 to vector<2x256xf32>
    %16 = arith.maximumf %14, %15 : vector<2x256xf32>
    %17 = arith.truncf %16 : vector<2x256xf32> to vector<2x256xbf16>
    %c0_12 = arith.constant 0 : index
    %c0_13 = arith.constant 0 : index
    %18 = vector.load %arg5[%c0_12, %c0_13] : memref<256x4xbf16, #tpu.memory_space<vmem>>, vector<256x4xbf16>
    %cst_14 = arith.constant dense<0.000000e+00> : vector<2x4xf32>
    %19 = tpu.matmul %17, %18, %cst_14 {dimension_numbers = #tpu.dot_dimension_numbers<[1], [0], [0], [1], [0, 0, 1, 1], [], []>} : vector<2x256xbf16>, vector<256x4xbf16>, vector<2x4xf32> -> vector<2x4xf32>
    %c0_15 = arith.constant 0 : index
    %c0_16 = arith.constant 0 : index
    %20 = vector.load %arg6[%c0_15, %c0_16] : memref<1x4xf32, #tpu.memory_space<vmem>>, vector<1x4xf32>
    %21 = vector.broadcast %20 : vector<1x4xf32> to vector<2x4xf32>
    %22 = arith.addf %19, %21 : vector<2x4xf32>
    %c0_17 = arith.constant 0 : index
    %c0_18 = arith.constant 0 : index
    %23 = vector.load %arg7[%c0_17, %c0_18] : memref<2x4xf32, #tpu.memory_space<vmem>>, vector<2x4xf32>
    tpu.vector_store %arg7[%c0_17, %c0_18], %22 {strides = array<i32>} : memref<2x4xf32, #tpu.memory_space<vmem>>, vector<2x4xf32>,
    return
  }
}

</mosaic_0001>

<llo_original>
// kernel: ovrl_forward.2
$region0: #{ovrl_forward.2}
  #allocation0 [shape = 'u32[]', space=smem, size = 0x4, offset = 0x4, fixed_abs, tag = 'smem constant byte address 0x4 - core index']
  #allocation1 [shape = 'u32[144,128]{1,0:T(1,128)}', space=vmem, size = 0x12000, scoped, tag = 'internal scratch']
  %s0 = inlined_call_operand.vmem [shape: f32[2,197,384], index: 0, kind: input, shape index: {}]
  %s1 = inlined_call_operand.vmem [shape: f32[2,197,384], index: 1, kind: input, shape index: {}]
  %s2 = inlined_call_operand.vmem [shape: bf16[384,45], index: 2, kind: input, shape index: {}]
  %s3 = inlined_call_operand.vmem [shape: f32[196,45], index: 3, kind: input, shape index: {}]
  %s4 = inlined_call_operand.vmem [shape: f32[1,5], index: 4, kind: input, shape index: {}]
  %s5 = inlined_call_operand.vmem [shape: f32[1,5], index: 5, kind: input, shape index: {}]
  %s6 = inlined_call_operand.vmem [shape: f32[2,2,196,5], index: 6, kind: output, shape index: {}]
  %s7 = sld [smem:[#allocation0]]
  $region57: #{ovrl_forward.2} parent=0
    _
  %s9 = ssub.s32 1, %s7
  %s10 = scalar_select 0, %s9, %s7
  loop: start=0, step=1, limit=4
  $region2: #{ovrl_forward.2} parent=0 // loop_pre_header
    _
  $region3: #{ovrl_forward.2} parent=0 // loop_header
    %s12 = sphi 0, %s16
    %p13 = scmp.ge.s32.totalorder %s12, 4
    %s22 = sphi 0, %s24
    %s25 = sphi 0, %s22
    %s26 = sphi 0, %s25
    %s42 = sphi 0, %s26
    %s48 = sphi 0, %s50
    %s51 = sphi 0, %s48
    %s52 = sphi 0, %s51
    %s68 = sphi 0, %s52
    %s72 = sphi 0, %s72
    %s74 = sphi 0, %s72
    %s75 = sphi 0, %s74
    %s89 = sphi 0, %s75
    %s93 = sphi 0, %s93
    %s95 = sphi 0, %s93
    %s96 = sphi 0, %s95
    %s110 = sphi 0, %s96
    %s114 = sphi 0, %s114
    %s116 = sphi 0, %s114
    %s117 = sphi 0, %s116
    %s131 = sphi 0, %s117
    %s135 = sphi 0, %s135
    %s137 = sphi 0, %s135
    %s138 = sphi 0, %s137
    %s152 = sphi 0, %s138
    %s158 = sphi 0, %s160
    %s161 = sphi 0, %s158
    %s162 = sphi 0, %s161
    %s178 = sphi 0, %s162
  $region4: #{ovrl_forward.2} parent=0 // loop_header_branch
    %15 = sbr.rel (%p13) target = $region8
  $region5: #{ovrl_forward.2} parent=0 // loop_body
    %s17 = ssub.s32 %s12, 1
    %s18 = ssub.s32 %s12, 2
    %s19 = sadd.s32 %s12, 1
    %s20 = ssub.s32 %s12, %s19
    %p21 = scmp.eq.s32.totalorder %s20, 0
    %s23 = sadd.s32 %s22, 1
    %s24 = scalar_select %p21, %s22, %s23
    %p27 = pneg %p21
    %p28 = scmp.eq.s32.totalorder %s12, 1
    %p29 = por %p27, %p28
    %p30 = scmp.ne.s32.totalorder %s22, %s25
    %p31 = scmp.eq.s32.totalorder %s12, 0
    %p32 = por %p30, %p31
    %p33 = scmp.ne.s32.totalorder %s22, %s25
    %p34 = scmp.eq.s32.totalorder %s17, 1
    %p35 = por %p33, %p34
    %p36 = scmp.ne.s32.totalorder %s25, %s26
    %p37 = scmp.eq.s32.totalorder %s17, 0
    %p38 = por %p36, %p37
    %p39 = scmp.ne.s32.totalorder %s25, %s26
    %p40 = scmp.eq.s32.totalorder %s18, 1
    %p41 = por %p39, %p40
    %p43 = scmp.ne.s32.totalorder %s26, %s42
    %p44 = scmp.eq.s32.totalorder %s18, 0
    %p45 = por %p43, %p44
    %s46 = ssub.s32 %s12, %s19
    %p47 = scmp.eq.s32.totalorder %s46, 0
    %s49 = sadd.s32 %s48, 1
    %s50 = scalar_select %p47, %s48, %s49
    %p53 = pneg %p47
    %p54 = scmp.eq.s32.totalorder %s12, 1
    %p55 = por %p53, %p54
    %p56 = scmp.ne.s32.totalorder %s48, %s51
    %p57 = scmp.eq.s32.totalorder %s12, 0
    %p58 = por %p56, %p57
    %p59 = scmp.ne.s32.totalorder %s48, %s51
    %p60 = scmp.eq.s32.totalorder %s17, 1
    %p61 = por %p59, %p60
    %p62 = scmp.ne.s32.totalorder %s51, %s52
    %p63 = scmp.eq.s32.totalorder %s17, 0
    %p64 = por %p62, %p63
    %p65 = scmp.ne.s32.totalorder %s51, %s52
    %p66 = scmp.eq.s32.totalorder %s18, 1
    %p67 = por %p65, %p66
    %p69 = scmp.ne.s32.totalorder %s52, %s68
    %p70 = scmp.eq.s32.totalorder %s18, 0
    %p71 = por %p69, %p70
    %s73 = sadd.s32 %s72, 1
    %p76 = scmp.eq.s32.totalorder %s12, 1
    %p77 = scmp.ne.s32.totalorder %s72, %s74
    %p78 = scmp.eq.s32.totalorder %s12, 0
    %p79 = por %p77, %p78
    %p80 = scmp.ne.s32.totalorder %s72, %s74
    %p81 = scmp.eq.s32.totalorder %s17, 1
    %p82 = por %p80, %p81
    %p83 = scmp.ne.s32.totalorder %s74, %s75
    %p84 = scmp.eq.s32.totalorder %s17, 0
    %p85 = por %p83, %p84
    %p86 = scmp.ne.s32.totalorder %s74, %s75
    %p87 = scmp.eq.s32.totalorder %s18, 1
    %p88 = por %p86, %p87
    %p90 = scmp.ne.s32.totalorder %s75, %s89
    %p91 = scmp.eq.s32.totalorder %s18, 0
    %p92 = por %p90, %p91
    %s94 = sadd.s32 %s93, 1
    %p97 = scmp.eq.s32.totalorder %s12, 1
    %p98 = scmp.ne.s32.totalorder %s93, %s95
    %p99 = scmp.eq.s32.totalorder %s12, 0
    %p100 = por %p98, %p99
    %p101 = scmp.ne.s32.totalorder %s93, %s95
    %p102 = scmp.eq.s32.totalorder %s17, 1
    %p103 = por %p101, %p102
    %p104 = scmp.ne.s32.totalorder %s95, %s96
    %p105 = scmp.eq.s32.totalorder %s17, 0
    %p106 = por %p104, %p105
    %p107 = scmp.ne.s32.totalorder %s95, %s96
    %p108 = scmp.eq.s32.totalorder %s18, 1
    %p109 = por %p107, %p108
    %p111 = scmp.ne.s32.totalorder %s96, %s110
    %p112 = scmp.eq.s32.totalorder %s18, 0
    %p113 = por %p111, %p112
    %s115 = sadd.s32 %s114, 1
    %p118 = scmp.eq.s32.totalorder %s12, 1
    %p119 = scmp.ne.s32.totalorder %s114, %s116
    %p120 = scmp.eq.s32.totalorder %s12, 0
    %p121 = por %p119, %p120
    %p122 = scmp.ne.s32.totalorder %s114, %s116
    %p123 = scmp.eq.s32.totalorder %s17, 1
    %p124 = por %p122, %p123
    %p125 = scmp.ne.s32.totalorder %s116, %s117
    %p126 = scmp.eq.s32.totalorder %s17, 0
    %p127 = por %p125, %p126
    %p128 = scmp.ne.s32.totalorder %s116, %s117
    %p129 = scmp.eq.s32.totalorder %s18, 1
    %p130 = por %p128, %p129
    %p132 = scmp.ne.s32.totalorder %s117, %s131
    %p133 = scmp.eq.s32.totalorder %s18, 0
    %p134 = por %p132, %p133
    %s136 = sadd.s32 %s135, 1
    %p139 = scmp.eq.s32.totalorder %s12, 1
    %p140 = scmp.ne.s32.totalorder %s135, %s137
    %p141 = scmp.eq.s32.totalorder %s12, 0
    %p142 = por %p140, %p141
    %p143 = scmp.ne.s32.totalorder %s135, %s137
    %p144 = scmp.eq.s32.totalorder %s17, 1
    %p145 = por %p143, %p144
    %p146 = scmp.ne.s32.totalorder %s137, %s138
    %p147 = scmp.eq.s32.totalorder %s17, 0
    %p148 = por %p146, %p147
    %p149 = scmp.ne.s32.totalorder %s137, %s138
    %p150 = scmp.eq.s32.totalorder %s18, 1
    %p151 = por %p149, %p150
    %p153 = scmp.ne.s32.totalorder %s138, %s152
    %p154 = scmp.eq.s32.totalorder %s18, 0
    %p155 = por %p153, %p154
    %s156 = ssub.s32 %s12, %s19
    %p157 = scmp.eq.s32.totalorder %s156, 0
    %s159 = sadd.s32 %s158, 1
    %s160 = scalar_select %p157, %s158, %s159
    %p163 = pneg %p157
    %p164 = scmp.eq.s32.totalorder %s12, 1
    %p165 = por %p163, %p164
    %p166 = scmp.ne.s32.totalorder %s158, %s161
    %p167 = scmp.eq.s32.totalorder %s12, 0
    %p168 = por %p166, %p167
    %p169 = scmp.ne.s32.totalorder %s158, %s161
    %p170 = scmp.eq.s32.totalorder %s17, 1
    %p171 = por %p169, %p170
    %p172 = scmp.ne.s32.totalorder %s161, %s162
    %p173 = scmp.eq.s32.totalorder %s17, 0
    %p174 = por %p172, %p173
    %p175 = scmp.ne.s32.totalorder %s161, %s162
    %p176 = scmp.eq.s32.totalorder %s18, 1
    %p177 = por %p175, %p176
    %p179 = scmp.ne.s32.totalorder %s162, %s178
    %p180 = scmp.eq.s32.totalorder %s18, 0
    %p181 = por %p179, %p180
    %p182 = scmp.le.s32.totalorder 1, %s12
    %p183 = scmp.lt.s32.totalorder %s12, 3
    %p184 = pnand %p182, %p183
    %p185 = pneg %p184
    // Predicated region
    $region9: #{ovrl_forward.2} parent=5 // pred_check
      _
    $region10: #{ovrl_forward.2} parent=5 // pred_check_branch
      %187 = sbr.rel (%p184) target = $region12
    $region11: #{ovrl_forward.2} parent=5 // pred_region
      %s188 = ssub.s32 %s12, 1
      // Predicated region
      $region13: #{ovrl_forward.2} parent=11 // pred_check
        %p189 = pneg %p85
      $region14: #{ovrl_forward.2} parent=11 // pred_check_branch
        %191 = sbr.rel (%p189) target = $region16
      $region15: #{ovrl_forward.2} parent=11 // pred_region
        _
      $region16: #{ovrl_forward.2} parent=11 // pred_fallthru
        _
      // Predicated region
      $region17: #{ovrl_forward.2} parent=11 // pred_check
        %p192 = pneg %p106
      $region18: #{ovrl_forward.2} parent=11 // pred_check_branch
        %194 = sbr.rel (%p192) target = $region20
      $region19: #{ovrl_forward.2} parent=11 // pred_region
        _
      $region20: #{ovrl_forward.2} parent=11 // pred_fallthru
        _
      // Predicated region
      $region21: #{ovrl_forward.2} parent=11 // pred_check
        %p195 = pneg %p127
      $region22: #{ovrl_forward.2} parent=11 // pred_check_branch
        %197 = sbr.rel (%p195) target = $region24
      $region23: #{ovrl_forward.2} parent=11 // pred_region
        _
      $region24: #{ovrl_forward.2} parent=11 // pred_fallthru
        _
      // Predicated region
      $region25: #{ovrl_forward.2} parent=11 // pred_check
        %p198 = pneg %p148
      $region26: #{ovrl_forward.2} parent=11 // pred_check_branch
        %200 = sbr.rel (%p198) target = $region28
      $region27: #{ovrl_forward.2} parent=11 // pred_region
        _
      $region28: #{ovrl_forward.2} parent=11 // pred_fallthru
        _
    $region12: #{ovrl_forward.2} parent=5 // pred_fallthru
      _
    %p201 = scmp.lt.s32.totalorder %s12, 2
    // Predicated region
    $region29: #{ovrl_forward.2} parent=5 // pred_check
      %p202 = pneg %p201
    $region30: #{ovrl_forward.2} parent=5 // pred_check_branch
      %204 = sbr.rel (%p202) target = $region32
    $region31: #{ovrl_forward.2} parent=5 // pred_region
      // Predicated region
      $region33: #{ovrl_forward.2} parent=31 // pred_check
        %p205 = pneg %p32
      $region34: #{ovrl_forward.2} parent=31 // pred_check_branch
        %207 = sbr.rel (%p205) target = $region36
      $region35: #{ovrl_forward.2} parent=31 // pred_region
        %p208 = scmp.lt.s32.totalorder %s12, 1
        %s209 = scalar_select %p208, %s12, 1
        %s210 = smul.addr %s209, 75
        %s211 = smul.addr %s210, 8
        %s212 = scalar_lea.vmem %s0, %s211
      $region36: #{ovrl_forward.2} parent=31 // pred_fallthru
        _
      // Predicated region
      $region37: #{ovrl_forward.2} parent=31 // pred_check
        %p213 = pneg %p58
      $region38: #{ovrl_forward.2} parent=31 // pred_check_branch
        %215 = sbr.rel (%p213) target = $region40
      $region39: #{ovrl_forward.2} parent=31 // pred_region
        %p216 = scmp.lt.s32.totalorder %s12, 1
        %s217 = scalar_select %p216, %s12, 1
        %s218 = smul.addr %s217, 75
        %s219 = smul.addr %s218, 8
        %s220 = scalar_lea.vmem %s1, %s219
      $region40: #{ovrl_forward.2} parent=31 // pred_fallthru
        _
    $region32: #{ovrl_forward.2} parent=5 // pred_fallthru
      _
    %p221 = scmp.le.s32.totalorder 1, %s12
    %p222 = scmp.lt.s32.totalorder %s12, 3
    %p223 = pnand %p221, %p222
    %p224 = pneg %p223
    // Predicated region
    $region41: #{ovrl_forward.2} parent=5 // pred_check
      _
    $region42: #{ovrl_forward.2} parent=5 // pred_check_branch
      %226 = sbr.rel (%p223) target = $region44
    $region43: #{ovrl_forward.2} parent=5 // pred_region
      %s227 = ssub.s32 %s12, 1
      %p228 = scmp.lt.s32.totalorder %s17, 1
      %s229 = scalar_select %p228, %s17, 1
      %s230 = smul.addr %s229, 75
      %s231 = smul.addr %s230, 8
      %s232 = scalar_lea.vmem %s0, %s231
      %p233 = pneg %p38
      %p234 = pneg %p35
      %p235 = scmp.lt.s32.totalorder %s17, 1
      %s236 = scalar_select %p235, %s17, 1
      %s237 = smul.addr %s236, 75
      %s238 = smul.addr %s237, 8
      %s239 = scalar_lea.vmem %s1, %s238
      %p240 = pneg %p64
      %p241 = pneg %p61
      %p242 = pneg %p85
      %p243 = pneg %p82
      %p244 = pneg %p106
      %p245 = pneg %p103
      %p246 = pneg %p127
      %p247 = pneg %p124
      %p248 = pneg %p148
      %p249 = pneg %p145
      %p250 = pneg %p174
      %p251 = pneg %p171
      %p252 = scmp.lt.s32.totalorder %s17, 1
      %s253 = scalar_select %p252, %s17, 1
      %s254 = smul.addr %s253, 50
      %s255 = smul.addr %s254, 8
      %s256 = scalar_lea.vmem %s6, %s255
      %p257 = scmp.lt.s32.totalorder %s17, 1
      %s258 = scalar_select %p257, %s17, 1
      %s259 = smul.addr %s258, 75
      %s260 = smul.addr %s259, 8
      %s261 = scalar_lea.vmem %s0, %s260
      %p262 = scmp.lt.s32.totalorder %s17, 1
      %s263 = scalar_select %p262, %s17, 1
      %s264 = smul.addr %s263, 75
      %s265 = smul.addr %s264, 8
      %s266 = scalar_lea.vmem %s1, %s265
      %p267 = scmp.lt.s32.totalorder %s17, 1
      %s268 = scalar_select %p267, %s17, 1
      %s269 = smul.addr %s268, 50
      %s270 = smul.addr %s269, 8
      %s271 = scalar_lea.vmem %s6, %s270
      %v273 = vld [vmem:[%s2] sm:$0xf]
      %v274 = vld [vmem:[%s2 + $0x4] sm:$0xf]
      %v275 = vld [vmem:[%s2 + $0x8] sm:$0xf]
      %v276 = vld [vmem:[%s2 + $0xc] sm:$0xf]
      %v277 = vld [vmem:[%s2 + $0x10] sm:$0xf]
      %v278 = vld [vmem:[%s2 + $0x14] sm:$0xf]
      %v279 = vld [vmem:[%s2 + $0x18] sm:$0xf]
      %v280 = vld [vmem:[%s2 + $0x1c] sm:$0xf]
      %v281 = vld [vmem:[%s2 + $0x20] sm:$0xf]
      %v282 = vld [vmem:[%s2 + $0x24] sm:$0xf]
      %v283 = vld [vmem:[%s2 + $0x28] sm:$0xf]
      %v284 = vld [vmem:[%s2 + $0x2c] sm:$0xf]
      %v285 = vld [vmem:[%s2 + $0x30] sm:$0xf]
      %v286 = vld [vmem:[%s2 + $0x34] sm:$0xf]
      %v287 = vld [vmem:[%s2 + $0x38] sm:$0xf]
      %v288 = vld [vmem:[%s2 + $0x3c] sm:$0xf]
      %v289 = vld [vmem:[%s2 + $0x40] sm:$0xf]
      %v290 = vld [vmem:[%s2 + $0x44] sm:$0xf]
      %v291 = vld [vmem:[%s2 + $0x48] sm:$0xf]
      %v292 = vld [vmem:[%s2 + $0x4c] sm:$0xf]
      %v293 = vld [vmem:[%s2 + $0x50] sm:$0xf]
      %v294 = vld [vmem:[%s2 + $0x54] sm:$0xf]
      %v295 = vld [vmem:[%s2 + $0x58] sm:$0xf]
      %v296 = vld [vmem:[%s2 + $0x5c] sm:$0xf]
      %v297 = vld [vmem:[%s2 + $0x60] sm:$0xf]
      %v298 = vld [vmem:[%s2 + $0x64] sm:$0xf]
      %v299 = vld [vmem:[%s2 + $0x68] sm:$0xf]
      %v300 = vld [vmem:[%s2 + $0x6c] sm:$0xf]
      %v301 = vld [vmem:[%s2 + $0x70] sm:$0xf]
      %v302 = vld [vmem:[%s2 + $0x74] sm:$0xf]
      %v303 = vld [vmem:[%s2 + $0x78] sm:$0xf]
      %v304 = vld [vmem:[%s2 + $0x7c] sm:$0xf]
      %v305 = vld [vmem:[%s2 + $0x80] sm:$0xf]
      %v306 = vld [vmem:[%s2 + $0x84] sm:$0xf]
      %v307 = vld [vmem:[%s2 + $0x88] sm:$0xf]
      %v308 = vld [vmem:[%s2 + $0x8c] sm:$0xf]
      %v309 = vld [vmem:[%s2 + $0x90] sm:$0xf]
      %v310 = vld [vmem:[%s2 + $0x94] sm:$0xf]
      %v311 = vld [vmem:[%s2 + $0x98] sm:$0xf]
      %v312 = vld [vmem:[%s2 + $0x9c] sm:$0xf]
      %v313 = vld [vmem:[%s2 + $0xa0] sm:$0xf]
      %v314 = vld [vmem:[%s2 + $0xa4] sm:$0xf]
      %v315 = vld [vmem:[%s2 + $0xa8] sm:$0xf]
      %v316 = vld [vmem:[%s2 + $0xac] sm:$0xf]
      %v317 = vld [vmem:[%s2 + $0xb0] sm:$0xf]
      %v318 = vld [vmem:[%s2 + $0xb4] sm:$0xf]
      %v319 = vld [vmem:[%s2 + $0xb8] sm:$0xf]
      %v320 = vld [vmem:[%s2 + $0xbc] sm:$0xf]
      %v321 = vld [vmem:[%s3] sm:$0xff]
      %v322 = vld [vmem:[%s3 + $0x8] sm:$0xff]
      %v323 = vld [vmem:[%s3 + $0x10] sm:$0xff]
      %v324 = vld [vmem:[%s3 + $0x18] sm:$0xff]
      %v325 = vld [vmem:[%s3 + $0x20] sm:$0xff]
      %v326 = vld [vmem:[%s3 + $0x28] sm:$0xff]
      %v327 = vld [vmem:[%s3 + $0x30] sm:$0xff]
      %v328 = vld [vmem:[%s3 + $0x38] sm:$0xff]
      %v329 = vld [vmem:[%s3 + $0x40] sm:$0xff]
      %v330 = vld [vmem:[%s3 + $0x48] sm:$0xff]
      %v331 = vld [vmem:[%s3 + $0x50] sm:$0xff]
      %v332 = vld [vmem:[%s3 + $0x58] sm:$0xff]
      %v333 = vld [vmem:[%s3 + $0x60] sm:$0xff]
      %v334 = vld [vmem:[%s3 + $0x68] sm:$0xff]
      %v335 = vld [vmem:[%s3 + $0x70] sm:$0xff]
      %v336 = vld [vmem:[%s3 + $0x78] sm:$0xff]
      %v337 = vld [vmem:[%s3 + $0x80] sm:$0xff]
      %v338 = vld [vmem:[%s3 + $0x88] sm:$0xff]
      %v339 = vld [vmem:[%s3 + $0x90] sm:$0xff]
      %v340 = vld [vmem:[%s3 + $0x98] sm:$0xff]
      %v341 = vld [vmem:[%s3 + $0xa0] sm:$0xff]
      %v342 = vld [vmem:[%s3 + $0xa8] sm:$0xff]
      %v343 = vld [vmem:[%s3 + $0xb0] sm:$0xff]
      %v344 = vld [vmem:[%s3 + $0xb8] sm:$0xff]
      %v345 = vld [vmem:[%s3 + $0xc0] sm:$0xf]
      %v346 = vld [vmem:[%s4] sm:$0x1]
      %v347 = vld [vmem:[%s5] sm:$0x1]
      %v348 = vld [vmem:[%s261] sm:$0xff]
      %v349 = vld [vmem:[%s261 + $0x8] sm:$0xff]
      %v350 = vld [vmem:[%s261 + $0x10] sm:$0xff]
      %v351 = vld [vmem:[%s261 + $0x18] sm:$0xff]
      %v352 = vld [vmem:[%s261 + $0x20] sm:$0xff]
      %v353 = vld [vmem:[%s261 + $0x28] sm:$0xff]
      %v354 = vld [vmem:[%s261 + $0x30] sm:$0xff]
      %v355 = vld [vmem:[%s261 + $0x38] sm:$0xff]
      %v356 = vld [vmem:[%s261 + $0x40] sm:$0xff]
      %v357 = vld [vmem:[%s261 + $0x48] sm:$0xff]
      %v358 = vld [vmem:[%s261 + $0x50] sm:$0xff]
      %v359 = vld [vmem:[%s261 + $0x58] sm:$0xff]
      %v360 = vld [vmem:[%s261 + $0x60] sm:$0xff]
      %v361 = vld [vmem:[%s261 + $0x68] sm:$0xff]
      %v362 = vld [vmem:[%s261 + $0x70] sm:$0xff]
      %v363 = vld [vmem:[%s261 + $0x78] sm:$0xff]
      %v364 = vld [vmem:[%s261 + $0x80] sm:$0xff]
      %v365 = vld [vmem:[%s261 + $0x88] sm:$0xff]
      %v366 = vld [vmem:[%s261 + $0x90] sm:$0xff]
      %v367 = vld [vmem:[%s261 + $0x98] sm:$0xff]
      %v368 = vld [vmem:[%s261 + $0xa0] sm:$0xff]
      %v369 = vld [vmem:[%s261 + $0xa8] sm:$0xff]
      %v370 = vld [vmem:[%s261 + $0xb0] sm:$0xff]
      %v371 = vld [vmem:[%s261 + $0xb8] sm:$0xff]
      %v372 = vld [vmem:[%s261 + $0xc0] sm:$0xff]
      %v373 = vld [vmem:[%s261 + $0xc8] sm:$0xff]
      %v374 = vld [vmem:[%s261 + $0xd0] sm:$0xff]
      %v375 = vld [vmem:[%s261 + $0xd8] sm:$0xff]
      %v376 = vld [vmem:[%s261 + $0xe0] sm:$0xff]
      %v377 = vld [vmem:[%s261 + $0xe8] sm:$0xff]
      %v378 = vld [vmem:[%s261 + $0xf0] sm:$0xff]
      %v379 = vld [vmem:[%s261 + $0xf8] sm:$0xff]
      %v380 = vld [vmem:[%s261 + $0x100] sm:$0xff]
      %v381 = vld [vmem:[%s261 + $0x108] sm:$0xff]
      %v382 = vld [vmem:[%s261 + $0x110] sm:$0xff]
      %v383 = vld [vmem:[%s261 + $0x118] sm:$0xff]
      %v384 = vld [vmem:[%s261 + $0x120] sm:$0xff]
      %v385 = vld [vmem:[%s261 + $0x128] sm:$0xff]
      %v386 = vld [vmem:[%s261 + $0x130] sm:$0xff]
      %v387 = vld [vmem:[%s261 + $0x138] sm:$0xff]
      %v388 = vld [vmem:[%s261 + $0x140] sm:$0xff]
      %v389 = vld [vmem:[%s261 + $0x148] sm:$0xff]
      %v390 = vld [vmem:[%s261 + $0x150] sm:$0xff]
      %v391 = vld [vmem:[%s261 + $0x158] sm:$0xff]
      %v392 = vld [vmem:[%s261 + $0x160] sm:$0xff]
      %v393 = vld [vmem:[%s261 + $0x168] sm:$0xff]
      %v394 = vld [vmem:[%s261 + $0x170] sm:$0xff]
      %v395 = vld [vmem:[%s261 + $0x178] sm:$0xff]
      %v396 = vld [vmem:[%s261 + $0x180] sm:$0xff]
      %v397 = vld [vmem:[%s261 + $0x188] sm:$0xff]
      %v398 = vld [vmem:[%s261 + $0x190] sm:$0xff]
      %v399 = vld [vmem:[%s261 + $0x198] sm:$0xff]
      %v400 = vld [vmem:[%s261 + $0x1a0] sm:$0xff]
      %v401 = vld [vmem:[%s261 + $0x1a8] sm:$0xff]
      %v402 = vld [vmem:[%s261 + $0x1b0] sm:$0xff]
      %v403 = vld [vmem:[%s261 + $0x1b8] sm:$0xff]
      %v404 = vld [vmem:[%s261 + $0x1c0] sm:$0xff]
      %v405 = vld [vmem:[%s261 + $0x1c8] sm:$0xff]
      %v406 = vld [vmem:[%s261 + $0x1d0] sm:$0xff]
      %v407 = vld [vmem:[%s261 + $0x1d8] sm:$0xff]
      %v408 = vld [vmem:[%s261 + $0x1e0] sm:$0xff]
      %v409 = vld [vmem:[%s261 + $0x1e8] sm:$0xff]
      %v410 = vld [vmem:[%s261 + $0x1f0] sm:$0xff]
      %v411 = vld [vmem:[%s261 + $0x1f8] sm:$0xff]
      %v412 = vld [vmem:[%s261 + $0x200] sm:$0xff]
      %v413 = vld [vmem:[%s261 + $0x208] sm:$0xff]
      %v414 = vld [vmem:[%s261 + $0x210] sm:$0xff]
      %v415 = vld [vmem:[%s261 + $0x218] sm:$0xff]
      %v416 = vld [vmem:[%s261 + $0x220] sm:$0xff]
      %v417 = vld [vmem:[%s261 + $0x228] sm:$0xff]
      %v418 = vld [vmem:[%s261 + $0x230] sm:$0xff]
      %v419 = vld [vmem:[%s261 + $0x238] sm:$0xff]
      %v420 = vld [vmem:[%s261 + $0x240] sm:$0x1f]
      %v421 = vld [vmem:[%s261 + $0x248] sm:$0x1f]
      %v422 = vld [vmem:[%s261 + $0x250] sm:$0x1f]
      %v423 = vpack.c.bf16 %v351, %v348
      %v424 = vpack.c.bf16 %v352, %v349
      %v425 = vpack.c.bf16 %v353, %v350
      %v426 = vpack.c.bf16 %v357, %v354
      %v427 = vpack.c.bf16 %v358, %v355
      %v428 = vpack.c.bf16 %v359, %v356
      %v429 = vpack.c.bf16 %v363, %v360
      %v430 = vpack.c.bf16 %v364, %v361
      %v431 = vpack.c.bf16 %v365, %v362
      %v432 = vpack.c.bf16 %v369, %v366
      %v433 = vpack.c.bf16 %v370, %v367
      %v434 = vpack.c.bf16 %v371, %v368
      %v435 = vpack.c.bf16 %v375, %v372
      %v436 = vpack.c.bf16 %v376, %v373
      %v437 = vpack.c.bf16 %v377, %v374
      %v438 = vpack.c.bf16 %v381, %v378
      %v439 = vpack.c.bf16 %v382, %v379
      %v440 = vpack.c.bf16 %v383, %v380
      %v441 = vpack.c.bf16 %v387, %v384
      %v442 = vpack.c.bf16 %v388, %v385
      %v443 = vpack.c.bf16 %v389, %v386
      %v444 = vpack.c.bf16 %v393, %v390
      %v445 = vpack.c.bf16 %v394, %v391
      %v446 = vpack.c.bf16 %v395, %v392
      %v447 = vpack.c.bf16 %v399, %v396
      %v448 = vpack.c.bf16 %v400, %v397
      %v449 = vpack.c.bf16 %v401, %v398
      %v450 = vpack.c.bf16 %v405, %v402
      %v451 = vpack.c.bf16 %v406, %v403
      %v452 = vpack.c.bf16 %v407, %v404
      %v453 = vpack.c.bf16 %v411, %v408
      %v454 = vpack.c.bf16 %v412, %v409
      %v455 = vpack.c.bf16 %v413, %v410
      %v456 = vpack.c.bf16 %v417, %v414
      %v457 = vpack.c.bf16 %v418, %v415
      %v458 = vpack.c.bf16 %v419, %v416
      %v459 = vpack.c.bf16 %v420, %v420
      %v460 = vpack.c.bf16 %v421, %v421
      %v461 = vpack.c.bf16 %v422, %v422
      %v510 = vunpack.c.l.b16 %v273
      %v511 = vunpack.c.l.b16 %v274
      %v512 = vunpack.c.l.b16 %v275
      %v513 = vunpack.c.l.b16 %v276
      %v514 = vunpack.c.l.b16 %v277
      %v515 = vunpack.c.l.b16 %v278
      %v516 = vunpack.c.l.b16 %v279
      %v517 = vunpack.c.l.b16 %v280
      %v518 = vunpack.c.l.b16 %v281
      %v519 = vunpack.c.l.b16 %v282
      %v520 = vunpack.c.l.b16 %v283
      %v521 = vunpack.c.l.b16 %v284
      %v522 = vunpack.c.l.b16 %v285
      %v523 = vunpack.c.l.b16 %v286
      %v524 = vunpack.c.l.b16 %v287
      %v525 = vunpack.c.l.b16 %v288
      %v526 = vunpack.c.l.b16 %v289
      %v527 = vunpack.c.l.b16 %v290
      %v528 = vunpack.c.l.b16 %v291
      %v529 = vunpack.c.l.b16 %v292
      %v530 = vunpack.c.l.b16 %v293
      %v531 = vunpack.c.l.b16 %v294
      %v532 = vunpack.c.l.b16 %v295
      %v533 = vunpack.c.l.b16 %v296
      %v534 = vunpack.c.l.b16 %v297
      %v535 = vunpack.c.l.b16 %v298
      %v536 = vunpack.c.l.b16 %v299
      %v537 = vunpack.c.l.b16 %v300
      %v538 = vunpack.c.l.b16 %v301
      %v539 = vunpack.c.l.b16 %v302
      %v540 = vunpack.c.l.b16 %v303
      %v541 = vunpack.c.l.b16 %v304
      %v542 = vunpack.c.l.b16 %v305
      %v543 = vunpack.c.l.b16 %v306
      %v544 = vunpack.c.l.b16 %v307
      %v545 = vunpack.c.l.b16 %v308
      %v546 = vunpack.c.l.b16 %v309
      %v547 = vunpack.c.l.b16 %v310
      %v548 = vunpack.c.l.b16 %v311
      %v549 = vunpack.c.l.b16 %v312
      %v550 = vunpack.c.l.b16 %v313
      %v551 = vunpack.c.l.b16 %v314
      %v552 = vunpack.c.l.b16 %v315
      %v553 = vunpack.c.l.b16 %v316
      %v554 = vunpack.c.l.b16 %v317
      %v555 = vunpack.c.l.b16 %v318
      %v556 = vunpack.c.l.b16 %v319
      %v557 = vunpack.c.l.b16 %v320
      %v558 = vpack.c.b16 %v511, %v510
      %v559 = vpack.c.b16 %v513, %v512
      %v560 = vpack.c.b16 %v515, %v514
      %v561 = vpack.c.b16 %v517, %v516
      %v562 = vpack.c.b16 %v519, %v518
      %v563 = vpack.c.b16 %v521, %v520
      %v564 = vpack.c.b16 %v523, %v522
      %v565 = vpack.c.b16 %v525, %v524
      %v566 = vpack.c.b16 %v527, %v526
      %v567 = vpack.c.b16 %v529, %v528
      %v568 = vpack.c.b16 %v531, %v530
      %v569 = vpack.c.b16 %v533, %v532
      %v570 = vpack.c.b16 %v535, %v534
      %v571 = vpack.c.b16 %v537, %v536
      %v572 = vpack.c.b16 %v539, %v538
      %v573 = vpack.c.b16 %v541, %v540
      %v574 = vpack.c.b16 %v543, %v542
      %v575 = vpack.c.b16 %v545, %v544
      %v576 = vpack.c.b16 %v547, %v546
      %v577 = vpack.c.b16 %v549, %v548
      %v578 = vpack.c.b16 %v551, %v550
      %v579 = vpack.c.b16 %v553, %v552
      %v580 = vpack.c.b16 %v555, %v554
      %v581 = vpack.c.b16 %v557, %v556
      %606 = vmatprep.subr.bf16.mxu0 0
      %607 = vmatpush1.bf16.msra.mxu0 %v558
      %608 = vmatprep.subr.bf16.mxu0 0
      %609 = vmatpush1.bf16.msra.mxu0 %v559
      %610 = vmatprep.subr.bf16.mxu0 0
      %611 = vmatpush1.bf16.msra.mxu0 %v560
      %612 = vmatprep.subr.bf16.mxu0 0
      %613 = vmatpush1.bf16.msra.mxu0 %v561
      %614 = vmatprep.subr.bf16.mxu0 0
      %615 = vmatpush1.bf16.msra.mxu0 %v562
      %616 = vmatprep.subr.bf16.mxu0 0
      %617 = vmatpush1.bf16.msra.mxu0 %v563
      %618 = vmatprep.subr.bf16.mxu0 0
      %619 = vmatpush1.bf16.msra.mxu0 %v564
      %620 = vmatprep.subr.bf16.mxu0 0
      %621 = vmatpush1.bf16.msra.mxu0 %v565
      %622 = vmatprep.subr.bf16.mxu0 0
      %623 = vmatpush1.bf16.msra.mxu0 %v566
      %624 = vmatprep.subr.bf16.mxu0 0
      %625 = vmatpush1.bf16.msra.mxu0 %v567
      %626 = vmatprep.subr.bf16.mxu0 0
      %627 = vmatpush1.bf16.msra.mxu0 %v568
      %628 = vmatprep.subr.bf16.mxu0 0
      %629 = vmatpush1.bf16.msra.mxu0 %v569
      %630 = vmatprep.subr.bf16.mxu0 0
      %631 = vmatpush1.bf16.msra.mxu0 %v570
      %632 = vmatprep.subr.bf16.mxu0 0
      %633 = vmatpush1.bf16.msra.mxu0 %v571
      %634 = vmatprep.subr.bf16.mxu0 0
      %635 = vmatpush1.bf16.msra.mxu0 %v572
      %636 = vmatprep.subr.bf16.mxu0 0
      %637 = vmatpush1.bf16.msra.mxu0 %v573
      %638 = vmatprep.mubr.bf16.mxu0 %v424
      %639 = vmatmul.mubr.bf16.gmra.mrb[0].mxu0 %v423
      %v640 = vpop.f32.mrb[0].mxu0
      %v641 = vadd.f32 0.0, %v640
      %v642 = vpop.f32.mrb[0].mxu0
      %v643 = vpop.f32.mrb[0].mxu0
      %v644 = vadd.f32 0.0, %v643
      %v645 = vpop.f32.mrb[0].mxu0
      %646 = vmatprep.mubr.bf16.mxu0 %v427
      %647 = vmatmul.mubr.bf16.gmra.mrb[0].mxu0 %v426
      %v648 = vpop.f32.mrb[0].mxu0
      %v649 = vadd.f32 0.0, %v648
      %v650 = vpop.f32.mrb[0].mxu0
      %v651 = vpop.f32.mrb[0].mxu0
      %v652 = vadd.f32 0.0, %v651
      %v653 = vpop.f32.mrb[0].mxu0
      %654 = vmatprep.mubr.bf16.mxu0 %v430
      %655 = vmatmul.mubr.bf16.gmra.mrb[0].mxu0 %v429
      %v656 = vpop.f32.mrb[0].mxu0
      %v657 = vadd.f32 0.0, %v656
      %v658 = vpop.f32.mrb[0].mxu0
      %v659 = vpop.f32.mrb[0].mxu0
      %v660 = vadd.f32 0.0, %v659
      %v661 = vpop.f32.mrb[0].mxu0
      %662 = vmatprep.mubr.bf16.mxu0 %v433
      %663 = vmatmul.mubr.bf16.gmra.mrb[0].mxu0 %v432
      %v664 = vpop.f32.mrb[0].mxu0
      %v665 = vadd.f32 0.0, %v664
      %v666 = vpop.f32.mrb[0].mxu0
      %v667 = vpop.f32.mrb[0].mxu0
      %v668 = vadd.f32 0.0, %v667
      %v669 = vpop.f32.mrb[0].mxu0
      %670 = vmatprep.mubr.bf16.mxu0 %v436
      %671 = vmatmul.mubr.bf16.gmra.mrb[0].mxu0 %v435
      %v672 = vpop.f32.mrb[0].mxu0
      %v673 = vadd.f32 0.0, %v672
      %v674 = vpop.f32.mrb[0].mxu0
      %v675 = vpop.f32.mrb[0].mxu0
      %v676 = vadd.f32 0.0, %v675
      %v677 = vpop.f32.mrb[0].mxu0
      %678 = vmatprep.mubr.bf16.mxu0 %v439
      %679 = vmatmul.mubr.bf16.gmra.mrb[0].mxu0 %v438
      %v680 = vpop.f32.mrb[0].mxu0
      %v681 = vadd.f32 0.0, %v680
      %v682 = vpop.f32.mrb[0].mxu0
      %v683 = vpop.f32.mrb[0].mxu0
      %v684 = vadd.f32 0.0, %v683
      %v685 = vpop.f32.mrb[0].mxu0
      %686 = vmatprep.mubr.bf16.mxu0 %v442
      %687 = vmatmul.mubr.bf16.gmra.mrb[0].mxu0 %v441
      %v688 = vpop.f32.mrb[0].mxu0
      %v689 = vadd.f32 0.0, %v688
      %v690 = vpop.f32.mrb[0].mxu0
      %v691 = vpop.f32.mrb[0].mxu0
      %v692 = vadd.f32 0.0, %v691
      %v693 = vpop.f32.mrb[0].mxu0
      %694 = vmatprep.mubr.bf16.mxu0 %v445
      %695 = vmatmul.mubr.bf16.gmra.mrb[0].mxu0 %v444
      %v696 = vpop.f32.mrb[0].mxu0
      %v697 = vadd.f32 0.0, %v696
      %v698 = vpop.f32.mrb[0].mxu0
      %v699 = vpop.f32.mrb[0].mxu0
      %v700 = vadd.f32 0.0, %v699
      %v701 = vpop.f32.mrb[0].mxu0
      %702 = vmatprep.mubr.bf16.mxu0 %v448
      %703 = vmatmul.mubr.bf16.gmra.mrb[0].mxu0 %v447
      %v704 = vpop.f32.mrb[0].mxu0
      %v705 = vadd.f32 0.0, %v704
      %v706 = vpop.f32.mrb[0].mxu0
      %v707 = vpop.f32.mrb[0].mxu0
      %v708 = vadd.f32 0.0, %v707
      %v709 = vpop.f32.mrb[0].mxu0
      %710 = vmatprep.mubr.bf16.mxu0 %v451
      %711 = vmatmul.mubr.bf16.gmra.mrb[0].mxu0 %v450
      %v712 = vpop.f32.mrb[0].mxu0
      %v713 = vadd.f32 0.0, %v712
      %v714 = vpop.f32.mrb[0].mxu0
      %v715 = vpop.f32.mrb[0].mxu0
      %v716 = vadd.f32 0.0, %v715
      %v717 = vpop.f32.mrb[0].mxu0
      %718 = vmatprep.mubr.bf16.mxu0 %v454
      %719 = vmatmul.mubr.bf16.gmra.mrb[0].mxu0 %v453
      %v720 = vpop.f32.mrb[0].mxu0
      %v721 = vadd.f32 0.0, %v720
      %v722 = vpop.f32.mrb[0].mxu0
      %v723 = vpop.f32.mrb[0].mxu0
      %v724 = vadd.f32 0.0, %v723
      %v725 = vpop.f32.mrb[0].mxu0
      %726 = vmatprep.mubr.bf16.mxu0 %v457
      %727 = vmatmul.mubr.bf16.gmra.mrb[0].mxu0 %v456
      %v728 = vpop.f32.mrb[0].mxu0
      %v729 = vadd.f32 0.0, %v728
      %v730 = vpop.f32.mrb[0].mxu0
      %v731 = vpop.f32.mrb[0].mxu0
      %v732 = vadd.f32 0.0, %v731
      %v733 = vpop.f32.mrb[0].mxu0
      %734 = vmatprep.mubr.bf16.mxu0 %v460
      %735 = vmatmul.mubr.bf16.gmra.mrb[0].mxu0 %v459
      %v736 = vpop.f32.mrb[0].mxu0
      %v737 = vadd.f32 0.0, %v736
      %v738 = vpop.f32.mrb[0].mxu0
      %v739 = vpop.f32.mrb[0].mxu0
      %v740 = vpop.f32.mrb[0].mxu0
      %741 = vdwg.mxu0
      %742 = vmatprep.subr.bf16.mxu0 0
      %743 = vmatpush1.bf16.msra.mxu0 %v574
      %744 = vmatprep.subr.bf16.mxu0 0
      %745 = vmatpush1.bf16.msra.mxu0 %v575
      %746 = vmatprep.subr.bf16.mxu0 0
      %747 = vmatpush1.bf16.msra.mxu0 %v576
      %748 = vmatprep.subr.bf16.mxu0 0
      %749 = vmatpush1.bf16.msra.mxu0 %v577
      %750 = vmatprep.subr.bf16.mxu0 0
      %751 = vmatpush1.bf16.msra.mxu0 %v578
      %752 = vmatprep.subr.bf16.mxu0 0
      %753 = vmatpush1.bf16.msra.mxu0 %v579
      %754 = vmatprep.subr.bf16.mxu0 0
      %755 = vmatpush1.bf16.msra.mxu0 %v580
      %756 = vmatprep.subr.bf16.mxu0 0
      %757 = vmatpush1.bf16.msra.mxu0 %v581
      %758 = vmatprep.subr.bf16.mxu0 0
      %759 = vmatpush1.bf16.msra.mxu0 0
      %760 = vmatprep.subr.bf16.mxu0 0
      %761 = vmatpush1.bf16.msra.mxu0 0
      %762 = vmatprep.subr.bf16.mxu0 0
      %763 = vmatpush1.bf16.msra.mxu0 0
      %764 = vmatprep.subr.bf16.mxu0 0
      %765 = vmatpush1.bf16.msra.mxu0 0
      %766 = vmatprep.subr.bf16.mxu0 0
      %767 = vmatpush1.bf16.msra.mxu0 0
      %768 = vmatprep.subr.bf16.mxu0 0
      %769 = vmatpush1.bf16.msra.mxu0 0
      %770 = vmatprep.subr.bf16.mxu0 0
      %771 = vmatpush1.bf16.msra.mxu0 0
      %772 = vmatprep.subr.bf16.mxu0 0
      %773 = vmatpush1.bf16.msra.mxu0 0
      %774 = vmatprep.mubr.bf16.mxu0 0
      %775 = vmatmul.mubr.bf16.gmra.mrb[0].mxu0 %v425
      %v776 = vpop.f32.mrb[0].mxu0
      %v777 = vadd.f32 %v641, %v776
      %v778 = vpop.f32.mrb[0].mxu0
      %v779 = vpop.f32.mrb[0].mxu0
      %v780 = vadd.f32 %v644, %v779
      %v781 = vpop.f32.mrb[0].mxu0
      %782 = vmatprep.mubr.bf16.mxu0 0
      %783 = vmatmul.mubr.bf16.gmra.mrb[0].mxu0 %v428
      %v784 = vpop.f32.mrb[0].mxu0
      %v785 = vadd.f32 %v649, %v784
      %v786 = vpop.f32.mrb[0].mxu0
      %v787 = vpop.f32.mrb[0].mxu0
      %v788 = vadd.f32 %v652, %v787
      %v789 = vpop.f32.mrb[0].mxu0
      %790 = vmatprep.mubr.bf16.mxu0 0
      %791 = vmatmul.mubr.bf16.gmra.mrb[0].mxu0 %v431
      %v792 = vpop.f32.mrb[0].mxu0
      %v793 = vadd.f32 %v657, %v792
      %v794 = vpop.f32.mrb[0].mxu0
      %v795 = vpop.f32.mrb[0].mxu0
      %v796 = vadd.f32 %v660, %v795
      %v797 = vpop.f32.mrb[0].mxu0
      %798 = vmatprep.mubr.bf16.mxu0 0
      %799 = vmatmul.mubr.bf16.gmra.mrb[0].mxu0 %v434
      %v800 = vpop.f32.mrb[0].mxu0
      %v801 = vadd.f32 %v665, %v800
      %v802 = vpop.f32.mrb[0].mxu0
      %v803 = vpop.f32.mrb[0].mxu0
      %v804 = vadd.f32 %v668, %v803
      %v805 = vpop.f32.mrb[0].mxu0
      %806 = vmatprep.mubr.bf16.mxu0 0
      %807 = vmatmul.mubr.bf16.gmra.mrb[0].mxu0 %v437
      %v808 = vpop.f32.mrb[0].mxu0
      %v809 = vadd.f32 %v673, %v808
      %v810 = vpop.f32.mrb[0].mxu0
      %v811 = vpop.f32.mrb[0].mxu0
      %v812 = vadd.f32 %v676, %v811
      %v813 = vpop.f32.mrb[0].mxu0
      %814 = vmatprep.mubr.bf16.mxu0 0
      %815 = vmatmul.mubr.bf16.gmra.mrb[0].mxu0 %v440
      %v816 = vpop.f32.mrb[0].mxu0
      %v817 = vadd.f32 %v681, %v816
      %v818 = vpop.f32.mrb[0].mxu0
      %v819 = vpop.f32.mrb[0].mxu0
      %v820 = vadd.f32 %v684, %v819
      %v821 = vpop.f32.mrb[0].mxu0
      %822 = vmatprep.mubr.bf16.mxu0 0
      %823 = vmatmul.mubr.bf16.gmra.mrb[0].mxu0 %v443
      %v824 = vpop.f32.mrb[0].mxu0
      %v825 = vadd.f32 %v689, %v824
      %v826 = vpop.f32.mrb[0].mxu0
      %v827 = vpop.f32.mrb[0].mxu0
      %v828 = vadd.f32 %v692, %v827
      %v829 = vpop.f32.mrb[0].mxu0
      %830 = vmatprep.mubr.bf16.mxu0 0
      %831 = vmatmul.mubr.bf16.gmra.mrb[0].mxu0 %v446
      %v832 = vpop.f32.mrb[0].mxu0
      %v833 = vadd.f32 %v697, %v832
      %v834 = vpop.f32.mrb[0].mxu0
      %v835 = vpop.f32.mrb[0].mxu0
      %v836 = vadd.f32 %v700, %v835
      %v837 = vpop.f32.mrb[0].mxu0
      %838 = vmatprep.mubr.bf16.mxu0 0
      %839 = vmatmul.mubr.bf16.gmra.mrb[0].mxu0 %v449
      %v840 = vpop.f32.mrb[0].mxu0
      %v841 = vadd.f32 %v705, %v840
      %v842 = vpop.f32.mrb[0].mxu0
      %v843 = vpop.f32.mrb[0].mxu0
      %v844 = vadd.f32 %v708, %v843
      %v845 = vpop.f32.mrb[0].mxu0
      %846 = vmatprep.mubr.bf16.mxu0 0
      %847 = vmatmul.mubr.bf16.gmra.mrb[0].mxu0 %v452
      %v848 = vpop.f32.mrb[0].mxu0
      %v849 = vadd.f32 %v713, %v848
      %v850 = vpop.f32.mrb[0].mxu0
      %v851 = vpop.f32.mrb[0].mxu0
      %v852 = vadd.f32 %v716, %v851
      %v853 = vpop.f32.mrb[0].mxu0
      %854 = vmatprep.mubr.bf16.mxu0 0
      %855 = vmatmul.mubr.bf16.gmra.mrb[0].mxu0 %v455
      %v856 = vpop.f32.mrb[0].mxu0
      %v857 = vadd.f32 %v721, %v856
      %v858 = vpop.f32.mrb[0].mxu0
      %v859 = vpop.f32.mrb[0].mxu0
      %v860 = vadd.f32 %v724, %v859
      %v861 = vpop.f32.mrb[0].mxu0
      %862 = vmatprep.mubr.bf16.mxu0 0
      %863 = vmatmul.mubr.bf16.gmra.mrb[0].mxu0 %v458
      %v864 = vpop.f32.mrb[0].mxu0
      %v865 = vadd.f32 %v729, %v864
      %v866 = vpop.f32.mrb[0].mxu0
      %v867 = vpop.f32.mrb[0].mxu0
      %v868 = vadd.f32 %v732, %v867
      %v869 = vpop.f32.mrb[0].mxu0
      %870 = vmatprep.mubr.bf16.mxu0 0
      %871 = vmatmul.mubr.bf16.gmra.mrb[0].mxu0 %v461
      %v872 = vpop.f32.mrb[0].mxu0
      %v873 = vadd.f32 %v737, %v872
      %v874 = vpop.f32.mrb[0].mxu0
      %v875 = vpop.f32.mrb[0].mxu0
      %v876 = vpop.f32.mrb[0].mxu0
      %877 = vdwg.mxu0
      %vm878 = vcmask 1044480
      %v879 = vsel %vm878, %v873, 0.0
      %vm905 = vcmask 1041408
      %v906 = vrot.slane %v321, 6
      %v907 = vrot.slane %v322, 6
      %v908 = vsel %vm905, %v906, %v907
      %v909 = vrot.slane %v323, 6
      %v910 = vsel %vm905, %v907, %v909
      %v911 = vrot.slane %v324, 6
      %v912 = vsel %vm905, %v909, %v911
      %v913 = vrot.slane %v325, 6
      %v914 = vsel %vm905, %v911, %v913
      %v915 = vrot.slane %v326, 6
      %v916 = vsel %vm905, %v913, %v915
      %v917 = vrot.slane %v327, 6
      %v918 = vsel %vm905, %v915, %v917
      %v919 = vrot.slane %v328, 6
      %v920 = vsel %vm905, %v917, %v919
      %v921 = vrot.slane %v329, 6
      %v922 = vsel %vm905, %v919, %v921
      %v923 = vrot.slane %v330, 6
      %v924 = vsel %vm905, %v921, %v923
      %v925 = vrot.slane %v331, 6
      %v926 = vsel %vm905, %v923, %v925
      %v927 = vrot.slane %v332, 6
      %v928 = vsel %vm905, %v925, %v927
      %v929 = vrot.slane %v333, 6
      %v930 = vsel %vm905, %v927, %v929
      %v931 = vrot.slane %v334, 6
      %v932 = vsel %vm905, %v929, %v931
      %v933 = vrot.slane %v335, 6
      %v934 = vsel %vm905, %v931, %v933
      %v935 = vrot.slane %v336, 6
      %v936 = vsel %vm905, %v933, %v935
      %v937 = vrot.slane %v337, 6
      %v938 = vsel %vm905, %v935, %v937
      %v939 = vrot.slane %v338, 6
      %v940 = vsel %vm905, %v937, %v939
      %v941 = vrot.slane %v339, 6
      %v942 = vsel %vm905, %v939, %v941
      %v943 = vrot.slane %v340, 6
      %v944 = vsel %vm905, %v941, %v943
      %v945 = vrot.slane %v341, 6
      %v946 = vsel %vm905, %v943, %v945
      %v947 = vrot.slane %v342, 6
      %v948 = vsel %vm905, %v945, %v947
      %v949 = vrot.slane %v343, 6
      %v950 = vsel %vm905, %v947, %v949
      %v951 = vrot.slane %v344, 6
      %v952 = vsel %vm905, %v949, %v951
      %v953 = vrot.slane %v345, 6
      %v954 = vsel %vm905, %v951, %v953
      %v980 = vmul.f32 %v906, 0.0
      %v981 = vmul.f32 %v908, 0.0
      %v982 = vmul.f32 %v777, %v910
      %v983 = vmul.f32 %v780, %v912
      %v984 = vmul.f32 %v785, %v914
      %v985 = vmul.f32 %v788, %v916
      %v986 = vmul.f32 %v793, %v918
      %v987 = vmul.f32 %v796, %v920
      %v988 = vmul.f32 %v801, %v922
      %v989 = vmul.f32 %v804, %v924
      %v990 = vmul.f32 %v809, %v926
      %v991 = vmul.f32 %v812, %v928
      %v992 = vmul.f32 %v817, %v930
      %v993 = vmul.f32 %v820, %v932
      %v994 = vmul.f32 %v825, %v934
      %v995 = vmul.f32 %v828, %v936
      %v996 = vmul.f32 %v833, %v938
      %v997 = vmul.f32 %v836, %v940
      %v998 = vmul.f32 %v841, %v942
      %v999 = vmul.f32 %v844, %v944
      %v1000 = vmul.f32 %v849, %v946
      %v1001 = vmul.f32 %v852, %v948
      %v1002 = vmul.f32 %v857, %v950
      %v1003 = vmul.f32 %v860, %v952
      %v1004 = vmul.f32 %v865, %v954
      %v1005 = vadd.f32 %v980, 0.0
      %v1006 = vadd.f32 %v981, 0.0
      %v1007 = vadd.f32 %v982, 0.0
      %v1008 = vadd.f32 %v983, 0.0
      %v1009 = vadd.f32 %v984, 0.0
      %v1010 = vadd.f32 %v985, 0.0
      %v1011 = vadd.f32 %v986, 0.0
      %v1012 = vadd.f32 %v987, 0.0
      %v1013 = vadd.f32 %v988, 0.0
      %v1014 = vadd.f32 %v989, 0.0
      %v1015 = vadd.f32 %v990, 0.0
      %v1016 = vadd.f32 %v991, 0.0
      %v1017 = vadd.f32 %v992, 0.0
      %v1018 = vadd.f32 %v993, 0.0
      %v1019 = vadd.f32 %v994, 0.0
      %v1020 = vadd.f32 %v995, 0.0
      %v1021 = vadd.f32 %v996, 0.0
      %v1022 = vadd.f32 %v997, 0.0
      %v1023 = vadd.f32 %v998, 0.0
      %v1024 = vadd.f32 %v999, 0.0
      %v1025 = vadd.f32 %v1000, 0.0
      %v1026 = vadd.f32 %v1001, 0.0
      %v1027 = vadd.f32 %v1002, 0.0
      %v1028 = vadd.f32 %v1003, 0.0
      %v1029 = vadd.f32 %v1004, 0.0
      %vm1030 = vcmask 1042432
      %v1031 = vrot.slane %v321, 5
      %v1032 = vrot.slane %v322, 5
      %v1033 = vsel %vm1030, %v1031, %v1032
      %v1034 = vrot.slane %v323, 5
      %v1035 = vsel %vm1030, %v1032, %v1034
      %v1036 = vrot.slane %v324, 5
      %v1037 = vsel %vm1030, %v1034, %v1036
      %v1038 = vrot.slane %v325, 5
      %v1039 = vsel %vm1030, %v1036, %v1038
      %v1040 = vrot.slane %v326, 5
      %v1041 = vsel %vm1030, %v1038, %v1040
      %v1042 = vrot.slane %v327, 5
      %v1043 = vsel %vm1030, %v1040, %v1042
      %v1044 = vrot.slane %v328, 5
      %v1045 = vsel %vm1030, %v1042, %v1044
      %v1046 = vrot.slane %v329, 5
      %v1047 = vsel %vm1030, %v1044, %v1046
      %v1048 = vrot.slane %v330, 5
      %v1049 = vsel %vm1030, %v1046, %v1048
      %v1050 = vrot.slane %v331, 5
      %v1051 = vsel %vm1030, %v1048, %v1050
      %v1052 = vrot.slane %v332, 5
      %v1053 = vsel %vm1030, %v1050, %v1052
      %v1054 = vrot.slane %v333, 5
      %v1055 = vsel %vm1030, %v1052, %v1054
      %v1056 = vrot.slane %v334, 5
      %v1057 = vsel %vm1030, %v1054, %v1056
      %v1058 = vrot.slane %v335, 5
      %v1059 = vsel %vm1030, %v1056, %v1058
      %v1060 = vrot.slane %v336, 5
      %v1061 = vsel %vm1030, %v1058, %v1060
      %v1062 = vrot.slane %v337, 5
      %v1063 = vsel %vm1030, %v1060, %v1062
      %v1064 = vrot.slane %v338, 5
      %v1065 = vsel %vm1030, %v1062, %v1064
      %v1066 = vrot.slane %v339, 5
      %v1067 = vsel %vm1030, %v1064, %v1066
      %v1068 = vrot.slane %v340, 5
      %v1069 = vsel %vm1030, %v1066, %v1068
      %v1070 = vrot.slane %v341, 5
      %v1071 = vsel %vm1030, %v1068, %v1070
      %v1072 = vrot.slane %v342, 5
      %v1073 = vsel %vm1030, %v1070, %v1072
      %v1074 = vrot.slane %v343, 5
      %v1075 = vsel %vm1030, %v1072, %v1074
      %v1076 = vrot.slane %v344, 5
      %v1077 = vsel %vm1030, %v1074, %v1076
      %v1078 = vrot.slane %v345, 5
      %v1079 = vsel %vm1030, %v1076, %v1078
      %v1105 = vmul.f32 %v1031, 0.0
      %v1106 = vmul.f32 %v1033, 0.0
      %v1107 = vmul.f32 %v777, %v1035
      %v1108 = vmul.f32 %v780, %v1037
      %v1109 = vmul.f32 %v785, %v1039
      %v1110 = vmul.f32 %v788, %v1041
      %v1111 = vmul.f32 %v793, %v1043
      %v1112 = vmul.f32 %v796, %v1045
      %v1113 = vmul.f32 %v801, %v1047
      %v1114 = vmul.f32 %v804, %v1049
      %v1115 = vmul.f32 %v809, %v1051
      %v1116 = vmul.f32 %v812, %v1053
      %v1117 = vmul.f32 %v817, %v1055
      %v1118 = vmul.f32 %v820, %v1057
      %v1119 = vmul.f32 %v825, %v1059
      %v1120 = vmul.f32 %v828, %v1061
      %v1121 = vmul.f32 %v833, %v1063
      %v1122 = vmul.f32 %v836, %v1065
      %v1123 = vmul.f32 %v841, %v1067
      %v1124 = vmul.f32 %v844, %v1069
      %v1125 = vmul.f32 %v849, %v1071
      %v1126 = vmul.f32 %v852, %v1073
      %v1127 = vmul.f32 %v857, %v1075
      %v1128 = vmul.f32 %v860, %v1077
      %v1129 = vmul.f32 %v865, %v1079
      %vm1155 = vcmask 1046528
      %v1156 = vrot.slane %v1105, 1
      %v1157 = vrot.slane %v1106, 1
      %v1158 = vsel %vm1155, %v1156, %v1157
      %v1159 = vrot.slane %v1107, 1
      %v1160 = vsel %vm1155, %v1157, %v1159
      %v1161 = vrot.slane %v1108, 1
      %v1162 = vsel %vm1155, %v1159, %v1161
      %v1163 = vrot.slane %v1109, 1
      %v1164 = vsel %vm1155, %v1161, %v1163
      %v1165 = vrot.slane %v1110, 1
      %v1166 = vsel %vm1155, %v1163, %v1165
      %v1167 = vrot.slane %v1111, 1
      %v1168 = vsel %vm1155, %v1165, %v1167
      %v1169 = vrot.slane %v1112, 1
      %v1170 = vsel %vm1155, %v1167, %v1169
      %v1171 = vrot.slane %v1113, 1
      %v1172 = vsel %vm1155, %v1169, %v1171
      %v1173 = vrot.slane %v1114, 1
      %v1174 = vsel %vm1155, %v1171, %v1173
      %v1175 = vrot.slane %v1115, 1
      %v1176 = vsel %vm1155, %v1173, %v1175
      %v1177 = vrot.slane %v1116, 1
      %v1178 = vsel %vm1155, %v1175, %v1177
      %v1179 = vrot.slane %v1117, 1
      %v1180 = vsel %vm1155, %v1177, %v1179
      %v1181 = vrot.slane %v1118, 1
      %v1182 = vsel %vm1155, %v1179, %v1181
      %v1183 = vrot.slane %v1119, 1
      %v1184 = vsel %vm1155, %v1181, %v1183
      %v1185 = vrot.slane %v1120, 1
      %v1186 = vsel %vm1155, %v1183, %v1185
      %v1187 = vrot.slane %v1121, 1
      %v1188 = vsel %vm1155, %v1185, %v1187
      %v1189 = vrot.slane %v1122, 1
      %v1190 = vsel %vm1155, %v1187, %v1189
      %v1191 = vrot.slane %v1123, 1
      %v1192 = vsel %vm1155, %v1189, %v1191
      %v1193 = vrot.slane %v1124, 1
      %v1194 = vsel %vm1155, %v1191, %v1193
      %v1195 = vrot.slane %v1125, 1
      %v1196 = vsel %vm1155, %v1193, %v1195
      %v1197 = vrot.slane %v1126, 1
      %v1198 = vsel %vm1155, %v1195, %v1197
      %v1199 = vrot.slane %v1127, 1
      %v1200 = vsel %vm1155, %v1197, %v1199
      %v1201 = vrot.slane %v1128, 1
      %v1202 = vsel %vm1155, %v1199, %v1201
      %v1203 = vrot.slane %v1129, 1
      %v1204 = vsel %vm1155, %v1201, %v1203
      %1205 = vrot.lane.b32.xlu0 %v1158, 123
      %v1206 = vpop.permute.xlu0 %1205
      %1207 = vrot.lane.b32.xlu0 %v1160, 123
      %v1208 = vpop.permute.xlu0 %1207
      %1209 = vrot.lane.b32.xlu0 %v1162, 123
      %v1210 = vpop.permute.xlu0 %1209
      %1211 = vrot.lane.b32.xlu0 %v1164, 123
      %v1212 = vpop.permute.xlu0 %1211
      %1213 = vrot.lane.b32.xlu0 %v1166, 123
      %v1214 = vpop.permute.xlu0 %1213
      %1215 = vrot.lane.b32.xlu0 %v1168, 123
      %v1216 = vpop.permute.xlu0 %1215
      %1217 = vrot.lane.b32.xlu0 %v1170, 123
      %v1218 = vpop.permute.xlu0 %1217
      %1219 = vrot.lane.b32.xlu0 %v1172, 123
      %v1220 = vpop.permute.xlu0 %1219
      %1221 = vrot.lane.b32.xlu0 %v1174, 123
      %v1222 = vpop.permute.xlu0 %1221
      %1223 = vrot.lane.b32.xlu0 %v1176, 123
      %v1224 = vpop.permute.xlu0 %1223
      %1225 = vrot.lane.b32.xlu0 %v1178, 123
      %v1226 = vpop.permute.xlu0 %1225
      %1227 = vrot.lane.b32.xlu0 %v1180, 123
      %v1228 = vpop.permute.xlu0 %1227
      %1229 = vrot.lane.b32.xlu0 %v1182, 123
      %v1230 = vpop.permute.xlu0 %1229
      %1231 = vrot.lane.b32.xlu0 %v1184, 123
      %v1232 = vpop.permute.xlu0 %1231
      %1233 = vrot.lane.b32.xlu0 %v1186, 123
      %v1234 = vpop.permute.xlu0 %1233
      %1235 = vrot.lane.b32.xlu0 %v1188, 123
      %v1236 = vpop.permute.xlu0 %1235
      %1237 = vrot.lane.b32.xlu0 %v1190, 123
      %v1238 = vpop.permute.xlu0 %1237
      %1239 = vrot.lane.b32.xlu0 %v1192, 123
      %v1240 = vpop.permute.xlu0 %1239
      %1241 = vrot.lane.b32.xlu0 %v1194, 123
      %v1242 = vpop.permute.xlu0 %1241
      %1243 = vrot.lane.b32.xlu0 %v1196, 123
      %v1244 = vpop.permute.xlu0 %1243
      %1245 = vrot.lane.b32.xlu0 %v1198, 123
      %v1246 = vpop.permute.xlu0 %1245
      %1247 = vrot.lane.b32.xlu0 %v1200, 123
      %v1248 = vpop.permute.xlu0 %1247
      %1249 = vrot.lane.b32.xlu0 %v1202, 123
      %v1250 = vpop.permute.xlu0 %1249
      %1251 = vrot.lane.b32.xlu0 %v1204, 123
      %v1252 = vpop.permute.xlu0 %1251
      %1253 = vrot.lane.b32.xlu0 %v1203, 123
      %v1254 = vpop.permute.xlu0 %1253
      %v1280 = vadd.f32 %v1005, %v1206
      %v1281 = vadd.f32 %v1006, %v1208
      %v1282 = vadd.f32 %v1007, %v1210
      %v1283 = vadd.f32 %v1008, %v1212
      %v1284 = vadd.f32 %v1009, %v1214
      %v1285 = vadd.f32 %v1010, %v1216
      %v1286 = vadd.f32 %v1011, %v1218
      %v1287 = vadd.f32 %v1012, %v1220
      %v1288 = vadd.f32 %v1013, %v1222
      %v1289 = vadd.f32 %v1014, %v1224
      %v1290 = vadd.f32 %v1015, %v1226
      %v1291 = vadd.f32 %v1016, %v1228
      %v1292 = vadd.f32 %v1017, %v1230
      %v1293 = vadd.f32 %v1018, %v1232
      %v1294 = vadd.f32 %v1019, %v1234
      %v1295 = vadd.f32 %v1020, %v1236
      %v1296 = vadd.f32 %v1021, %v1238
      %v1297 = vadd.f32 %v1022, %v1240
      %v1298 = vadd.f32 %v1023, %v1242
      %v1299 = vadd.f32 %v1024, %v1244
      %v1300 = vadd.f32 %v1025, %v1246
      %v1301 = vadd.f32 %v1026, %v1248
      %v1302 = vadd.f32 %v1027, %v1250
      %v1303 = vadd.f32 %v1028, %v1252
      %v1304 = vadd.f32 %v1029, %v1254
      %vm1305 = vcmask 1043456
      %v1306 = vrot.slane %v321, 4
      %v1307 = vrot.slane %v322, 4
      %v1308 = vsel %vm1305, %v1306, %v1307
      %v1309 = vrot.slane %v323, 4
      %v1310 = vsel %vm1305, %v1307, %v1309
      %v1311 = vrot.slane %v324, 4
      %v1312 = vsel %vm1305, %v1309, %v1311
      %v1313 = vrot.slane %v325, 4
      %v1314 = vsel %vm1305, %v1311, %v1313
      %v1315 = vrot.slane %v326, 4
      %v1316 = vsel %vm1305, %v1313, %v1315
      %v1317 = vrot.slane %v327, 4
      %v1318 = vsel %vm1305, %v1315, %v1317
      %v1319 = vrot.slane %v328, 4
      %v1320 = vsel %vm1305, %v1317, %v1319
      %v1321 = vrot.slane %v329, 4
      %v1322 = vsel %vm1305, %v1319, %v1321
      %v1323 = vrot.slane %v330, 4
      %v1324 = vsel %vm1305, %v1321, %v1323
      %v1325 = vrot.slane %v331, 4
      %v1326 = vsel %vm1305, %v1323, %v1325
      %v1327 = vrot.slane %v332, 4
      %v1328 = vsel %vm1305, %v1325, %v1327
      %v1329 = vrot.slane %v333, 4
      %v1330 = vsel %vm1305, %v1327, %v1329
      %v1331 = vrot.slane %v334, 4
      %v1332 = vsel %vm1305, %v1329, %v1331
      %v1333 = vrot.slane %v335, 4
      %v1334 = vsel %vm1305, %v1331, %v1333
      %v1335 = vrot.slane %v336, 4
      %v1336 = vsel %vm1305, %v1333, %v1335
      %v1337 = vrot.slane %v337, 4
      %v1338 = vsel %vm1305, %v1335, %v1337
      %v1339 = vrot.slane %v338, 4
      %v1340 = vsel %vm1305, %v1337, %v1339
      %v1341 = vrot.slane %v339, 4
      %v1342 = vsel %vm1305, %v1339, %v1341
      %v1343 = vrot.slane %v340, 4
      %v1344 = vsel %vm1305, %v1341, %v1343
      %v1345 = vrot.slane %v341, 4
      %v1346 = vsel %vm1305, %v1343, %v1345
      %v1347 = vrot.slane %v342, 4
      %v1348 = vsel %vm1305, %v1345, %v1347
      %v1349 = vrot.slane %v343, 4
      %v1350 = vsel %vm1305, %v1347, %v1349
      %v1351 = vrot.slane %v344, 4
      %v1352 = vsel %vm1305, %v1349, %v1351
      %v1353 = vrot.slane %v345, 4
      %v1354 = vsel %vm1305, %v1351, %v1353
      %v1380 = vmul.f32 %v1306, 0.0
      %v1381 = vmul.f32 %v1308, 0.0
      %v1382 = vmul.f32 %v777, %v1310
      %v1383 = vmul.f32 %v780, %v1312
      %v1384 = vmul.f32 %v785, %v1314
      %v1385 = vmul.f32 %v788, %v1316
      %v1386 = vmul.f32 %v793, %v1318
      %v1387 = vmul.f32 %v796, %v1320
      %v1388 = vmul.f32 %v801, %v1322
      %v1389 = vmul.f32 %v804, %v1324
      %v1390 = vmul.f32 %v809, %v1326
      %v1391 = vmul.f32 %v812, %v1328
      %v1392 = vmul.f32 %v817, %v1330
      %v1393 = vmul.f32 %v820, %v1332
      %v1394 = vmul.f32 %v825, %v1334
      %v1395 = vmul.f32 %v828, %v1336
      %v1396 = vmul.f32 %v833, %v1338
      %v1397 = vmul.f32 %v836, %v1340
      %v1398 = vmul.f32 %v841, %v1342
      %v1399 = vmul.f32 %v844, %v1344
      %v1400 = vmul.f32 %v849, %v1346
      %v1401 = vmul.f32 %v852, %v1348
      %v1402 = vmul.f32 %v857, %v1350
      %v1403 = vmul.f32 %v860, %v1352
      %v1404 = vmul.f32 %v865, %v1354
      %vm1430 = vcmask 1045504
      %v1431 = vrot.slane %v1380, 2
      %v1432 = vrot.slane %v1381, 2
      %v1433 = vsel %vm1430, %v1431, %v1432
      %v1434 = vrot.slane %v1382, 2
      %v1435 = vsel %vm1430, %v1432, %v1434
      %v1436 = vrot.slane %v1383, 2
      %v1437 = vsel %vm1430, %v1434, %v1436
      %v1438 = vrot.slane %v1384, 2
      %v1439 = vsel %vm1430, %v1436, %v1438
      %v1440 = vrot.slane %v1385, 2
      %v1441 = vsel %vm1430, %v1438, %v1440
      %v1442 = vrot.slane %v1386, 2
      %v1443 = vsel %vm1430, %v1440, %v1442
      %v1444 = vrot.slane %v1387, 2
      %v1445 = vsel %vm1430, %v1442, %v1444
      %v1446 = vrot.slane %v1388, 2
      %v1447 = vsel %vm1430, %v1444, %v1446
      %v1448 = vrot.slane %v1389, 2
      %v1449 = vsel %vm1430, %v1446, %v1448
      %v1450 = vrot.slane %v1390, 2
      %v1451 = vsel %vm1430, %v1448, %v1450
      %v1452 = vrot.slane %v1391, 2
      %v1453 = vsel %vm1430, %v1450, %v1452
      %v1454 = vrot.slane %v1392, 2
      %v1455 = vsel %vm1430, %v1452, %v1454
      %v1456 = vrot.slane %v1393, 2
      %v1457 = vsel %vm1430, %v1454, %v1456
      %v1458 = vrot.slane %v1394, 2
      %v1459 = vsel %vm1430, %v1456, %v1458
      %v1460 = vrot.slane %v1395, 2
      %v1461 = vsel %vm1430, %v1458, %v1460
      %v1462 = vrot.slane %v1396, 2
      %v1463 = vsel %vm1430, %v1460, %v1462
      %v1464 = vrot.slane %v1397, 2
      %v1465 = vsel %vm1430, %v1462, %v1464
      %v1466 = vrot.slane %v1398, 2
      %v1467 = vsel %vm1430, %v1464, %v1466
      %v1468 = vrot.slane %v1399, 2
      %v1469 = vsel %vm1430, %v1466, %v1468
      %v1470 = vrot.slane %v1400, 2
      %v1471 = vsel %vm1430, %v1468, %v1470
      %v1472 = vrot.slane %v1401, 2
      %v1473 = vsel %vm1430, %v1470, %v1472
      %v1474 = vrot.slane %v1402, 2
      %v1475 = vsel %vm1430, %v1472, %v1474
      %v1476 = vrot.slane %v1403, 2
      %v1477 = vsel %vm1430, %v1474, %v1476
      %v1478 = vrot.slane %v1404, 2
      %v1479 = vsel %vm1430, %v1476, %v1478
      %1480 = vrot.lane.b32.xlu0 %v1433, 118
      %v1481 = vpop.permute.xlu0 %1480
      %1482 = vrot.lane.b32.xlu0 %v1435, 118
      %v1483 = vpop.permute.xlu0 %1482
      %1484 = vrot.lane.b32.xlu0 %v1437, 118
      %v1485 = vpop.permute.xlu0 %1484
      %1486 = vrot.lane.b32.xlu0 %v1439, 118
      %v1487 = vpop.permute.xlu0 %1486
      %1488 = vrot.lane.b32.xlu0 %v1441, 118
      %v1489 = vpop.permute.xlu0 %1488
      %1490 = vrot.lane.b32.xlu0 %v1443, 118
      %v1491 = vpop.permute.xlu0 %1490
      %1492 = vrot.lane.b32.xlu0 %v1445, 118
      %v1493 = vpop.permute.xlu0 %1492
      %1494 = vrot.lane.b32.xlu0 %v1447, 118
      %v1495 = vpop.permute.xlu0 %1494
      %1496 = vrot.lane.b32.xlu0 %v1449, 118
      %v1497 = vpop.permute.xlu0 %1496
      %1498 = vrot.lane.b32.xlu0 %v1451, 118
      %v1499 = vpop.permute.xlu0 %1498
      %1500 = vrot.lane.b32.xlu0 %v1453, 118
      %v1501 = vpop.permute.xlu0 %1500
      %1502 = vrot.lane.b32.xlu0 %v1455, 118
      %v1503 = vpop.permute.xlu0 %1502
      %1504 = vrot.lane.b32.xlu0 %v1457, 118
      %v1505 = vpop.permute.xlu0 %1504
      %1506 = vrot.lane.b32.xlu0 %v1459, 118
      %v1507 = vpop.permute.xlu0 %1506
      %1508 = vrot.lane.b32.xlu0 %v1461, 118
      %v1509 = vpop.permute.xlu0 %1508
      %1510 = vrot.lane.b32.xlu0 %v1463, 118
      %v1511 = vpop.permute.xlu0 %1510
      %1512 = vrot.lane.b32.xlu0 %v1465, 118
      %v1513 = vpop.permute.xlu0 %1512
      %1514 = vrot.lane.b32.xlu0 %v1467, 118
      %v1515 = vpop.permute.xlu0 %1514
      %1516 = vrot.lane.b32.xlu0 %v1469, 118
      %v1517 = vpop.permute.xlu0 %1516
      %1518 = vrot.lane.b32.xlu0 %v1471, 118
      %v1519 = vpop.permute.xlu0 %1518
      %1520 = vrot.lane.b32.xlu0 %v1473, 118
      %v1521 = vpop.permute.xlu0 %1520
      %1522 = vrot.lane.b32.xlu0 %v1475, 118
      %v1523 = vpop.permute.xlu0 %1522
      %1524 = vrot.lane.b32.xlu0 %v1477, 118
      %v1525 = vpop.permute.xlu0 %1524
      %1526 = vrot.lane.b32.xlu0 %v1479, 118
      %v1527 = vpop.permute.xlu0 %1526
      %1528 = vrot.lane.b32.xlu0 %v1478, 118
      %v1529 = vpop.permute.xlu0 %1528
      %v1555 = vadd.f32 %v1280, %v1481
      %v1556 = vadd.f32 %v1281, %v1483
      %v1557 = vadd.f32 %v1282, %v1485
      %v1558 = vadd.f32 %v1283, %v1487
      %v1559 = vadd.f32 %v1284, %v1489
      %v1560 = vadd.f32 %v1285, %v1491
      %v1561 = vadd.f32 %v1286, %v1493
      %v1562 = vadd.f32 %v1287, %v1495
      %v1563 = vadd.f32 %v1288, %v1497
      %v1564 = vadd.f32 %v1289, %v1499
      %v1565 = vadd.f32 %v1290, %v1501
      %v1566 = vadd.f32 %v1291, %v1503
      %v1567 = vadd.f32 %v1292, %v1505
      %v1568 = vadd.f32 %v1293, %v1507
      %v1569 = vadd.f32 %v1294, %v1509
      %v1570 = vadd.f32 %v1295, %v1511
      %v1571 = vadd.f32 %v1296, %v1513
      %v1572 = vadd.f32 %v1297, %v1515
      %v1573 = vadd.f32 %v1298, %v1517
      %v1574 = vadd.f32 %v1299, %v1519
      %v1575 = vadd.f32 %v1300, %v1521
      %v1576 = vadd.f32 %v1301, %v1523
      %v1577 = vadd.f32 %v1302, %v1525
      %v1578 = vadd.f32 %v1303, %v1527
      %v1579 = vadd.f32 %v1304, %v1529
      %v1580 = vmul.f32 %v777, %v321
      %v1581 = vmul.f32 %v780, %v322
      %v1582 = vmul.f32 %v785, %v323
      %v1583 = vmul.f32 %v788, %v324
      %v1584 = vmul.f32 %v793, %v325
      %v1585 = vmul.f32 %v796, %v326
      %v1586 = vmul.f32 %v801, %v327
      %v1587 = vmul.f32 %v804, %v328
      %v1588 = vmul.f32 %v809, %v329
      %v1589 = vmul.f32 %v812, %v330
      %v1590 = vmul.f32 %v817, %v331
      %v1591 = vmul.f32 %v820, %v332
      %v1592 = vmul.f32 %v825, %v333
      %v1593 = vmul.f32 %v828, %v334
      %v1594 = vmul.f32 %v833, %v335
      %v1595 = vmul.f32 %v836, %v336
      %v1596 = vmul.f32 %v841, %v337
      %v1597 = vmul.f32 %v844, %v338
      %v1598 = vmul.f32 %v849, %v339
      %v1599 = vmul.f32 %v852, %v340
      %v1600 = vmul.f32 %v857, %v341
      %v1601 = vmul.f32 %v860, %v342
      %v1602 = vmul.f32 %v865, %v343
      %v1603 = vmul.f32 %v868, %v344
      %v1604 = vmul.f32 %v879, %v345
      %v1630 = vrot.slane %v1580, 6
      %v1631 = vrot.slane %v1581, 6
      %v1632 = vsel %vm905, %v1630, %v1631
      %v1633 = vrot.slane %v1582, 6
      %v1634 = vsel %vm905, %v1631, %v1633
      %v1635 = vrot.slane %v1583, 6
      %v1636 = vsel %vm905, %v1633, %v1635
      %v1637 = vrot.slane %v1584, 6
      %v1638 = vsel %vm905, %v1635, %v1637
      %v1639 = vrot.slane %v1585, 6
      %v1640 = vsel %vm905, %v1637, %v1639
      %v1641 = vrot.slane %v1586, 6
      %v1642 = vsel %vm905, %v1639, %v1641
      %v1643 = vrot.slane %v1587, 6
      %v1644 = vsel %vm905, %v1641, %v1643
      %v1645 = vrot.slane %v1588, 6
      %v1646 = vsel %vm905, %v1643, %v1645
      %v1647 = vrot.slane %v1589, 6
      %v1648 = vsel %vm905, %v1645, %v1647
      %v1649 = vrot.slane %v1590, 6
      %v1650 = vsel %vm905, %v1647, %v1649
      %v1651 = vrot.slane %v1591, 6
      %v1652 = vsel %vm905, %v1649, %v1651
      %v1653 = vrot.slane %v1592, 6
      %v1654 = vsel %vm905, %v1651, %v1653
      %v1655 = vrot.slane %v1593, 6
      %v1656 = vsel %vm905, %v1653, %v1655
      %v1657 = vrot.slane %v1594, 6
      %v1658 = vsel %vm905, %v1655, %v1657
      %v1659 = vrot.slane %v1595, 6
      %v1660 = vsel %vm905, %v1657, %v1659
      %v1661 = vrot.slane %v1596, 6
      %v1662 = vsel %vm905, %v1659, %v1661
      %v1663 = vrot.slane %v1597, 6
      %v1664 = vsel %vm905, %v1661, %v1663
      %v1665 = vrot.slane %v1598, 6
      %v1666 = vsel %vm905, %v1663, %v1665
      %v1667 = vrot.slane %v1599, 6
      %v1668 = vsel %vm905, %v1665, %v1667
      %v1669 = vrot.slane %v1600, 6
      %v1670 = vsel %vm905, %v1667, %v1669
      %v1671 = vrot.slane %v1601, 6
      %v1672 = vsel %vm905, %v1669, %v1671
      %v1673 = vrot.slane %v1602, 6
      %v1674 = vsel %vm905, %v1671, %v1673
      %v1675 = vrot.slane %v1603, 6
      %v1676 = vsel %vm905, %v1673, %v1675
      %v1677 = vrot.slane %v1604, 6
      %v1678 = vsel %vm905, %v1675, %v1677
      %1679 = vrot.lane.b32.xlu0 %v1630, 113
      %v1680 = vpop.permute.xlu0 %1679
      %1681 = vrot.lane.b32.xlu0 %v1632, 113
      %v1682 = vpop.permute.xlu0 %1681
      %1683 = vrot.lane.b32.xlu0 %v1634, 113
      %v1684 = vpop.permute.xlu0 %1683
      %1685 = vrot.lane.b32.xlu0 %v1636, 113
      %v1686 = vpop.permute.xlu0 %1685
      %1687 = vrot.lane.b32.xlu0 %v1638, 113
      %v1688 = vpop.permute.xlu0 %1687
      %1689 = vrot.lane.b32.xlu0 %v1640, 113
      %v1690 = vpop.permute.xlu0 %1689
      %1691 = vrot.lane.b32.xlu0 %v1642, 113
      %v1692 = vpop.permute.xlu0 %1691
      %1693 = vrot.lane.b32.xlu0 %v1644, 113
      %v1694 = vpop.permute.xlu0 %1693
      %1695 = vrot.lane.b32.xlu0 %v1646, 113
      %v1696 = vpop.permute.xlu0 %1695
      %1697 = vrot.lane.b32.xlu0 %v1648, 113
      %v1698 = vpop.permute.xlu0 %1697
      %1699 = vrot.lane.b32.xlu0 %v1650, 113
      %v1700 = vpop.permute.xlu0 %1699
      %1701 = vrot.lane.b32.xlu0 %v1652, 113
      %v1702 = vpop.permute.xlu0 %1701
      %1703 = vrot.lane.b32.xlu0 %v1654, 113
      %v1704 = vpop.permute.xlu0 %1703
      %1705 = vrot.lane.b32.xlu0 %v1656, 113
      %v1706 = vpop.permute.xlu0 %1705
      %1707 = vrot.lane.b32.xlu0 %v1658, 113
      %v1708 = vpop.permute.xlu0 %1707
      %1709 = vrot.lane.b32.xlu0 %v1660, 113
      %v1710 = vpop.permute.xlu0 %1709
      %1711 = vrot.lane.b32.xlu0 %v1662, 113
      %v1712 = vpop.permute.xlu0 %1711
      %1713 = vrot.lane.b32.xlu0 %v1664, 113
      %v1714 = vpop.permute.xlu0 %1713
      %1715 = vrot.lane.b32.xlu0 %v1666, 113
      %v1716 = vpop.permute.xlu0 %1715
      %1717 = vrot.lane.b32.xlu0 %v1668, 113
      %v1718 = vpop.permute.xlu0 %1717
      %1719 = vrot.lane.b32.xlu0 %v1670, 113
      %v1720 = vpop.permute.xlu0 %1719
      %1721 = vrot.lane.b32.xlu0 %v1672, 113
      %v1722 = vpop.permute.xlu0 %1721
      %1723 = vrot.lane.b32.xlu0 %v1674, 113
      %v1724 = vpop.permute.xlu0 %1723
      %1725 = vrot.lane.b32.xlu0 %v1676, 113
      %v1726 = vpop.permute.xlu0 %1725
      %1727 = vrot.lane.b32.xlu0 %v1678, 113
      %v1728 = vpop.permute.xlu0 %1727
      %v1754 = vadd.f32 %v1555, %v1680
      %v1755 = vadd.f32 %v1556, %v1682
      %v1756 = vadd.f32 %v1557, %v1684
      %v1757 = vadd.f32 %v1558, %v1686
      %v1758 = vadd.f32 %v1559, %v1688
      %v1759 = vadd.f32 %v1560, %v1690
      %v1760 = vadd.f32 %v1561, %v1692
      %v1761 = vadd.f32 %v1562, %v1694
      %v1762 = vadd.f32 %v1563, %v1696
      %v1763 = vadd.f32 %v1564, %v1698
      %v1764 = vadd.f32 %v1565, %v1700
      %v1765 = vadd.f32 %v1566, %v1702
      %v1766 = vadd.f32 %v1567, %v1704
      %v1767 = vadd.f32 %v1568, %v1706
      %v1768 = vadd.f32 %v1569, %v1708
      %v1769 = vadd.f32 %v1570, %v1710
      %v1770 = vadd.f32 %v1571, %v1712
      %v1771 = vadd.f32 %v1572, %v1714
      %v1772 = vadd.f32 %v1573, %v1716
      %v1773 = vadd.f32 %v1574, %v1718
      %v1774 = vadd.f32 %v1575, %v1720
      %v1775 = vadd.f32 %v1576, %v1722
      %v1776 = vadd.f32 %v1577, %v1724
      %v1777 = vadd.f32 %v1578, %v1726
      %v1778 = vadd.f32 %v1579, %v1728
      %vm1779 = vcmask 1040384
      %v1780 = vrot.slane %v321, 7
      %v1781 = vrot.slane %v322, 7
      %v1782 = vsel %vm1779, %v1780, %v1781
      %v1783 = vrot.slane %v323, 7
      %v1784 = vsel %vm1779, %v1781, %v1783
      %v1785 = vrot.slane %v324, 7
      %v1786 = vsel %vm1779, %v1783, %v1785
      %v1787 = vrot.slane %v325, 7
      %v1788 = vsel %vm1779, %v1785, %v1787
      %v1789 = vrot.slane %v326, 7
      %v1790 = vsel %vm1779, %v1787, %v1789
      %v1791 = vrot.slane %v327, 7
      %v1792 = vsel %vm1779, %v1789, %v1791
      %v1793 = vrot.slane %v328, 7
      %v1794 = vsel %vm1779, %v1791, %v1793
      %v1795 = vrot.slane %v329, 7
      %v1796 = vsel %vm1779, %v1793, %v1795
      %v1797 = vrot.slane %v330, 7
      %v1798 = vsel %vm1779, %v1795, %v1797
      %v1799 = vrot.slane %v331, 7
      %v1800 = vsel %vm1779, %v1797, %v1799
      %v1801 = vrot.slane %v332, 7
      %v1802 = vsel %vm1779, %v1799, %v1801
      %v1803 = vrot.slane %v333, 7
      %v1804 = vsel %vm1779, %v1801, %v1803
      %v1805 = vrot.slane %v334, 7
      %v1806 = vsel %vm1779, %v1803, %v1805
      %v1807 = vrot.slane %v335, 7
      %v1808 = vsel %vm1779, %v1805, %v1807
      %v1809 = vrot.slane %v336, 7
      %v1810 = vsel %vm1779, %v1807, %v1809
      %v1811 = vrot.slane %v337, 7
      %v1812 = vsel %vm1779, %v1809, %v1811
      %v1813 = vrot.slane %v338, 7
      %v1814 = vsel %vm1779, %v1811, %v1813
      %v1815 = vrot.slane %v339, 7
      %v1816 = vsel %vm1779, %v1813, %v1815
      %v1817 = vrot.slane %v340, 7
      %v1818 = vsel %vm1779, %v1815, %v1817
      %v1819 = vrot.slane %v341, 7
      %v1820 = vsel %vm1779, %v1817, %v1819
      %v1821 = vrot.slane %v342, 7
      %v1822 = vsel %vm1779, %v1819, %v1821
      %v1823 = vrot.slane %v343, 7
      %v1824 = vsel %vm1779, %v1821, %v1823
      %v1825 = vrot.slane %v344, 7
      %v1826 = vsel %vm1779, %v1823, %v1825
      %v1827 = vrot.slane %v345, 7
      %v1828 = vsel %vm1779, %v1825, %v1827
      %v1854 = vmul.f32 %v777, %v1780
      %v1855 = vmul.f32 %v780, %v1782
      %v1856 = vmul.f32 %v785, %v1784
      %v1857 = vmul.f32 %v788, %v1786
      %v1858 = vmul.f32 %v793, %v1788
      %v1859 = vmul.f32 %v796, %v1790
      %v1860 = vmul.f32 %v801, %v1792
      %v1861 = vmul.f32 %v804, %v1794
      %v1862 = vmul.f32 %v809, %v1796
      %v1863 = vmul.f32 %v812, %v1798
      %v1864 = vmul.f32 %v817, %v1800
      %v1865 = vmul.f32 %v820, %v1802
      %v1866 = vmul.f32 %v825, %v1804
      %v1867 = vmul.f32 %v828, %v1806
      %v1868 = vmul.f32 %v833, %v1808
      %v1869 = vmul.f32 %v836, %v1810
      %v1870 = vmul.f32 %v841, %v1812
      %v1871 = vmul.f32 %v844, %v1814
      %v1872 = vmul.f32 %v849, %v1816
      %v1873 = vmul.f32 %v852, %v1818
      %v1874 = vmul.f32 %v857, %v1820
      %v1875 = vmul.f32 %v860, %v1822
      %v1876 = vmul.f32 %v865, %v1824
      %v1877 = vmul.f32 %v868, %v1826
      %v1878 = vmul.f32 %v879, %v1828
      %v1904 = vrot.slane %v1854, 7
      %v1905 = vrot.slane %v1855, 7
      %v1906 = vsel %vm1779, %v1904, %v1905
      %v1907 = vrot.slane %v1856, 7
      %v1908 = vsel %vm1779, %v1905, %v1907
      %v1909 = vrot.slane %v1857, 7
      %v1910 = vsel %vm1779, %v1907, %v1909
      %v1911 = vrot.slane %v1858, 7
      %v1912 = vsel %vm1779, %v1909, %v1911
      %v1913 = vrot.slane %v1859, 7
      %v1914 = vsel %vm1779, %v1911, %v1913
      %v1915 = vrot.slane %v1860, 7
      %v1916 = vsel %vm1779, %v1913, %v1915
      %v1917 = vrot.slane %v1861, 7
      %v1918 = vsel %vm1779, %v1915, %v1917
      %v1919 = vrot.slane %v1862, 7
      %v1920 = vsel %vm1779, %v1917, %v1919
      %v1921 = vrot.slane %v1863, 7
      %v1922 = vsel %vm1779, %v1919, %v1921
      %v1923 = vrot.slane %v1864, 7
      %v1924 = vsel %vm1779, %v1921, %v1923
      %v1925 = vrot.slane %v1865, 7
      %v1926 = vsel %vm1779, %v1923, %v1925
      %v1927 = vrot.slane %v1866, 7
      %v1928 = vsel %vm1779, %v1925, %v1927
      %v1929 = vrot.slane %v1867, 7
      %v1930 = vsel %vm1779, %v1927, %v1929
      %v1931 = vrot.slane %v1868, 7
      %v1932 = vsel %vm1779, %v1929, %v1931
      %v1933 = vrot.slane %v1869, 7
      %v1934 = vsel %vm1779, %v1931, %v1933
      %v1935 = vrot.slane %v1870, 7
      %v1936 = vsel %vm1779, %v1933, %v1935
      %v1937 = vrot.slane %v1871, 7
      %v1938 = vsel %vm1779, %v1935, %v1937
      %v1939 = vrot.slane %v1872, 7
      %v1940 = vsel %vm1779, %v1937, %v1939
      %v1941 = vrot.slane %v1873, 7
      %v1942 = vsel %vm1779, %v1939, %v1941
      %v1943 = vrot.slane %v1874, 7
      %v1944 = vsel %vm1779, %v1941, %v1943
      %v1945 = vrot.slane %v1875, 7
      %v1946 = vsel %vm1779, %v1943, %v1945
      %v1947 = vrot.slane %v1876, 7
      %v1948 = vsel %vm1779, %v1945, %v1947
      %v1949 = vrot.slane %v1877, 7
      %v1950 = vsel %vm1779, %v1947, %v1949
      %v1951 = vrot.slane %v1878, 7
      %v1952 = vsel %vm1779, %v1949, %v1951
      %1953 = vrot.lane.b32.xlu0 %v1904, 108
      %v1954 = vpop.permute.xlu0 %1953
      %1955 = vrot.lane.b32.xlu0 %v1906, 108
      %v1956 = vpop.permute.xlu0 %1955
      %1957 = vrot.lane.b32.xlu0 %v1908, 108
      %v1958 = vpop.permute.xlu0 %1957
      %1959 = vrot.lane.b32.xlu0 %v1910, 108
      %v1960 = vpop.permute.xlu0 %1959
      %1961 = vrot.lane.b32.xlu0 %v1912, 108
      %v1962 = vpop.permute.xlu0 %1961
      %1963 = vrot.lane.b32.xlu0 %v1914, 108
      %v1964 = vpop.permute.xlu0 %1963
      %1965 = vrot.lane.b32.xlu0 %v1916, 108
      %v1966 = vpop.permute.xlu0 %1965
      %1967 = vrot.lane.b32.xlu0 %v1918, 108
      %v1968 = vpop.permute.xlu0 %1967
      %1969 = vrot.lane.b32.xlu0 %v1920, 108
      %v1970 = vpop.permute.xlu0 %1969
      %1971 = vrot.lane.b32.xlu0 %v1922, 108
      %v1972 = vpop.permute.xlu0 %1971
      %1973 = vrot.lane.b32.xlu0 %v1924, 108
      %v1974 = vpop.permute.xlu0 %1973
      %1975 = vrot.lane.b32.xlu0 %v1926, 108
      %v1976 = vpop.permute.xlu0 %1975
      %1977 = vrot.lane.b32.xlu0 %v1928, 108
      %v1978 = vpop.permute.xlu0 %1977
      %1979 = vrot.lane.b32.xlu0 %v1930, 108
      %v1980 = vpop.permute.xlu0 %1979
      %1981 = vrot.lane.b32.xlu0 %v1932, 108
      %v1982 = vpop.permute.xlu0 %1981
      %1983 = vrot.lane.b32.xlu0 %v1934, 108
      %v1984 = vpop.permute.xlu0 %1983
      %1985 = vrot.lane.b32.xlu0 %v1936, 108
      %v1986 = vpop.permute.xlu0 %1985
      %1987 = vrot.lane.b32.xlu0 %v1938, 108
      %v1988 = vpop.permute.xlu0 %1987
      %1989 = vrot.lane.b32.xlu0 %v1940, 108
      %v1990 = vpop.permute.xlu0 %1989
      %1991 = vrot.lane.b32.xlu0 %v1942, 108
      %v1992 = vpop.permute.xlu0 %1991
      %1993 = vrot.lane.b32.xlu0 %v1944, 108
      %v1994 = vpop.permute.xlu0 %1993
      %1995 = vrot.lane.b32.xlu0 %v1946, 108
      %v1996 = vpop.permute.xlu0 %1995
      %1997 = vrot.lane.b32.xlu0 %v1948, 108
      %v1998 = vpop.permute.xlu0 %1997
      %1999 = vrot.lane.b32.xlu0 %v1950, 108
      %v2000 = vpop.permute.xlu0 %1999
      %2001 = vrot.lane.b32.xlu0 %v1952, 108
      %v2002 = vpop.permute.xlu0 %2001
      %v2028 = vadd.f32 %v1754, %v1954
      %v2029 = vadd.f32 %v1755, %v1956
      %v2030 = vadd.f32 %v1756, %v1958
      %v2031 = vadd.f32 %v1757, %v1960
      %v2032 = vadd.f32 %v1758, %v1962
      %v2033 = vadd.f32 %v1759, %v1964
      %v2034 = vadd.f32 %v1760, %v1966
      %v2035 = vadd.f32 %v1761, %v1968
      %v2036 = vadd.f32 %v1762, %v1970
      %v2037 = vadd.f32 %v1763, %v1972
      %v2038 = vadd.f32 %v1764, %v1974
      %v2039 = vadd.f32 %v1765, %v1976
      %v2040 = vadd.f32 %v1766, %v1978
      %v2041 = vadd.f32 %v1767, %v1980
      %v2042 = vadd.f32 %v1768, %v1982
      %v2043 = vadd.f32 %v1769, %v1984
      %v2044 = vadd.f32 %v1770, %v1986
      %v2045 = vadd.f32 %v1771, %v1988
      %v2046 = vadd.f32 %v1772, %v1990
      %v2047 = vadd.f32 %v1773, %v1992
      %v2048 = vadd.f32 %v1774, %v1994
      %v2049 = vadd.f32 %v1775, %v1996
      %v2050 = vadd.f32 %v1776, %v1998
      %v2051 = vadd.f32 %v1777, %v2000
      %v2052 = vadd.f32 %v1778, %v2002
      %v2053 = vmul.f32 %v777, %v906
      %v2054 = vmul.f32 %v780, %v908
      %v2055 = vmul.f32 %v785, %v910
      %v2056 = vmul.f32 %v788, %v912
      %v2057 = vmul.f32 %v793, %v914
      %v2058 = vmul.f32 %v796, %v916
      %v2059 = vmul.f32 %v801, %v918
      %v2060 = vmul.f32 %v804, %v920
      %v2061 = vmul.f32 %v809, %v922
      %v2062 = vmul.f32 %v812, %v924
      %v2063 = vmul.f32 %v817, %v926
      %v2064 = vmul.f32 %v820, %v928
      %v2065 = vmul.f32 %v825, %v930
      %v2066 = vmul.f32 %v828, %v932
      %v2067 = vmul.f32 %v833, %v934
      %v2068 = vmul.f32 %v836, %v936
      %v2069 = vmul.f32 %v841, %v938
      %v2070 = vmul.f32 %v844, %v940
      %v2071 = vmul.f32 %v849, %v942
      %v2072 = vmul.f32 %v852, %v944
      %v2073 = vmul.f32 %v857, %v946
      %v2074 = vmul.f32 %v860, %v948
      %v2075 = vmul.f32 %v865, %v950
      %v2076 = vmul.f32 %v868, %v952
      %v2077 = vmul.f32 %v879, %v954
      %2103 = vrot.lane.b32.xlu0 %v2053, 103
      %v2104 = vpop.permute.xlu0 %2103
      %2105 = vrot.lane.b32.xlu0 %v2054, 103
      %v2106 = vpop.permute.xlu0 %2105
      %2107 = vrot.lane.b32.xlu0 %v2055, 103
      %v2108 = vpop.permute.xlu0 %2107
      %2109 = vrot.lane.b32.xlu0 %v2056, 103
      %v2110 = vpop.permute.xlu0 %2109
      %2111 = vrot.lane.b32.xlu0 %v2057, 103
      %v2112 = vpop.permute.xlu0 %2111
      %2113 = vrot.lane.b32.xlu0 %v2058, 103
      %v2114 = vpop.permute.xlu0 %2113
      %2115 = vrot.lane.b32.xlu0 %v2059, 103
      %v2116 = vpop.permute.xlu0 %2115
      %2117 = vrot.lane.b32.xlu0 %v2060, 103
      %v2118 = vpop.permute.xlu0 %2117
      %2119 = vrot.lane.b32.xlu0 %v2061, 103
      %v2120 = vpop.permute.xlu0 %2119
      %2121 = vrot.lane.b32.xlu0 %v2062, 103
      %v2122 = vpop.permute.xlu0 %2121
      %2123 = vrot.lane.b32.xlu0 %v2063, 103
      %v2124 = vpop.permute.xlu0 %2123
      %2125 = vrot.lane.b32.xlu0 %v2064, 103
      %v2126 = vpop.permute.xlu0 %2125
      %2127 = vrot.lane.b32.xlu0 %v2065, 103
      %v2128 = vpop.permute.xlu0 %2127
      %2129 = vrot.lane.b32.xlu0 %v2066, 103
      %v2130 = vpop.permute.xlu0 %2129
      %2131 = vrot.lane.b32.xlu0 %v2067, 103
      %v2132 = vpop.permute.xlu0 %2131
      %2133 = vrot.lane.b32.xlu0 %v2068, 103
      %v2134 = vpop.permute.xlu0 %2133
      %2135 = vrot.lane.b32.xlu0 %v2069, 103
      %v2136 = vpop.permute.xlu0 %2135
      %2137 = vrot.lane.b32.xlu0 %v2070, 103
      %v2138 = vpop.permute.xlu0 %2137
      %2139 = vrot.lane.b32.xlu0 %v2071, 103
      %v2140 = vpop.permute.xlu0 %2139
      %2141 = vrot.lane.b32.xlu0 %v2072, 103
      %v2142 = vpop.permute.xlu0 %2141
      %2143 = vrot.lane.b32.xlu0 %v2073, 103
      %v2144 = vpop.permute.xlu0 %2143
      %2145 = vrot.lane.b32.xlu0 %v2074, 103
      %v2146 = vpop.permute.xlu0 %2145
      %2147 = vrot.lane.b32.xlu0 %v2075, 103
      %v2148 = vpop.permute.xlu0 %2147
      %2149 = vrot.lane.b32.xlu0 %v2076, 103
      %v2150 = vpop.permute.xlu0 %2149
      %2151 = vrot.lane.b32.xlu0 %v2077, 103
      %v2152 = vpop.permute.xlu0 %2151
      %v2178 = vadd.f32 %v2028, %v2104
      %v2179 = vadd.f32 %v2029, %v2106
      %v2180 = vadd.f32 %v2030, %v2108
      %v2181 = vadd.f32 %v2031, %v2110
      %v2182 = vadd.f32 %v2032, %v2112
      %v2183 = vadd.f32 %v2033, %v2114
      %v2184 = vadd.f32 %v2034, %v2116
      %v2185 = vadd.f32 %v2035, %v2118
      %v2186 = vadd.f32 %v2036, %v2120
      %v2187 = vadd.f32 %v2037, %v2122
      %v2188 = vadd.f32 %v2038, %v2124
      %v2189 = vadd.f32 %v2039, %v2126
      %v2190 = vadd.f32 %v2040, %v2128
      %v2191 = vadd.f32 %v2041, %v2130
      %v2192 = vadd.f32 %v2042, %v2132
      %v2193 = vadd.f32 %v2043, %v2134
      %v2194 = vadd.f32 %v2044, %v2136
      %v2195 = vadd.f32 %v2045, %v2138
      %v2196 = vadd.f32 %v2046, %v2140
      %v2197 = vadd.f32 %v2047, %v2142
      %v2198 = vadd.f32 %v2048, %v2144
      %v2199 = vadd.f32 %v2049, %v2146
      %v2200 = vadd.f32 %v2050, %v2148
      %v2201 = vadd.f32 %v2051, %v2150
      %v2202 = vadd.f32 %v2052, %v2152
      %v2203 = vrot.slane %v321, 2
      %v2204 = vrot.slane %v322, 2
      %v2205 = vsel %vm1430, %v2203, %v2204
      %v2206 = vrot.slane %v323, 2
      %v2207 = vsel %vm1430, %v2204, %v2206
      %v2208 = vrot.slane %v324, 2
      %v2209 = vsel %vm1430, %v2206, %v2208
      %v2210 = vrot.slane %v325, 2
      %v2211 = vsel %vm1430, %v2208, %v2210
      %v2212 = vrot.slane %v326, 2
      %v2213 = vsel %vm1430, %v2210, %v2212
      %v2214 = vrot.slane %v327, 2
      %v2215 = vsel %vm1430, %v2212, %v2214
      %v2216 = vrot.slane %v328, 2
      %v2217 = vsel %vm1430, %v2214, %v2216
      %v2218 = vrot.slane %v329, 2
      %v2219 = vsel %vm1430, %v2216, %v2218
      %v2220 = vrot.slane %v330, 2
      %v2221 = vsel %vm1430, %v2218, %v2220
      %v2222 = vrot.slane %v331, 2
      %v2223 = vsel %vm1430, %v2220, %v2222
      %v2224 = vrot.slane %v332, 2
      %v2225 = vsel %vm1430, %v2222, %v2224
      %v2226 = vrot.slane %v333, 2
      %v2227 = vsel %vm1430, %v2224, %v2226
      %v2228 = vrot.slane %v334, 2
      %v2229 = vsel %vm1430, %v2226, %v2228
      %v2230 = vrot.slane %v335, 2
      %v2231 = vsel %vm1430, %v2228, %v2230
      %v2232 = vrot.slane %v336, 2
      %v2233 = vsel %vm1430, %v2230, %v2232
      %v2234 = vrot.slane %v337, 2
      %v2235 = vsel %vm1430, %v2232, %v2234
      %v2236 = vrot.slane %v338, 2
      %v2237 = vsel %vm1430, %v2234, %v2236
      %v2238 = vrot.slane %v339, 2
      %v2239 = vsel %vm1430, %v2236, %v2238
      %v2240 = vrot.slane %v340, 2
      %v2241 = vsel %vm1430, %v2238, %v2240
      %v2242 = vrot.slane %v341, 2
      %v2243 = vsel %vm1430, %v2240, %v2242
      %v2244 = vrot.slane %v342, 2
      %v2245 = vsel %vm1430, %v2242, %v2244
      %v2246 = vrot.slane %v343, 2
      %v2247 = vsel %vm1430, %v2244, %v2246
      %v2248 = vrot.slane %v344, 2
      %v2249 = vsel %vm1430, %v2246, %v2248
      %v2250 = vrot.slane %v345, 2
      %v2251 = vsel %vm1430, %v2248, %v2250
      %v2278 = vmul.f32 %v780, %v2203
      %v2279 = vmul.f32 %v785, %v2205
      %v2280 = vmul.f32 %v788, %v2207
      %v2281 = vmul.f32 %v793, %v2209
      %v2282 = vmul.f32 %v796, %v2211
      %v2283 = vmul.f32 %v801, %v2213
      %v2284 = vmul.f32 %v804, %v2215
      %v2285 = vmul.f32 %v809, %v2217
      %v2286 = vmul.f32 %v812, %v2219
      %v2287 = vmul.f32 %v817, %v2221
      %v2288 = vmul.f32 %v820, %v2223
      %v2289 = vmul.f32 %v825, %v2225
      %v2290 = vmul.f32 %v828, %v2227
      %v2291 = vmul.f32 %v833, %v2229
      %v2292 = vmul.f32 %v836, %v2231
      %v2293 = vmul.f32 %v841, %v2233
      %v2294 = vmul.f32 %v844, %v2235
      %v2295 = vmul.f32 %v849, %v2237
      %v2296 = vmul.f32 %v852, %v2239
      %v2297 = vmul.f32 %v857, %v2241
      %v2298 = vmul.f32 %v860, %v2243
      %v2299 = vmul.f32 %v865, %v2245
      %v2300 = vmul.f32 %v868, %v2247
      %v2301 = vmul.f32 %v879, %v2249
      %v2302 = vmul.f32 %v2251, 0.0
      %v2303 = vmul.f32 %v2250, 0.0
      %v2330 = vrot.slane %v2278, 4
      %v2331 = vrot.slane %v2279, 4
      %v2332 = vsel %vm1305, %v2330, %v2331
      %v2333 = vrot.slane %v2280, 4
      %v2334 = vsel %vm1305, %v2331, %v2333
      %v2335 = vrot.slane %v2281, 4
      %v2336 = vsel %vm1305, %v2333, %v2335
      %v2337 = vrot.slane %v2282, 4
      %v2338 = vsel %vm1305, %v2335, %v2337
      %v2339 = vrot.slane %v2283, 4
      %v2340 = vsel %vm1305, %v2337, %v2339
      %v2341 = vrot.slane %v2284, 4
      %v2342 = vsel %vm1305, %v2339, %v2341
      %v2343 = vrot.slane %v2285, 4
      %v2344 = vsel %vm1305, %v2341, %v2343
      %v2345 = vrot.slane %v2286, 4
      %v2346 = vsel %vm1305, %v2343, %v2345
      %v2347 = vrot.slane %v2287, 4
      %v2348 = vsel %vm1305, %v2345, %v2347
      %v2349 = vrot.slane %v2288, 4
      %v2350 = vsel %vm1305, %v2347, %v2349
      %v2351 = vrot.slane %v2289, 4
      %v2352 = vsel %vm1305, %v2349, %v2351
      %v2353 = vrot.slane %v2290, 4
      %v2354 = vsel %vm1305, %v2351, %v2353
      %v2355 = vrot.slane %v2291, 4
      %v2356 = vsel %vm1305, %v2353, %v2355
      %v2357 = vrot.slane %v2292, 4
      %v2358 = vsel %vm1305, %v2355, %v2357
      %v2359 = vrot.slane %v2293, 4
      %v2360 = vsel %vm1305, %v2357, %v2359
      %v2361 = vrot.slane %v2294, 4
      %v2362 = vsel %vm1305, %v2359, %v2361
      %v2363 = vrot.slane %v2295, 4
      %v2364 = vsel %vm1305, %v2361, %v2363
      %v2365 = vrot.slane %v2296, 4
      %v2366 = vsel %vm1305, %v2363, %v2365
      %v2367 = vrot.slane %v2297, 4
      %v2368 = vsel %vm1305, %v2365, %v2367
      %v2369 = vrot.slane %v2298, 4
      %v2370 = vsel %vm1305, %v2367, %v2369
      %v2371 = vrot.slane %v2299, 4
      %v2372 = vsel %vm1305, %v2369, %v2371
      %v2373 = vrot.slane %v2300, 4
      %v2374 = vsel %vm1305, %v2371, %v2373
      %v2375 = vrot.slane %v2301, 4
      %v2376 = vsel %vm1305, %v2373, %v2375
      %v2377 = vrot.slane %v2302, 4
      %v2378 = vsel %vm1305, %v2375, %v2377
      %v2379 = vrot.slane %v2303, 4
      %v2380 = vsel %vm1305, %v2377, %v2379
      %2381 = vrot.lane.b32.xlu0 %v2332, 98
      %v2382 = vpop.permute.xlu0 %2381
      %2383 = vrot.lane.b32.xlu0 %v2334, 98
      %v2384 = vpop.permute.xlu0 %2383
      %2385 = vrot.lane.b32.xlu0 %v2336, 98
      %v2386 = vpop.permute.xlu0 %2385
      %2387 = vrot.lane.b32.xlu0 %v2338, 98
      %v2388 = vpop.permute.xlu0 %2387
      %2389 = vrot.lane.b32.xlu0 %v2340, 98
      %v2390 = vpop.permute.xlu0 %2389
      %2391 = vrot.lane.b32.xlu0 %v2342, 98
      %v2392 = vpop.permute.xlu0 %2391
      %2393 = vrot.lane.b32.xlu0 %v2344, 98
      %v2394 = vpop.permute.xlu0 %2393
      %2395 = vrot.lane.b32.xlu0 %v2346, 98
      %v2396 = vpop.permute.xlu0 %2395
      %2397 = vrot.lane.b32.xlu0 %v2348, 98
      %v2398 = vpop.permute.xlu0 %2397
      %2399 = vrot.lane.b32.xlu0 %v2350, 98
      %v2400 = vpop.permute.xlu0 %2399
      %2401 = vrot.lane.b32.xlu0 %v2352, 98
      %v2402 = vpop.permute.xlu0 %2401
      %2403 = vrot.lane.b32.xlu0 %v2354, 98
      %v2404 = vpop.permute.xlu0 %2403
      %2405 = vrot.lane.b32.xlu0 %v2356, 98
      %v2406 = vpop.permute.xlu0 %2405
      %2407 = vrot.lane.b32.xlu0 %v2358, 98
      %v2408 = vpop.permute.xlu0 %2407
      %2409 = vrot.lane.b32.xlu0 %v2360, 98
      %v2410 = vpop.permute.xlu0 %2409
      %2411 = vrot.lane.b32.xlu0 %v2362, 98
      %v2412 = vpop.permute.xlu0 %2411
      %2413 = vrot.lane.b32.xlu0 %v2364, 98
      %v2414 = vpop.permute.xlu0 %2413
      %2415 = vrot.lane.b32.xlu0 %v2366, 98
      %v2416 = vpop.permute.xlu0 %2415
      %2417 = vrot.lane.b32.xlu0 %v2368, 98
      %v2418 = vpop.permute.xlu0 %2417
      %2419 = vrot.lane.b32.xlu0 %v2370, 98
      %v2420 = vpop.permute.xlu0 %2419
      %2421 = vrot.lane.b32.xlu0 %v2372, 98
      %v2422 = vpop.permute.xlu0 %2421
      %2423 = vrot.lane.b32.xlu0 %v2374, 98
      %v2424 = vpop.permute.xlu0 %2423
      %2425 = vrot.lane.b32.xlu0 %v2376, 98
      %v2426 = vpop.permute.xlu0 %2425
      %2427 = vrot.lane.b32.xlu0 %v2378, 98
      %v2428 = vpop.permute.xlu0 %2427
      %2429 = vrot.lane.b32.xlu0 %v2380, 98
      %v2430 = vpop.permute.xlu0 %2429
      %v2456 = vadd.f32 %v2178, %v2382
      %v2457 = vadd.f32 %v2179, %v2384
      %v2458 = vadd.f32 %v2180, %v2386
      %v2459 = vadd.f32 %v2181, %v2388
      %v2460 = vadd.f32 %v2182, %v2390
      %v2461 = vadd.f32 %v2183, %v2392
      %v2462 = vadd.f32 %v2184, %v2394
      %v2463 = vadd.f32 %v2185, %v2396
      %v2464 = vadd.f32 %v2186, %v2398
      %v2465 = vadd.f32 %v2187, %v2400
      %v2466 = vadd.f32 %v2188, %v2402
      %v2467 = vadd.f32 %v2189, %v2404
      %v2468 = vadd.f32 %v2190, %v2406
      %v2469 = vadd.f32 %v2191, %v2408
      %v2470 = vadd.f32 %v2192, %v2410
      %v2471 = vadd.f32 %v2193, %v2412
      %v2472 = vadd.f32 %v2194, %v2414
      %v2473 = vadd.f32 %v2195, %v2416
      %v2474 = vadd.f32 %v2196, %v2418
      %v2475 = vadd.f32 %v2197, %v2420
      %v2476 = vadd.f32 %v2198, %v2422
      %v2477 = vadd.f32 %v2199, %v2424
      %v2478 = vadd.f32 %v2200, %v2426
      %v2479 = vadd.f32 %v2201, %v2428
      %v2480 = vadd.f32 %v2202, %v2430
      %v2481 = vrot.slane %v321, 1
      %v2482 = vrot.slane %v322, 1
      %v2483 = vsel %vm1155, %v2481, %v2482
      %v2484 = vrot.slane %v323, 1
      %v2485 = vsel %vm1155, %v2482, %v2484
      %v2486 = vrot.slane %v324, 1
      %v2487 = vsel %vm1155, %v2484, %v2486
      %v2488 = vrot.slane %v325, 1
      %v2489 = vsel %vm1155, %v2486, %v2488
      %v2490 = vrot.slane %v326, 1
      %v2491 = vsel %vm1155, %v2488, %v2490
      %v2492 = vrot.slane %v327, 1
      %v2493 = vsel %vm1155, %v2490, %v2492
      %v2494 = vrot.slane %v328, 1
      %v2495 = vsel %vm1155, %v2492, %v2494
      %v2496 = vrot.slane %v329, 1
      %v2497 = vsel %vm1155, %v2494, %v2496
      %v2498 = vrot.slane %v330, 1
      %v2499 = vsel %vm1155, %v2496, %v2498
      %v2500 = vrot.slane %v331, 1
      %v2501 = vsel %vm1155, %v2498, %v2500
      %v2502 = vrot.slane %v332, 1
      %v2503 = vsel %vm1155, %v2500, %v2502
      %v2504 = vrot.slane %v333, 1
      %v2505 = vsel %vm1155, %v2502, %v2504
      %v2506 = vrot.slane %v334, 1
      %v2507 = vsel %vm1155, %v2504, %v2506
      %v2508 = vrot.slane %v335, 1
      %v2509 = vsel %vm1155, %v2506, %v2508
      %v2510 = vrot.slane %v336, 1
      %v2511 = vsel %vm1155, %v2508, %v2510
      %v2512 = vrot.slane %v337, 1
      %v2513 = vsel %vm1155, %v2510, %v2512
      %v2514 = vrot.slane %v338, 1
      %v2515 = vsel %vm1155, %v2512, %v2514
      %v2516 = vrot.slane %v339, 1
      %v2517 = vsel %vm1155, %v2514, %v2516
      %v2518 = vrot.slane %v340, 1
      %v2519 = vsel %vm1155, %v2516, %v2518
      %v2520 = vrot.slane %v341, 1
      %v2521 = vsel %vm1155, %v2518, %v2520
      %v2522 = vrot.slane %v342, 1
      %v2523 = vsel %vm1155, %v2520, %v2522
      %v2524 = vrot.slane %v343, 1
      %v2525 = vsel %vm1155, %v2522, %v2524
      %v2526 = vrot.slane %v344, 1
      %v2527 = vsel %vm1155, %v2524, %v2526
      %v2528 = vrot.slane %v345, 1
      %v2529 = vsel %vm1155, %v2526, %v2528
      %v2556 = vmul.f32 %v780, %v2481
      %v2557 = vmul.f32 %v785, %v2483
      %v2558 = vmul.f32 %v788, %v2485
      %v2559 = vmul.f32 %v793, %v2487
      %v2560 = vmul.f32 %v796, %v2489
      %v2561 = vmul.f32 %v801, %v2491
      %v2562 = vmul.f32 %v804, %v2493
      %v2563 = vmul.f32 %v809, %v2495
      %v2564 = vmul.f32 %v812, %v2497
      %v2565 = vmul.f32 %v817, %v2499
      %v2566 = vmul.f32 %v820, %v2501
      %v2567 = vmul.f32 %v825, %v2503
      %v2568 = vmul.f32 %v828, %v2505
      %v2569 = vmul.f32 %v833, %v2507
      %v2570 = vmul.f32 %v836, %v2509
      %v2571 = vmul.f32 %v841, %v2511
      %v2572 = vmul.f32 %v844, %v2513
      %v2573 = vmul.f32 %v849, %v2515
      %v2574 = vmul.f32 %v852, %v2517
      %v2575 = vmul.f32 %v857, %v2519
      %v2576 = vmul.f32 %v860, %v2521
      %v2577 = vmul.f32 %v865, %v2523
      %v2578 = vmul.f32 %v868, %v2525
      %v2579 = vmul.f32 %v879, %v2527
      %v2580 = vmul.f32 %v2529, 0.0
      %v2581 = vmul.f32 %v2528, 0.0
      %v2608 = vrot.slane %v2556, 5
      %v2609 = vrot.slane %v2557, 5
      %v2610 = vsel %vm1030, %v2608, %v2609
      %v2611 = vrot.slane %v2558, 5
      %v2612 = vsel %vm1030, %v2609, %v2611
      %v2613 = vrot.slane %v2559, 5
      %v2614 = vsel %vm1030, %v2611, %v2613
      %v2615 = vrot.slane %v2560, 5
      %v2616 = vsel %vm1030, %v2613, %v2615
      %v2617 = vrot.slane %v2561, 5
      %v2618 = vsel %vm1030, %v2615, %v2617
      %v2619 = vrot.slane %v2562, 5
      %v2620 = vsel %vm1030, %v2617, %v2619
      %v2621 = vrot.slane %v2563, 5
      %v2622 = vsel %vm1030, %v2619, %v2621
      %v2623 = vrot.slane %v2564, 5
      %v2624 = vsel %vm1030, %v2621, %v2623
      %v2625 = vrot.slane %v2565, 5
      %v2626 = vsel %vm1030, %v2623, %v2625
      %v2627 = vrot.slane %v2566, 5
      %v2628 = vsel %vm1030, %v2625, %v2627
      %v2629 = vrot.slane %v2567, 5
      %v2630 = vsel %vm1030, %v2627, %v2629
      %v2631 = vrot.slane %v2568, 5
      %v2632 = vsel %vm1030, %v2629, %v2631
      %v2633 = vrot.slane %v2569, 5
      %v2634 = vsel %vm1030, %v2631, %v2633
      %v2635 = vrot.slane %v2570, 5
      %v2636 = vsel %vm1030, %v2633, %v2635
      %v2637 = vrot.slane %v2571, 5
      %v2638 = vsel %vm1030, %v2635, %v2637
      %v2639 = vrot.slane %v2572, 5
      %v2640 = vsel %vm1030, %v2637, %v2639
      %v2641 = vrot.slane %v2573, 5
      %v2642 = vsel %vm1030, %v2639, %v2641
      %v2643 = vrot.slane %v2574, 5
      %v2644 = vsel %vm1030, %v2641, %v2643
      %v2645 = vrot.slane %v2575, 5
      %v2646 = vsel %vm1030, %v2643, %v2645
      %v2647 = vrot.slane %v2576, 5
      %v2648 = vsel %vm1030, %v2645, %v2647
      %v2649 = vrot.slane %v2577, 5
      %v2650 = vsel %vm1030, %v2647, %v2649
      %v2651 = vrot.slane %v2578, 5
      %v2652 = vsel %vm1030, %v2649, %v2651
      %v2653 = vrot.slane %v2579, 5
      %v2654 = vsel %vm1030, %v2651, %v2653
      %v2655 = vrot.slane %v2580, 5
      %v2656 = vsel %vm1030, %v2653, %v2655
      %v2657 = vrot.slane %v2581, 5
      %v2658 = vsel %vm1030, %v2655, %v2657
      %2659 = vrot.lane.b32.xlu0 %v2610, 93
      %v2660 = vpop.permute.xlu0 %2659
      %2661 = vrot.lane.b32.xlu0 %v2612, 93
      %v2662 = vpop.permute.xlu0 %2661
      %2663 = vrot.lane.b32.xlu0 %v2614, 93
      %v2664 = vpop.permute.xlu0 %2663
      %2665 = vrot.lane.b32.xlu0 %v2616, 93
      %v2666 = vpop.permute.xlu0 %2665
      %2667 = vrot.lane.b32.xlu0 %v2618, 93
      %v2668 = vpop.permute.xlu0 %2667
      %2669 = vrot.lane.b32.xlu0 %v2620, 93
      %v2670 = vpop.permute.xlu0 %2669
      %2671 = vrot.lane.b32.xlu0 %v2622, 93
      %v2672 = vpop.permute.xlu0 %2671
      %2673 = vrot.lane.b32.xlu0 %v2624, 93
      %v2674 = vpop.permute.xlu0 %2673
      %2675 = vrot.lane.b32.xlu0 %v2626, 93
      %v2676 = vpop.permute.xlu0 %2675
      %2677 = vrot.lane.b32.xlu0 %v2628, 93
      %v2678 = vpop.permute.xlu0 %2677
      %2679 = vrot.lane.b32.xlu0 %v2630, 93
      %v2680 = vpop.permute.xlu0 %2679
      %2681 = vrot.lane.b32.xlu0 %v2632, 93
      %v2682 = vpop.permute.xlu0 %2681
      %2683 = vrot.lane.b32.xlu0 %v2634, 93
      %v2684 = vpop.permute.xlu0 %2683
      %2685 = vrot.lane.b32.xlu0 %v2636, 93
      %v2686 = vpop.permute.xlu0 %2685
      %2687 = vrot.lane.b32.xlu0 %v2638, 93
      %v2688 = vpop.permute.xlu0 %2687
      %2689 = vrot.lane.b32.xlu0 %v2640, 93
      %v2690 = vpop.permute.xlu0 %2689
      %2691 = vrot.lane.b32.xlu0 %v2642, 93
      %v2692 = vpop.permute.xlu0 %2691
      %2693 = vrot.lane.b32.xlu0 %v2644, 93
      %v2694 = vpop.permute.xlu0 %2693
      %2695 = vrot.lane.b32.xlu0 %v2646, 93
      %v2696 = vpop.permute.xlu0 %2695
      %2697 = vrot.lane.b32.xlu0 %v2648, 93
      %v2698 = vpop.permute.xlu0 %2697
      %2699 = vrot.lane.b32.xlu0 %v2650, 93
      %v2700 = vpop.permute.xlu0 %2699
      %2701 = vrot.lane.b32.xlu0 %v2652, 93
      %v2702 = vpop.permute.xlu0 %2701
      %2703 = vrot.lane.b32.xlu0 %v2654, 93
      %v2704 = vpop.permute.xlu0 %2703
      %2705 = vrot.lane.b32.xlu0 %v2656, 93
      %v2706 = vpop.permute.xlu0 %2705
      %2707 = vrot.lane.b32.xlu0 %v2658, 93
      %v2708 = vpop.permute.xlu0 %2707
      %v2734 = vadd.f32 %v2456, %v2660
      %v2735 = vadd.f32 %v2457, %v2662
      %v2736 = vadd.f32 %v2458, %v2664
      %v2737 = vadd.f32 %v2459, %v2666
      %v2738 = vadd.f32 %v2460, %v2668
      %v2739 = vadd.f32 %v2461, %v2670
      %v2740 = vadd.f32 %v2462, %v2672
      %v2741 = vadd.f32 %v2463, %v2674
      %v2742 = vadd.f32 %v2464, %v2676
      %v2743 = vadd.f32 %v2465, %v2678
      %v2744 = vadd.f32 %v2466, %v2680
      %v2745 = vadd.f32 %v2467, %v2682
      %v2746 = vadd.f32 %v2468, %v2684
      %v2747 = vadd.f32 %v2469, %v2686
      %v2748 = vadd.f32 %v2470, %v2688
      %v2749 = vadd.f32 %v2471, %v2690
      %v2750 = vadd.f32 %v2472, %v2692
      %v2751 = vadd.f32 %v2473, %v2694
      %v2752 = vadd.f32 %v2474, %v2696
      %v2753 = vadd.f32 %v2475, %v2698
      %v2754 = vadd.f32 %v2476, %v2700
      %v2755 = vadd.f32 %v2477, %v2702
      %v2756 = vadd.f32 %v2478, %v2704
      %v2757 = vadd.f32 %v2479, %v2706
      %v2758 = vadd.f32 %v2480, %v2708
      %v2759 = vmul.f32 %v785, %v321
      %v2760 = vmul.f32 %v788, %v322
      %v2761 = vmul.f32 %v793, %v323
      %v2762 = vmul.f32 %v796, %v324
      %v2763 = vmul.f32 %v801, %v325
      %v2764 = vmul.f32 %v804, %v326
      %v2765 = vmul.f32 %v809, %v327
      %v2766 = vmul.f32 %v812, %v328
      %v2767 = vmul.f32 %v817, %v329
      %v2768 = vmul.f32 %v820, %v330
      %v2769 = vmul.f32 %v825, %v331
      %v2770 = vmul.f32 %v828, %v332
      %v2771 = vmul.f32 %v833, %v333
      %v2772 = vmul.f32 %v836, %v334
      %v2773 = vmul.f32 %v841, %v335
      %v2774 = vmul.f32 %v844, %v336
      %v2775 = vmul.f32 %v849, %v337
      %v2776 = vmul.f32 %v852, %v338
      %v2777 = vmul.f32 %v857, %v339
      %v2778 = vmul.f32 %v860, %v340
      %v2779 = vmul.f32 %v865, %v341
      %v2780 = vmul.f32 %v868, %v342
      %v2781 = vmul.f32 %v879, %v343
      %v2782 = vmul.f32 %v344, 0.0
      %v2783 = vmul.f32 %v345, 0.0
      %v2809 = vrot.slane %v2759, 6
      %v2810 = vrot.slane %v2760, 6
      %v2811 = vsel %vm905, %v2809, %v2810
      %v2812 = vrot.slane %v2761, 6
      %v2813 = vsel %vm905, %v2810, %v2812
      %v2814 = vrot.slane %v2762, 6
      %v2815 = vsel %vm905, %v2812, %v2814
      %v2816 = vrot.slane %v2763, 6
      %v2817 = vsel %vm905, %v2814, %v2816
      %v2818 = vrot.slane %v2764, 6
      %v2819 = vsel %vm905, %v2816, %v2818
      %v2820 = vrot.slane %v2765, 6
      %v2821 = vsel %vm905, %v2818, %v2820
      %v2822 = vrot.slane %v2766, 6
      %v2823 = vsel %vm905, %v2820, %v2822
      %v2824 = vrot.slane %v2767, 6
      %v2825 = vsel %vm905, %v2822, %v2824
      %v2826 = vrot.slane %v2768, 6
      %v2827 = vsel %vm905, %v2824, %v2826
      %v2828 = vrot.slane %v2769, 6
      %v2829 = vsel %vm905, %v2826, %v2828
      %v2830 = vrot.slane %v2770, 6
      %v2831 = vsel %vm905, %v2828, %v2830
      %v2832 = vrot.slane %v2771, 6
      %v2833 = vsel %vm905, %v2830, %v2832
      %v2834 = vrot.slane %v2772, 6
      %v2835 = vsel %vm905, %v2832, %v2834
      %v2836 = vrot.slane %v2773, 6
      %v2837 = vsel %vm905, %v2834, %v2836
      %v2838 = vrot.slane %v2774, 6
      %v2839 = vsel %vm905, %v2836, %v2838
      %v2840 = vrot.slane %v2775, 6
      %v2841 = vsel %vm905, %v2838, %v2840
      %v2842 = vrot.slane %v2776, 6
      %v2843 = vsel %vm905, %v2840, %v2842
      %v2844 = vrot.slane %v2777, 6
      %v2845 = vsel %vm905, %v2842, %v2844
      %v2846 = vrot.slane %v2778, 6
      %v2847 = vsel %vm905, %v2844, %v2846
      %v2848 = vrot.slane %v2779, 6
      %v2849 = vsel %vm905, %v2846, %v2848
      %v2850 = vrot.slane %v2780, 6
      %v2851 = vsel %vm905, %v2848, %v2850
      %v2852 = vrot.slane %v2781, 6
      %v2853 = vsel %vm905, %v2850, %v2852
      %v2854 = vrot.slane %v2782, 6
      %v2855 = vsel %vm905, %v2852, %v2854
      %v2856 = vrot.slane %v2783, 6
      %v2857 = vsel %vm905, %v2854, %v2856
      %2858 = vrot.lane.b32.xlu0 %v2809, 88
      %v2859 = vpop.permute.xlu0 %2858
      %2860 = vrot.lane.b32.xlu0 %v2811, 88
      %v2861 = vpop.permute.xlu0 %2860
      %2862 = vrot.lane.b32.xlu0 %v2813, 88
      %v2863 = vpop.permute.xlu0 %2862
      %2864 = vrot.lane.b32.xlu0 %v2815, 88
      %v2865 = vpop.permute.xlu0 %2864
      %2866 = vrot.lane.b32.xlu0 %v2817, 88
      %v2867 = vpop.permute.xlu0 %2866
      %2868 = vrot.lane.b32.xlu0 %v2819, 88
      %v2869 = vpop.permute.xlu0 %2868
      %2870 = vrot.lane.b32.xlu0 %v2821, 88
      %v2871 = vpop.permute.xlu0 %2870
      %2872 = vrot.lane.b32.xlu0 %v2823, 88
      %v2873 = vpop.permute.xlu0 %2872
      %2874 = vrot.lane.b32.xlu0 %v2825, 88
      %v2875 = vpop.permute.xlu0 %2874
      %2876 = vrot.lane.b32.xlu0 %v2827, 88
      %v2877 = vpop.permute.xlu0 %2876
      %2878 = vrot.lane.b32.xlu0 %v2829, 88
      %v2879 = vpop.permute.xlu0 %2878
      %2880 = vrot.lane.b32.xlu0 %v2831, 88
      %v2881 = vpop.permute.xlu0 %2880
      %2882 = vrot.lane.b32.xlu0 %v2833, 88
      %v2883 = vpop.permute.xlu0 %2882
      %2884 = vrot.lane.b32.xlu0 %v2835, 88
      %v2885 = vpop.permute.xlu0 %2884
      %2886 = vrot.lane.b32.xlu0 %v2837, 88
      %v2887 = vpop.permute.xlu0 %2886
      %2888 = vrot.lane.b32.xlu0 %v2839, 88
      %v2889 = vpop.permute.xlu0 %2888
      %2890 = vrot.lane.b32.xlu0 %v2841, 88
      %v2891 = vpop.permute.xlu0 %2890
      %2892 = vrot.lane.b32.xlu0 %v2843, 88
      %v2893 = vpop.permute.xlu0 %2892
      %2894 = vrot.lane.b32.xlu0 %v2845, 88
      %v2895 = vpop.permute.xlu0 %2894
      %2896 = vrot.lane.b32.xlu0 %v2847, 88
      %v2897 = vpop.permute.xlu0 %2896
      %2898 = vrot.lane.b32.xlu0 %v2849, 88
      %v2899 = vpop.permute.xlu0 %2898
      %2900 = vrot.lane.b32.xlu0 %v2851, 88
      %v2901 = vpop.permute.xlu0 %2900
      %2902 = vrot.lane.b32.xlu0 %v2853, 88
      %v2903 = vpop.permute.xlu0 %2902
      %2904 = vrot.lane.b32.xlu0 %v2855, 88
      %v2905 = vpop.permute.xlu0 %2904
      %2906 = vrot.lane.b32.xlu0 %v2857, 88
      %v2907 = vpop.permute.xlu0 %2906
      %v2933 = vadd.f32 %v2734, %v2859
      %v2934 = vadd.f32 %v2735, %v2861
      %v2935 = vadd.f32 %v2736, %v2863
      %v2936 = vadd.f32 %v2737, %v2865
      %v2937 = vadd.f32 %v2738, %v2867
      %v2938 = vadd.f32 %v2739, %v2869
      %v2939 = vadd.f32 %v2740, %v2871
      %v2940 = vadd.f32 %v2741, %v2873
      %v2941 = vadd.f32 %v2742, %v2875
      %v2942 = vadd.f32 %v2743, %v2877
      %v2943 = vadd.f32 %v2744, %v2879
      %v2944 = vadd.f32 %v2745, %v2881
      %v2945 = vadd.f32 %v2746, %v2883
      %v2946 = vadd.f32 %v2747, %v2885
      %v2947 = vadd.f32 %v2748, %v2887
      %v2948 = vadd.f32 %v2749, %v2889
      %v2949 = vadd.f32 %v2750, %v2891
      %v2950 = vadd.f32 %v2751, %v2893
      %v2951 = vadd.f32 %v2752, %v2895
      %v2952 = vadd.f32 %v2753, %v2897
      %v2953 = vadd.f32 %v2754, %v2899
      %v2954 = vadd.f32 %v2755, %v2901
      %v2955 = vadd.f32 %v2756, %v2903
      %v2956 = vadd.f32 %v2757, %v2905
      %v2957 = vadd.f32 %v2758, %v2907
      %v2983 = vrot.slane %v2933, 2
      %v2984 = vrot.slane %v2934, 2
      %v2985 = vsel %vm1430, %v2983, %v2984
      %v2986 = vrot.slane %v2935, 2
      %v2987 = vsel %vm1430, %v2984, %v2986
      %v2988 = vrot.slane %v2936, 2
      %v2989 = vsel %vm1430, %v2986, %v2988
      %v2990 = vrot.slane %v2937, 2
      %v2991 = vsel %vm1430, %v2988, %v2990
      %v2992 = vrot.slane %v2938, 2
      %v2993 = vsel %vm1430, %v2990, %v2992
      %v2994 = vrot.slane %v2939, 2
      %v2995 = vsel %vm1430, %v2992, %v2994
      %v2996 = vrot.slane %v2940, 2
      %v2997 = vsel %vm1430, %v2994, %v2996
      %v2998 = vrot.slane %v2941, 2
      %v2999 = vsel %vm1430, %v2996, %v2998
      %v3000 = vrot.slane %v2942, 2
      %v3001 = vsel %vm1430, %v2998, %v3000
      %v3002 = vrot.slane %v2943, 2
      %v3003 = vsel %vm1430, %v3000, %v3002
      %v3004 = vrot.slane %v2944, 2
      %v3005 = vsel %vm1430, %v3002, %v3004
      %v3006 = vrot.slane %v2945, 2
      %v3007 = vsel %vm1430, %v3004, %v3006
      %v3008 = vrot.slane %v2946, 2
      %v3009 = vsel %vm1430, %v3006, %v3008
      %v3010 = vrot.slane %v2947, 2
      %v3011 = vsel %vm1430, %v3008, %v3010
      %v3012 = vrot.slane %v2948, 2
      %v3013 = vsel %vm1430, %v3010, %v3012
      %v3014 = vrot.slane %v2949, 2
      %v3015 = vsel %vm1430, %v3012, %v3014
      %v3016 = vrot.slane %v2950, 2
      %v3017 = vsel %vm1430, %v3014, %v3016
      %v3018 = vrot.slane %v2951, 2
      %v3019 = vsel %vm1430, %v3016, %v3018
      %v3020 = vrot.slane %v2952, 2
      %v3021 = vsel %vm1430, %v3018, %v3020
      %v3022 = vrot.slane %v2953, 2
      %v3023 = vsel %vm1430, %v3020, %v3022
      %v3024 = vrot.slane %v2954, 2
      %v3025 = vsel %vm1430, %v3022, %v3024
      %v3026 = vrot.slane %v2955, 2
      %v3027 = vsel %vm1430, %v3024, %v3026
      %v3028 = vrot.slane %v2956, 2
      %v3029 = vsel %vm1430, %v3026, %v3028
      %v3030 = vrot.slane %v2957, 2
      %v3031 = vsel %vm1430, %v3028, %v3030
      %vm3057 = vcmask 39936
      %v3058 = vsel %vm3057, %v2985, 0.0
      %v3059 = vsel %vm3057, %v2987, 0.0
      %v3060 = vadd.f32 %v3058, %v3059
      %v3061 = vsel %vm3057, %v2989, 0.0
      %v3062 = vadd.f32 %v3060, %v3061
      %v3063 = vsel %vm3057, %v2991, 0.0
      %v3064 = vadd.f32 %v3062, %v3063
      %v3065 = vsel %vm3057, %v2993, 0.0
      %v3066 = vadd.f32 %v3064, %v3065
      %v3067 = vsel %vm3057, %v2995, 0.0
      %v3068 = vadd.f32 %v3066, %v3067
      %v3069 = vsel %vm3057, %v2997, 0.0
      %v3070 = vadd.f32 %v3068, %v3069
      %v3071 = vsel %vm3057, %v2999, 0.0
      %v3072 = vadd.f32 %v3070, %v3071
      %v3073 = vsel %vm3057, %v3001, 0.0
      %v3074 = vadd.f32 %v3072, %v3073
      %v3075 = vsel %vm3057, %v3003, 0.0
      %v3076 = vadd.f32 %v3074, %v3075
      %v3077 = vsel %vm3057, %v3005, 0.0
      %v3078 = vadd.f32 %v3076, %v3077
      %v3079 = vsel %vm3057, %v3007, 0.0
      %v3080 = vadd.f32 %v3078, %v3079
      %v3081 = vsel %vm3057, %v3009, 0.0
      %v3082 = vadd.f32 %v3080, %v3081
      %v3083 = vsel %vm3057, %v3011, 0.0
      %v3084 = vadd.f32 %v3082, %v3083
      %v3085 = vsel %vm3057, %v3013, 0.0
      %v3086 = vadd.f32 %v3084, %v3085
      %v3087 = vsel %vm3057, %v3015, 0.0
      %v3088 = vadd.f32 %v3086, %v3087
      %v3089 = vsel %vm3057, %v3017, 0.0
      %v3090 = vadd.f32 %v3088, %v3089
      %v3091 = vsel %vm3057, %v3019, 0.0
      %v3092 = vadd.f32 %v3090, %v3091
      %v3093 = vsel %vm3057, %v3021, 0.0
      %v3094 = vadd.f32 %v3092, %v3093
      %v3095 = vsel %vm3057, %v3023, 0.0
      %v3096 = vadd.f32 %v3094, %v3095
      %v3097 = vsel %vm3057, %v3025, 0.0
      %v3098 = vadd.f32 %v3096, %v3097
      %v3099 = vsel %vm3057, %v3027, 0.0
      %v3100 = vadd.f32 %v3098, %v3099
      %v3101 = vsel %vm3057, %v3029, 0.0
      %v3102 = vadd.f32 %v3100, %v3101
      %v3103 = vsel %vm3057, %v3031, 0.0
      %v3104 = vadd.f32 %v3102, %v3103
      %vm3105 = vcmask 35840
      %v3106 = vsel %vm3105, %v3030, 0.0
      %v3107 = vadd.f32 %v3104, %v3106
      %3108 = vadd.xlane.f32.xlu0 %v3107
      %v3109 = vpop.xlane.xlu0 %3108
      %v3110 = vrot.slane %v3109, 4
      %v3111 = vadd.f32 %v3109, %v3110
      %v3112 = vrot.slane %v3111, 2
      %v3113 = vadd.f32 %v3111, %v3112
      %v3114 = vrot.slane %v3113, 1
      %v3115 = vadd.f32 %v3113, %v3114
      %s3116 = vtos %v3115
      %s3117 = smul.f32 %s3116, 0.0010204081
      %v3118 = vstv %s3117
      %v3119 = vsub.f32 %v2933, %v3118
      %v3120 = vsub.f32 %v2934, %v3118
      %v3121 = vsub.f32 %v2935, %v3118
      %v3122 = vsub.f32 %v2936, %v3118
      %v3123 = vsub.f32 %v2937, %v3118
      %v3124 = vsub.f32 %v2938, %v3118
      %v3125 = vsub.f32 %v2939, %v3118
      %v3126 = vsub.f32 %v2940, %v3118
      %v3127 = vsub.f32 %v2941, %v3118
      %v3128 = vsub.f32 %v2942, %v3118
      %v3129 = vsub.f32 %v2943, %v3118
      %v3130 = vsub.f32 %v2944, %v3118
      %v3131 = vsub.f32 %v2945, %v3118
      %v3132 = vsub.f32 %v2946, %v3118
      %v3133 = vsub.f32 %v2947, %v3118
      %v3134 = vsub.f32 %v2948, %v3118
      %v3135 = vsub.f32 %v2949, %v3118
      %v3136 = vsub.f32 %v2950, %v3118
      %v3137 = vsub.f32 %v2951, %v3118
      %v3138 = vsub.f32 %v2952, %v3118
      %v3139 = vsub.f32 %v2953, %v3118
      %v3140 = vsub.f32 %v2954, %v3118
      %v3141 = vsub.f32 %v2955, %v3118
      %v3142 = vsub.f32 %v2956, %v3118
      %v3143 = vsub.f32 %v2957, %v3118
      %v3144 = vmul.f32 %v3119, %v3119
      %v3145 = vmul.f32 %v3120, %v3120
      %v3146 = vmul.f32 %v3121, %v3121
      %v3147 = vmul.f32 %v3122, %v3122
      %v3148 = vmul.f32 %v3123, %v3123
      %v3149 = vmul.f32 %v3124, %v3124
      %v3150 = vmul.f32 %v3125, %v3125
      %v3151 = vmul.f32 %v3126, %v3126
      %v3152 = vmul.f32 %v3127, %v3127
      %v3153 = vmul.f32 %v3128, %v3128
      %v3154 = vmul.f32 %v3129, %v3129
      %v3155 = vmul.f32 %v3130, %v3130
      %v3156 = vmul.f32 %v3131, %v3131
      %v3157 = vmul.f32 %v3132, %v3132
      %v3158 = vmul.f32 %v3133, %v3133
      %v3159 = vmul.f32 %v3134, %v3134
      %v3160 = vmul.f32 %v3135, %v3135
      %v3161 = vmul.f32 %v3136, %v3136
      %v3162 = vmul.f32 %v3137, %v3137
      %v3163 = vmul.f32 %v3138, %v3138
      %v3164 = vmul.f32 %v3139, %v3139
      %v3165 = vmul.f32 %v3140, %v3140
      %v3166 = vmul.f32 %v3141, %v3141
      %v3167 = vmul.f32 %v3142, %v3142
      %v3168 = vmul.f32 %v3143, %v3143
      %v3194 = vrot.slane %v3144, 2
      %v3195 = vrot.slane %v3145, 2
      %v3196 = vsel %vm1430, %v3194, %v3195
      %v3197 = vrot.slane %v3146, 2
      %v3198 = vsel %vm1430, %v3195, %v3197
      %v3199 = vrot.slane %v3147, 2
      %v3200 = vsel %vm1430, %v3197, %v3199
      %v3201 = vrot.slane %v3148, 2
      %v3202 = vsel %vm1430, %v3199, %v3201
      %v3203 = vrot.slane %v3149, 2
      %v3204 = vsel %vm1430, %v3201, %v3203
      %v3205 = vrot.slane %v3150, 2
      %v3206 = vsel %vm1430, %v3203, %v3205
      %v3207 = vrot.slane %v3151, 2
      %v3208 = vsel %vm1430, %v3205, %v3207
      %v3209 = vrot.slane %v3152, 2
      %v3210 = vsel %vm1430, %v3207, %v3209
      %v3211 = vrot.slane %v3153, 2
      %v3212 = vsel %vm1430, %v3209, %v3211
      %v3213 = vrot.slane %v3154, 2
      %v3214 = vsel %vm1430, %v3211, %v3213
      %v3215 = vrot.slane %v3155, 2
      %v3216 = vsel %vm1430, %v3213, %v3215
      %v3217 = vrot.slane %v3156, 2
      %v3218 = vsel %vm1430, %v3215, %v3217
      %v3219 = vrot.slane %v3157, 2
      %v3220 = vsel %vm1430, %v3217, %v3219
      %v3221 = vrot.slane %v3158, 2
      %v3222 = vsel %vm1430, %v3219, %v3221
      %v3223 = vrot.slane %v3159, 2
      %v3224 = vsel %vm1430, %v3221, %v3223
      %v3225 = vrot.slane %v3160, 2
      %v3226 = vsel %vm1430, %v3223, %v3225
      %v3227 = vrot.slane %v3161, 2
      %v3228 = vsel %vm1430, %v3225, %v3227
      %v3229 = vrot.slane %v3162, 2
      %v3230 = vsel %vm1430, %v3227, %v3229
      %v3231 = vrot.slane %v3163, 2
      %v3232 = vsel %vm1430, %v3229, %v3231
      %v3233 = vrot.slane %v3164, 2
      %v3234 = vsel %vm1430, %v3231, %v3233
      %v3235 = vrot.slane %v3165, 2
      %v3236 = vsel %vm1430, %v3233, %v3235
      %v3237 = vrot.slane %v3166, 2
      %v3238 = vsel %vm1430, %v3235, %v3237
      %v3239 = vrot.slane %v3167, 2
      %v3240 = vsel %vm1430, %v3237, %v3239
      %v3241 = vrot.slane %v3168, 2
      %v3242 = vsel %vm1430, %v3239, %v3241
      %v3268 = vsel %vm3057, %v3196, 0.0
      %v3269 = vsel %vm3057, %v3198, 0.0
      %v3270 = vadd.f32 %v3268, %v3269
      %v3271 = vsel %vm3057, %v3200, 0.0
      %v3272 = vadd.f32 %v3270, %v3271
      %v3273 = vsel %vm3057, %v3202, 0.0
      %v3274 = vadd.f32 %v3272, %v3273
      %v3275 = vsel %vm3057, %v3204, 0.0
      %v3276 = vadd.f32 %v3274, %v3275
      %v3277 = vsel %vm3057, %v3206, 0.0
      %v3278 = vadd.f32 %v3276, %v3277
      %v3279 = vsel %vm3057, %v3208, 0.0
      %v3280 = vadd.f32 %v3278, %v3279
      %v3281 = vsel %vm3057, %v3210, 0.0
      %v3282 = vadd.f32 %v3280, %v3281
      %v3283 = vsel %vm3057, %v3212, 0.0
      %v3284 = vadd.f32 %v3282, %v3283
      %v3285 = vsel %vm3057, %v3214, 0.0
      %v3286 = vadd.f32 %v3284, %v3285
      %v3287 = vsel %vm3057, %v3216, 0.0
      %v3288 = vadd.f32 %v3286, %v3287
      %v3289 = vsel %vm3057, %v3218, 0.0
      %v3290 = vadd.f32 %v3288, %v3289
      %v3291 = vsel %vm3057, %v3220, 0.0
      %v3292 = vadd.f32 %v3290, %v3291
      %v3293 = vsel %vm3057, %v3222, 0.0
      %v3294 = vadd.f32 %v3292, %v3293
      %v3295 = vsel %vm3057, %v3224, 0.0
      %v3296 = vadd.f32 %v3294, %v3295
      %v3297 = vsel %vm3057, %v3226, 0.0
      %v3298 = vadd.f32 %v3296, %v3297
      %v3299 = vsel %vm3057, %v3228, 0.0
      %v3300 = vadd.f32 %v3298, %v3299
      %v3301 = vsel %vm3057, %v3230, 0.0
      %v3302 = vadd.f32 %v3300, %v3301
      %v3303 = vsel %vm3057, %v3232, 0.0
      %v3304 = vadd.f32 %v3302, %v3303
      %v3305 = vsel %vm3057, %v3234, 0.0
      %v3306 = vadd.f32 %v3304, %v3305
      %v3307 = vsel %vm3057, %v3236, 0.0
      %v3308 = vadd.f32 %v3306, %v3307
      %v3309 = vsel %vm3057, %v3238, 0.0
      %v3310 = vadd.f32 %v3308, %v3309
      %v3311 = vsel %vm3057, %v3240, 0.0
      %v3312 = vadd.f32 %v3310, %v3311
      %v3313 = vsel %vm3057, %v3242, 0.0
      %v3314 = vadd.f32 %v3312, %v3313
      %v3315 = vsel %vm3105, %v3241, 0.0
      %v3316 = vadd.f32 %v3314, %v3315
      %3317 = vadd.xlane.f32.xlu0 %v3316
      %v3318 = vpop.xlane.xlu0 %3317
      %v3319 = vrot.slane %v3318, 4
      %v3320 = vadd.f32 %v3318, %v3319
      %v3321 = vrot.slane %v3320, 2
      %v3322 = vadd.f32 %v3320, %v3321
      %v3323 = vrot.slane %v3322, 1
      %v3324 = vadd.f32 %v3322, %v3323
      %s3325 = vtos %v3324
      %s3326 = smul.f32 %s3325, 0.0010204081
      %s3327 = sadd.f32 %s3326, 1e-05
      %v3328 = vstv %s3327
      %v3329 = vrsqrt.pop %v3328
      %s3330 = vtos %v3329
      %v3331 = vstv %s3330
      %v3332 = vmul.f32 %v3119, %v3331
      %v3333 = vmul.f32 %v3120, %v3331
      %v3334 = vmul.f32 %v3121, %v3331
      %v3335 = vmul.f32 %v3122, %v3331
      %v3336 = vmul.f32 %v3123, %v3331
      %v3337 = vmul.f32 %v3124, %v3331
      %v3338 = vmul.f32 %v3125, %v3331
      %v3339 = vmul.f32 %v3126, %v3331
      %v3340 = vmul.f32 %v3127, %v3331
      %v3341 = vmul.f32 %v3128, %v3331
      %v3342 = vmul.f32 %v3129, %v3331
      %v3343 = vmul.f32 %v3130, %v3331
      %v3344 = vmul.f32 %v3131, %v3331
      %v3345 = vmul.f32 %v3132, %v3331
      %v3346 = vmul.f32 %v3133, %v3331
      %v3347 = vmul.f32 %v3134, %v3331
      %v3348 = vmul.f32 %v3135, %v3331
      %v3349 = vmul.f32 %v3136, %v3331
      %v3350 = vmul.f32 %v3137, %v3331
      %v3351 = vmul.f32 %v3138, %v3331
      %v3352 = vmul.f32 %v3139, %v3331
      %v3353 = vmul.f32 %v3140, %v3331
      %v3354 = vmul.f32 %v3141, %v3331
      %v3355 = vmul.f32 %v3142, %v3331
      %v3356 = vmul.f32 %v3143, %v3331
      %v3358 = vlaneseq
      %v3359 = vshrl.u32 %v3358, 7
      %v3360 = vsub.s32 0, %v3359
      %v3361 = vrot.slane %v346, %v3360
      %v3363 = vmul.f32 %v3332, %v3361
      %v3364 = vmul.f32 %v3333, %v3361
      %v3365 = vmul.f32 %v3334, %v3361
      %v3366 = vmul.f32 %v3335, %v3361
      %v3367 = vmul.f32 %v3336, %v3361
      %v3368 = vmul.f32 %v3337, %v3361
      %v3369 = vmul.f32 %v3338, %v3361
      %v3370 = vmul.f32 %v3339, %v3361
      %v3371 = vmul.f32 %v3340, %v3361
      %v3372 = vmul.f32 %v3341, %v3361
      %v3373 = vmul.f32 %v3342, %v3361
      %v3374 = vmul.f32 %v3343, %v3361
      %v3375 = vmul.f32 %v3344, %v3361
      %v3376 = vmul.f32 %v3345, %v3361
      %v3377 = vmul.f32 %v3346, %v3361
      %v3378 = vmul.f32 %v3347, %v3361
      %v3379 = vmul.f32 %v3348, %v3361
      %v3380 = vmul.f32 %v3349, %v3361
      %v3381 = vmul.f32 %v3350, %v3361
      %v3382 = vmul.f32 %v3351, %v3361
      %v3383 = vmul.f32 %v3352, %v3361
      %v3384 = vmul.f32 %v3353, %v3361
      %v3385 = vmul.f32 %v3354, %v3361
      %v3386 = vmul.f32 %v3355, %v3361
      %v3387 = vmul.f32 %v3356, %v3361
      %v3389 = vlaneseq
      %v3390 = vshrl.u32 %v3389, 7
      %v3391 = vsub.s32 0, %v3390
      %v3392 = vrot.slane %v347, %v3391
      %v3394 = vadd.f32 %v3363, %v3392
      %v3395 = vadd.f32 %v3364, %v3392
      %v3396 = vadd.f32 %v3365, %v3392
      %v3397 = vadd.f32 %v3366, %v3392
      %v3398 = vadd.f32 %v3367, %v3392
      %v3399 = vadd.f32 %v3368, %v3392
      %v3400 = vadd.f32 %v3369, %v3392
      %v3401 = vadd.f32 %v3370, %v3392
      %v3402 = vadd.f32 %v3371, %v3392
      %v3403 = vadd.f32 %v3372, %v3392
      %v3404 = vadd.f32 %v3373, %v3392
      %v3405 = vadd.f32 %v3374, %v3392
      %v3406 = vadd.f32 %v3375, %v3392
      %v3407 = vadd.f32 %v3376, %v3392
      %v3408 = vadd.f32 %v3377, %v3392
      %v3409 = vadd.f32 %v3378, %v3392
      %v3410 = vadd.f32 %v3379, %v3392
      %v3411 = vadd.f32 %v3380, %v3392
      %v3412 = vadd.f32 %v3381, %v3392
      %v3413 = vadd.f32 %v3382, %v3392
      %v3414 = vadd.f32 %v3383, %v3392
      %v3415 = vadd.f32 %v3384, %v3392
      %v3416 = vadd.f32 %v3385, %v3392
      %v3417 = vadd.f32 %v3386, %v3392
      %v3418 = vadd.f32 %v3387, %v3392
      %v3419 = vmax.f32 %v3394, 0.0
      %v3420 = vmax.f32 %v3395, 0.0
      %v3421 = vmax.f32 %v3396, 0.0
      %v3422 = vmax.f32 %v3397, 0.0
      %v3423 = vmax.f32 %v3398, 0.0
      %v3424 = vmax.f32 %v3399, 0.0
      %v3425 = vmax.f32 %v3400, 0.0
      %v3426 = vmax.f32 %v3401, 0.0
      %v3427 = vmax.f32 %v3402, 0.0
      %v3428 = vmax.f32 %v3403, 0.0
      %v3429 = vmax.f32 %v3404, 0.0
      %v3430 = vmax.f32 %v3405, 0.0
      %v3431 = vmax.f32 %v3406, 0.0
      %v3432 = vmax.f32 %v3407, 0.0
      %v3433 = vmax.f32 %v3408, 0.0
      %v3434 = vmax.f32 %v3409, 0.0
      %v3435 = vmax.f32 %v3410, 0.0
      %v3436 = vmax.f32 %v3411, 0.0
      %v3437 = vmax.f32 %v3412, 0.0
      %v3438 = vmax.f32 %v3413, 0.0
      %v3439 = vmax.f32 %v3414, 0.0
      %v3440 = vmax.f32 %v3415, 0.0
      %v3441 = vmax.f32 %v3416, 0.0
      %v3442 = vmax.f32 %v3417, 0.0
      %v3443 = vmax.f32 %v3418, 0.0
      %vm3444 = vcmask 39938
      %3445 = vst.msk [vmem:[%s271 - $0x2] sm:$0xfc] %vm3444, %v3419
      %3446 = vst.msk [vmem:[%s271 + $0x6] sm:$0xff] %vm3057, %v3420
      %3447 = vst.msk [vmem:[%s271 + $0xe] sm:$0xff] %vm3057, %v3421
      %3448 = vst.msk [vmem:[%s271 + $0x16] sm:$0xff] %vm3057, %v3422
      %3449 = vst.msk [vmem:[%s271 + $0x1e] sm:$0xff] %vm3057, %v3423
      %3450 = vst.msk [vmem:[%s271 + $0x26] sm:$0xff] %vm3057, %v3424
      %3451 = vst.msk [vmem:[%s271 + $0x2e] sm:$0xff] %vm3057, %v3425
      %3452 = vst.msk [vmem:[%s271 + $0x36] sm:$0xff] %vm3057, %v3426
      %3453 = vst.msk [vmem:[%s271 + $0x3e] sm:$0xff] %vm3057, %v3427
      %3454 = vst.msk [vmem:[%s271 + $0x46] sm:$0xff] %vm3057, %v3428
      %3455 = vst.msk [vmem:[%s271 + $0x4e] sm:$0xff] %vm3057, %v3429
      %3456 = vst.msk [vmem:[%s271 + $0x56] sm:$0xff] %vm3057, %v3430
      %3457 = vst.msk [vmem:[%s271 + $0x5e] sm:$0xff] %vm3057, %v3431
      %3458 = vst.msk [vmem:[%s271 + $0x66] sm:$0xff] %vm3057, %v3432
      %3459 = vst.msk [vmem:[%s271 + $0x6e] sm:$0xff] %vm3057, %v3433
      %3460 = vst.msk [vmem:[%s271 + $0x76] sm:$0xff] %vm3057, %v3434
      %3461 = vst.msk [vmem:[%s271 + $0x7e] sm:$0xff] %vm3057, %v3435
      %3462 = vst.msk [vmem:[%s271 + $0x86] sm:$0xff] %vm3057, %v3436
      %3463 = vst.msk [vmem:[%s271 + $0x8e] sm:$0xff] %vm3057, %v3437
      %3464 = vst.msk [vmem:[%s271 + $0x96] sm:$0xff] %vm3057, %v3438
      %3465 = vst.msk [vmem:[%s271 + $0x9e] sm:$0xff] %vm3057, %v3439
      %3466 = vst.msk [vmem:[%s271 + $0xa6] sm:$0xff] %vm3057, %v3440
      %3467 = vst.msk [vmem:[%s271 + $0xae] sm:$0xff] %vm3057, %v3441
      %3468 = vst.msk [vmem:[%s271 + $0xb6] sm:$0xff] %vm3057, %v3442
      %vm3469 = vcmask 37888
      %3470 = vst.msk [vmem:[%s271 + $0xbe] sm:$0x3f] %vm3469, %v3443
      %v3471 = vld [vmem:[%s266] sm:$0xff]
      %v3472 = vld [vmem:[%s266 + $0x8] sm:$0xff]
      %v3473 = vld [vmem:[%s266 + $0x10] sm:$0xff]
      %v3474 = vld [vmem:[%s266 + $0x18] sm:$0xff]
      %v3475 = vld [vmem:[%s266 + $0x20] sm:$0xff]
      %v3476 = vld [vmem:[%s266 + $0x28] sm:$0xff]
      %v3477 = vld [vmem:[%s266 + $0x30] sm:$0xff]
      %v3478 = vld [vmem:[%s266 + $0x38] sm:$0xff]
      %v3479 = vld [vmem:[%s266 + $0x40] sm:$0xff]
      %v3480 = vld [vmem:[%s266 + $0x48] sm:$0xff]
      %v3481 = vld [vmem:[%s266 + $0x50] sm:$0xff]
      %v3482 = vld [vmem:[%s266 + $0x58] sm:$0xff]
      %v3483 = vld [vmem:[%s266 + $0x60] sm:$0xff]
      %v3484 = vld [vmem:[%s266 + $0x68] sm:$0xff]
      %v3485 = vld [vmem:[%s266 + $0x70] sm:$0xff]
      %v3486 = vld [vmem:[%s266 + $0x78] sm:$0xff]
      %v3487 = vld [vmem:[%s266 + $0x80] sm:$0xff]
      %v3488 = vld [vmem:[%s266 + $0x88] sm:$0xff]
      %v3489 = vld [vmem:[%s266 + $0x90] sm:$0xff]
      %v3490 = vld [vmem:[%s266 + $0x98] sm:$0xff]
      %v3491 = vld [vmem:[%s266 + $0xa0] sm:$0xff]
      %v3492 = vld [vmem:[%s266 + $0xa8] sm:$0xff]
      %v3493 = vld [vmem:[%s266 + $0xb0] sm:$0xff]
      %v3494 = vld [vmem:[%s266 + $0xb8] sm:$0xff]
      %v3495 = vld [vmem:[%s266 + $0xc0] sm:$0xff]
      %v3496 = vld [vmem:[%s266 + $0xc8] sm:$0xff]
      %v3497 = vld [vmem:[%s266 + $0xd0] sm:$0xff]
      %v3498 = vld [vmem:[%s266 + $0xd8] sm:$0xff]
      %v3499 = vld [vmem:[%s266 + $0xe0] sm:$0xff]
      %v3500 = vld [vmem:[%s266 + $0xe8] sm:$0xff]
      %v3501 = vld [vmem:[%s266 + $0xf0] sm:$0xff]
      %v3502 = vld [vmem:[%s266 + $0xf8] sm:$0xff]
      %v3503 = vld [vmem:[%s266 + $0x100] sm:$0xff]
      %v3504 = vld [vmem:[%s266 + $0x108] sm:$0xff]
      %v3505 = vld [vmem:[%s266 + $0x110] sm:$0xff]
      %v3506 = vld [vmem:[%s266 + $0x118] sm:$0xff]
      %v3507 = vld [vmem:[%s266 + $0x120] sm:$0xff]
      %v3508 = vld [vmem:[%s266 + $0x128] sm:$0xff]
      %v3509 = vld [vmem:[%s266 + $0x130] sm:$0xff]
      %v3510 = vld [vmem:[%s266 + $0x138] sm:$0xff]
      %v3511 = vld [vmem:[%s266 + $0x140] sm:$0xff]
      %v3512 = vld [vmem:[%s266 + $0x148] sm:$0xff]
      %v3513 = vld [vmem:[%s266 + $0x150] sm:$0xff]
      %v3514 = vld [vmem:[%s266 + $0x158] sm:$0xff]
      %v3515 = vld [vmem:[%s266 + $0x160] sm:$0xff]
      %v3516 = vld [vmem:[%s266 + $0x168] sm:$0xff]
      %v3517 = vld [vmem:[%s266 + $0x170] sm:$0xff]
      %v3518 = vld [vmem:[%s266 + $0x178] sm:$0xff]
      %v3519 = vld [vmem:[%s266 + $0x180] sm:$0xff]
      %v3520 = vld [vmem:[%s266 + $0x188] sm:$0xff]
      %v3521 = vld [vmem:[%s266 + $0x190] sm:$0xff]
      %v3522 = vld [vmem:[%s266 + $0x198] sm:$0xff]
      %v3523 = vld [vmem:[%s266 + $0x1a0] sm:$0xff]
      %v3524 = vld [vmem:[%s266 + $0x1a8] sm:$0xff]
      %v3525 = vld [vmem:[%s266 + $0x1b0] sm:$0xff]
      %v3526 = vld [vmem:[%s266 + $0x1b8] sm:$0xff]
      %v3527 = vld [vmem:[%s266 + $0x1c0] sm:$0xff]
      %v3528 = vld [vmem:[%s266 + $0x1c8] sm:$0xff]
      %v3529 = vld [vmem:[%s266 + $0x1d0] sm:$0xff]
      %v3530 = vld [vmem:[%s266 + $0x1d8] sm:$0xff]
      %v3531 = vld [vmem:[%s266 + $0x1e0] sm:$0xff]
      %v3532 = vld [vmem:[%s266 + $0x1e8] sm:$0xff]
      %v3533 = vld [vmem:[%s266 + $0x1f0] sm:$0xff]
      %v3534 = vld [vmem:[%s266 + $0x1f8] sm:$0xff]
      %v3535 = vld [vmem:[%s266 + $0x200] sm:$0xff]
      %v3536 = vld [vmem:[%s266 + $0x208] sm:$0xff]
      %v3537 = vld [vmem:[%s266 + $0x210] sm:$0xff]
      %v3538 = vld [vmem:[%s266 + $0x218] sm:$0xff]
      %v3539 = vld [vmem:[%s266 + $0x220] sm:$0xff]
      %v3540 = vld [vmem:[%s266 + $0x228] sm:$0xff]
      %v3541 = vld [vmem:[%s266 + $0x230] sm:$0xff]
      %v3542 = vld [vmem:[%s266 + $0x238] sm:$0xff]
      %v3543 = vld [vmem:[%s266 + $0x240] sm:$0x1f]
      %v3544 = vld [vmem:[%s266 + $0x248] sm:$0x1f]
      %v3545 = vld [vmem:[%s266 + $0x250] sm:$0x1f]
      %v3546 = vpack.c.bf16 %v3474, %v3471
      %v3547 = vpack.c.bf16 %v3475, %v3472
      %v3548 = vpack.c.bf16 %v3476, %v3473
      %v3549 = vpack.c.bf16 %v3480, %v3477
      %v3550 = vpack.c.bf16 %v3481, %v3478
      %v3551 = vpack.c.bf16 %v3482, %v3479
      %v3552 = vpack.c.bf16 %v3486, %v3483
      %v3553 = vpack.c.bf16 %v3487, %v3484
      %v3554 = vpack.c.bf16 %v3488, %v3485
      %v3555 = vpack.c.bf16 %v3492, %v3489
      %v3556 = vpack.c.bf16 %v3493, %v3490
      %v3557 = vpack.c.bf16 %v3494, %v3491
      %v3558 = vpack.c.bf16 %v3498, %v3495
      %v3559 = vpack.c.bf16 %v3499, %v3496
      %v3560 = vpack.c.bf16 %v3500, %v3497
      %v3561 = vpack.c.bf16 %v3504, %v3501
      %v3562 = vpack.c.bf16 %v3505, %v3502
      %v3563 = vpack.c.bf16 %v3506, %v3503
      %v3564 = vpack.c.bf16 %v3510, %v3507
      %v3565 = vpack.c.bf16 %v3511, %v3508
      %v3566 = vpack.c.bf16 %v3512, %v3509
      %v3567 = vpack.c.bf16 %v3516, %v3513
      %v3568 = vpack.c.bf16 %v3517, %v3514
      %v3569 = vpack.c.bf16 %v3518, %v3515
      %v3570 = vpack.c.bf16 %v3522, %v3519
      %v3571 = vpack.c.bf16 %v3523, %v3520
      %v3572 = vpack.c.bf16 %v3524, %v3521
      %v3573 = vpack.c.bf16 %v3528, %v3525
      %v3574 = vpack.c.bf16 %v3529, %v3526
      %v3575 = vpack.c.bf16 %v3530, %v3527
      %v3576 = vpack.c.bf16 %v3534, %v3531
      %v3577 = vpack.c.bf16 %v3535, %v3532
      %v3578 = vpack.c.bf16 %v3536, %v3533
      %v3579 = vpack.c.bf16 %v3540, %v3537
      %v3580 = vpack.c.bf16 %v3541, %v3538
      %v3581 = vpack.c.bf16 %v3542, %v3539
      %v3582 = vpack.c.bf16 %v3543, %v3543
      %v3583 = vpack.c.bf16 %v3544, %v3544
      %v3584 = vpack.c.bf16 %v3545, %v3545
      %3585 = vmatprep.subr.bf16.mxu0 0
      %3586 = vmatpush1.bf16.msra.mxu0 %v558
      %3587 = vmatprep.subr.bf16.mxu0 0
      %3588 = vmatpush1.bf16.msra.mxu0 %v559
      %3589 = vmatprep.subr.bf16.mxu0 0
      %3590 = vmatpush1.bf16.msra.mxu0 %v560
      %3591 = vmatprep.subr.bf16.mxu0 0
      %3592 = vmatpush1.bf16.msra.mxu0 %v561
      %3593 = vmatprep.subr.bf16.mxu0 0
      %3594 = vmatpush1.bf16.msra.mxu0 %v562
      %3595 = vmatprep.subr.bf16.mxu0 0
      %3596 = vmatpush1.bf16.msra.mxu0 %v563
      %3597 = vmatprep.subr.bf16.mxu0 0
      %3598 = vmatpush1.bf16.msra.mxu0 %v564
      %3599 = vmatprep.subr.bf16.mxu0 0
      %3600 = vmatpush1.bf16.msra.mxu0 %v565
      %3601 = vmatprep.subr.bf16.mxu0 0
      %3602 = vmatpush1.bf16.msra.mxu0 %v566
      %3603 = vmatprep.subr.bf16.mxu0 0
      %3604 = vmatpush1.bf16.msra.mxu0 %v567
      %3605 = vmatprep.subr.bf16.mxu0 0
      %3606 = vmatpush1.bf16.msra.mxu0 %v568
      %3607 = vmatprep.subr.bf16.mxu0 0
      %3608 = vmatpush1.bf16.msra.mxu0 %v569
      %3609 = vmatprep.subr.bf16.mxu0 0
      %3610 = vmatpush1.bf16.msra.mxu0 %v570
      %3611 = vmatprep.subr.bf16.mxu0 0
      %3612 = vmatpush1.bf16.msra.mxu0 %v571
      %3613 = vmatprep.subr.bf16.mxu0 0
      %3614 = vmatpush1.bf16.msra.mxu0 %v572
      %3615 = vmatprep.subr.bf16.mxu0 0
      %3616 = vmatpush1.bf16.msra.mxu0 %v573
      %3617 = vmatprep.mubr.bf16.mxu0 %v3547
      %3618 = vmatmul.mubr.bf16.gmra.mrb[0].mxu0 %v3546
      %v3619 = vpop.f32.mrb[0].mxu0
      %v3620 = vadd.f32 0.0, %v3619
      %v3621 = vpop.f32.mrb[0].mxu0
      %v3622 = vpop.f32.mrb[0].mxu0
      %v3623 = vadd.f32 0.0, %v3622
      %v3624 = vpop.f32.mrb[0].mxu0
      %3625 = vmatprep.mubr.bf16.mxu0 %v3550
      %3626 = vmatmul.mubr.bf16.gmra.mrb[0].mxu0 %v3549
      %v3627 = vpop.f32.mrb[0].mxu0
      %v3628 = vadd.f32 0.0, %v3627
      %v3629 = vpop.f32.mrb[0].mxu0
      %v3630 = vpop.f32.mrb[0].mxu0
      %v3631 = vadd.f32 0.0, %v3630
      %v3632 = vpop.f32.mrb[0].mxu0
      %3633 = vmatprep.mubr.bf16.mxu0 %v3553
      %3634 = vmatmul.mubr.bf16.gmra.mrb[0].mxu0 %v3552
      %v3635 = vpop.f32.mrb[0].mxu0
      %v3636 = vadd.f32 0.0, %v3635
      %v3637 = vpop.f32.mrb[0].mxu0
      %v3638 = vpop.f32.mrb[0].mxu0
      %v3639 = vadd.f32 0.0, %v3638
      %v3640 = vpop.f32.mrb[0].mxu0
      %3641 = vmatprep.mubr.bf16.mxu0 %v3556
      %3642 = vmatmul.mubr.bf16.gmra.mrb[0].mxu0 %v3555
      %v3643 = vpop.f32.mrb[0].mxu0
      %v3644 = vadd.f32 0.0, %v3643
      %v3645 = vpop.f32.mrb[0].mxu0
      %v3646 = vpop.f32.mrb[0].mxu0
      %v3647 = vadd.f32 0.0, %v3646
      %v3648 = vpop.f32.mrb[0].mxu0
      %3649 = vmatprep.mubr.bf16.mxu0 %v3559
      %3650 = vmatmul.mubr.bf16.gmra.mrb[0].mxu0 %v3558
      %v3651 = vpop.f32.mrb[0].mxu0
      %v3652 = vadd.f32 0.0, %v3651
      %v3653 = vpop.f32.mrb[0].mxu0
      %v3654 = vpop.f32.mrb[0].mxu0
      %v3655 = vadd.f32 0.0, %v3654
      %v3656 = vpop.f32.mrb[0].mxu0
      %3657 = vmatprep.mubr.bf16.mxu0 %v3562
      %3658 = vmatmul.mubr.bf16.gmra.mrb[0].mxu0 %v3561
      %v3659 = vpop.f32.mrb[0].mxu0
      %v3660 = vadd.f32 0.0, %v3659
      %v3661 = vpop.f32.mrb[0].mxu0
      %v3662 = vpop.f32.mrb[0].mxu0
      %v3663 = vadd.f32 0.0, %v3662
      %v3664 = vpop.f32.mrb[0].mxu0
      %3665 = vmatprep.mubr.bf16.mxu0 %v3565
      %3666 = vmatmul.mubr.bf16.gmra.mrb[0].mxu0 %v3564
      %v3667 = vpop.f32.mrb[0].mxu0
      %v3668 = vadd.f32 0.0, %v3667
      %v3669 = vpop.f32.mrb[0].mxu0
      %v3670 = vpop.f32.mrb[0].mxu0
      %v3671 = vadd.f32 0.0, %v3670
      %v3672 = vpop.f32.mrb[0].mxu0
      %3673 = vmatprep.mubr.bf16.mxu0 %v3568
      %3674 = vmatmul.mubr.bf16.gmra.mrb[0].mxu0 %v3567
      %v3675 = vpop.f32.mrb[0].mxu0
      %v3676 = vadd.f32 0.0, %v3675
      %v3677 = vpop.f32.mrb[0].mxu0
      %v3678 = vpop.f32.mrb[0].mxu0
      %v3679 = vadd.f32 0.0, %v3678
      %v3680 = vpop.f32.mrb[0].mxu0
      %3681 = vmatprep.mubr.bf16.mxu0 %v3571
      %3682 = vmatmul.mubr.bf16.gmra.mrb[0].mxu0 %v3570
      %v3683 = vpop.f32.mrb[0].mxu0
      %v3684 = vadd.f32 0.0, %v3683
      %v3685 = vpop.f32.mrb[0].mxu0
      %v3686 = vpop.f32.mrb[0].mxu0
      %v3687 = vadd.f32 0.0, %v3686
      %v3688 = vpop.f32.mrb[0].mxu0
      %3689 = vmatprep.mubr.bf16.mxu0 %v3574
      %3690 = vmatmul.mubr.bf16.gmra.mrb[0].mxu0 %v3573
      %v3691 = vpop.f32.mrb[0].mxu0
      %v3692 = vadd.f32 0.0, %v3691
      %v3693 = vpop.f32.mrb[0].mxu0
      %v3694 = vpop.f32.mrb[0].mxu0
      %v3695 = vadd.f32 0.0, %v3694
      %v3696 = vpop.f32.mrb[0].mxu0
      %3697 = vmatprep.mubr.bf16.mxu0 %v3577
      %3698 = vmatmul.mubr.bf16.gmra.mrb[0].mxu0 %v3576
      %v3699 = vpop.f32.mrb[0].mxu0
      %v3700 = vadd.f32 0.0, %v3699
      %v3701 = vpop.f32.mrb[0].mxu0
      %v3702 = vpop.f32.mrb[0].mxu0
      %v3703 = vadd.f32 0.0, %v3702
      %v3704 = vpop.f32.mrb[0].mxu0
      %3705 = vmatprep.mubr.bf16.mxu0 %v3580
      %3706 = vmatmul.mubr.bf16.gmra.mrb[0].mxu0 %v3579
      %v3707 = vpop.f32.mrb[0].mxu0
      %v3708 = vadd.f32 0.0, %v3707
      %v3709 = vpop.f32.mrb[0].mxu0
      %v3710 = vpop.f32.mrb[0].mxu0
      %v3711 = vadd.f32 0.0, %v3710
      %v3712 = vpop.f32.mrb[0].mxu0
      %3713 = vmatprep.mubr.bf16.mxu0 %v3583
      %3714 = vmatmul.mubr.bf16.gmra.mrb[0].mxu0 %v3582
      %v3715 = vpop.f32.mrb[0].mxu0
      %v3716 = vadd.f32 0.0, %v3715
      %v3717 = vpop.f32.mrb[0].mxu0
      %v3718 = vpop.f32.mrb[0].mxu0
      %v3719 = vpop.f32.mrb[0].mxu0
      %3720 = vdwg.mxu0
      %3721 = vmatprep.subr.bf16.mxu0 0
      %3722 = vmatpush1.bf16.msra.mxu0 %v574
      %3723 = vmatprep.subr.bf16.mxu0 0
      %3724 = vmatpush1.bf16.msra.mxu0 %v575
      %3725 = vmatprep.subr.bf16.mxu0 0
      %3726 = vmatpush1.bf16.msra.mxu0 %v576
      %3727 = vmatprep.subr.bf16.mxu0 0
      %3728 = vmatpush1.bf16.msra.mxu0 %v577
      %3729 = vmatprep.subr.bf16.mxu0 0
      %3730 = vmatpush1.bf16.msra.mxu0 %v578
      %3731 = vmatprep.subr.bf16.mxu0 0
      %3732 = vmatpush1.bf16.msra.mxu0 %v579
      %3733 = vmatprep.subr.bf16.mxu0 0
      %3734 = vmatpush1.bf16.msra.mxu0 %v580
      %3735 = vmatprep.subr.bf16.mxu0 0
      %3736 = vmatpush1.bf16.msra.mxu0 %v581
      %3737 = vmatprep.subr.bf16.mxu0 0
      %3738 = vmatpush1.bf16.msra.mxu0 0
      %3739 = vmatprep.subr.bf16.mxu0 0
      %3740 = vmatpush1.bf16.msra.mxu0 0
      %3741 = vmatprep.subr.bf16.mxu0 0
      %3742 = vmatpush1.bf16.msra.mxu0 0
      %3743 = vmatprep.subr.bf16.mxu0 0
      %3744 = vmatpush1.bf16.msra.mxu0 0
      %3745 = vmatprep.subr.bf16.mxu0 0
      %3746 = vmatpush1.bf16.msra.mxu0 0
      %3747 = vmatprep.subr.bf16.mxu0 0
      %3748 = vmatpush1.bf16.msra.mxu0 0
      %3749 = vmatprep.subr.bf16.mxu0 0
      %3750 = vmatpush1.bf16.msra.mxu0 0
      %3751 = vmatprep.subr.bf16.mxu0 0
      %3752 = vmatpush1.bf16.msra.mxu0 0
      %3753 = vmatprep.mubr.bf16.mxu0 0
      %3754 = vmatmul.mubr.bf16.gmra.mrb[0].mxu0 %v3548
      %v3755 = vpop.f32.mrb[0].mxu0
      %v3756 = vadd.f32 %v3620, %v3755
      %v3757 = vpop.f32.mrb[0].mxu0
      %v3758 = vpop.f32.mrb[0].mxu0
      %v3759 = vadd.f32 %v3623, %v3758
      %v3760 = vpop.f32.mrb[0].mxu0
      %3761 = vmatprep.mubr.bf16.mxu0 0
      %3762 = vmatmul.mubr.bf16.gmra.mrb[0].mxu0 %v3551
      %v3763 = vpop.f32.mrb[0].mxu0
      %v3764 = vadd.f32 %v3628, %v3763
      %v3765 = vpop.f32.mrb[0].mxu0
      %v3766 = vpop.f32.mrb[0].mxu0
      %v3767 = vadd.f32 %v3631, %v3766
      %v3768 = vpop.f32.mrb[0].mxu0
      %3769 = vmatprep.mubr.bf16.mxu0 0
      %3770 = vmatmul.mubr.bf16.gmra.mrb[0].mxu0 %v3554
      %v3771 = vpop.f32.mrb[0].mxu0
      %v3772 = vadd.f32 %v3636, %v3771
      %v3773 = vpop.f32.mrb[0].mxu0
      %v3774 = vpop.f32.mrb[0].mxu0
      %v3775 = vadd.f32 %v3639, %v3774
      %v3776 = vpop.f32.mrb[0].mxu0
      %3777 = vmatprep.mubr.bf16.mxu0 0
      %3778 = vmatmul.mubr.bf16.gmra.mrb[0].mxu0 %v3557
      %v3779 = vpop.f32.mrb[0].mxu0
      %v3780 = vadd.f32 %v3644, %v3779
      %v3781 = vpop.f32.mrb[0].mxu0
      %v3782 = vpop.f32.mrb[0].mxu0
      %v3783 = vadd.f32 %v3647, %v3782
      %v3784 = vpop.f32.mrb[0].mxu0
      %3785 = vmatprep.mubr.bf16.mxu0 0
      %3786 = vmatmul.mubr.bf16.gmra.mrb[0].mxu0 %v3560
      %v3787 = vpop.f32.mrb[0].mxu0
      %v3788 = vadd.f32 %v3652, %v3787
      %v3789 = vpop.f32.mrb[0].mxu0
      %v3790 = vpop.f32.mrb[0].mxu0
      %v3791 = vadd.f32 %v3655, %v3790
      %v3792 = vpop.f32.mrb[0].mxu0
      %3793 = vmatprep.mubr.bf16.mxu0 0
      %3794 = vmatmul.mubr.bf16.gmra.mrb[0].mxu0 %v3563
      %v3795 = vpop.f32.mrb[0].mxu0
      %v3796 = vadd.f32 %v3660, %v3795
      %v3797 = vpop.f32.mrb[0].mxu0
      %v3798 = vpop.f32.mrb[0].mxu0
      %v3799 = vadd.f32 %v3663, %v3798
      %v3800 = vpop.f32.mrb[0].mxu0
      %3801 = vmatprep.mubr.bf16.mxu0 0
      %3802 = vmatmul.mubr.bf16.gmra.mrb[0].mxu0 %v3566
      %v3803 = vpop.f32.mrb[0].mxu0
      %v3804 = vadd.f32 %v3668, %v3803
      %v3805 = vpop.f32.mrb[0].mxu0
      %v3806 = vpop.f32.mrb[0].mxu0
      %v3807 = vadd.f32 %v3671, %v3806
      %v3808 = vpop.f32.mrb[0].mxu0
      %3809 = vmatprep.mubr.bf16.mxu0 0
      %3810 = vmatmul.mubr.bf16.gmra.mrb[0].mxu0 %v3569
      %v3811 = vpop.f32.mrb[0].mxu0
      %v3812 = vadd.f32 %v3676, %v3811
      %v3813 = vpop.f32.mrb[0].mxu0
      %v3814 = vpop.f32.mrb[0].mxu0
      %v3815 = vadd.f32 %v3679, %v3814
      %v3816 = vpop.f32.mrb[0].mxu0
      %3817 = vmatprep.mubr.bf16.mxu0 0
      %3818 = vmatmul.mubr.bf16.gmra.mrb[0].mxu0 %v3572
      %v3819 = vpop.f32.mrb[0].mxu0
      %v3820 = vadd.f32 %v3684, %v3819
      %v3821 = vpop.f32.mrb[0].mxu0
      %v3822 = vpop.f32.mrb[0].mxu0
      %v3823 = vadd.f32 %v3687, %v3822
      %v3824 = vpop.f32.mrb[0].mxu0
      %3825 = vmatprep.mubr.bf16.mxu0 0
      %3826 = vmatmul.mubr.bf16.gmra.mrb[0].mxu0 %v3575
      %v3827 = vpop.f32.mrb[0].mxu0
      %v3828 = vadd.f32 %v3692, %v3827
      %v3829 = vpop.f32.mrb[0].mxu0
      %v3830 = vpop.f32.mrb[0].mxu0
      %v3831 = vadd.f32 %v3695, %v3830
      %v3832 = vpop.f32.mrb[0].mxu0
      %3833 = vmatprep.mubr.bf16.mxu0 0
      %3834 = vmatmul.mubr.bf16.gmra.mrb[0].mxu0 %v3578
      %v3835 = vpop.f32.mrb[0].mxu0
      %v3836 = vadd.f32 %v3700, %v3835
      %v3837 = vpop.f32.mrb[0].mxu0
      %v3838 = vpop.f32.mrb[0].mxu0
      %v3839 = vadd.f32 %v3703, %v3838
      %v3840 = vpop.f32.mrb[0].mxu0
      %3841 = vmatprep.mubr.bf16.mxu0 0
      %3842 = vmatmul.mubr.bf16.gmra.mrb[0].mxu0 %v3581
      %v3843 = vpop.f32.mrb[0].mxu0
      %v3844 = vadd.f32 %v3708, %v3843
      %v3845 = vpop.f32.mrb[0].mxu0
      %v3846 = vpop.f32.mrb[0].mxu0
      %v3847 = vadd.f32 %v3711, %v3846
      %v3848 = vpop.f32.mrb[0].mxu0
      %3849 = vmatprep.mubr.bf16.mxu0 0
      %3850 = vmatmul.mubr.bf16.gmra.mrb[0].mxu0 %v3584
      %v3851 = vpop.f32.mrb[0].mxu0
      %v3852 = vadd.f32 %v3716, %v3851
      %v3853 = vpop.f32.mrb[0].mxu0
      %v3854 = vpop.f32.mrb[0].mxu0
      %v3855 = vpop.f32.mrb[0].mxu0
      %3856 = vdwg.mxu0
      %v3857 = vsel %vm878, %v3852, 0.0
      %v3858 = vmul.f32 %v3756, %v910
      %v3859 = vmul.f32 %v3759, %v912
      %v3860 = vmul.f32 %v3764, %v914
      %v3861 = vmul.f32 %v3767, %v916
      %v3862 = vmul.f32 %v3772, %v918
      %v3863 = vmul.f32 %v3775, %v920
      %v3864 = vmul.f32 %v3780, %v922
      %v3865 = vmul.f32 %v3783, %v924
      %v3866 = vmul.f32 %v3788, %v926
      %v3867 = vmul.f32 %v3791, %v928
      %v3868 = vmul.f32 %v3796, %v930
      %v3869 = vmul.f32 %v3799, %v932
      %v3870 = vmul.f32 %v3804, %v934
      %v3871 = vmul.f32 %v3807, %v936
      %v3872 = vmul.f32 %v3812, %v938
      %v3873 = vmul.f32 %v3815, %v940
      %v3874 = vmul.f32 %v3820, %v942
      %v3875 = vmul.f32 %v3823, %v944
      %v3876 = vmul.f32 %v3828, %v946
      %v3877 = vmul.f32 %v3831, %v948
      %v3878 = vmul.f32 %v3836, %v950
      %v3879 = vmul.f32 %v3839, %v952
      %v3880 = vmul.f32 %v3844, %v954
      %v3881 = vadd.f32 %v3858, 0.0
      %v3882 = vadd.f32 %v3859, 0.0
      %v3883 = vadd.f32 %v3860, 0.0
      %v3884 = vadd.f32 %v3861, 0.0
      %v3885 = vadd.f32 %v3862, 0.0
      %v3886 = vadd.f32 %v3863, 0.0
      %v3887 = vadd.f32 %v3864, 0.0
      %v3888 = vadd.f32 %v3865, 0.0
      %v3889 = vadd.f32 %v3866, 0.0
      %v3890 = vadd.f32 %v3867, 0.0
      %v3891 = vadd.f32 %v3868, 0.0
      %v3892 = vadd.f32 %v3869, 0.0
      %v3893 = vadd.f32 %v3870, 0.0
      %v3894 = vadd.f32 %v3871, 0.0
      %v3895 = vadd.f32 %v3872, 0.0
      %v3896 = vadd.f32 %v3873, 0.0
      %v3897 = vadd.f32 %v3874, 0.0
      %v3898 = vadd.f32 %v3875, 0.0
      %v3899 = vadd.f32 %v3876, 0.0
      %v3900 = vadd.f32 %v3877, 0.0
      %v3901 = vadd.f32 %v3878, 0.0
      %v3902 = vadd.f32 %v3879, 0.0
      %v3903 = vadd.f32 %v3880, 0.0
      %v3904 = vmul.f32 %v3756, %v1035
      %v3905 = vmul.f32 %v3759, %v1037
      %v3906 = vmul.f32 %v3764, %v1039
      %v3907 = vmul.f32 %v3767, %v1041
      %v3908 = vmul.f32 %v3772, %v1043
      %v3909 = vmul.f32 %v3775, %v1045
      %v3910 = vmul.f32 %v3780, %v1047
      %v3911 = vmul.f32 %v3783, %v1049
      %v3912 = vmul.f32 %v3788, %v1051
      %v3913 = vmul.f32 %v3791, %v1053
      %v3914 = vmul.f32 %v3796, %v1055
      %v3915 = vmul.f32 %v3799, %v1057
      %v3916 = vmul.f32 %v3804, %v1059
      %v3917 = vmul.f32 %v3807, %v1061
      %v3918 = vmul.f32 %v3812, %v1063
      %v3919 = vmul.f32 %v3815, %v1065
      %v3920 = vmul.f32 %v3820, %v1067
      %v3921 = vmul.f32 %v3823, %v1069
      %v3922 = vmul.f32 %v3828, %v1071
      %v3923 = vmul.f32 %v3831, %v1073
      %v3924 = vmul.f32 %v3836, %v1075
      %v3925 = vmul.f32 %v3839, %v1077
      %v3926 = vmul.f32 %v3844, %v1079
      %v3950 = vrot.slane %v3904, 1
      %v3951 = vsel %vm1155, %v1157, %v3950
      %v3952 = vrot.slane %v3905, 1
      %v3953 = vsel %vm1155, %v3950, %v3952
      %v3954 = vrot.slane %v3906, 1
      %v3955 = vsel %vm1155, %v3952, %v3954
      %v3956 = vrot.slane %v3907, 1
      %v3957 = vsel %vm1155, %v3954, %v3956
      %v3958 = vrot.slane %v3908, 1
      %v3959 = vsel %vm1155, %v3956, %v3958
      %v3960 = vrot.slane %v3909, 1
      %v3961 = vsel %vm1155, %v3958, %v3960
      %v3962 = vrot.slane %v3910, 1
      %v3963 = vsel %vm1155, %v3960, %v3962
      %v3964 = vrot.slane %v3911, 1
      %v3965 = vsel %vm1155, %v3962, %v3964
      %v3966 = vrot.slane %v3912, 1
      %v3967 = vsel %vm1155, %v3964, %v3966
      %v3968 = vrot.slane %v3913, 1
      %v3969 = vsel %vm1155, %v3966, %v3968
      %v3970 = vrot.slane %v3914, 1
      %v3971 = vsel %vm1155, %v3968, %v3970
      %v3972 = vrot.slane %v3915, 1
      %v3973 = vsel %vm1155, %v3970, %v3972
      %v3974 = vrot.slane %v3916, 1
      %v3975 = vsel %vm1155, %v3972, %v3974
      %v3976 = vrot.slane %v3917, 1
      %v3977 = vsel %vm1155, %v3974, %v3976
      %v3978 = vrot.slane %v3918, 1
      %v3979 = vsel %vm1155, %v3976, %v3978
      %v3980 = vrot.slane %v3919, 1
      %v3981 = vsel %vm1155, %v3978, %v3980
      %v3982 = vrot.slane %v3920, 1
      %v3983 = vsel %vm1155, %v3980, %v3982
      %v3984 = vrot.slane %v3921, 1
      %v3985 = vsel %vm1155, %v3982, %v3984
      %v3986 = vrot.slane %v3922, 1
      %v3987 = vsel %vm1155, %v3984, %v3986
      %v3988 = vrot.slane %v3923, 1
      %v3989 = vsel %vm1155, %v3986, %v3988
      %v3990 = vrot.slane %v3924, 1
      %v3991 = vsel %vm1155, %v3988, %v3990
      %v3992 = vrot.slane %v3925, 1
      %v3993 = vsel %vm1155, %v3990, %v3992
      %v3994 = vrot.slane %v3926, 1
      %v3995 = vsel %vm1155, %v3992, %v3994
      %3996 = vrot.lane.b32.xlu0 %v3951, 123
      %v3997 = vpop.permute.xlu0 %3996
      %3998 = vrot.lane.b32.xlu0 %v3953, 123
      %v3999 = vpop.permute.xlu0 %3998
      %4000 = vrot.lane.b32.xlu0 %v3955, 123
      %v4001 = vpop.permute.xlu0 %4000
      %4002 = vrot.lane.b32.xlu0 %v3957, 123
      %v4003 = vpop.permute.xlu0 %4002
      %4004 = vrot.lane.b32.xlu0 %v3959, 123
      %v4005 = vpop.permute.xlu0 %4004
      %4006 = vrot.lane.b32.xlu0 %v3961, 123
      %v4007 = vpop.permute.xlu0 %4006
      %4008 = vrot.lane.b32.xlu0 %v3963, 123
      %v4009 = vpop.permute.xlu0 %4008
      %4010 = vrot.lane.b32.xlu0 %v3965, 123
      %v4011 = vpop.permute.xlu0 %4010
      %4012 = vrot.lane.b32.xlu0 %v3967, 123
      %v4013 = vpop.permute.xlu0 %4012
      %4014 = vrot.lane.b32.xlu0 %v3969, 123
      %v4015 = vpop.permute.xlu0 %4014
      %4016 = vrot.lane.b32.xlu0 %v3971, 123
      %v4017 = vpop.permute.xlu0 %4016
      %4018 = vrot.lane.b32.xlu0 %v3973, 123
      %v4019 = vpop.permute.xlu0 %4018
      %4020 = vrot.lane.b32.xlu0 %v3975, 123
      %v4021 = vpop.permute.xlu0 %4020
      %4022 = vrot.lane.b32.xlu0 %v3977, 123
      %v4023 = vpop.permute.xlu0 %4022
      %4024 = vrot.lane.b32.xlu0 %v3979, 123
      %v4025 = vpop.permute.xlu0 %4024
      %4026 = vrot.lane.b32.xlu0 %v3981, 123
      %v4027 = vpop.permute.xlu0 %4026
      %4028 = vrot.lane.b32.xlu0 %v3983, 123
      %v4029 = vpop.permute.xlu0 %4028
      %4030 = vrot.lane.b32.xlu0 %v3985, 123
      %v4031 = vpop.permute.xlu0 %4030
      %4032 = vrot.lane.b32.xlu0 %v3987, 123
      %v4033 = vpop.permute.xlu0 %4032
      %4034 = vrot.lane.b32.xlu0 %v3989, 123
      %v4035 = vpop.permute.xlu0 %4034
      %4036 = vrot.lane.b32.xlu0 %v3991, 123
      %v4037 = vpop.permute.xlu0 %4036
      %4038 = vrot.lane.b32.xlu0 %v3993, 123
      %v4039 = vpop.permute.xlu0 %4038
      %4040 = vrot.lane.b32.xlu0 %v3995, 123
      %v4041 = vpop.permute.xlu0 %4040
      %4042 = vrot.lane.b32.xlu0 %v3994, 123
      %v4043 = vpop.permute.xlu0 %4042
      %v4068 = vadd.f32 %v1006, %v3997
      %v4069 = vadd.f32 %v3881, %v3999
      %v4070 = vadd.f32 %v3882, %v4001
      %v4071 = vadd.f32 %v3883, %v4003
      %v4072 = vadd.f32 %v3884, %v4005
      %v4073 = vadd.f32 %v3885, %v4007
      %v4074 = vadd.f32 %v3886, %v4009
      %v4075 = vadd.f32 %v3887, %v4011
      %v4076 = vadd.f32 %v3888, %v4013
      %v4077 = vadd.f32 %v3889, %v4015
      %v4078 = vadd.f32 %v3890, %v4017
      %v4079 = vadd.f32 %v3891, %v4019
      %v4080 = vadd.f32 %v3892, %v4021
      %v4081 = vadd.f32 %v3893, %v4023
      %v4082 = vadd.f32 %v3894, %v4025
      %v4083 = vadd.f32 %v3895, %v4027
      %v4084 = vadd.f32 %v3896, %v4029
      %v4085 = vadd.f32 %v3897, %v4031
      %v4086 = vadd.f32 %v3898, %v4033
      %v4087 = vadd.f32 %v3899, %v4035
      %v4088 = vadd.f32 %v3900, %v4037
      %v4089 = vadd.f32 %v3901, %v4039
      %v4090 = vadd.f32 %v3902, %v4041
      %v4091 = vadd.f32 %v3903, %v4043
      %v4092 = vmul.f32 %v3756, %v1310
      %v4093 = vmul.f32 %v3759, %v1312
      %v4094 = vmul.f32 %v3764, %v1314
      %v4095 = vmul.f32 %v3767, %v1316
      %v4096 = vmul.f32 %v3772, %v1318
      %v4097 = vmul.f32 %v3775, %v1320
      %v4098 = vmul.f32 %v3780, %v1322
      %v4099 = vmul.f32 %v3783, %v1324
      %v4100 = vmul.f32 %v3788, %v1326
      %v4101 = vmul.f32 %v3791, %v1328
      %v4102 = vmul.f32 %v3796, %v1330
      %v4103 = vmul.f32 %v3799, %v1332
      %v4104 = vmul.f32 %v3804, %v1334
      %v4105 = vmul.f32 %v3807, %v1336
      %v4106 = vmul.f32 %v3812, %v1338
      %v4107 = vmul.f32 %v3815, %v1340
      %v4108 = vmul.f32 %v3820, %v1342
      %v4109 = vmul.f32 %v3823, %v1344
      %v4110 = vmul.f32 %v3828, %v1346
      %v4111 = vmul.f32 %v3831, %v1348
      %v4112 = vmul.f32 %v3836, %v1350
      %v4113 = vmul.f32 %v3839, %v1352
      %v4114 = vmul.f32 %v3844, %v1354
      %v4138 = vrot.slane %v4092, 2
      %v4139 = vsel %vm1430, %v1432, %v4138
      %v4140 = vrot.slane %v4093, 2
      %v4141 = vsel %vm1430, %v4138, %v4140
      %v4142 = vrot.slane %v4094, 2
      %v4143 = vsel %vm1430, %v4140, %v4142
      %v4144 = vrot.slane %v4095, 2
      %v4145 = vsel %vm1430, %v4142, %v4144
      %v4146 = vrot.slane %v4096, 2
      %v4147 = vsel %vm1430, %v4144, %v4146
      %v4148 = vrot.slane %v4097, 2
      %v4149 = vsel %vm1430, %v4146, %v4148
      %v4150 = vrot.slane %v4098, 2
      %v4151 = vsel %vm1430, %v4148, %v4150
      %v4152 = vrot.slane %v4099, 2
      %v4153 = vsel %vm1430, %v4150, %v4152
      %v4154 = vrot.slane %v4100, 2
      %v4155 = vsel %vm1430, %v4152, %v4154
      %v4156 = vrot.slane %v4101, 2
      %v4157 = vsel %vm1430, %v4154, %v4156
      %v4158 = vrot.slane %v4102, 2
      %v4159 = vsel %vm1430, %v4156, %v4158
      %v4160 = vrot.slane %v4103, 2
      %v4161 = vsel %vm1430, %v4158, %v4160
      %v4162 = vrot.slane %v4104, 2
      %v4163 = vsel %vm1430, %v4160, %v4162
      %v4164 = vrot.slane %v4105, 2
      %v4165 = vsel %vm1430, %v4162, %v4164
      %v4166 = vrot.slane %v4106, 2
      %v4167 = vsel %vm1430, %v4164, %v4166
      %v4168 = vrot.slane %v4107, 2
      %v4169 = vsel %vm1430, %v4166, %v4168
      %v4170 = vrot.slane %v4108, 2
      %v4171 = vsel %vm1430, %v4168, %v4170
      %v4172 = vrot.slane %v4109, 2
      %v4173 = vsel %vm1430, %v4170, %v4172
      %v4174 = vrot.slane %v4110, 2
      %v4175 = vsel %vm1430, %v4172, %v4174
      %v4176 = vrot.slane %v4111, 2
      %v4177 = vsel %vm1430, %v4174, %v4176
      %v4178 = vrot.slane %v4112, 2
      %v4179 = vsel %vm1430, %v4176, %v4178
      %v4180 = vrot.slane %v4113, 2
      %v4181 = vsel %vm1430, %v4178, %v4180
      %v4182 = vrot.slane %v4114, 2
      %v4183 = vsel %vm1430, %v4180, %v4182
      %4184 = vrot.lane.b32.xlu0 %v4139, 118
      %v4185 = vpop.permute.xlu0 %4184
      %4186 = vrot.lane.b32.xlu0 %v4141, 118
      %v4187 = vpop.permute.xlu0 %4186
      %4188 = vrot.lane.b32.xlu0 %v4143, 118
      %v4189 = vpop.permute.xlu0 %4188
      %4190 = vrot.lane.b32.xlu0 %v4145, 118
      %v4191 = vpop.permute.xlu0 %4190
      %4192 = vrot.lane.b32.xlu0 %v4147, 118
      %v4193 = vpop.permute.xlu0 %4192
      %4194 = vrot.lane.b32.xlu0 %v4149, 118
      %v4195 = vpop.permute.xlu0 %4194
      %4196 = vrot.lane.b32.xlu0 %v4151, 118
      %v4197 = vpop.permute.xlu0 %4196
      %4198 = vrot.lane.b32.xlu0 %v4153, 118
      %v4199 = vpop.permute.xlu0 %4198
      %4200 = vrot.lane.b32.xlu0 %v4155, 118
      %v4201 = vpop.permute.xlu0 %4200
      %4202 = vrot.lane.b32.xlu0 %v4157, 118
      %v4203 = vpop.permute.xlu0 %4202
      %4204 = vrot.lane.b32.xlu0 %v4159, 118
      %v4205 = vpop.permute.xlu0 %4204
      %4206 = vrot.lane.b32.xlu0 %v4161, 118
      %v4207 = vpop.permute.xlu0 %4206
      %4208 = vrot.lane.b32.xlu0 %v4163, 118
      %v4209 = vpop.permute.xlu0 %4208
      %4210 = vrot.lane.b32.xlu0 %v4165, 118
      %v4211 = vpop.permute.xlu0 %4210
      %4212 = vrot.lane.b32.xlu0 %v4167, 118
      %v4213 = vpop.permute.xlu0 %4212
      %4214 = vrot.lane.b32.xlu0 %v4169, 118
      %v4215 = vpop.permute.xlu0 %4214
      %4216 = vrot.lane.b32.xlu0 %v4171, 118
      %v4217 = vpop.permute.xlu0 %4216
      %4218 = vrot.lane.b32.xlu0 %v4173, 118
      %v4219 = vpop.permute.xlu0 %4218
      %4220 = vrot.lane.b32.xlu0 %v4175, 118
      %v4221 = vpop.permute.xlu0 %4220
      %4222 = vrot.lane.b32.xlu0 %v4177, 118
      %v4223 = vpop.permute.xlu0 %4222
      %4224 = vrot.lane.b32.xlu0 %v4179, 118
      %v4225 = vpop.permute.xlu0 %4224
      %4226 = vrot.lane.b32.xlu0 %v4181, 118
      %v4227 = vpop.permute.xlu0 %4226
      %4228 = vrot.lane.b32.xlu0 %v4183, 118
      %v4229 = vpop.permute.xlu0 %4228
      %4230 = vrot.lane.b32.xlu0 %v4182, 118
      %v4231 = vpop.permute.xlu0 %4230
      %v4256 = vadd.f32 %v4068, %v4185
      %v4257 = vadd.f32 %v4069, %v4187
      %v4258 = vadd.f32 %v4070, %v4189
      %v4259 = vadd.f32 %v4071, %v4191
      %v4260 = vadd.f32 %v4072, %v4193
      %v4261 = vadd.f32 %v4073, %v4195
      %v4262 = vadd.f32 %v4074, %v4197
      %v4263 = vadd.f32 %v4075, %v4199
      %v4264 = vadd.f32 %v4076, %v4201
      %v4265 = vadd.f32 %v4077, %v4203
      %v4266 = vadd.f32 %v4078, %v4205
      %v4267 = vadd.f32 %v4079, %v4207
      %v4268 = vadd.f32 %v4080, %v4209
      %v4269 = vadd.f32 %v4081, %v4211
      %v4270 = vadd.f32 %v4082, %v4213
      %v4271 = vadd.f32 %v4083, %v4215
      %v4272 = vadd.f32 %v4084, %v4217
      %v4273 = vadd.f32 %v4085, %v4219
      %v4274 = vadd.f32 %v4086, %v4221
      %v4275 = vadd.f32 %v4087, %v4223
      %v4276 = vadd.f32 %v4088, %v4225
      %v4277 = vadd.f32 %v4089, %v4227
      %v4278 = vadd.f32 %v4090, %v4229
      %v4279 = vadd.f32 %v4091, %v4231
      %v4280 = vmul.f32 %v3756, %v321
      %v4281 = vmul.f32 %v3759, %v322
      %v4282 = vmul.f32 %v3764, %v323
      %v4283 = vmul.f32 %v3767, %v324
      %v4284 = vmul.f32 %v3772, %v325
      %v4285 = vmul.f32 %v3775, %v326
      %v4286 = vmul.f32 %v3780, %v327
      %v4287 = vmul.f32 %v3783, %v328
      %v4288 = vmul.f32 %v3788, %v329
      %v4289 = vmul.f32 %v3791, %v330
      %v4290 = vmul.f32 %v3796, %v331
      %v4291 = vmul.f32 %v3799, %v332
      %v4292 = vmul.f32 %v3804, %v333
      %v4293 = vmul.f32 %v3807, %v334
      %v4294 = vmul.f32 %v3812, %v335
      %v4295 = vmul.f32 %v3815, %v336
      %v4296 = vmul.f32 %v3820, %v337
      %v4297 = vmul.f32 %v3823, %v338
      %v4298 = vmul.f32 %v3828, %v339
      %v4299 = vmul.f32 %v3831, %v340
      %v4300 = vmul.f32 %v3836, %v341
      %v4301 = vmul.f32 %v3839, %v342
      %v4302 = vmul.f32 %v3844, %v343
      %v4303 = vmul.f32 %v3847, %v344
      %v4304 = vmul.f32 %v3857, %v345
      %v4330 = vrot.slane %v4280, 6
      %v4331 = vrot.slane %v4281, 6
      %v4332 = vsel %vm905, %v4330, %v4331
      %v4333 = vrot.slane %v4282, 6
      %v4334 = vsel %vm905, %v4331, %v4333
      %v4335 = vrot.slane %v4283, 6
      %v4336 = vsel %vm905, %v4333, %v4335
      %v4337 = vrot.slane %v4284, 6
      %v4338 = vsel %vm905, %v4335, %v4337
      %v4339 = vrot.slane %v4285, 6
      %v4340 = vsel %vm905, %v4337, %v4339
      %v4341 = vrot.slane %v4286, 6
      %v4342 = vsel %vm905, %v4339, %v4341
      %v4343 = vrot.slane %v4287, 6
      %v4344 = vsel %vm905, %v4341, %v4343
      %v4345 = vrot.slane %v4288, 6
      %v4346 = vsel %vm905, %v4343, %v4345
      %v4347 = vrot.slane %v4289, 6
      %v4348 = vsel %vm905, %v4345, %v4347
      %v4349 = vrot.slane %v4290, 6
      %v4350 = vsel %vm905, %v4347, %v4349
      %v4351 = vrot.slane %v4291, 6
      %v4352 = vsel %vm905, %v4349, %v4351
      %v4353 = vrot.slane %v4292, 6
      %v4354 = vsel %vm905, %v4351, %v4353
      %v4355 = vrot.slane %v4293, 6
      %v4356 = vsel %vm905, %v4353, %v4355
      %v4357 = vrot.slane %v4294, 6
      %v4358 = vsel %vm905, %v4355, %v4357
      %v4359 = vrot.slane %v4295, 6
      %v4360 = vsel %vm905, %v4357, %v4359
      %v4361 = vrot.slane %v4296, 6
      %v4362 = vsel %vm905, %v4359, %v4361
      %v4363 = vrot.slane %v4297, 6
      %v4364 = vsel %vm905, %v4361, %v4363
      %v4365 = vrot.slane %v4298, 6
      %v4366 = vsel %vm905, %v4363, %v4365
      %v4367 = vrot.slane %v4299, 6
      %v4368 = vsel %vm905, %v4365, %v4367
      %v4369 = vrot.slane %v4300, 6
      %v4370 = vsel %vm905, %v4367, %v4369
      %v4371 = vrot.slane %v4301, 6
      %v4372 = vsel %vm905, %v4369, %v4371
      %v4373 = vrot.slane %v4302, 6
      %v4374 = vsel %vm905, %v4371, %v4373
      %v4375 = vrot.slane %v4303, 6
      %v4376 = vsel %vm905, %v4373, %v4375
      %v4377 = vrot.slane %v4304, 6
      %v4378 = vsel %vm905, %v4375, %v4377
      %4379 = vrot.lane.b32.xlu0 %v4330, 113
      %v4380 = vpop.permute.xlu0 %4379
      %4381 = vrot.lane.b32.xlu0 %v4332, 113
      %v4382 = vpop.permute.xlu0 %4381
      %4383 = vrot.lane.b32.xlu0 %v4334, 113
      %v4384 = vpop.permute.xlu0 %4383
      %4385 = vrot.lane.b32.xlu0 %v4336, 113
      %v4386 = vpop.permute.xlu0 %4385
      %4387 = vrot.lane.b32.xlu0 %v4338, 113
      %v4388 = vpop.permute.xlu0 %4387
      %4389 = vrot.lane.b32.xlu0 %v4340, 113
      %v4390 = vpop.permute.xlu0 %4389
      %4391 = vrot.lane.b32.xlu0 %v4342, 113
      %v4392 = vpop.permute.xlu0 %4391
      %4393 = vrot.lane.b32.xlu0 %v4344, 113
      %v4394 = vpop.permute.xlu0 %4393
      %4395 = vrot.lane.b32.xlu0 %v4346, 113
      %v4396 = vpop.permute.xlu0 %4395
      %4397 = vrot.lane.b32.xlu0 %v4348, 113
      %v4398 = vpop.permute.xlu0 %4397
      %4399 = vrot.lane.b32.xlu0 %v4350, 113
      %v4400 = vpop.permute.xlu0 %4399
      %4401 = vrot.lane.b32.xlu0 %v4352, 113
      %v4402 = vpop.permute.xlu0 %4401
      %4403 = vrot.lane.b32.xlu0 %v4354, 113
      %v4404 = vpop.permute.xlu0 %4403
      %4405 = vrot.lane.b32.xlu0 %v4356, 113
      %v4406 = vpop.permute.xlu0 %4405
      %4407 = vrot.lane.b32.xlu0 %v4358, 113
      %v4408 = vpop.permute.xlu0 %4407
      %4409 = vrot.lane.b32.xlu0 %v4360, 113
      %v4410 = vpop.permute.xlu0 %4409
      %4411 = vrot.lane.b32.xlu0 %v4362, 113
      %v4412 = vpop.permute.xlu0 %4411
      %4413 = vrot.lane.b32.xlu0 %v4364, 113
      %v4414 = vpop.permute.xlu0 %4413
      %4415 = vrot.lane.b32.xlu0 %v4366, 113
      %v4416 = vpop.permute.xlu0 %4415
      %4417 = vrot.lane.b32.xlu0 %v4368, 113
      %v4418 = vpop.permute.xlu0 %4417
      %4419 = vrot.lane.b32.xlu0 %v4370, 113
      %v4420 = vpop.permute.xlu0 %4419
      %4421 = vrot.lane.b32.xlu0 %v4372, 113
      %v4422 = vpop.permute.xlu0 %4421
      %4423 = vrot.lane.b32.xlu0 %v4374, 113
      %v4424 = vpop.permute.xlu0 %4423
      %4425 = vrot.lane.b32.xlu0 %v4376, 113
      %v4426 = vpop.permute.xlu0 %4425
      %4427 = vrot.lane.b32.xlu0 %v4378, 113
      %v4428 = vpop.permute.xlu0 %4427
      %v4454 = vadd.f32 %v1555, %v4380
      %v4455 = vadd.f32 %v4256, %v4382
      %v4456 = vadd.f32 %v4257, %v4384
      %v4457 = vadd.f32 %v4258, %v4386
      %v4458 = vadd.f32 %v4259, %v4388
      %v4459 = vadd.f32 %v4260, %v4390
      %v4460 = vadd.f32 %v4261, %v4392
      %v4461 = vadd.f32 %v4262, %v4394
      %v4462 = vadd.f32 %v4263, %v4396
      %v4463 = vadd.f32 %v4264, %v4398
      %v4464 = vadd.f32 %v4265, %v4400
      %v4465 = vadd.f32 %v4266, %v4402
      %v4466 = vadd.f32 %v4267, %v4404
      %v4467 = vadd.f32 %v4268, %v4406
      %v4468 = vadd.f32 %v4269, %v4408
      %v4469 = vadd.f32 %v4270, %v4410
      %v4470 = vadd.f32 %v4271, %v4412
      %v4471 = vadd.f32 %v4272, %v4414
      %v4472 = vadd.f32 %v4273, %v4416
      %v4473 = vadd.f32 %v4274, %v4418
      %v4474 = vadd.f32 %v4275, %v4420
      %v4475 = vadd.f32 %v4276, %v4422
      %v4476 = vadd.f32 %v4277, %v4424
      %v4477 = vadd.f32 %v4278, %v4426
      %v4478 = vadd.f32 %v4279, %v4428
      %v4479 = vmul.f32 %v3756, %v1780
      %v4480 = vmul.f32 %v3759, %v1782
      %v4481 = vmul.f32 %v3764, %v1784
      %v4482 = vmul.f32 %v3767, %v1786
      %v4483 = vmul.f32 %v3772, %v1788
      %v4484 = vmul.f32 %v3775, %v1790
      %v4485 = vmul.f32 %v3780, %v1792
      %v4486 = vmul.f32 %v3783, %v1794
      %v4487 = vmul.f32 %v3788, %v1796
      %v4488 = vmul.f32 %v3791, %v1798
      %v4489 = vmul.f32 %v3796, %v1800
      %v4490 = vmul.f32 %v3799, %v1802
      %v4491 = vmul.f32 %v3804, %v1804
      %v4492 = vmul.f32 %v3807, %v1806
      %v4493 = vmul.f32 %v3812, %v1808
      %v4494 = vmul.f32 %v3815, %v1810
      %v4495 = vmul.f32 %v3820, %v1812
      %v4496 = vmul.f32 %v3823, %v1814
      %v4497 = vmul.f32 %v3828, %v1816
      %v4498 = vmul.f32 %v3831, %v1818
      %v4499 = vmul.f32 %v3836, %v1820
      %v4500 = vmul.f32 %v3839, %v1822
      %v4501 = vmul.f32 %v3844, %v1824
      %v4502 = vmul.f32 %v3847, %v1826
      %v4503 = vmul.f32 %v3857, %v1828
      %v4529 = vrot.slane %v4479, 7
      %v4530 = vrot.slane %v4480, 7
      %v4531 = vsel %vm1779, %v4529, %v4530
      %v4532 = vrot.slane %v4481, 7
      %v4533 = vsel %vm1779, %v4530, %v4532
      %v4534 = vrot.slane %v4482, 7
      %v4535 = vsel %vm1779, %v4532, %v4534
      %v4536 = vrot.slane %v4483, 7
      %v4537 = vsel %vm1779, %v4534, %v4536
      %v4538 = vrot.slane %v4484, 7
      %v4539 = vsel %vm1779, %v4536, %v4538
      %v4540 = vrot.slane %v4485, 7
      %v4541 = vsel %vm1779, %v4538, %v4540
      %v4542 = vrot.slane %v4486, 7
      %v4543 = vsel %vm1779, %v4540, %v4542
      %v4544 = vrot.slane %v4487, 7
      %v4545 = vsel %vm1779, %v4542, %v4544
      %v4546 = vrot.slane %v4488, 7
      %v4547 = vsel %vm1779, %v4544, %v4546
      %v4548 = vrot.slane %v4489, 7
      %v4549 = vsel %vm1779, %v4546, %v4548
      %v4550 = vrot.slane %v4490, 7
      %v4551 = vsel %vm1779, %v4548, %v4550
      %v4552 = vrot.slane %v4491, 7
      %v4553 = vsel %vm1779, %v4550, %v4552
      %v4554 = vrot.slane %v4492, 7
      %v4555 = vsel %vm1779, %v4552, %v4554
      %v4556 = vrot.slane %v4493, 7
      %v4557 = vsel %vm1779, %v4554, %v4556
      %v4558 = vrot.slane %v4494, 7
      %v4559 = vsel %vm1779, %v4556, %v4558
      %v4560 = vrot.slane %v4495, 7
      %v4561 = vsel %vm1779, %v4558, %v4560
      %v4562 = vrot.slane %v4496, 7
      %v4563 = vsel %vm1779, %v4560, %v4562
      %v4564 = vrot.slane %v4497, 7
      %v4565 = vsel %vm1779, %v4562, %v4564
      %v4566 = vrot.slane %v4498, 7
      %v4567 = vsel %vm1779, %v4564, %v4566
      %v4568 = vrot.slane %v4499, 7
      %v4569 = vsel %vm1779, %v4566, %v4568
      %v4570 = vrot.slane %v4500, 7
      %v4571 = vsel %vm1779, %v4568, %v4570
      %v4572 = vrot.slane %v4501, 7
      %v4573 = vsel %vm1779, %v4570, %v4572
      %v4574 = vrot.slane %v4502, 7
      %v4575 = vsel %vm1779, %v4572, %v4574
      %v4576 = vrot.slane %v4503, 7
      %v4577 = vsel %vm1779, %v4574, %v4576
      %4578 = vrot.lane.b32.xlu0 %v4529, 108
      %v4579 = vpop.permute.xlu0 %4578
      %4580 = vrot.lane.b32.xlu0 %v4531, 108
      %v4581 = vpop.permute.xlu0 %4580
      %4582 = vrot.lane.b32.xlu0 %v4533, 108
      %v4583 = vpop.permute.xlu0 %4582
      %4584 = vrot.lane.b32.xlu0 %v4535, 108
      %v4585 = vpop.permute.xlu0 %4584
      %4586 = vrot.lane.b32.xlu0 %v4537, 108
      %v4587 = vpop.permute.xlu0 %4586
      %4588 = vrot.lane.b32.xlu0 %v4539, 108
      %v4589 = vpop.permute.xlu0 %4588
      %4590 = vrot.lane.b32.xlu0 %v4541, 108
      %v4591 = vpop.permute.xlu0 %4590
      %4592 = vrot.lane.b32.xlu0 %v4543, 108
      %v4593 = vpop.permute.xlu0 %4592
      %4594 = vrot.lane.b32.xlu0 %v4545, 108
      %v4595 = vpop.permute.xlu0 %4594
      %4596 = vrot.lane.b32.xlu0 %v4547, 108
      %v4597 = vpop.permute.xlu0 %4596
      %4598 = vrot.lane.b32.xlu0 %v4549, 108
      %v4599 = vpop.permute.xlu0 %4598
      %4600 = vrot.lane.b32.xlu0 %v4551, 108
      %v4601 = vpop.permute.xlu0 %4600
      %4602 = vrot.lane.b32.xlu0 %v4553, 108
      %v4603 = vpop.permute.xlu0 %4602
      %4604 = vrot.lane.b32.xlu0 %v4555, 108
      %v4605 = vpop.permute.xlu0 %4604
      %4606 = vrot.lane.b32.xlu0 %v4557, 108
      %v4607 = vpop.permute.xlu0 %4606
      %4608 = vrot.lane.b32.xlu0 %v4559, 108
      %v4609 = vpop.permute.xlu0 %4608
      %4610 = vrot.lane.b32.xlu0 %v4561, 108
      %v4611 = vpop.permute.xlu0 %4610
      %4612 = vrot.lane.b32.xlu0 %v4563, 108
      %v4613 = vpop.permute.xlu0 %4612
      %4614 = vrot.lane.b32.xlu0 %v4565, 108
      %v4615 = vpop.permute.xlu0 %4614
      %4616 = vrot.lane.b32.xlu0 %v4567, 108
      %v4617 = vpop.permute.xlu0 %4616
      %4618 = vrot.lane.b32.xlu0 %v4569, 108
      %v4619 = vpop.permute.xlu0 %4618
      %4620 = vrot.lane.b32.xlu0 %v4571, 108
      %v4621 = vpop.permute.xlu0 %4620
      %4622 = vrot.lane.b32.xlu0 %v4573, 108
      %v4623 = vpop.permute.xlu0 %4622
      %4624 = vrot.lane.b32.xlu0 %v4575, 108
      %v4625 = vpop.permute.xlu0 %4624
      %4626 = vrot.lane.b32.xlu0 %v4577, 108
      %v4627 = vpop.permute.xlu0 %4626
      %v4653 = vadd.f32 %v4454, %v4579
      %v4654 = vadd.f32 %v4455, %v4581
      %v4655 = vadd.f32 %v4456, %v4583
      %v4656 = vadd.f32 %v4457, %v4585
      %v4657 = vadd.f32 %v4458, %v4587
      %v4658 = vadd.f32 %v4459, %v4589
      %v4659 = vadd.f32 %v4460, %v4591
      %v4660 = vadd.f32 %v4461, %v4593
      %v4661 = vadd.f32 %v4462, %v4595
      %v4662 = vadd.f32 %v4463, %v4597
      %v4663 = vadd.f32 %v4464, %v4599
      %v4664 = vadd.f32 %v4465, %v4601
      %v4665 = vadd.f32 %v4466, %v4603
      %v4666 = vadd.f32 %v4467, %v4605
      %v4667 = vadd.f32 %v4468, %v4607
      %v4668 = vadd.f32 %v4469, %v4609
      %v4669 = vadd.f32 %v4470, %v4611
      %v4670 = vadd.f32 %v4471, %v4613
      %v4671 = vadd.f32 %v4472, %v4615
      %v4672 = vadd.f32 %v4473, %v4617
      %v4673 = vadd.f32 %v4474, %v4619
      %v4674 = vadd.f32 %v4475, %v4621
      %v4675 = vadd.f32 %v4476, %v4623
      %v4676 = vadd.f32 %v4477, %v4625
      %v4677 = vadd.f32 %v4478, %v4627
      %v4678 = vmul.f32 %v3756, %v906
      %v4679 = vmul.f32 %v3759, %v908
      %v4680 = vmul.f32 %v3764, %v910
      %v4681 = vmul.f32 %v3767, %v912
      %v4682 = vmul.f32 %v3772, %v914
      %v4683 = vmul.f32 %v3775, %v916
      %v4684 = vmul.f32 %v3780, %v918
      %v4685 = vmul.f32 %v3783, %v920
      %v4686 = vmul.f32 %v3788, %v922
      %v4687 = vmul.f32 %v3791, %v924
      %v4688 = vmul.f32 %v3796, %v926
      %v4689 = vmul.f32 %v3799, %v928
      %v4690 = vmul.f32 %v3804, %v930
      %v4691 = vmul.f32 %v3807, %v932
      %v4692 = vmul.f32 %v3812, %v934
      %v4693 = vmul.f32 %v3815, %v936
      %v4694 = vmul.f32 %v3820, %v938
      %v4695 = vmul.f32 %v3823, %v940
      %v4696 = vmul.f32 %v3828, %v942
      %v4697 = vmul.f32 %v3831, %v944
      %v4698 = vmul.f32 %v3836, %v946
      %v4699 = vmul.f32 %v3839, %v948
      %v4700 = vmul.f32 %v3844, %v950
      %v4701 = vmul.f32 %v3847, %v952
      %v4702 = vmul.f32 %v3857, %v954
      %4728 = vrot.lane.b32.xlu0 %v4678, 103
      %v4729 = vpop.permute.xlu0 %4728
      %4730 = vrot.lane.b32.xlu0 %v4679, 103
      %v4731 = vpop.permute.xlu0 %4730
      %4732 = vrot.lane.b32.xlu0 %v4680, 103
      %v4733 = vpop.permute.xlu0 %4732
      %4734 = vrot.lane.b32.xlu0 %v4681, 103
      %v4735 = vpop.permute.xlu0 %4734
      %4736 = vrot.lane.b32.xlu0 %v4682, 103
      %v4737 = vpop.permute.xlu0 %4736
      %4738 = vrot.lane.b32.xlu0 %v4683, 103
      %v4739 = vpop.permute.xlu0 %4738
      %4740 = vrot.lane.b32.xlu0 %v4684, 103
      %v4741 = vpop.permute.xlu0 %4740
      %4742 = vrot.lane.b32.xlu0 %v4685, 103
      %v4743 = vpop.permute.xlu0 %4742
      %4744 = vrot.lane.b32.xlu0 %v4686, 103
      %v4745 = vpop.permute.xlu0 %4744
      %4746 = vrot.lane.b32.xlu0 %v4687, 103
      %v4747 = vpop.permute.xlu0 %4746
      %4748 = vrot.lane.b32.xlu0 %v4688, 103
      %v4749 = vpop.permute.xlu0 %4748
      %4750 = vrot.lane.b32.xlu0 %v4689, 103
      %v4751 = vpop.permute.xlu0 %4750
      %4752 = vrot.lane.b32.xlu0 %v4690, 103
      %v4753 = vpop.permute.xlu0 %4752
      %4754 = vrot.lane.b32.xlu0 %v4691, 103
      %v4755 = vpop.permute.xlu0 %4754
      %4756 = vrot.lane.b32.xlu0 %v4692, 103
      %v4757 = vpop.permute.xlu0 %4756
      %4758 = vrot.lane.b32.xlu0 %v4693, 103
      %v4759 = vpop.permute.xlu0 %4758
      %4760 = vrot.lane.b32.xlu0 %v4694, 103
      %v4761 = vpop.permute.xlu0 %4760
      %4762 = vrot.lane.b32.xlu0 %v4695, 103
      %v4763 = vpop.permute.xlu0 %4762
      %4764 = vrot.lane.b32.xlu0 %v4696, 103
      %v4765 = vpop.permute.xlu0 %4764
      %4766 = vrot.lane.b32.xlu0 %v4697, 103
      %v4767 = vpop.permute.xlu0 %4766
      %4768 = vrot.lane.b32.xlu0 %v4698, 103
      %v4769 = vpop.permute.xlu0 %4768
      %4770 = vrot.lane.b32.xlu0 %v4699, 103
      %v4771 = vpop.permute.xlu0 %4770
      %4772 = vrot.lane.b32.xlu0 %v4700, 103
      %v4773 = vpop.permute.xlu0 %4772
      %4774 = vrot.lane.b32.xlu0 %v4701, 103
      %v4775 = vpop.permute.xlu0 %4774
      %4776 = vrot.lane.b32.xlu0 %v4702, 103
      %v4777 = vpop.permute.xlu0 %4776
      %v4803 = vadd.f32 %v4653, %v4729
      %v4804 = vadd.f32 %v4654, %v4731
      %v4805 = vadd.f32 %v4655, %v4733
      %v4806 = vadd.f32 %v4656, %v4735
      %v4807 = vadd.f32 %v4657, %v4737
      %v4808 = vadd.f32 %v4658, %v4739
      %v4809 = vadd.f32 %v4659, %v4741
      %v4810 = vadd.f32 %v4660, %v4743
      %v4811 = vadd.f32 %v4661, %v4745
      %v4812 = vadd.f32 %v4662, %v4747
      %v4813 = vadd.f32 %v4663, %v4749
      %v4814 = vadd.f32 %v4664, %v4751
      %v4815 = vadd.f32 %v4665, %v4753
      %v4816 = vadd.f32 %v4666, %v4755
      %v4817 = vadd.f32 %v4667, %v4757
      %v4818 = vadd.f32 %v4668, %v4759
      %v4819 = vadd.f32 %v4669, %v4761
      %v4820 = vadd.f32 %v4670, %v4763
      %v4821 = vadd.f32 %v4671, %v4765
      %v4822 = vadd.f32 %v4672, %v4767
      %v4823 = vadd.f32 %v4673, %v4769
      %v4824 = vadd.f32 %v4674, %v4771
      %v4825 = vadd.f32 %v4675, %v4773
      %v4826 = vadd.f32 %v4676, %v4775
      %v4827 = vadd.f32 %v4677, %v4777
      %v4828 = vmul.f32 %v3759, %v2203
      %v4829 = vmul.f32 %v3764, %v2205
      %v4830 = vmul.f32 %v3767, %v2207
      %v4831 = vmul.f32 %v3772, %v2209
      %v4832 = vmul.f32 %v3775, %v2211
      %v4833 = vmul.f32 %v3780, %v2213
      %v4834 = vmul.f32 %v3783, %v2215
      %v4835 = vmul.f32 %v3788, %v2217
      %v4836 = vmul.f32 %v3791, %v2219
      %v4837 = vmul.f32 %v3796, %v2221
      %v4838 = vmul.f32 %v3799, %v2223
      %v4839 = vmul.f32 %v3804, %v2225
      %v4840 = vmul.f32 %v3807, %v2227
      %v4841 = vmul.f32 %v3812, %v2229
      %v4842 = vmul.f32 %v3815, %v2231
      %v4843 = vmul.f32 %v3820, %v2233
      %v4844 = vmul.f32 %v3823, %v2235
      %v4845 = vmul.f32 %v3828, %v2237
      %v4846 = vmul.f32 %v3831, %v2239
      %v4847 = vmul.f32 %v3836, %v2241
      %v4848 = vmul.f32 %v3839, %v2243
      %v4849 = vmul.f32 %v3844, %v2245
      %v4850 = vmul.f32 %v3847, %v2247
      %v4851 = vmul.f32 %v3857, %v2249
      %v4876 = vrot.slane %v4828, 4
      %v4877 = vrot.slane %v4829, 4
      %v4878 = vsel %vm1305, %v4876, %v4877
      %v4879 = vrot.slane %v4830, 4
      %v4880 = vsel %vm1305, %v4877, %v4879
      %v4881 = vrot.slane %v4831, 4
      %v4882 = vsel %vm1305, %v4879, %v4881
      %v4883 = vrot.slane %v4832, 4
      %v4884 = vsel %vm1305, %v4881, %v4883
      %v4885 = vrot.slane %v4833, 4
      %v4886 = vsel %vm1305, %v4883, %v4885
      %v4887 = vrot.slane %v4834, 4
      %v4888 = vsel %vm1305, %v4885, %v4887
      %v4889 = vrot.slane %v4835, 4
      %v4890 = vsel %vm1305, %v4887, %v4889
      %v4891 = vrot.slane %v4836, 4
      %v4892 = vsel %vm1305, %v4889, %v4891
      %v4893 = vrot.slane %v4837, 4
      %v4894 = vsel %vm1305, %v4891, %v4893
      %v4895 = vrot.slane %v4838, 4
      %v4896 = vsel %vm1305, %v4893, %v4895
      %v4897 = vrot.slane %v4839, 4
      %v4898 = vsel %vm1305, %v4895, %v4897
      %v4899 = vrot.slane %v4840, 4
      %v4900 = vsel %vm1305, %v4897, %v4899
      %v4901 = vrot.slane %v4841, 4
      %v4902 = vsel %vm1305, %v4899, %v4901
      %v4903 = vrot.slane %v4842, 4
      %v4904 = vsel %vm1305, %v4901, %v4903
      %v4905 = vrot.slane %v4843, 4
      %v4906 = vsel %vm1305, %v4903, %v4905
      %v4907 = vrot.slane %v4844, 4
      %v4908 = vsel %vm1305, %v4905, %v4907
      %v4909 = vrot.slane %v4845, 4
      %v4910 = vsel %vm1305, %v4907, %v4909
      %v4911 = vrot.slane %v4846, 4
      %v4912 = vsel %vm1305, %v4909, %v4911
      %v4913 = vrot.slane %v4847, 4
      %v4914 = vsel %vm1305, %v4911, %v4913
      %v4915 = vrot.slane %v4848, 4
      %v4916 = vsel %vm1305, %v4913, %v4915
      %v4917 = vrot.slane %v4849, 4
      %v4918 = vsel %vm1305, %v4915, %v4917
      %v4919 = vrot.slane %v4850, 4
      %v4920 = vsel %vm1305, %v4917, %v4919
      %v4921 = vrot.slane %v4851, 4
      %v4922 = vsel %vm1305, %v4919, %v4921
      %v4923 = vsel %vm1305, %v4921, %v2377
      %4924 = vrot.lane.b32.xlu0 %v4878, 98
      %v4925 = vpop.permute.xlu0 %4924
      %4926 = vrot.lane.b32.xlu0 %v4880, 98
      %v4927 = vpop.permute.xlu0 %4926
      %4928 = vrot.lane.b32.xlu0 %v4882, 98
      %v4929 = vpop.permute.xlu0 %4928
      %4930 = vrot.lane.b32.xlu0 %v4884, 98
      %v4931 = vpop.permute.xlu0 %4930
      %4932 = vrot.lane.b32.xlu0 %v4886, 98
      %v4933 = vpop.permute.xlu0 %4932
      %4934 = vrot.lane.b32.xlu0 %v4888, 98
      %v4935 = vpop.permute.xlu0 %4934
      %4936 = vrot.lane.b32.xlu0 %v4890, 98
      %v4937 = vpop.permute.xlu0 %4936
      %4938 = vrot.lane.b32.xlu0 %v4892, 98
      %v4939 = vpop.permute.xlu0 %4938
      %4940 = vrot.lane.b32.xlu0 %v4894, 98
      %v4941 = vpop.permute.xlu0 %4940
      %4942 = vrot.lane.b32.xlu0 %v4896, 98
      %v4943 = vpop.permute.xlu0 %4942
      %4944 = vrot.lane.b32.xlu0 %v4898, 98
      %v4945 = vpop.permute.xlu0 %4944
      %4946 = vrot.lane.b32.xlu0 %v4900, 98
      %v4947 = vpop.permute.xlu0 %4946
      %4948 = vrot.lane.b32.xlu0 %v4902, 98
      %v4949 = vpop.permute.xlu0 %4948
      %4950 = vrot.lane.b32.xlu0 %v4904, 98
      %v4951 = vpop.permute.xlu0 %4950
      %4952 = vrot.lane.b32.xlu0 %v4906, 98
      %v4953 = vpop.permute.xlu0 %4952
      %4954 = vrot.lane.b32.xlu0 %v4908, 98
      %v4955 = vpop.permute.xlu0 %4954
      %4956 = vrot.lane.b32.xlu0 %v4910, 98
      %v4957 = vpop.permute.xlu0 %4956
      %4958 = vrot.lane.b32.xlu0 %v4912, 98
      %v4959 = vpop.permute.xlu0 %4958
      %4960 = vrot.lane.b32.xlu0 %v4914, 98
      %v4961 = vpop.permute.xlu0 %4960
      %4962 = vrot.lane.b32.xlu0 %v4916, 98
      %v4963 = vpop.permute.xlu0 %4962
      %4964 = vrot.lane.b32.xlu0 %v4918, 98
      %v4965 = vpop.permute.xlu0 %4964
      %4966 = vrot.lane.b32.xlu0 %v4920, 98
      %v4967 = vpop.permute.xlu0 %4966
      %4968 = vrot.lane.b32.xlu0 %v4922, 98
      %v4969 = vpop.permute.xlu0 %4968
      %4970 = vrot.lane.b32.xlu0 %v4923, 98
      %v4971 = vpop.permute.xlu0 %4970
      %v4996 = vadd.f32 %v4803, %v4925
      %v4997 = vadd.f32 %v4804, %v4927
      %v4998 = vadd.f32 %v4805, %v4929
      %v4999 = vadd.f32 %v4806, %v4931
      %v5000 = vadd.f32 %v4807, %v4933
      %v5001 = vadd.f32 %v4808, %v4935
      %v5002 = vadd.f32 %v4809, %v4937
      %v5003 = vadd.f32 %v4810, %v4939
      %v5004 = vadd.f32 %v4811, %v4941
      %v5005 = vadd.f32 %v4812, %v4943
      %v5006 = vadd.f32 %v4813, %v4945
      %v5007 = vadd.f32 %v4814, %v4947
      %v5008 = vadd.f32 %v4815, %v4949
      %v5009 = vadd.f32 %v4816, %v4951
      %v5010 = vadd.f32 %v4817, %v4953
      %v5011 = vadd.f32 %v4818, %v4955
      %v5012 = vadd.f32 %v4819, %v4957
      %v5013 = vadd.f32 %v4820, %v4959
      %v5014 = vadd.f32 %v4821, %v4961
      %v5015 = vadd.f32 %v4822, %v4963
      %v5016 = vadd.f32 %v4823, %v4965
      %v5017 = vadd.f32 %v4824, %v4967
      %v5018 = vadd.f32 %v4825, %v4969
      %v5019 = vadd.f32 %v4826, %v4971
      %v5020 = vadd.f32 %v4827, %v2430
      %v5021 = vmul.f32 %v3759, %v2481
      %v5022 = vmul.f32 %v3764, %v2483
      %v5023 = vmul.f32 %v3767, %v2485
      %v5024 = vmul.f32 %v3772, %v2487
      %v5025 = vmul.f32 %v3775, %v2489
      %v5026 = vmul.f32 %v3780, %v2491
      %v5027 = vmul.f32 %v3783, %v2493
      %v5028 = vmul.f32 %v3788, %v2495
      %v5029 = vmul.f32 %v3791, %v2497
      %v5030 = vmul.f32 %v3796, %v2499
      %v5031 = vmul.f32 %v3799, %v2501
      %v5032 = vmul.f32 %v3804, %v2503
      %v5033 = vmul.f32 %v3807, %v2505
      %v5034 = vmul.f32 %v3812, %v2507
      %v5035 = vmul.f32 %v3815, %v2509
      %v5036 = vmul.f32 %v3820, %v2511
      %v5037 = vmul.f32 %v3823, %v2513
      %v5038 = vmul.f32 %v3828, %v2515
      %v5039 = vmul.f32 %v3831, %v2517
      %v5040 = vmul.f32 %v3836, %v2519
      %v5041 = vmul.f32 %v3839, %v2521
      %v5042 = vmul.f32 %v3844, %v2523
      %v5043 = vmul.f32 %v3847, %v2525
      %v5044 = vmul.f32 %v3857, %v2527
      %v5069 = vrot.slane %v5021, 5
      %v5070 = vrot.slane %v5022, 5
      %v5071 = vsel %vm1030, %v5069, %v5070
      %v5072 = vrot.slane %v5023, 5
      %v5073 = vsel %vm1030, %v5070, %v5072
      %v5074 = vrot.slane %v5024, 5
      %v5075 = vsel %vm1030, %v5072, %v5074
      %v5076 = vrot.slane %v5025, 5
      %v5077 = vsel %vm1030, %v5074, %v5076
      %v5078 = vrot.slane %v5026, 5
      %v5079 = vsel %vm1030, %v5076, %v5078
      %v5080 = vrot.slane %v5027, 5
      %v5081 = vsel %vm1030, %v5078, %v5080
      %v5082 = vrot.slane %v5028, 5
      %v5083 = vsel %vm1030, %v5080, %v5082
      %v5084 = vrot.slane %v5029, 5
      %v5085 = vsel %vm1030, %v5082, %v5084
      %v5086 = vrot.slane %v5030, 5
      %v5087 = vsel %vm1030, %v5084, %v5086
      %v5088 = vrot.slane %v5031, 5
      %v5089 = vsel %vm1030, %v5086, %v5088
      %v5090 = vrot.slane %v5032, 5
      %v5091 = vsel %vm1030, %v5088, %v5090
      %v5092 = vrot.slane %v5033, 5
      %v5093 = vsel %vm1030, %v5090, %v5092
      %v5094 = vrot.slane %v5034, 5
      %v5095 = vsel %vm1030, %v5092, %v5094
      %v5096 = vrot.slane %v5035, 5
      %v5097 = vsel %vm1030, %v5094, %v5096
      %v5098 = vrot.slane %v5036, 5
      %v5099 = vsel %vm1030, %v5096, %v5098
      %v5100 = vrot.slane %v5037, 5
      %v5101 = vsel %vm1030, %v5098, %v5100
      %v5102 = vrot.slane %v5038, 5
      %v5103 = vsel %vm1030, %v5100, %v5102
      %v5104 = vrot.slane %v5039, 5
      %v5105 = vsel %vm1030, %v5102, %v5104
      %v5106 = vrot.slane %v5040, 5
      %v5107 = vsel %vm1030, %v5104, %v5106
      %v5108 = vrot.slane %v5041, 5
      %v5109 = vsel %vm1030, %v5106, %v5108
      %v5110 = vrot.slane %v5042, 5
      %v5111 = vsel %vm1030, %v5108, %v5110
      %v5112 = vrot.slane %v5043, 5
      %v5113 = vsel %vm1030, %v5110, %v5112
      %v5114 = vrot.slane %v5044, 5
      %v5115 = vsel %vm1030, %v5112, %v5114
      %v5116 = vsel %vm1030, %v5114, %v2655
      %5117 = vrot.lane.b32.xlu0 %v5071, 93
      %v5118 = vpop.permute.xlu0 %5117
      %5119 = vrot.lane.b32.xlu0 %v5073, 93
      %v5120 = vpop.permute.xlu0 %5119
      %5121 = vrot.lane.b32.xlu0 %v5075, 93
      %v5122 = vpop.permute.xlu0 %5121
      %5123 = vrot.lane.b32.xlu0 %v5077, 93
      %v5124 = vpop.permute.xlu0 %5123
      %5125 = vrot.lane.b32.xlu0 %v5079, 93
      %v5126 = vpop.permute.xlu0 %5125
      %5127 = vrot.lane.b32.xlu0 %v5081, 93
      %v5128 = vpop.permute.xlu0 %5127
      %5129 = vrot.lane.b32.xlu0 %v5083, 93
      %v5130 = vpop.permute.xlu0 %5129
      %5131 = vrot.lane.b32.xlu0 %v5085, 93
      %v5132 = vpop.permute.xlu0 %5131
      %5133 = vrot.lane.b32.xlu0 %v5087, 93
      %v5134 = vpop.permute.xlu0 %5133
      %5135 = vrot.lane.b32.xlu0 %v5089, 93
      %v5136 = vpop.permute.xlu0 %5135
      %5137 = vrot.lane.b32.xlu0 %v5091, 93
      %v5138 = vpop.permute.xlu0 %5137
      %5139 = vrot.lane.b32.xlu0 %v5093, 93
      %v5140 = vpop.permute.xlu0 %5139
      %5141 = vrot.lane.b32.xlu0 %v5095, 93
      %v5142 = vpop.permute.xlu0 %5141
      %5143 = vrot.lane.b32.xlu0 %v5097, 93
      %v5144 = vpop.permute.xlu0 %5143
      %5145 = vrot.lane.b32.xlu0 %v5099, 93
      %v5146 = vpop.permute.xlu0 %5145
      %5147 = vrot.lane.b32.xlu0 %v5101, 93
      %v5148 = vpop.permute.xlu0 %5147
      %5149 = vrot.lane.b32.xlu0 %v5103, 93
      %v5150 = vpop.permute.xlu0 %5149
      %5151 = vrot.lane.b32.xlu0 %v5105, 93
      %v5152 = vpop.permute.xlu0 %5151
      %5153 = vrot.lane.b32.xlu0 %v5107, 93
      %v5154 = vpop.permute.xlu0 %5153
      %5155 = vrot.lane.b32.xlu0 %v5109, 93
      %v5156 = vpop.permute.xlu0 %5155
      %5157 = vrot.lane.b32.xlu0 %v5111, 93
      %v5158 = vpop.permute.xlu0 %5157
      %5159 = vrot.lane.b32.xlu0 %v5113, 93
      %v5160 = vpop.permute.xlu0 %5159
      %5161 = vrot.lane.b32.xlu0 %v5115, 93
      %v5162 = vpop.permute.xlu0 %5161
      %5163 = vrot.lane.b32.xlu0 %v5116, 93
      %v5164 = vpop.permute.xlu0 %5163
      %v5189 = vadd.f32 %v4996, %v5118
      %v5190 = vadd.f32 %v4997, %v5120
      %v5191 = vadd.f32 %v4998, %v5122
      %v5192 = vadd.f32 %v4999, %v5124
      %v5193 = vadd.f32 %v5000, %v5126
      %v5194 = vadd.f32 %v5001, %v5128
      %v5195 = vadd.f32 %v5002, %v5130
      %v5196 = vadd.f32 %v5003, %v5132
      %v5197 = vadd.f32 %v5004, %v5134
      %v5198 = vadd.f32 %v5005, %v5136
      %v5199 = vadd.f32 %v5006, %v5138
      %v5200 = vadd.f32 %v5007, %v5140
      %v5201 = vadd.f32 %v5008, %v5142
      %v5202 = vadd.f32 %v5009, %v5144
      %v5203 = vadd.f32 %v5010, %v5146
      %v5204 = vadd.f32 %v5011, %v5148
      %v5205 = vadd.f32 %v5012, %v5150
      %v5206 = vadd.f32 %v5013, %v5152
      %v5207 = vadd.f32 %v5014, %v5154
      %v5208 = vadd.f32 %v5015, %v5156
      %v5209 = vadd.f32 %v5016, %v5158
      %v5210 = vadd.f32 %v5017, %v5160
      %v5211 = vadd.f32 %v5018, %v5162
      %v5212 = vadd.f32 %v5019, %v5164
      %v5213 = vadd.f32 %v5020, %v2708
      %v5214 = vmul.f32 %v3764, %v321
      %v5215 = vmul.f32 %v3767, %v322
      %v5216 = vmul.f32 %v3772, %v323
      %v5217 = vmul.f32 %v3775, %v324
      %v5218 = vmul.f32 %v3780, %v325
      %v5219 = vmul.f32 %v3783, %v326
      %v5220 = vmul.f32 %v3788, %v327
      %v5221 = vmul.f32 %v3791, %v328
      %v5222 = vmul.f32 %v3796, %v329
      %v5223 = vmul.f32 %v3799, %v330
      %v5224 = vmul.f32 %v3804, %v331
      %v5225 = vmul.f32 %v3807, %v332
      %v5226 = vmul.f32 %v3812, %v333
      %v5227 = vmul.f32 %v3815, %v334
      %v5228 = vmul.f32 %v3820, %v335
      %v5229 = vmul.f32 %v3823, %v336
      %v5230 = vmul.f32 %v3828, %v337
      %v5231 = vmul.f32 %v3831, %v338
      %v5232 = vmul.f32 %v3836, %v339
      %v5233 = vmul.f32 %v3839, %v340
      %v5234 = vmul.f32 %v3844, %v341
      %v5235 = vmul.f32 %v3847, %v342
      %v5236 = vmul.f32 %v3857, %v343
      %v5260 = vrot.slane %v5214, 6
      %v5261 = vrot.slane %v5215, 6
      %v5262 = vsel %vm905, %v5260, %v5261
      %v5263 = vrot.slane %v5216, 6
      %v5264 = vsel %vm905, %v5261, %v5263
      %v5265 = vrot.slane %v5217, 6
      %v5266 = vsel %vm905, %v5263, %v5265
      %v5267 = vrot.slane %v5218, 6
      %v5268 = vsel %vm905, %v5265, %v5267
      %v5269 = vrot.slane %v5219, 6
      %v5270 = vsel %vm905, %v5267, %v5269
      %v5271 = vrot.slane %v5220, 6
      %v5272 = vsel %vm905, %v5269, %v5271
      %v5273 = vrot.slane %v5221, 6
      %v5274 = vsel %vm905, %v5271, %v5273
      %v5275 = vrot.slane %v5222, 6
      %v5276 = vsel %vm905, %v5273, %v5275
      %v5277 = vrot.slane %v5223, 6
      %v5278 = vsel %vm905, %v5275, %v5277
      %v5279 = vrot.slane %v5224, 6
      %v5280 = vsel %vm905, %v5277, %v5279
      %v5281 = vrot.slane %v5225, 6
      %v5282 = vsel %vm905, %v5279, %v5281
      %v5283 = vrot.slane %v5226, 6
      %v5284 = vsel %vm905, %v5281, %v5283
      %v5285 = vrot.slane %v5227, 6
      %v5286 = vsel %vm905, %v5283, %v5285
      %v5287 = vrot.slane %v5228, 6
      %v5288 = vsel %vm905, %v5285, %v5287
      %v5289 = vrot.slane %v5229, 6
      %v5290 = vsel %vm905, %v5287, %v5289
      %v5291 = vrot.slane %v5230, 6
      %v5292 = vsel %vm905, %v5289, %v5291
      %v5293 = vrot.slane %v5231, 6
      %v5294 = vsel %vm905, %v5291, %v5293
      %v5295 = vrot.slane %v5232, 6
      %v5296 = vsel %vm905, %v5293, %v5295
      %v5297 = vrot.slane %v5233, 6
      %v5298 = vsel %vm905, %v5295, %v5297
      %v5299 = vrot.slane %v5234, 6
      %v5300 = vsel %vm905, %v5297, %v5299
      %v5301 = vrot.slane %v5235, 6
      %v5302 = vsel %vm905, %v5299, %v5301
      %v5303 = vrot.slane %v5236, 6
      %v5304 = vsel %vm905, %v5301, %v5303
      %v5305 = vsel %vm905, %v5303, %v2854
      %5306 = vrot.lane.b32.xlu0 %v5260, 88
      %v5307 = vpop.permute.xlu0 %5306
      %5308 = vrot.lane.b32.xlu0 %v5262, 88
      %v5309 = vpop.permute.xlu0 %5308
      %5310 = vrot.lane.b32.xlu0 %v5264, 88
      %v5311 = vpop.permute.xlu0 %5310
      %5312 = vrot.lane.b32.xlu0 %v5266, 88
      %v5313 = vpop.permute.xlu0 %5312
      %5314 = vrot.lane.b32.xlu0 %v5268, 88
      %v5315 = vpop.permute.xlu0 %5314
      %5316 = vrot.lane.b32.xlu0 %v5270, 88
      %v5317 = vpop.permute.xlu0 %5316
      %5318 = vrot.lane.b32.xlu0 %v5272, 88
      %v5319 = vpop.permute.xlu0 %5318
      %5320 = vrot.lane.b32.xlu0 %v5274, 88
      %v5321 = vpop.permute.xlu0 %5320
      %5322 = vrot.lane.b32.xlu0 %v5276, 88
      %v5323 = vpop.permute.xlu0 %5322
      %5324 = vrot.lane.b32.xlu0 %v5278, 88
      %v5325 = vpop.permute.xlu0 %5324
      %5326 = vrot.lane.b32.xlu0 %v5280, 88
      %v5327 = vpop.permute.xlu0 %5326
      %5328 = vrot.lane.b32.xlu0 %v5282, 88
      %v5329 = vpop.permute.xlu0 %5328
      %5330 = vrot.lane.b32.xlu0 %v5284, 88
      %v5331 = vpop.permute.xlu0 %5330
      %5332 = vrot.lane.b32.xlu0 %v5286, 88
      %v5333 = vpop.permute.xlu0 %5332
      %5334 = vrot.lane.b32.xlu0 %v5288, 88
      %v5335 = vpop.permute.xlu0 %5334
      %5336 = vrot.lane.b32.xlu0 %v5290, 88
      %v5337 = vpop.permute.xlu0 %5336
      %5338 = vrot.lane.b32.xlu0 %v5292, 88
      %v5339 = vpop.permute.xlu0 %5338
      %5340 = vrot.lane.b32.xlu0 %v5294, 88
      %v5341 = vpop.permute.xlu0 %5340
      %5342 = vrot.lane.b32.xlu0 %v5296, 88
      %v5343 = vpop.permute.xlu0 %5342
      %5344 = vrot.lane.b32.xlu0 %v5298, 88
      %v5345 = vpop.permute.xlu0 %5344
      %5346 = vrot.lane.b32.xlu0 %v5300, 88
      %v5347 = vpop.permute.xlu0 %5346
      %5348 = vrot.lane.b32.xlu0 %v5302, 88
      %v5349 = vpop.permute.xlu0 %5348
      %5350 = vrot.lane.b32.xlu0 %v5304, 88
      %v5351 = vpop.permute.xlu0 %5350
      %5352 = vrot.lane.b32.xlu0 %v5305, 88
      %v5353 = vpop.permute.xlu0 %5352
      %v5378 = vadd.f32 %v5189, %v5307
      %v5379 = vadd.f32 %v5190, %v5309
      %v5380 = vadd.f32 %v5191, %v5311
      %v5381 = vadd.f32 %v5192, %v5313
      %v5382 = vadd.f32 %v5193, %v5315
      %v5383 = vadd.f32 %v5194, %v5317
      %v5384 = vadd.f32 %v5195, %v5319
      %v5385 = vadd.f32 %v5196, %v5321
      %v5386 = vadd.f32 %v5197, %v5323
      %v5387 = vadd.f32 %v5198, %v5325
      %v5388 = vadd.f32 %v5199, %v5327
      %v5389 = vadd.f32 %v5200, %v5329
      %v5390 = vadd.f32 %v5201, %v5331
      %v5391 = vadd.f32 %v5202, %v5333
      %v5392 = vadd.f32 %v5203, %v5335
      %v5393 = vadd.f32 %v5204, %v5337
      %v5394 = vadd.f32 %v5205, %v5339
      %v5395 = vadd.f32 %v5206, %v5341
      %v5396 = vadd.f32 %v5207, %v5343
      %v5397 = vadd.f32 %v5208, %v5345
      %v5398 = vadd.f32 %v5209, %v5347
      %v5399 = vadd.f32 %v5210, %v5349
      %v5400 = vadd.f32 %v5211, %v5351
      %v5401 = vadd.f32 %v5212, %v5353
      %v5402 = vadd.f32 %v5213, %v2907
      %v5428 = vrot.slane %v5378, 2
      %v5429 = vrot.slane %v5379, 2
      %v5430 = vsel %vm1430, %v5428, %v5429
      %v5431 = vrot.slane %v5380, 2
      %v5432 = vsel %vm1430, %v5429, %v5431
      %v5433 = vrot.slane %v5381, 2
      %v5434 = vsel %vm1430, %v5431, %v5433
      %v5435 = vrot.slane %v5382, 2
      %v5436 = vsel %vm1430, %v5433, %v5435
      %v5437 = vrot.slane %v5383, 2
      %v5438 = vsel %vm1430, %v5435, %v5437
      %v5439 = vrot.slane %v5384, 2
      %v5440 = vsel %vm1430, %v5437, %v5439
      %v5441 = vrot.slane %v5385, 2
      %v5442 = vsel %vm1430, %v5439, %v5441
      %v5443 = vrot.slane %v5386, 2
      %v5444 = vsel %vm1430, %v5441, %v5443
      %v5445 = vrot.slane %v5387, 2
      %v5446 = vsel %vm1430, %v5443, %v5445
      %v5447 = vrot.slane %v5388, 2
      %v5448 = vsel %vm1430, %v5445, %v5447
      %v5449 = vrot.slane %v5389, 2
      %v5450 = vsel %vm1430, %v5447, %v5449
      %v5451 = vrot.slane %v5390, 2
      %v5452 = vsel %vm1430, %v5449, %v5451
      %v5453 = vrot.slane %v5391, 2
      %v5454 = vsel %vm1430, %v5451, %v5453
      %v5455 = vrot.slane %v5392, 2
      %v5456 = vsel %vm1430, %v5453, %v5455
      %v5457 = vrot.slane %v5393, 2
      %v5458 = vsel %vm1430, %v5455, %v5457
      %v5459 = vrot.slane %v5394, 2
      %v5460 = vsel %vm1430, %v5457, %v5459
      %v5461 = vrot.slane %v5395, 2
      %v5462 = vsel %vm1430, %v5459, %v5461
      %v5463 = vrot.slane %v5396, 2
      %v5464 = vsel %vm1430, %v5461, %v5463
      %v5465 = vrot.slane %v5397, 2
      %v5466 = vsel %vm1430, %v5463, %v5465
      %v5467 = vrot.slane %v5398, 2
      %v5468 = vsel %vm1430, %v5465, %v5467
      %v5469 = vrot.slane %v5399, 2
      %v5470 = vsel %vm1430, %v5467, %v5469
      %v5471 = vrot.slane %v5400, 2
      %v5472 = vsel %vm1430, %v5469, %v5471
      %v5473 = vrot.slane %v5401, 2
      %v5474 = vsel %vm1430, %v5471, %v5473
      %v5475 = vrot.slane %v5402, 2
      %v5476 = vsel %vm1430, %v5473, %v5475
      %v5502 = vsel %vm3057, %v5430, 0.0
      %v5503 = vsel %vm3057, %v5432, 0.0
      %v5504 = vadd.f32 %v5502, %v5503
      %v5505 = vsel %vm3057, %v5434, 0.0
      %v5506 = vadd.f32 %v5504, %v5505
      %v5507 = vsel %vm3057, %v5436, 0.0
      %v5508 = vadd.f32 %v5506, %v5507
      %v5509 = vsel %vm3057, %v5438, 0.0
      %v5510 = vadd.f32 %v5508, %v5509
      %v5511 = vsel %vm3057, %v5440, 0.0
      %v5512 = vadd.f32 %v5510, %v5511
      %v5513 = vsel %vm3057, %v5442, 0.0
      %v5514 = vadd.f32 %v5512, %v5513
      %v5515 = vsel %vm3057, %v5444, 0.0
      %v5516 = vadd.f32 %v5514, %v5515
      %v5517 = vsel %vm3057, %v5446, 0.0
      %v5518 = vadd.f32 %v5516, %v5517
      %v5519 = vsel %vm3057, %v5448, 0.0
      %v5520 = vadd.f32 %v5518, %v5519
      %v5521 = vsel %vm3057, %v5450, 0.0
      %v5522 = vadd.f32 %v5520, %v5521
      %v5523 = vsel %vm3057, %v5452, 0.0
      %v5524 = vadd.f32 %v5522, %v5523
      %v5525 = vsel %vm3057, %v5454, 0.0
      %v5526 = vadd.f32 %v5524, %v5525
      %v5527 = vsel %vm3057, %v5456, 0.0
      %v5528 = vadd.f32 %v5526, %v5527
      %v5529 = vsel %vm3057, %v5458, 0.0
      %v5530 = vadd.f32 %v5528, %v5529
      %v5531 = vsel %vm3057, %v5460, 0.0
      %v5532 = vadd.f32 %v5530, %v5531
      %v5533 = vsel %vm3057, %v5462, 0.0
      %v5534 = vadd.f32 %v5532, %v5533
      %v5535 = vsel %vm3057, %v5464, 0.0
      %v5536 = vadd.f32 %v5534, %v5535
      %v5537 = vsel %vm3057, %v5466, 0.0
      %v5538 = vadd.f32 %v5536, %v5537
      %v5539 = vsel %vm3057, %v5468, 0.0
      %v5540 = vadd.f32 %v5538, %v5539
      %v5541 = vsel %vm3057, %v5470, 0.0
      %v5542 = vadd.f32 %v5540, %v5541
      %v5543 = vsel %vm3057, %v5472, 0.0
      %v5544 = vadd.f32 %v5542, %v5543
      %v5545 = vsel %vm3057, %v5474, 0.0
      %v5546 = vadd.f32 %v5544, %v5545
      %v5547 = vsel %vm3057, %v5476, 0.0
      %v5548 = vadd.f32 %v5546, %v5547
      %v5549 = vsel %vm3105, %v5475, 0.0
      %v5550 = vadd.f32 %v5548, %v5549
      %5551 = vadd.xlane.f32.xlu0 %v5550
      %v5552 = vpop.xlane.xlu0 %5551
      %v5553 = vrot.slane %v5552, 4
      %v5554 = vadd.f32 %v5552, %v5553
      %v5555 = vrot.slane %v5554, 2
      %v5556 = vadd.f32 %v5554, %v5555
      %v5557 = vrot.slane %v5556, 1
      %v5558 = vadd.f32 %v5556, %v5557
      %s5559 = vtos %v5558
      %s5560 = smul.f32 %s5559, 0.0010204081
      %v5561 = vstv %s5560
      %v5562 = vsub.f32 %v5378, %v5561
      %v5563 = vsub.f32 %v5379, %v5561
      %v5564 = vsub.f32 %v5380, %v5561
      %v5565 = vsub.f32 %v5381, %v5561
      %v5566 = vsub.f32 %v5382, %v5561
      %v5567 = vsub.f32 %v5383, %v5561
      %v5568 = vsub.f32 %v5384, %v5561
      %v5569 = vsub.f32 %v5385, %v5561
      %v5570 = vsub.f32 %v5386, %v5561
      %v5571 = vsub.f32 %v5387, %v5561
      %v5572 = vsub.f32 %v5388, %v5561
      %v5573 = vsub.f32 %v5389, %v5561
      %v5574 = vsub.f32 %v5390, %v5561
      %v5575 = vsub.f32 %v5391, %v5561
      %v5576 = vsub.f32 %v5392, %v5561
      %v5577 = vsub.f32 %v5393, %v5561
      %v5578 = vsub.f32 %v5394, %v5561
      %v5579 = vsub.f32 %v5395, %v5561
      %v5580 = vsub.f32 %v5396, %v5561
      %v5581 = vsub.f32 %v5397, %v5561
      %v5582 = vsub.f32 %v5398, %v5561
      %v5583 = vsub.f32 %v5399, %v5561
      %v5584 = vsub.f32 %v5400, %v5561
      %v5585 = vsub.f32 %v5401, %v5561
      %v5586 = vsub.f32 %v5402, %v5561
      %v5587 = vmul.f32 %v5562, %v5562
      %v5588 = vmul.f32 %v5563, %v5563
      %v5589 = vmul.f32 %v5564, %v5564
      %v5590 = vmul.f32 %v5565, %v5565
      %v5591 = vmul.f32 %v5566, %v5566
      %v5592 = vmul.f32 %v5567, %v5567
      %v5593 = vmul.f32 %v5568, %v5568
      %v5594 = vmul.f32 %v5569, %v5569
      %v5595 = vmul.f32 %v5570, %v5570
      %v5596 = vmul.f32 %v5571, %v5571
      %v5597 = vmul.f32 %v5572, %v5572
      %v5598 = vmul.f32 %v5573, %v5573
      %v5599 = vmul.f32 %v5574, %v5574
      %v5600 = vmul.f32 %v5575, %v5575
      %v5601 = vmul.f32 %v5576, %v5576
      %v5602 = vmul.f32 %v5577, %v5577
      %v5603 = vmul.f32 %v5578, %v5578
      %v5604 = vmul.f32 %v5579, %v5579
      %v5605 = vmul.f32 %v5580, %v5580
      %v5606 = vmul.f32 %v5581, %v5581
      %v5607 = vmul.f32 %v5582, %v5582
      %v5608 = vmul.f32 %v5583, %v5583
      %v5609 = vmul.f32 %v5584, %v5584
      %v5610 = vmul.f32 %v5585, %v5585
      %v5611 = vmul.f32 %v5586, %v5586
      %v5637 = vrot.slane %v5587, 2
      %v5638 = vrot.slane %v5588, 2
      %v5639 = vsel %vm1430, %v5637, %v5638
      %v5640 = vrot.slane %v5589, 2
      %v5641 = vsel %vm1430, %v5638, %v5640
      %v5642 = vrot.slane %v5590, 2
      %v5643 = vsel %vm1430, %v5640, %v5642
      %v5644 = vrot.slane %v5591, 2
      %v5645 = vsel %vm1430, %v5642, %v5644
      %v5646 = vrot.slane %v5592, 2
      %v5647 = vsel %vm1430, %v5644, %v5646
      %v5648 = vrot.slane %v5593, 2
      %v5649 = vsel %vm1430, %v5646, %v5648
      %v5650 = vrot.slane %v5594, 2
      %v5651 = vsel %vm1430, %v5648, %v5650
      %v5652 = vrot.slane %v5595, 2
      %v5653 = vsel %vm1430, %v5650, %v5652
      %v5654 = vrot.slane %v5596, 2
      %v5655 = vsel %vm1430, %v5652, %v5654
      %v5656 = vrot.slane %v5597, 2
      %v5657 = vsel %vm1430, %v5654, %v5656
      %v5658 = vrot.slane %v5598, 2
      %v5659 = vsel %vm1430, %v5656, %v5658
      %v5660 = vrot.slane %v5599, 2
      %v5661 = vsel %vm1430, %v5658, %v5660
      %v5662 = vrot.slane %v5600, 2
      %v5663 = vsel %vm1430, %v5660, %v5662
      %v5664 = vrot.slane %v5601, 2
      %v5665 = vsel %vm1430, %v5662, %v5664
      %v5666 = vrot.slane %v5602, 2
      %v5667 = vsel %vm1430, %v5664, %v5666
      %v5668 = vrot.slane %v5603, 2
      %v5669 = vsel %vm1430, %v5666, %v5668
      %v5670 = vrot.slane %v5604, 2
      %v5671 = vsel %vm1430, %v5668, %v5670
      %v5672 = vrot.slane %v5605, 2
      %v5673 = vsel %vm1430, %v5670, %v5672
      %v5674 = vrot.slane %v5606, 2
      %v5675 = vsel %vm1430, %v5672, %v5674
      %v5676 = vrot.slane %v5607, 2
      %v5677 = vsel %vm1430, %v5674, %v5676
      %v5678 = vrot.slane %v5608, 2
      %v5679 = vsel %vm1430, %v5676, %v5678
      %v5680 = vrot.slane %v5609, 2
      %v5681 = vsel %vm1430, %v5678, %v5680
      %v5682 = vrot.slane %v5610, 2
      %v5683 = vsel %vm1430, %v5680, %v5682
      %v5684 = vrot.slane %v5611, 2
      %v5685 = vsel %vm1430, %v5682, %v5684
      %v5711 = vsel %vm3057, %v5639, 0.0
      %v5712 = vsel %vm3057, %v5641, 0.0
      %v5713 = vadd.f32 %v5711, %v5712
      %v5714 = vsel %vm3057, %v5643, 0.0
      %v5715 = vadd.f32 %v5713, %v5714
      %v5716 = vsel %vm3057, %v5645, 0.0
      %v5717 = vadd.f32 %v5715, %v5716
      %v5718 = vsel %vm3057, %v5647, 0.0
      %v5719 = vadd.f32 %v5717, %v5718
      %v5720 = vsel %vm3057, %v5649, 0.0
      %v5721 = vadd.f32 %v5719, %v5720
      %v5722 = vsel %vm3057, %v5651, 0.0
      %v5723 = vadd.f32 %v5721, %v5722
      %v5724 = vsel %vm3057, %v5653, 0.0
      %v5725 = vadd.f32 %v5723, %v5724
      %v5726 = vsel %vm3057, %v5655, 0.0
      %v5727 = vadd.f32 %v5725, %v5726
      %v5728 = vsel %vm3057, %v5657, 0.0
      %v5729 = vadd.f32 %v5727, %v5728
      %v5730 = vsel %vm3057, %v5659, 0.0
      %v5731 = vadd.f32 %v5729, %v5730
      %v5732 = vsel %vm3057, %v5661, 0.0
      %v5733 = vadd.f32 %v5731, %v5732
      %v5734 = vsel %vm3057, %v5663, 0.0
      %v5735 = vadd.f32 %v5733, %v5734
      %v5736 = vsel %vm3057, %v5665, 0.0
      %v5737 = vadd.f32 %v5735, %v5736
      %v5738 = vsel %vm3057, %v5667, 0.0
      %v5739 = vadd.f32 %v5737, %v5738
      %v5740 = vsel %vm3057, %v5669, 0.0
      %v5741 = vadd.f32 %v5739, %v5740
      %v5742 = vsel %vm3057, %v5671, 0.0
      %v5743 = vadd.f32 %v5741, %v5742
      %v5744 = vsel %vm3057, %v5673, 0.0
      %v5745 = vadd.f32 %v5743, %v5744
      %v5746 = vsel %vm3057, %v5675, 0.0
      %v5747 = vadd.f32 %v5745, %v5746
      %v5748 = vsel %vm3057, %v5677, 0.0
      %v5749 = vadd.f32 %v5747, %v5748
      %v5750 = vsel %vm3057, %v5679, 0.0
      %v5751 = vadd.f32 %v5749, %v5750
      %v5752 = vsel %vm3057, %v5681, 0.0
      %v5753 = vadd.f32 %v5751, %v5752
      %v5754 = vsel %vm3057, %v5683, 0.0
      %v5755 = vadd.f32 %v5753, %v5754
      %v5756 = vsel %vm3057, %v5685, 0.0
      %v5757 = vadd.f32 %v5755, %v5756
      %v5758 = vsel %vm3105, %v5684, 0.0
      %v5759 = vadd.f32 %v5757, %v5758
      %5760 = vadd.xlane.f32.xlu0 %v5759
      %v5761 = vpop.xlane.xlu0 %5760
      %v5762 = vrot.slane %v5761, 4
      %v5763 = vadd.f32 %v5761, %v5762
      %v5764 = vrot.slane %v5763, 2
      %v5765 = vadd.f32 %v5763, %v5764
      %v5766 = vrot.slane %v5765, 1
      %v5767 = vadd.f32 %v5765, %v5766
      %s5768 = vtos %v5767
      %s5769 = smul.f32 %s5768, 0.0010204081
      %s5770 = sadd.f32 %s5769, 1e-05
      %v5771 = vstv %s5770
      %v5772 = vrsqrt.pop %v5771
      %s5773 = vtos %v5772
      %v5774 = vstv %s5773
      %v5775 = vmul.f32 %v5562, %v5774
      %v5776 = vmul.f32 %v5563, %v5774
      %v5777 = vmul.f32 %v5564, %v5774
      %v5778 = vmul.f32 %v5565, %v5774
      %v5779 = vmul.f32 %v5566, %v5774
      %v5780 = vmul.f32 %v5567, %v5774
      %v5781 = vmul.f32 %v5568, %v5774
      %v5782 = vmul.f32 %v5569, %v5774
      %v5783 = vmul.f32 %v5570, %v5774
      %v5784 = vmul.f32 %v5571, %v5774
      %v5785 = vmul.f32 %v5572, %v5774
      %v5786 = vmul.f32 %v5573, %v5774
      %v5787 = vmul.f32 %v5574, %v5774
      %v5788 = vmul.f32 %v5575, %v5774
      %v5789 = vmul.f32 %v5576, %v5774
      %v5790 = vmul.f32 %v5577, %v5774
      %v5791 = vmul.f32 %v5578, %v5774
      %v5792 = vmul.f32 %v5579, %v5774
      %v5793 = vmul.f32 %v5580, %v5774
      %v5794 = vmul.f32 %v5581, %v5774
      %v5795 = vmul.f32 %v5582, %v5774
      %v5796 = vmul.f32 %v5583, %v5774
      %v5797 = vmul.f32 %v5584, %v5774
      %v5798 = vmul.f32 %v5585, %v5774
      %v5799 = vmul.f32 %v5586, %v5774
      %v5800 = vmul.f32 %v5775, %v3361
      %v5801 = vmul.f32 %v5776, %v3361
      %v5802 = vmul.f32 %v5777, %v3361
      %v5803 = vmul.f32 %v5778, %v3361
      %v5804 = vmul.f32 %v5779, %v3361
      %v5805 = vmul.f32 %v5780, %v3361
      %v5806 = vmul.f32 %v5781, %v3361
      %v5807 = vmul.f32 %v5782, %v3361
      %v5808 = vmul.f32 %v5783, %v3361
      %v5809 = vmul.f32 %v5784, %v3361
      %v5810 = vmul.f32 %v5785, %v3361
      %v5811 = vmul.f32 %v5786, %v3361
      %v5812 = vmul.f32 %v5787, %v3361
      %v5813 = vmul.f32 %v5788, %v3361
      %v5814 = vmul.f32 %v5789, %v3361
      %v5815 = vmul.f32 %v5790, %v3361
      %v5816 = vmul.f32 %v5791, %v3361
      %v5817 = vmul.f32 %v5792, %v3361
      %v5818 = vmul.f32 %v5793, %v3361
      %v5819 = vmul.f32 %v5794, %v3361
      %v5820 = vmul.f32 %v5795, %v3361
      %v5821 = vmul.f32 %v5796, %v3361
      %v5822 = vmul.f32 %v5797, %v3361
      %v5823 = vmul.f32 %v5798, %v3361
      %v5824 = vmul.f32 %v5799, %v3361
      %v5825 = vadd.f32 %v5800, %v3392
      %v5826 = vadd.f32 %v5801, %v3392
      %v5827 = vadd.f32 %v5802, %v3392
      %v5828 = vadd.f32 %v5803, %v3392
      %v5829 = vadd.f32 %v5804, %v3392
      %v5830 = vadd.f32 %v5805, %v3392
      %v5831 = vadd.f32 %v5806, %v3392
      %v5832 = vadd.f32 %v5807, %v3392
      %v5833 = vadd.f32 %v5808, %v3392
      %v5834 = vadd.f32 %v5809, %v3392
      %v5835 = vadd.f32 %v5810, %v3392
      %v5836 = vadd.f32 %v5811, %v3392
      %v5837 = vadd.f32 %v5812, %v3392
      %v5838 = vadd.f32 %v5813, %v3392
      %v5839 = vadd.f32 %v5814, %v3392
      %v5840 = vadd.f32 %v5815, %v3392
      %v5841 = vadd.f32 %v5816, %v3392
      %v5842 = vadd.f32 %v5817, %v3392
      %v5843 = vadd.f32 %v5818, %v3392
      %v5844 = vadd.f32 %v5819, %v3392
      %v5845 = vadd.f32 %v5820, %v3392
      %v5846 = vadd.f32 %v5821, %v3392
      %v5847 = vadd.f32 %v5822, %v3392
      %v5848 = vadd.f32 %v5823, %v3392
      %v5849 = vadd.f32 %v5824, %v3392
      %v5850 = vmax.f32 %v5825, 0.0
      %v5851 = vmax.f32 %v5826, 0.0
      %v5852 = vmax.f32 %v5827, 0.0
      %v5853 = vmax.f32 %v5828, 0.0
      %v5854 = vmax.f32 %v5829, 0.0
      %v5855 = vmax.f32 %v5830, 0.0
      %v5856 = vmax.f32 %v5831, 0.0
      %v5857 = vmax.f32 %v5832, 0.0
      %v5858 = vmax.f32 %v5833, 0.0
      %v5859 = vmax.f32 %v5834, 0.0
      %v5860 = vmax.f32 %v5835, 0.0
      %v5861 = vmax.f32 %v5836, 0.0
      %v5862 = vmax.f32 %v5837, 0.0
      %v5863 = vmax.f32 %v5838, 0.0
      %v5864 = vmax.f32 %v5839, 0.0
      %v5865 = vmax.f32 %v5840, 0.0
      %v5866 = vmax.f32 %v5841, 0.0
      %v5867 = vmax.f32 %v5842, 0.0
      %v5868 = vmax.f32 %v5843, 0.0
      %v5869 = vmax.f32 %v5844, 0.0
      %v5870 = vmax.f32 %v5845, 0.0
      %v5871 = vmax.f32 %v5846, 0.0
      %v5872 = vmax.f32 %v5847, 0.0
      %v5873 = vmax.f32 %v5848, 0.0
      %v5874 = vmax.f32 %v5849, 0.0
      %s5875 = scalar_lea.vmem %s271, 200
      %5876 = vst.msk [vmem:[%s5875 - $0x2] sm:$0xfc] %vm3444, %v5850
      %5877 = vst.msk [vmem:[%s5875 + $0x6] sm:$0xff] %vm3057, %v5851
      %5878 = vst.msk [vmem:[%s5875 + $0xe] sm:$0xff] %vm3057, %v5852
      %5879 = vst.msk [vmem:[%s5875 + $0x16] sm:$0xff] %vm3057, %v5853
      %5880 = vst.msk [vmem:[%s5875 + $0x1e] sm:$0xff] %vm3057, %v5854
      %5881 = vst.msk [vmem:[%s5875 + $0x26] sm:$0xff] %vm3057, %v5855
      %5882 = vst.msk [vmem:[%s5875 + $0x2e] sm:$0xff] %vm3057, %v5856
      %5883 = vst.msk [vmem:[%s5875 + $0x36] sm:$0xff] %vm3057, %v5857
      %5884 = vst.msk [vmem:[%s5875 + $0x3e] sm:$0xff] %vm3057, %v5858
      %5885 = vst.msk [vmem:[%s5875 + $0x46] sm:$0xff] %vm3057, %v5859
      %5886 = vst.msk [vmem:[%s5875 + $0x4e] sm:$0xff] %vm3057, %v5860
      %5887 = vst.msk [vmem:[%s5875 + $0x56] sm:$0xff] %vm3057, %v5861
      %5888 = vst.msk [vmem:[%s5875 + $0x5e] sm:$0xff] %vm3057, %v5862
      %5889 = vst.msk [vmem:[%s5875 + $0x66] sm:$0xff] %vm3057, %v5863
      %5890 = vst.msk [vmem:[%s5875 + $0x6e] sm:$0xff] %vm3057, %v5864
      %5891 = vst.msk [vmem:[%s5875 + $0x76] sm:$0xff] %vm3057, %v5865
      %5892 = vst.msk [vmem:[%s5875 + $0x7e] sm:$0xff] %vm3057, %v5866
      %5893 = vst.msk [vmem:[%s5875 + $0x86] sm:$0xff] %vm3057, %v5867
      %5894 = vst.msk [vmem:[%s5875 + $0x8e] sm:$0xff] %vm3057, %v5868
      %5895 = vst.msk [vmem:[%s5875 + $0x96] sm:$0xff] %vm3057, %v5869
      %5896 = vst.msk [vmem:[%s5875 + $0x9e] sm:$0xff] %vm3057, %v5870
      %5897 = vst.msk [vmem:[%s5875 + $0xa6] sm:$0xff] %vm3057, %v5871
      %5898 = vst.msk [vmem:[%s5875 + $0xae] sm:$0xff] %vm3057, %v5872
      %5899 = vst.msk [vmem:[%s5875 + $0xb6] sm:$0xff] %vm3057, %v5873
      %5900 = vst.msk [vmem:[%s5875 + $0xbe] sm:$0x3f] %vm3469, %v5874
      %p5901 = scmp.lt.s32.totalorder %s17, 1
      %s5902 = scalar_select %p5901, %s17, 1
      %s5903 = smul.addr %s5902, 50
      %s5904 = smul.addr %s5903, 8
      %s5905 = scalar_lea.vmem %s6, %s5904
      // Predicated region
      $region45: #{ovrl_forward.2} parent=43 // pred_check
        %p5906 = pneg %p171
      $region46: #{ovrl_forward.2} parent=43 // pred_check_branch
        %5908 = sbr.rel (%p5906) target = $region48
      $region47: #{ovrl_forward.2} parent=43 // pred_region
        _
      $region48: #{ovrl_forward.2} parent=43 // pred_fallthru
        _
    $region44: #{ovrl_forward.2} parent=5 // pred_fallthru
      _
    %p5909 = scmp.le.s32.totalorder 2, %s12
    // Predicated region
    $region49: #{ovrl_forward.2} parent=5 // pred_check
      %p5910 = pneg %p5909
    $region50: #{ovrl_forward.2} parent=5 // pred_check_branch
      %5912 = sbr.rel (%p5910) target = $region52
    $region51: #{ovrl_forward.2} parent=5 // pred_region
      %s5913 = ssub.s32 %s12, 2
      // Predicated region
      $region53: #{ovrl_forward.2} parent=51 // pred_check
        %p5914 = pneg %p177
      $region54: #{ovrl_forward.2} parent=51 // pred_check_branch
        %5916 = sbr.rel (%p5914) target = $region56
      $region55: #{ovrl_forward.2} parent=51 // pred_region
        %p5917 = scmp.lt.s32.totalorder %s18, 1
        %s5918 = scalar_select %p5917, %s18, 1
        %s5919 = smul.addr %s5918, 50
        %s5920 = smul.addr %s5919, 8
        %s5921 = scalar_lea.vmem %s6, %s5920
      $region56: #{ovrl_forward.2} parent=51 // pred_fallthru
        _
    $region52: #{ovrl_forward.2} parent=5 // pred_fallthru
      _
  $region6: #{ovrl_forward.2} parent=0 // loop_footer
    %s16 = sadd.s32 1, %s12
  $region7: #{ovrl_forward.2} parent=0 // loop_footer_branch
    %11 = sbr.rel target = $region3
  $region8: #{ovrl_forward.2} parent=0 // loop_exit
    _

// kernel: ovrl_forward.3
$region0: #{ovrl_forward.3}
  #allocation0 [shape = 'u32[]', space=smem, size = 0x4, offset = 0x4, fixed_abs, tag = 'smem constant byte address 0x4 - core index']
  #allocation1 [shape = 'u32[144,128]{1,0:T(1,128)}', space=vmem, size = 0x12000, scoped, tag = 'internal scratch']
  %s0 = inlined_call_operand.vmem [shape: f32[2,1960], index: 0, kind: input, shape index: {}]
  %s1 = inlined_call_operand.vmem [shape: bf16[1960,512], index: 1, kind: input, shape index: {}]
  %s2 = inlined_call_operand.vmem [shape: f32[1,512], index: 2, kind: input, shape index: {}]
  %s3 = inlined_call_operand.vmem [shape: bf16[512,256], index: 3, kind: input, shape index: {}]
  %s4 = inlined_call_operand.vmem [shape: f32[1,256], index: 4, kind: input, shape index: {}]
  %s5 = inlined_call_operand.vmem [shape: bf16[256,4], index: 5, kind: input, shape index: {}]
  %s6 = inlined_call_operand.vmem [shape: f32[1,4], index: 6, kind: input, shape index: {}]
  %s7 = inlined_call_operand.vmem [shape: f32[2,4], index: 7, kind: output, shape index: {}]
  %s8 = sld [smem:[#allocation0]]
  $region38: #{ovrl_forward.3} parent=0
    _
  %s10 = ssub.s32 1, %s8
  %s11 = scalar_select 0, %s10, %s8
  // Predicated region
  $region2: #{ovrl_forward.3} parent=0 // pred_check
    _
  $region3: #{ovrl_forward.3} parent=0 // pred_check_branch
    %13 = sbr.rel (0) target = $region5
  $region4: #{ovrl_forward.3} parent=0 // pred_region
    _
  $region5: #{ovrl_forward.3} parent=0 // pred_fallthru
    _
  // Predicated region
  $region6: #{ovrl_forward.3} parent=0 // pred_check
    _
  $region7: #{ovrl_forward.3} parent=0 // pred_check_branch
    %15 = sbr.rel (0) target = $region9
  $region8: #{ovrl_forward.3} parent=0 // pred_region
    _
  $region9: #{ovrl_forward.3} parent=0 // pred_fallthru
    _
  // Predicated region
  $region10: #{ovrl_forward.3} parent=0 // pred_check
    _
  $region11: #{ovrl_forward.3} parent=0 // pred_check_branch
    %17 = sbr.rel (0) target = $region13
  $region12: #{ovrl_forward.3} parent=0 // pred_region
    _
  $region13: #{ovrl_forward.3} parent=0 // pred_fallthru
    _
  // Predicated region
  $region14: #{ovrl_forward.3} parent=0 // pred_check
    _
  $region15: #{ovrl_forward.3} parent=0 // pred_check_branch
    %19 = sbr.rel (0) target = $region17
  $region16: #{ovrl_forward.3} parent=0 // pred_region
    _
  $region17: #{ovrl_forward.3} parent=0 // pred_fallthru
    _
  // Predicated region
  $region18: #{ovrl_forward.3} parent=0 // pred_check
    _
  $region19: #{ovrl_forward.3} parent=0 // pred_check_branch
    %21 = sbr.rel (0) target = $region21
  $region20: #{ovrl_forward.3} parent=0 // pred_region
    _
  $region21: #{ovrl_forward.3} parent=0 // pred_fallthru
    _
  // Predicated region
  $region22: #{ovrl_forward.3} parent=0 // pred_check
    _
  $region23: #{ovrl_forward.3} parent=0 // pred_check_branch
    %23 = sbr.rel (0) target = $region25
  $region24: #{ovrl_forward.3} parent=0 // pred_region
    _
  $region25: #{ovrl_forward.3} parent=0 // pred_fallthru
    _
  // Predicated region
  $region26: #{ovrl_forward.3} parent=0 // pred_check
    _
  $region27: #{ovrl_forward.3} parent=0 // pred_check_branch
    %25 = sbr.rel (0) target = $region29
  $region28: #{ovrl_forward.3} parent=0 // pred_region
    _
  $region29: #{ovrl_forward.3} parent=0 // pred_fallthru
    _
  %v27 = vld [vmem:[%s0] sm:$0xff]
  %v28 = vld [vmem:[%s0 + $0x8] sm:$0xff]
  %v29 = vld [vmem:[%s0 + $0x10] sm:$0xff]
  %v30 = vld [vmem:[%s0 + $0x18] sm:$0xff]
  %v35 = vcombine.high %v27, %v27
  %v37 = vunpack.c.l.s4 1983009808
  %v38 = vunpack.c.0.s8 %v37
  %v39 = vlaneseq
  %v40 = vshrl.u32 %v39, 7
  %v41 = vsub.s32 %v38, %v40
  %v42 = vrot.slane %v27, %v41
  %v44 = vunpack.c.l.s4 1983009808
  %v45 = vunpack.c.0.s8 %v44
  %v46 = vlaneseq
  %v47 = vshrl.u32 %v46, 7
  %v48 = vsub.s32 %v45, %v47
  %v49 = vrot.slane %v35, %v48
  %v50 = vcombine.high %v42, %v42
  %v51 = vcombine.high %v49, %v49
  %v52 = vcombine.high %v28, %v28
  %v54 = vunpack.c.l.s4 1983009808
  %v55 = vunpack.c.0.s8 %v54
  %v56 = vlaneseq
  %v57 = vshrl.u32 %v56, 7
  %v58 = vsub.s32 %v55, %v57
  %v59 = vrot.slane %v28, %v58
  %v61 = vunpack.c.l.s4 1983009808
  %v62 = vunpack.c.0.s8 %v61
  %v63 = vlaneseq
  %v64 = vshrl.u32 %v63, 7
  %v65 = vsub.s32 %v62, %v64
  %v66 = vrot.slane %v52, %v65
  %v67 = vcombine.high %v59, %v59
  %v68 = vcombine.high %v66, %v66
  %v69 = vcombine.high %v29, %v29
  %v71 = vunpack.c.l.s4 1983009808
  %v72 = vunpack.c.0.s8 %v71
  %v73 = vlaneseq
  %v74 = vshrl.u32 %v73, 7
  %v75 = vsub.s32 %v72, %v74
  %v76 = vrot.slane %v29, %v75
  %v78 = vunpack.c.l.s4 1983009808
  %v79 = vunpack.c.0.s8 %v78
  %v80 = vlaneseq
  %v81 = vshrl.u32 %v80, 7
  %v82 = vsub.s32 %v79, %v81
  %v83 = vrot.slane %v69, %v82
  %v84 = vcombine.high %v76, %v76
  %v85 = vcombine.high %v83, %v83
  %v86 = vcombine.high %v30, %v30
  %v88 = vunpack.c.l.s4 1983009808
  %v89 = vunpack.c.0.s8 %v88
  %v90 = vlaneseq
  %v91 = vshrl.u32 %v90, 7
  %v92 = vsub.s32 %v89, %v91
  %v93 = vrot.slane %v30, %v92
  %v95 = vunpack.c.l.s4 1983009808
  %v96 = vunpack.c.0.s8 %v95
  %v97 = vlaneseq
  %v98 = vshrl.u32 %v97, 7
  %v99 = vsub.s32 %v96, %v98
  %v100 = vrot.slane %v86, %v99
  %v101 = vcombine.high %v93, %v93
  %v102 = vcombine.high %v100, %v100
  %v119 = vpack.c.bf16 %v42, %v42
  %v120 = vpack.c.bf16 %v50, %v50
  %v121 = vpack.c.bf16 %v49, %v49
  %v122 = vpack.c.bf16 %v51, %v51
  %v123 = vpack.c.bf16 %v59, %v59
  %v124 = vpack.c.bf16 %v67, %v67
  %v125 = vpack.c.bf16 %v66, %v66
  %v126 = vpack.c.bf16 %v68, %v68
  %v127 = vpack.c.bf16 %v76, %v76
  %v128 = vpack.c.bf16 %v84, %v84
  %v129 = vpack.c.bf16 %v83, %v83
  %v130 = vpack.c.bf16 %v85, %v85
  %v131 = vpack.c.bf16 %v93, %v93
  %v132 = vpack.c.bf16 %v101, %v101
  %v133 = vpack.c.bf16 %v100, %v100
  %v134 = vpack.c.bf16 %v102, %v102
  %v135 = vld [vmem:[%s1] sm:$0xff]
  %v136 = vld [vmem:[%s1 + $0x8] sm:$0xff]
  %v137 = vld [vmem:[%s1 + $0x10] sm:$0xff]
  %v138 = vld [vmem:[%s1 + $0x18] sm:$0xff]
  %v139 = vld [vmem:[%s1 + $0x20] sm:$0xff]
  %v140 = vld [vmem:[%s1 + $0x28] sm:$0xff]
  %v141 = vld [vmem:[%s1 + $0x30] sm:$0xff]
  %v142 = vld [vmem:[%s1 + $0x38] sm:$0xff]
  %v143 = vld [vmem:[%s1 + $0x40] sm:$0xff]
  %v144 = vld [vmem:[%s1 + $0x48] sm:$0xff]
  %v145 = vld [vmem:[%s1 + $0x50] sm:$0xff]
  %v146 = vld [vmem:[%s1 + $0x58] sm:$0xff]
  %v147 = vld [vmem:[%s1 + $0x60] sm:$0xff]
  %v148 = vld [vmem:[%s1 + $0x68] sm:$0xff]
  %v149 = vld [vmem:[%s1 + $0x70] sm:$0xff]
  %v150 = vld [vmem:[%s1 + $0x78] sm:$0xff]
  %v151 = vld [vmem:[%s1 + $0x80] sm:$0xff]
  %v152 = vld [vmem:[%s1 + $0x88] sm:$0xff]
  %v153 = vld [vmem:[%s1 + $0x90] sm:$0xff]
  %v154 = vld [vmem:[%s1 + $0x98] sm:$0xff]
  %v155 = vld [vmem:[%s1 + $0xa0] sm:$0xff]
  %v156 = vld [vmem:[%s1 + $0xa8] sm:$0xff]
  %v157 = vld [vmem:[%s1 + $0xb0] sm:$0xff]
  %v158 = vld [vmem:[%s1 + $0xb8] sm:$0xff]
  %v159 = vld [vmem:[%s1 + $0xc0] sm:$0xff]
  %v160 = vld [vmem:[%s1 + $0xc8] sm:$0xff]
  %v161 = vld [vmem:[%s1 + $0xd0] sm:$0xff]
  %v162 = vld [vmem:[%s1 + $0xd8] sm:$0xff]
  %v163 = vld [vmem:[%s1 + $0xe0] sm:$0xff]
  %v164 = vld [vmem:[%s1 + $0xe8] sm:$0xff]
  %v165 = vld [vmem:[%s1 + $0xf0] sm:$0xff]
  %v166 = vld [vmem:[%s1 + $0xf8] sm:$0xff]
  %v167 = vld [vmem:[%s1 + $0x100] sm:$0xff]
  %v168 = vld [vmem:[%s1 + $0x108] sm:$0xff]
  %v169 = vld [vmem:[%s1 + $0x110] sm:$0xff]
  %v170 = vld [vmem:[%s1 + $0x118] sm:$0xff]
  %v171 = vld [vmem:[%s1 + $0x120] sm:$0xff]
  %v172 = vld [vmem:[%s1 + $0x128] sm:$0xff]
  %v173 = vld [vmem:[%s1 + $0x130] sm:$0xff]
  %v174 = vld [vmem:[%s1 + $0x138] sm:$0xff]
  %v175 = vld [vmem:[%s1 + $0x140] sm:$0xff]
  %v176 = vld [vmem:[%s1 + $0x148] sm:$0xff]
  %v177 = vld [vmem:[%s1 + $0x150] sm:$0xff]
  %v178 = vld [vmem:[%s1 + $0x158] sm:$0xff]
  %v179 = vld [vmem:[%s1 + $0x160] sm:$0xff]
  %v180 = vld [vmem:[%s1 + $0x168] sm:$0xff]
  %v181 = vld [vmem:[%s1 + $0x170] sm:$0xff]
  %v182 = vld [vmem:[%s1 + $0x178] sm:$0xff]
  %v183 = vld [vmem:[%s1 + $0x180] sm:$0xff]
  %v184 = vld [vmem:[%s1 + $0x188] sm:$0xff]
  %v185 = vld [vmem:[%s1 + $0x190] sm:$0xff]
  %v186 = vld [vmem:[%s1 + $0x198] sm:$0xff]
  %v187 = vld [vmem:[%s1 + $0x1a0] sm:$0xff]
  %v188 = vld [vmem:[%s1 + $0x1a8] sm:$0xff]
  %v189 = vld [vmem:[%s1 + $0x1b0] sm:$0xff]
  %v190 = vld [vmem:[%s1 + $0x1b8] sm:$0xff]
  %v191 = vld [vmem:[%s1 + $0x1c0] sm:$0xff]
  %v192 = vld [vmem:[%s1 + $0x1c8] sm:$0xff]
  %v193 = vld [vmem:[%s1 + $0x1d0] sm:$0xff]
  %v194 = vld [vmem:[%s1 + $0x1d8] sm:$0xff]
  %v195 = vld [vmem:[%s1 + $0x1e0] sm:$0xff]
  %v196 = vld [vmem:[%s1 + $0x1e8] sm:$0xff]
  %v197 = vld [vmem:[%s1 + $0x1f0] sm:$0xff]
  %v198 = vld [vmem:[%s1 + $0x1f8] sm:$0xff]
  %v199 = vld [vmem:[%s1 + $0x200] sm:$0xff]
  %v200 = vld [vmem:[%s1 + $0x208] sm:$0xff]
  %v201 = vld [vmem:[%s1 + $0x210] sm:$0xff]
  %v202 = vld [vmem:[%s1 + $0x218] sm:$0xff]
  %v203 = vld [vmem:[%s1 + $0x220] sm:$0xff]
  %v204 = vld [vmem:[%s1 + $0x228] sm:$0xff]
  %v205 = vld [vmem:[%s1 + $0x230] sm:$0xff]
  %v206 = vld [vmem:[%s1 + $0x238] sm:$0xff]
  %v207 = vld [vmem:[%s1 + $0x240] sm:$0xff]
  %v208 = vld [vmem:[%s1 + $0x248] sm:$0xff]
  %v209 = vld [vmem:[%s1 + $0x250] sm:$0xff]
  %v210 = vld [vmem:[%s1 + $0x258] sm:$0xff]
  %v211 = vld [vmem:[%s1 + $0x260] sm:$0xff]
  %v212 = vld [vmem:[%s1 + $0x268] sm:$0xff]
  %v213 = vld [vmem:[%s1 + $0x270] sm:$0xff]
  %v214 = vld [vmem:[%s1 + $0x278] sm:$0xff]
  %v215 = vld [vmem:[%s1 + $0x280] sm:$0xff]
  %v216 = vld [vmem:[%s1 + $0x288] sm:$0xff]
  %v217 = vld [vmem:[%s1 + $0x290] sm:$0xff]
  %v218 = vld [vmem:[%s1 + $0x298] sm:$0xff]
  %v219 = vld [vmem:[%s1 + $0x2a0] sm:$0xff]
  %v220 = vld [vmem:[%s1 + $0x2a8] sm:$0xff]
  %v221 = vld [vmem:[%s1 + $0x2b0] sm:$0xff]
  %v222 = vld [vmem:[%s1 + $0x2b8] sm:$0xff]
  %v223 = vld [vmem:[%s1 + $0x2c0] sm:$0xff]
  %v224 = vld [vmem:[%s1 + $0x2c8] sm:$0xff]
  %v225 = vld [vmem:[%s1 + $0x2d0] sm:$0xff]
  %v226 = vld [vmem:[%s1 + $0x2d8] sm:$0xff]
  %v227 = vld [vmem:[%s1 + $0x2e0] sm:$0xff]
  %v228 = vld [vmem:[%s1 + $0x2e8] sm:$0xff]
  %v229 = vld [vmem:[%s1 + $0x2f0] sm:$0xff]
  %v230 = vld [vmem:[%s1 + $0x2f8] sm:$0xff]
  %v231 = vld [vmem:[%s1 + $0x300] sm:$0xff]
  %v232 = vld [vmem:[%s1 + $0x308] sm:$0xff]
  %v233 = vld [vmem:[%s1 + $0x310] sm:$0xff]
  %v234 = vld [vmem:[%s1 + $0x318] sm:$0xff]
  %v235 = vld [vmem:[%s1 + $0x320] sm:$0xff]
  %v236 = vld [vmem:[%s1 + $0x328] sm:$0xff]
  %v237 = vld [vmem:[%s1 + $0x330] sm:$0xff]
  %v238 = vld [vmem:[%s1 + $0x338] sm:$0xff]
  %v239 = vld [vmem:[%s1 + $0x340] sm:$0xff]
  %v240 = vld [vmem:[%s1 + $0x348] sm:$0xff]
  %v241 = vld [vmem:[%s1 + $0x350] sm:$0xff]
  %v242 = vld [vmem:[%s1 + $0x358] sm:$0xff]
  %v243 = vld [vmem:[%s1 + $0x360] sm:$0xff]
  %v244 = vld [vmem:[%s1 + $0x368] sm:$0xff]
  %v245 = vld [vmem:[%s1 + $0x370] sm:$0xff]
  %v246 = vld [vmem:[%s1 + $0x378] sm:$0xff]
  %v247 = vld [vmem:[%s1 + $0x380] sm:$0xff]
  %v248 = vld [vmem:[%s1 + $0x388] sm:$0xff]
  %v249 = vld [vmem:[%s1 + $0x390] sm:$0xff]
  %v250 = vld [vmem:[%s1 + $0x398] sm:$0xff]
  %v251 = vld [vmem:[%s1 + $0x3a0] sm:$0xff]
  %v252 = vld [vmem:[%s1 + $0x3a8] sm:$0xff]
  %v253 = vld [vmem:[%s1 + $0x3b0] sm:$0xff]
  %v254 = vld [vmem:[%s1 + $0x3b8] sm:$0xff]
  %v255 = vld [vmem:[%s1 + $0x3c0] sm:$0xff]
  %v256 = vld [vmem:[%s1 + $0x3c8] sm:$0xff]
  %v257 = vld [vmem:[%s1 + $0x3d0] sm:$0xff]
  %v258 = vld [vmem:[%s1 + $0x3d8] sm:$0xff]
  %v259 = vld [vmem:[%s1 + $0x3e0] sm:$0xff]
  %v260 = vld [vmem:[%s1 + $0x3e8] sm:$0xff]
  %v261 = vld [vmem:[%s1 + $0x3f0] sm:$0xff]
  %v262 = vld [vmem:[%s1 + $0x3f8] sm:$0xff]
  %v263 = vld [vmem:[%s1 + $0x400] sm:$0xff]
  %v264 = vld [vmem:[%s1 + $0x408] sm:$0xff]
  %v265 = vld [vmem:[%s1 + $0x410] sm:$0xff]
  %v266 = vld [vmem:[%s1 + $0x418] sm:$0xff]
  %v267 = vld [vmem:[%s1 + $0x420] sm:$0xff]
  %v268 = vld [vmem:[%s1 + $0x428] sm:$0xff]
  %v269 = vld [vmem:[%s1 + $0x430] sm:$0xff]
  %v270 = vld [vmem:[%s1 + $0x438] sm:$0xff]
  %v271 = vld [vmem:[%s1 + $0x440] sm:$0xff]
  %v272 = vld [vmem:[%s1 + $0x448] sm:$0xff]
  %v273 = vld [vmem:[%s1 + $0x450] sm:$0xff]
  %v274 = vld [vmem:[%s1 + $0x458] sm:$0xff]
  %v275 = vld [vmem:[%s1 + $0x460] sm:$0xff]
  %v276 = vld [vmem:[%s1 + $0x468] sm:$0xff]
  %v277 = vld [vmem:[%s1 + $0x470] sm:$0xff]
  %v278 = vld [vmem:[%s1 + $0x478] sm:$0xff]
  %v279 = vld [vmem:[%s1 + $0x480] sm:$0xff]
  %v280 = vld [vmem:[%s1 + $0x488] sm:$0xff]
  %v281 = vld [vmem:[%s1 + $0x490] sm:$0xff]
  %v282 = vld [vmem:[%s1 + $0x498] sm:$0xff]
  %v283 = vld [vmem:[%s1 + $0x4a0] sm:$0xff]
  %v284 = vld [vmem:[%s1 + $0x4a8] sm:$0xff]
  %v285 = vld [vmem:[%s1 + $0x4b0] sm:$0xff]
  %v286 = vld [vmem:[%s1 + $0x4b8] sm:$0xff]
  %v287 = vld [vmem:[%s1 + $0x4c0] sm:$0xff]
  %v288 = vld [vmem:[%s1 + $0x4c8] sm:$0xff]
  %v289 = vld [vmem:[%s1 + $0x4d0] sm:$0xff]
  %v290 = vld [vmem:[%s1 + $0x4d8] sm:$0xff]
  %v291 = vld [vmem:[%s1 + $0x4e0] sm:$0xff]
  %v292 = vld [vmem:[%s1 + $0x4e8] sm:$0xff]
  %v293 = vld [vmem:[%s1 + $0x4f0] sm:$0xff]
  %v294 = vld [vmem:[%s1 + $0x4f8] sm:$0xff]
  %v295 = vld [vmem:[%s1 + $0x500] sm:$0xff]
  %v296 = vld [vmem:[%s1 + $0x508] sm:$0xff]
  %v297 = vld [vmem:[%s1 + $0x510] sm:$0xff]
  %v298 = vld [vmem:[%s1 + $0x518] sm:$0xff]
  %v299 = vld [vmem:[%s1 + $0x520] sm:$0xff]
  %v300 = vld [vmem:[%s1 + $0x528] sm:$0xff]
  %v301 = vld [vmem:[%s1 + $0x530] sm:$0xff]
  %v302 = vld [vmem:[%s1 + $0x538] sm:$0xff]
  %v303 = vld [vmem:[%s1 + $0x540] sm:$0xff]
  %v304 = vld [vmem:[%s1 + $0x548] sm:$0xff]
  %v305 = vld [vmem:[%s1 + $0x550] sm:$0xff]
  %v306 = vld [vmem:[%s1 + $0x558] sm:$0xff]
  %v307 = vld [vmem:[%s1 + $0x560] sm:$0xff]
  %v308 = vld [vmem:[%s1 + $0x568] sm:$0xff]
  %v309 = vld [vmem:[%s1 + $0x570] sm:$0xff]
  %v310 = vld [vmem:[%s1 + $0x578] sm:$0xff]
  %v311 = vld [vmem:[%s1 + $0x580] sm:$0xff]
  %v312 = vld [vmem:[%s1 + $0x588] sm:$0xff]
  %v313 = vld [vmem:[%s1 + $0x590] sm:$0xff]
  %v314 = vld [vmem:[%s1 + $0x598] sm:$0xff]
  %v315 = vld [vmem:[%s1 + $0x5a0] sm:$0xff]
  %v316 = vld [vmem:[%s1 + $0x5a8] sm:$0xff]
  %v317 = vld [vmem:[%s1 + $0x5b0] sm:$0xff]
  %v318 = vld [vmem:[%s1 + $0x5b8] sm:$0xff]
  %v319 = vld [vmem:[%s1 + $0x5c0] sm:$0xff]
  %v320 = vld [vmem:[%s1 + $0x5c8] sm:$0xff]
  %v321 = vld [vmem:[%s1 + $0x5d0] sm:$0xff]
  %v322 = vld [vmem:[%s1 + $0x5d8] sm:$0xff]
  %v323 = vld [vmem:[%s1 + $0x5e0] sm:$0xff]
  %v324 = vld [vmem:[%s1 + $0x5e8] sm:$0xff]
  %v325 = vld [vmem:[%s1 + $0x5f0] sm:$0xff]
  %v326 = vld [vmem:[%s1 + $0x5f8] sm:$0xff]
  %v327 = vld [vmem:[%s1 + $0x600] sm:$0xff]
  %v328 = vld [vmem:[%s1 + $0x608] sm:$0xff]
  %v329 = vld [vmem:[%s1 + $0x610] sm:$0xff]
  %v330 = vld [vmem:[%s1 + $0x618] sm:$0xff]
  %v331 = vld [vmem:[%s1 + $0x620] sm:$0xff]
  %v332 = vld [vmem:[%s1 + $0x628] sm:$0xff]
  %v333 = vld [vmem:[%s1 + $0x630] sm:$0xff]
  %v334 = vld [vmem:[%s1 + $0x638] sm:$0xff]
  %v335 = vld [vmem:[%s1 + $0x640] sm:$0xff]
  %v336 = vld [vmem:[%s1 + $0x648] sm:$0xff]
  %v337 = vld [vmem:[%s1 + $0x650] sm:$0xff]
  %v338 = vld [vmem:[%s1 + $0x658] sm:$0xff]
  %v339 = vld [vmem:[%s1 + $0x660] sm:$0xff]
  %v340 = vld [vmem:[%s1 + $0x668] sm:$0xff]
  %v341 = vld [vmem:[%s1 + $0x670] sm:$0xff]
  %v342 = vld [vmem:[%s1 + $0x678] sm:$0xff]
  %v343 = vld [vmem:[%s1 + $0x680] sm:$0xff]
  %v344 = vld [vmem:[%s1 + $0x688] sm:$0xff]
  %v345 = vld [vmem:[%s1 + $0x690] sm:$0xff]
  %v346 = vld [vmem:[%s1 + $0x698] sm:$0xff]
  %v347 = vld [vmem:[%s1 + $0x6a0] sm:$0xff]
  %v348 = vld [vmem:[%s1 + $0x6a8] sm:$0xff]
  %v349 = vld [vmem:[%s1 + $0x6b0] sm:$0xff]
  %v350 = vld [vmem:[%s1 + $0x6b8] sm:$0xff]
  %v351 = vld [vmem:[%s1 + $0x6c0] sm:$0xff]
  %v352 = vld [vmem:[%s1 + $0x6c8] sm:$0xff]
  %v353 = vld [vmem:[%s1 + $0x6d0] sm:$0xff]
  %v354 = vld [vmem:[%s1 + $0x6d8] sm:$0xff]
  %v355 = vld [vmem:[%s1 + $0x6e0] sm:$0xff]
  %v356 = vld [vmem:[%s1 + $0x6e8] sm:$0xff]
  %v357 = vld [vmem:[%s1 + $0x6f0] sm:$0xff]
  %v358 = vld [vmem:[%s1 + $0x6f8] sm:$0xff]
  %v359 = vld [vmem:[%s1 + $0x700] sm:$0xff]
  %v360 = vld [vmem:[%s1 + $0x708] sm:$0xff]
  %v361 = vld [vmem:[%s1 + $0x710] sm:$0xff]
  %v362 = vld [vmem:[%s1 + $0x718] sm:$0xff]
  %v363 = vld [vmem:[%s1 + $0x720] sm:$0xff]
  %v364 = vld [vmem:[%s1 + $0x728] sm:$0xff]
  %v365 = vld [vmem:[%s1 + $0x730] sm:$0xff]
  %v366 = vld [vmem:[%s1 + $0x738] sm:$0xff]
  %v367 = vld [vmem:[%s1 + $0x740] sm:$0xff]
  %v368 = vld [vmem:[%s1 + $0x748] sm:$0xff]
  %v369 = vld [vmem:[%s1 + $0x750] sm:$0xff]
  %v370 = vld [vmem:[%s1 + $0x758] sm:$0xff]
  %v371 = vld [vmem:[%s1 + $0x760] sm:$0xff]
  %v372 = vld [vmem:[%s1 + $0x768] sm:$0xff]
  %v373 = vld [vmem:[%s1 + $0x770] sm:$0xff]
  %v374 = vld [vmem:[%s1 + $0x778] sm:$0xff]
  %v375 = vld [vmem:[%s1 + $0x780] sm:$0xff]
  %v376 = vld [vmem:[%s1 + $0x788] sm:$0xff]
  %v377 = vld [vmem:[%s1 + $0x790] sm:$0xff]
  %v378 = vld [vmem:[%s1 + $0x798] sm:$0xff]
  %v379 = vld [vmem:[%s1 + $0x7a0] sm:$0xff]
  %v380 = vld [vmem:[%s1 + $0x7a8] sm:$0xff]
  %v381 = vld [vmem:[%s1 + $0x7b0] sm:$0xff]
  %v382 = vld [vmem:[%s1 + $0x7b8] sm:$0xff]
  %v383 = vld [vmem:[%s1 + $0x7c0] sm:$0xff]
  %v384 = vld [vmem:[%s1 + $0x7c8] sm:$0xff]
  %v385 = vld [vmem:[%s1 + $0x7d0] sm:$0xff]
  %v386 = vld [vmem:[%s1 + $0x7d8] sm:$0xff]
  %v387 = vld [vmem:[%s1 + $0x7e0] sm:$0xff]
  %v388 = vld [vmem:[%s1 + $0x7e8] sm:$0xff]
  %v389 = vld [vmem:[%s1 + $0x7f0] sm:$0xff]
  %v390 = vld [vmem:[%s1 + $0x7f8] sm:$0xff]
  %v391 = vld [vmem:[%s1 + $0x800] sm:$0xff]
  %v392 = vld [vmem:[%s1 + $0x808] sm:$0xff]
  %v393 = vld [vmem:[%s1 + $0x810] sm:$0xff]
  %v394 = vld [vmem:[%s1 + $0x818] sm:$0xff]
  %v395 = vld [vmem:[%s1 + $0x820] sm:$0xff]
  %v396 = vld [vmem:[%s1 + $0x828] sm:$0xff]
  %v397 = vld [vmem:[%s1 + $0x830] sm:$0xff]
  %v398 = vld [vmem:[%s1 + $0x838] sm:$0xff]
  %v399 = vld [vmem:[%s1 + $0x840] sm:$0xff]
  %v400 = vld [vmem:[%s1 + $0x848] sm:$0xff]
  %v401 = vld [vmem:[%s1 + $0x850] sm:$0xff]
  %v402 = vld [vmem:[%s1 + $0x858] sm:$0xff]
  %v403 = vld [vmem:[%s1 + $0x860] sm:$0xff]
  %v404 = vld [vmem:[%s1 + $0x868] sm:$0xff]
  %v405 = vld [vmem:[%s1 + $0x870] sm:$0xff]
  %v406 = vld [vmem:[%s1 + $0x878] sm:$0xff]
  %v407 = vld [vmem:[%s1 + $0x880] sm:$0xff]
  %v408 = vld [vmem:[%s1 + $0x888] sm:$0xff]
  %v409 = vld [vmem:[%s1 + $0x890] sm:$0xff]
  %v410 = vld [vmem:[%s1 + $0x898] sm:$0xff]
  %v411 = vld [vmem:[%s1 + $0x8a0] sm:$0xff]
  %v412 = vld [vmem:[%s1 + $0x8a8] sm:$0xff]
  %v413 = vld [vmem:[%s1 + $0x8b0] sm:$0xff]
  %v414 = vld [vmem:[%s1 + $0x8b8] sm:$0xff]
  %v415 = vld [vmem:[%s1 + $0x8c0] sm:$0xff]
  %v416 = vld [vmem:[%s1 + $0x8c8] sm:$0xff]
  %v417 = vld [vmem:[%s1 + $0x8d0] sm:$0xff]
  %v418 = vld [vmem:[%s1 + $0x8d8] sm:$0xff]
  %v419 = vld [vmem:[%s1 + $0x8e0] sm:$0xff]
  %v420 = vld [vmem:[%s1 + $0x8e8] sm:$0xff]
  %v421 = vld [vmem:[%s1 + $0x8f0] sm:$0xff]
  %v422 = vld [vmem:[%s1 + $0x8f8] sm:$0xff]
  %v423 = vld [vmem:[%s1 + $0x900] sm:$0xff]
  %v424 = vld [vmem:[%s1 + $0x908] sm:$0xff]
  %v425 = vld [vmem:[%s1 + $0x910] sm:$0xff]
  %v426 = vld [vmem:[%s1 + $0x918] sm:$0xff]
  %v427 = vld [vmem:[%s1 + $0x920] sm:$0xff]
  %v428 = vld [vmem:[%s1 + $0x928] sm:$0xff]
  %v429 = vld [vmem:[%s1 + $0x930] sm:$0xff]
  %v430 = vld [vmem:[%s1 + $0x938] sm:$0xff]
  %v431 = vld [vmem:[%s1 + $0x940] sm:$0xff]
  %v432 = vld [vmem:[%s1 + $0x948] sm:$0xff]
  %v433 = vld [vmem:[%s1 + $0x950] sm:$0xff]
  %v434 = vld [vmem:[%s1 + $0x958] sm:$0xff]
  %v435 = vld [vmem:[%s1 + $0x960] sm:$0xff]
  %v436 = vld [vmem:[%s1 + $0x968] sm:$0xff]
  %v437 = vld [vmem:[%s1 + $0x970] sm:$0xff]
  %v438 = vld [vmem:[%s1 + $0x978] sm:$0xff]
  %v439 = vld [vmem:[%s1 + $0x980] sm:$0xff]
  %v440 = vld [vmem:[%s1 + $0x988] sm:$0xff]
  %v441 = vld [vmem:[%s1 + $0x990] sm:$0xff]
  %v442 = vld [vmem:[%s1 + $0x998] sm:$0xff]
  %v443 = vld [vmem:[%s1 + $0x9a0] sm:$0xff]
  %v444 = vld [vmem:[%s1 + $0x9a8] sm:$0xff]
  %v445 = vld [vmem:[%s1 + $0x9b0] sm:$0xff]
  %v446 = vld [vmem:[%s1 + $0x9b8] sm:$0xff]
  %v447 = vld [vmem:[%s1 + $0x9c0] sm:$0xff]
  %v448 = vld [vmem:[%s1 + $0x9c8] sm:$0xff]
  %v449 = vld [vmem:[%s1 + $0x9d0] sm:$0xff]
  %v450 = vld [vmem:[%s1 + $0x9d8] sm:$0xff]
  %v451 = vld [vmem:[%s1 + $0x9e0] sm:$0xff]
  %v452 = vld [vmem:[%s1 + $0x9e8] sm:$0xff]
  %v453 = vld [vmem:[%s1 + $0x9f0] sm:$0xff]
  %v454 = vld [vmem:[%s1 + $0x9f8] sm:$0xff]
  %v455 = vld [vmem:[%s1 + $0xa00] sm:$0xff]
  %v456 = vld [vmem:[%s1 + $0xa08] sm:$0xff]
  %v457 = vld [vmem:[%s1 + $0xa10] sm:$0xff]
  %v458 = vld [vmem:[%s1 + $0xa18] sm:$0xff]
  %v459 = vld [vmem:[%s1 + $0xa20] sm:$0xff]
  %v460 = vld [vmem:[%s1 + $0xa28] sm:$0xff]
  %v461 = vld [vmem:[%s1 + $0xa30] sm:$0xff]
  %v462 = vld [vmem:[%s1 + $0xa38] sm:$0xff]
  %v463 = vld [vmem:[%s1 + $0xa40] sm:$0xff]
  %v464 = vld [vmem:[%s1 + $0xa48] sm:$0xff]
  %v465 = vld [vmem:[%s1 + $0xa50] sm:$0xff]
  %v466 = vld [vmem:[%s1 + $0xa58] sm:$0xff]
  %v467 = vld [vmem:[%s1 + $0xa60] sm:$0xff]
  %v468 = vld [vmem:[%s1 + $0xa68] sm:$0xff]
  %v469 = vld [vmem:[%s1 + $0xa70] sm:$0xff]
  %v470 = vld [vmem:[%s1 + $0xa78] sm:$0xff]
  %v471 = vld [vmem:[%s1 + $0xa80] sm:$0xff]
  %v472 = vld [vmem:[%s1 + $0xa88] sm:$0xff]
  %v473 = vld [vmem:[%s1 + $0xa90] sm:$0xff]
  %v474 = vld [vmem:[%s1 + $0xa98] sm:$0xff]
  %v475 = vld [vmem:[%s1 + $0xaa0] sm:$0xff]
  %v476 = vld [vmem:[%s1 + $0xaa8] sm:$0xff]
  %v477 = vld [vmem:[%s1 + $0xab0] sm:$0xff]
  %v478 = vld [vmem:[%s1 + $0xab8] sm:$0xff]
  %v479 = vld [vmem:[%s1 + $0xac0] sm:$0xff]
  %v480 = vld [vmem:[%s1 + $0xac8] sm:$0xff]
  %v481 = vld [vmem:[%s1 + $0xad0] sm:$0xff]
  %v482 = vld [vmem:[%s1 + $0xad8] sm:$0xff]
  %v483 = vld [vmem:[%s1 + $0xae0] sm:$0xff]
  %v484 = vld [vmem:[%s1 + $0xae8] sm:$0xff]
  %v485 = vld [vmem:[%s1 + $0xaf0] sm:$0xff]
  %v486 = vld [vmem:[%s1 + $0xaf8] sm:$0xff]
  %v487 = vld [vmem:[%s1 + $0xb00] sm:$0xff]
  %v488 = vld [vmem:[%s1 + $0xb08] sm:$0xff]
  %v489 = vld [vmem:[%s1 + $0xb10] sm:$0xff]
  %v490 = vld [vmem:[%s1 + $0xb18] sm:$0xff]
  %v491 = vld [vmem:[%s1 + $0xb20] sm:$0xff]
  %v492 = vld [vmem:[%s1 + $0xb28] sm:$0xff]
  %v493 = vld [vmem:[%s1 + $0xb30] sm:$0xff]
  %v494 = vld [vmem:[%s1 + $0xb38] sm:$0xff]
  %v495 = vld [vmem:[%s1 + $0xb40] sm:$0xff]
  %v496 = vld [vmem:[%s1 + $0xb48] sm:$0xff]
  %v497 = vld [vmem:[%s1 + $0xb50] sm:$0xff]
  %v498 = vld [vmem:[%s1 + $0xb58] sm:$0xff]
  %v499 = vld [vmem:[%s1 + $0xb60] sm:$0xff]
  %v500 = vld [vmem:[%s1 + $0xb68] sm:$0xff]
  %v501 = vld [vmem:[%s1 + $0xb70] sm:$0xff]
  %v502 = vld [vmem:[%s1 + $0xb78] sm:$0xff]
  %v503 = vld [vmem:[%s1 + $0xb80] sm:$0xff]
  %v504 = vld [vmem:[%s1 + $0xb88] sm:$0xff]
  %v505 = vld [vmem:[%s1 + $0xb90] sm:$0xff]
  %v506 = vld [vmem:[%s1 + $0xb98] sm:$0xff]
  %v507 = vld [vmem:[%s1 + $0xba0] sm:$0xff]
  %v508 = vld [vmem:[%s1 + $0xba8] sm:$0xff]
  %v509 = vld [vmem:[%s1 + $0xbb0] sm:$0xff]
  %v510 = vld [vmem:[%s1 + $0xbb8] sm:$0xff]
  %v511 = vld [vmem:[%s1 + $0xbc0] sm:$0xff]
  %v512 = vld [vmem:[%s1 + $0xbc8] sm:$0xff]
  %v513 = vld [vmem:[%s1 + $0xbd0] sm:$0xff]
  %v514 = vld [vmem:[%s1 + $0xbd8] sm:$0xff]
  %v515 = vld [vmem:[%s1 + $0xbe0] sm:$0xff]
  %v516 = vld [vmem:[%s1 + $0xbe8] sm:$0xff]
  %v517 = vld [vmem:[%s1 + $0xbf0] sm:$0xff]
  %v518 = vld [vmem:[%s1 + $0xbf8] sm:$0xff]
  %v519 = vld [vmem:[%s1 + $0xc00] sm:$0xff]
  %v520 = vld [vmem:[%s1 + $0xc08] sm:$0xff]
  %v521 = vld [vmem:[%s1 + $0xc10] sm:$0xff]
  %v522 = vld [vmem:[%s1 + $0xc18] sm:$0xff]
  %v523 = vld [vmem:[%s1 + $0xc20] sm:$0xff]
  %v524 = vld [vmem:[%s1 + $0xc28] sm:$0xff]
  %v525 = vld [vmem:[%s1 + $0xc30] sm:$0xff]
  %v526 = vld [vmem:[%s1 + $0xc38] sm:$0xff]
  %v527 = vld [vmem:[%s1 + $0xc40] sm:$0xff]
  %v528 = vld [vmem:[%s1 + $0xc48] sm:$0xff]
  %v529 = vld [vmem:[%s1 + $0xc50] sm:$0xff]
  %v530 = vld [vmem:[%s1 + $0xc58] sm:$0xff]
  %v531 = vld [vmem:[%s1 + $0xc60] sm:$0xff]
  %v532 = vld [vmem:[%s1 + $0xc68] sm:$0xff]
  %v533 = vld [vmem:[%s1 + $0xc70] sm:$0xff]
  %v534 = vld [vmem:[%s1 + $0xc78] sm:$0xff]
  %v535 = vld [vmem:[%s1 + $0xc80] sm:$0xff]
  %v536 = vld [vmem:[%s1 + $0xc88] sm:$0xff]
  %v537 = vld [vmem:[%s1 + $0xc90] sm:$0xff]
  %v538 = vld [vmem:[%s1 + $0xc98] sm:$0xff]
  %v539 = vld [vmem:[%s1 + $0xca0] sm:$0xff]
  %v540 = vld [vmem:[%s1 + $0xca8] sm:$0xff]
  %v541 = vld [vmem:[%s1 + $0xcb0] sm:$0xff]
  %v542 = vld [vmem:[%s1 + $0xcb8] sm:$0xff]
  %v543 = vld [vmem:[%s1 + $0xcc0] sm:$0xff]
  %v544 = vld [vmem:[%s1 + $0xcc8] sm:$0xff]
  %v545 = vld [vmem:[%s1 + $0xcd0] sm:$0xff]
  %v546 = vld [vmem:[%s1 + $0xcd8] sm:$0xff]
  %v547 = vld [vmem:[%s1 + $0xce0] sm:$0xff]
  %v548 = vld [vmem:[%s1 + $0xce8] sm:$0xff]
  %v549 = vld [vmem:[%s1 + $0xcf0] sm:$0xff]
  %v550 = vld [vmem:[%s1 + $0xcf8] sm:$0xff]
  %v551 = vld [vmem:[%s1 + $0xd00] sm:$0xff]
  %v552 = vld [vmem:[%s1 + $0xd08] sm:$0xff]
  %v553 = vld [vmem:[%s1 + $0xd10] sm:$0xff]
  %v554 = vld [vmem:[%s1 + $0xd18] sm:$0xff]
  %v555 = vld [vmem:[%s1 + $0xd20] sm:$0xff]
  %v556 = vld [vmem:[%s1 + $0xd28] sm:$0xff]
  %v557 = vld [vmem:[%s1 + $0xd30] sm:$0xff]
  %v558 = vld [vmem:[%s1 + $0xd38] sm:$0xff]
  %v559 = vld [vmem:[%s1 + $0xd40] sm:$0xff]
  %v560 = vld [vmem:[%s1 + $0xd48] sm:$0xff]
  %v561 = vld [vmem:[%s1 + $0xd50] sm:$0xff]
  %v562 = vld [vmem:[%s1 + $0xd58] sm:$0xff]
  %v563 = vld [vmem:[%s1 + $0xd60] sm:$0xff]
  %v564 = vld [vmem:[%s1 + $0xd68] sm:$0xff]
  %v565 = vld [vmem:[%s1 + $0xd70] sm:$0xff]
  %v566 = vld [vmem:[%s1 + $0xd78] sm:$0xff]
  %v567 = vld [vmem:[%s1 + $0xd80] sm:$0xff]
  %v568 = vld [vmem:[%s1 + $0xd88] sm:$0xff]
  %v569 = vld [vmem:[%s1 + $0xd90] sm:$0xff]
  %v570 = vld [vmem:[%s1 + $0xd98] sm:$0xff]
  %v571 = vld [vmem:[%s1 + $0xda0] sm:$0xff]
  %v572 = vld [vmem:[%s1 + $0xda8] sm:$0xff]
  %v573 = vld [vmem:[%s1 + $0xdb0] sm:$0xff]
  %v574 = vld [vmem:[%s1 + $0xdb8] sm:$0xff]
  %v575 = vld [vmem:[%s1 + $0xdc0] sm:$0xff]
  %v576 = vld [vmem:[%s1 + $0xdc8] sm:$0xff]
  %v577 = vld [vmem:[%s1 + $0xdd0] sm:$0xff]
  %v578 = vld [vmem:[%s1 + $0xdd8] sm:$0xff]
  %v579 = vld [vmem:[%s1 + $0xde0] sm:$0xff]
  %v580 = vld [vmem:[%s1 + $0xde8] sm:$0xff]
  %v581 = vld [vmem:[%s1 + $0xdf0] sm:$0xff]
  %v582 = vld [vmem:[%s1 + $0xdf8] sm:$0xff]
  %v583 = vld [vmem:[%s1 + $0xe00] sm:$0xff]
  %v584 = vld [vmem:[%s1 + $0xe08] sm:$0xff]
  %v585 = vld [vmem:[%s1 + $0xe10] sm:$0xff]
  %v586 = vld [vmem:[%s1 + $0xe18] sm:$0xff]
  %v587 = vld [vmem:[%s1 + $0xe20] sm:$0xff]
  %v588 = vld [vmem:[%s1 + $0xe28] sm:$0xff]
  %v589 = vld [vmem:[%s1 + $0xe30] sm:$0xff]
  %v590 = vld [vmem:[%s1 + $0xe38] sm:$0xff]
  %v591 = vld [vmem:[%s1 + $0xe40] sm:$0xff]
  %v592 = vld [vmem:[%s1 + $0xe48] sm:$0xff]
  %v593 = vld [vmem:[%s1 + $0xe50] sm:$0xff]
  %v594 = vld [vmem:[%s1 + $0xe58] sm:$0xff]
  %v595 = vld [vmem:[%s1 + $0xe60] sm:$0xff]
  %v596 = vld [vmem:[%s1 + $0xe68] sm:$0xff]
  %v597 = vld [vmem:[%s1 + $0xe70] sm:$0xff]
  %v598 = vld [vmem:[%s1 + $0xe78] sm:$0xff]
  %v599 = vld [vmem:[%s1 + $0xe80] sm:$0xff]
  %v600 = vld [vmem:[%s1 + $0xe88] sm:$0xff]
  %v601 = vld [vmem:[%s1 + $0xe90] sm:$0xff]
  %v602 = vld [vmem:[%s1 + $0xe98] sm:$0xff]
  %v603 = vld [vmem:[%s1 + $0xea0] sm:$0xff]
  %v604 = vld [vmem:[%s1 + $0xea8] sm:$0xff]
  %v605 = vld [vmem:[%s1 + $0xeb0] sm:$0xff]
  %v606 = vld [vmem:[%s1 + $0xeb8] sm:$0xff]
  %v607 = vld [vmem:[%s1 + $0xec0] sm:$0xff]
  %v608 = vld [vmem:[%s1 + $0xec8] sm:$0xff]
  %v609 = vld [vmem:[%s1 + $0xed0] sm:$0xff]
  %v610 = vld [vmem:[%s1 + $0xed8] sm:$0xff]
  %v611 = vld [vmem:[%s1 + $0xee0] sm:$0xff]
  %v612 = vld [vmem:[%s1 + $0xee8] sm:$0xff]
  %v613 = vld [vmem:[%s1 + $0xef0] sm:$0xff]
  %v614 = vld [vmem:[%s1 + $0xef8] sm:$0xff]
  %v615 = vld [vmem:[%s1 + $0xf00] sm:$0xff]
  %v616 = vld [vmem:[%s1 + $0xf08] sm:$0xff]
  %v617 = vld [vmem:[%s1 + $0xf10] sm:$0xff]
  %v618 = vld [vmem:[%s1 + $0xf18] sm:$0xff]
  %v619 = vld [vmem:[%s1 + $0xf20] sm:$0xff]
  %v620 = vld [vmem:[%s1 + $0xf28] sm:$0xff]
  %v621 = vld [vmem:[%s1 + $0xf30] sm:$0xff]
  %v622 = vld [vmem:[%s1 + $0xf38] sm:$0xff]
  %v623 = vld [vmem:[%s1 + $0xf40] sm:$0xff]
  %v624 = vld [vmem:[%s1 + $0xf48] sm:$0xff]
  %v625 = vld [vmem:[%s2] sm:$0xf]
  %v627 = vlaneseq
  %v628 = vshrl.u32 %v627, 7
  %v629 = vsub.s32 0, %v628
  %v630 = vrot.slane %v625, %v629
  %v631 = vlaneseq
  %v632 = vshrl.u32 %v631, 7
  %v633 = vsub.s32 1, %v632
  %v634 = vrot.slane %v625, %v633
  %v635 = vlaneseq
  %v636 = vshrl.u32 %v635, 7
  %v637 = vsub.s32 2, %v636
  %v638 = vrot.slane %v625, %v637
  %v639 = vlaneseq
  %v640 = vshrl.u32 %v639, 7
  %v641 = vsub.s32 3, %v640
  %v642 = vrot.slane %v625, %v641
  %v1137 = vunpack.c.l.b16 %v135
  %v1138 = vunpack.c.h.b16 %v135
  %v1139 = vunpack.c.l.b16 %v136
  %v1140 = vunpack.c.h.b16 %v136
  %v1141 = vunpack.c.l.b16 %v137
  %v1142 = vunpack.c.h.b16 %v137
  %v1143 = vunpack.c.l.b16 %v138
  %v1144 = vunpack.c.h.b16 %v138
  %v1145 = vunpack.c.l.b16 %v139
  %v1146 = vunpack.c.h.b16 %v139
  %v1147 = vunpack.c.l.b16 %v140
  %v1148 = vunpack.c.h.b16 %v140
  %v1149 = vunpack.c.l.b16 %v141
  %v1150 = vunpack.c.h.b16 %v141
  %v1151 = vunpack.c.l.b16 %v142
  %v1152 = vunpack.c.h.b16 %v142
  %v1153 = vunpack.c.l.b16 %v143
  %v1154 = vunpack.c.h.b16 %v143
  %v1155 = vunpack.c.l.b16 %v144
  %v1156 = vunpack.c.h.b16 %v144
  %v1157 = vunpack.c.l.b16 %v145
  %v1158 = vunpack.c.h.b16 %v145
  %v1159 = vunpack.c.l.b16 %v146
  %v1160 = vunpack.c.h.b16 %v146
  %v1161 = vunpack.c.l.b16 %v147
  %v1162 = vunpack.c.h.b16 %v147
  %v1163 = vunpack.c.l.b16 %v148
  %v1164 = vunpack.c.h.b16 %v148
  %v1165 = vunpack.c.l.b16 %v149
  %v1166 = vunpack.c.h.b16 %v149
  %v1167 = vunpack.c.l.b16 %v150
  %v1168 = vunpack.c.h.b16 %v150
  %v1169 = vunpack.c.l.b16 %v151
  %v1170 = vunpack.c.h.b16 %v151
  %v1171 = vunpack.c.l.b16 %v152
  %v1172 = vunpack.c.h.b16 %v152
  %v1173 = vunpack.c.l.b16 %v153
  %v1174 = vunpack.c.h.b16 %v153
  %v1175 = vunpack.c.l.b16 %v154
  %v1176 = vunpack.c.h.b16 %v154
  %v1177 = vunpack.c.l.b16 %v155
  %v1178 = vunpack.c.h.b16 %v155
  %v1179 = vunpack.c.l.b16 %v156
  %v1180 = vunpack.c.h.b16 %v156
  %v1181 = vunpack.c.l.b16 %v157
  %v1182 = vunpack.c.h.b16 %v157
  %v1183 = vunpack.c.l.b16 %v158
  %v1184 = vunpack.c.h.b16 %v158
  %v1185 = vunpack.c.l.b16 %v159
  %v1186 = vunpack.c.h.b16 %v159
  %v1187 = vunpack.c.l.b16 %v160
  %v1188 = vunpack.c.h.b16 %v160
  %v1189 = vunpack.c.l.b16 %v161
  %v1190 = vunpack.c.h.b16 %v161
  %v1191 = vunpack.c.l.b16 %v162
  %v1192 = vunpack.c.h.b16 %v162
  %v1193 = vunpack.c.l.b16 %v163
  %v1194 = vunpack.c.h.b16 %v163
  %v1195 = vunpack.c.l.b16 %v164
  %v1196 = vunpack.c.h.b16 %v164
  %v1197 = vunpack.c.l.b16 %v165
  %v1198 = vunpack.c.h.b16 %v165
  %v1199 = vunpack.c.l.b16 %v166
  %v1200 = vunpack.c.h.b16 %v166
  %v1201 = vunpack.c.l.b16 %v167
  %v1202 = vunpack.c.h.b16 %v167
  %v1203 = vunpack.c.l.b16 %v168
  %v1204 = vunpack.c.h.b16 %v168
  %v1205 = vunpack.c.l.b16 %v169
  %v1206 = vunpack.c.h.b16 %v169
  %v1207 = vunpack.c.l.b16 %v170
  %v1208 = vunpack.c.h.b16 %v170
  %v1209 = vunpack.c.l.b16 %v171
  %v1210 = vunpack.c.h.b16 %v171
  %v1211 = vunpack.c.l.b16 %v172
  %v1212 = vunpack.c.h.b16 %v172
  %v1213 = vunpack.c.l.b16 %v173
  %v1214 = vunpack.c.h.b16 %v173
  %v1215 = vunpack.c.l.b16 %v174
  %v1216 = vunpack.c.h.b16 %v174
  %v1217 = vunpack.c.l.b16 %v175
  %v1218 = vunpack.c.h.b16 %v175
  %v1219 = vunpack.c.l.b16 %v176
  %v1220 = vunpack.c.h.b16 %v176
  %v1221 = vunpack.c.l.b16 %v177
  %v1222 = vunpack.c.h.b16 %v177
  %v1223 = vunpack.c.l.b16 %v178
  %v1224 = vunpack.c.h.b16 %v178
  %v1225 = vunpack.c.l.b16 %v179
  %v1226 = vunpack.c.h.b16 %v179
  %v1227 = vunpack.c.l.b16 %v180
  %v1228 = vunpack.c.h.b16 %v180
  %v1229 = vunpack.c.l.b16 %v181
  %v1230 = vunpack.c.h.b16 %v181
  %v1231 = vunpack.c.l.b16 %v182
  %v1232 = vunpack.c.h.b16 %v182
  %v1233 = vunpack.c.l.b16 %v183
  %v1234 = vunpack.c.h.b16 %v183
  %v1235 = vunpack.c.l.b16 %v184
  %v1236 = vunpack.c.h.b16 %v184
  %v1237 = vunpack.c.l.b16 %v185
  %v1238 = vunpack.c.h.b16 %v185
  %v1239 = vunpack.c.l.b16 %v186
  %v1240 = vunpack.c.h.b16 %v186
  %v1241 = vunpack.c.l.b16 %v187
  %v1242 = vunpack.c.h.b16 %v187
  %v1243 = vunpack.c.l.b16 %v188
  %v1244 = vunpack.c.h.b16 %v188
  %v1245 = vunpack.c.l.b16 %v189
  %v1246 = vunpack.c.h.b16 %v189
  %v1247 = vunpack.c.l.b16 %v190
  %v1248 = vunpack.c.h.b16 %v190
  %v1249 = vunpack.c.l.b16 %v191
  %v1250 = vunpack.c.h.b16 %v191
  %v1251 = vunpack.c.l.b16 %v192
  %v1252 = vunpack.c.h.b16 %v192
  %v1253 = vunpack.c.l.b16 %v193
  %v1254 = vunpack.c.h.b16 %v193
  %v1255 = vunpack.c.l.b16 %v194
  %v1256 = vunpack.c.h.b16 %v194
  %v1257 = vunpack.c.l.b16 %v195
  %v1258 = vunpack.c.h.b16 %v195
  %v1259 = vunpack.c.l.b16 %v196
  %v1260 = vunpack.c.h.b16 %v196
  %v1261 = vunpack.c.l.b16 %v197
  %v1262 = vunpack.c.h.b16 %v197
  %v1263 = vunpack.c.l.b16 %v198
  %v1264 = vunpack.c.h.b16 %v198
  %v1265 = vunpack.c.l.b16 %v199
  %v1266 = vunpack.c.h.b16 %v199
  %v1267 = vunpack.c.l.b16 %v200
  %v1268 = vunpack.c.h.b16 %v200
  %v1269 = vunpack.c.l.b16 %v201
  %v1270 = vunpack.c.h.b16 %v201
  %v1271 = vunpack.c.l.b16 %v202
  %v1272 = vunpack.c.h.b16 %v202
  %v1273 = vunpack.c.l.b16 %v203
  %v1274 = vunpack.c.h.b16 %v203
  %v1275 = vunpack.c.l.b16 %v204
  %v1276 = vunpack.c.h.b16 %v204
  %v1277 = vunpack.c.l.b16 %v205
  %v1278 = vunpack.c.h.b16 %v205
  %v1279 = vunpack.c.l.b16 %v206
  %v1280 = vunpack.c.h.b16 %v206
  %v1281 = vunpack.c.l.b16 %v207
  %v1282 = vunpack.c.h.b16 %v207
  %v1283 = vunpack.c.l.b16 %v208
  %v1284 = vunpack.c.h.b16 %v208
  %v1285 = vunpack.c.l.b16 %v209
  %v1286 = vunpack.c.h.b16 %v209
  %v1287 = vunpack.c.l.b16 %v210
  %v1288 = vunpack.c.h.b16 %v210
  %v1289 = vunpack.c.l.b16 %v211
  %v1290 = vunpack.c.h.b16 %v211
  %v1291 = vunpack.c.l.b16 %v212
  %v1292 = vunpack.c.h.b16 %v212
  %v1293 = vunpack.c.l.b16 %v213
  %v1294 = vunpack.c.h.b16 %v213
  %v1295 = vunpack.c.l.b16 %v214
  %v1296 = vunpack.c.h.b16 %v214
  %v1297 = vunpack.c.l.b16 %v215
  %v1298 = vunpack.c.h.b16 %v215
  %v1299 = vunpack.c.l.b16 %v216
  %v1300 = vunpack.c.h.b16 %v216
  %v1301 = vunpack.c.l.b16 %v217
  %v1302 = vunpack.c.h.b16 %v217
  %v1303 = vunpack.c.l.b16 %v218
  %v1304 = vunpack.c.h.b16 %v218
  %v1305 = vunpack.c.l.b16 %v219
  %v1306 = vunpack.c.h.b16 %v219
  %v1307 = vunpack.c.l.b16 %v220
  %v1308 = vunpack.c.h.b16 %v220
  %v1309 = vunpack.c.l.b16 %v221
  %v1310 = vunpack.c.h.b16 %v221
  %v1311 = vunpack.c.l.b16 %v222
  %v1312 = vunpack.c.h.b16 %v222
  %v1313 = vunpack.c.l.b16 %v223
  %v1314 = vunpack.c.h.b16 %v223
  %v1315 = vunpack.c.l.b16 %v224
  %v1316 = vunpack.c.h.b16 %v224
  %v1317 = vunpack.c.l.b16 %v225
  %v1318 = vunpack.c.h.b16 %v225
  %v1319 = vunpack.c.l.b16 %v226
  %v1320 = vunpack.c.h.b16 %v226
  %v1321 = vunpack.c.l.b16 %v227
  %v1322 = vunpack.c.h.b16 %v227
  %v1323 = vunpack.c.l.b16 %v228
  %v1324 = vunpack.c.h.b16 %v228
  %v1325 = vunpack.c.l.b16 %v229
  %v1326 = vunpack.c.h.b16 %v229
  %v1327 = vunpack.c.l.b16 %v230
  %v1328 = vunpack.c.h.b16 %v230
  %v1329 = vunpack.c.l.b16 %v231
  %v1330 = vunpack.c.h.b16 %v231
  %v1331 = vunpack.c.l.b16 %v232
  %v1332 = vunpack.c.h.b16 %v232
  %v1333 = vunpack.c.l.b16 %v233
  %v1334 = vunpack.c.h.b16 %v233
  %v1335 = vunpack.c.l.b16 %v234
  %v1336 = vunpack.c.h.b16 %v234
  %v1337 = vunpack.c.l.b16 %v235
  %v1338 = vunpack.c.h.b16 %v235
  %v1339 = vunpack.c.l.b16 %v236
  %v1340 = vunpack.c.h.b16 %v236
  %v1341 = vunpack.c.l.b16 %v237
  %v1342 = vunpack.c.h.b16 %v237
  %v1343 = vunpack.c.l.b16 %v238
  %v1344 = vunpack.c.h.b16 %v238
  %v1345 = vunpack.c.l.b16 %v239
  %v1346 = vunpack.c.h.b16 %v239
  %v1347 = vunpack.c.l.b16 %v240
  %v1348 = vunpack.c.h.b16 %v240
  %v1349 = vunpack.c.l.b16 %v241
  %v1350 = vunpack.c.h.b16 %v241
  %v1351 = vunpack.c.l.b16 %v242
  %v1352 = vunpack.c.h.b16 %v242
  %v1353 = vunpack.c.l.b16 %v243
  %v1354 = vunpack.c.h.b16 %v243
  %v1355 = vunpack.c.l.b16 %v244
  %v1356 = vunpack.c.h.b16 %v244
  %v1357 = vunpack.c.l.b16 %v245
  %v1358 = vunpack.c.h.b16 %v245
  %v1359 = vunpack.c.l.b16 %v246
  %v1360 = vunpack.c.h.b16 %v246
  %v1361 = vunpack.c.l.b16 %v247
  %v1362 = vunpack.c.h.b16 %v247
  %v1363 = vunpack.c.l.b16 %v248
  %v1364 = vunpack.c.h.b16 %v248
  %v1365 = vunpack.c.l.b16 %v249
  %v1366 = vunpack.c.h.b16 %v249
  %v1367 = vunpack.c.l.b16 %v250
  %v1368 = vunpack.c.h.b16 %v250
  %v1369 = vunpack.c.l.b16 %v251
  %v1370 = vunpack.c.h.b16 %v251
  %v1371 = vunpack.c.l.b16 %v252
  %v1372 = vunpack.c.h.b16 %v252
  %v1373 = vunpack.c.l.b16 %v253
  %v1374 = vunpack.c.h.b16 %v253
  %v1375 = vunpack.c.l.b16 %v254
  %v1376 = vunpack.c.h.b16 %v254
  %v1377 = vunpack.c.l.b16 %v255
  %v1378 = vunpack.c.h.b16 %v255
  %v1379 = vunpack.c.l.b16 %v256
  %v1380 = vunpack.c.h.b16 %v256
  %v1381 = vunpack.c.l.b16 %v257
  %v1382 = vunpack.c.h.b16 %v257
  %v1383 = vunpack.c.l.b16 %v258
  %v1384 = vunpack.c.h.b16 %v258
  %v1385 = vunpack.c.l.b16 %v259
  %v1386 = vunpack.c.h.b16 %v259
  %v1387 = vunpack.c.l.b16 %v260
  %v1388 = vunpack.c.h.b16 %v260
  %v1389 = vunpack.c.l.b16 %v261
  %v1390 = vunpack.c.h.b16 %v261
  %v1391 = vunpack.c.l.b16 %v262
  %v1392 = vunpack.c.h.b16 %v262
  %v1393 = vunpack.c.l.b16 %v263
  %v1394 = vunpack.c.h.b16 %v263
  %v1395 = vunpack.c.l.b16 %v264
  %v1396 = vunpack.c.h.b16 %v264
  %v1397 = vunpack.c.l.b16 %v265
  %v1398 = vunpack.c.h.b16 %v265
  %v1399 = vunpack.c.l.b16 %v266
  %v1400 = vunpack.c.h.b16 %v266
  %v1401 = vunpack.c.l.b16 %v267
  %v1402 = vunpack.c.h.b16 %v267
  %v1403 = vunpack.c.l.b16 %v268
  %v1404 = vunpack.c.h.b16 %v268
  %v1405 = vunpack.c.l.b16 %v269
  %v1406 = vunpack.c.h.b16 %v269
  %v1407 = vunpack.c.l.b16 %v270
  %v1408 = vunpack.c.h.b16 %v270
  %v1409 = vunpack.c.l.b16 %v271
  %v1410 = vunpack.c.h.b16 %v271
  %v1411 = vunpack.c.l.b16 %v272
  %v1412 = vunpack.c.h.b16 %v272
  %v1413 = vunpack.c.l.b16 %v273
  %v1414 = vunpack.c.h.b16 %v273
  %v1415 = vunpack.c.l.b16 %v274
  %v1416 = vunpack.c.h.b16 %v274
  %v1417 = vunpack.c.l.b16 %v275
  %v1418 = vunpack.c.h.b16 %v275
  %v1419 = vunpack.c.l.b16 %v276
  %v1420 = vunpack.c.h.b16 %v276
  %v1421 = vunpack.c.l.b16 %v277
  %v1422 = vunpack.c.h.b16 %v277
  %v1423 = vunpack.c.l.b16 %v278
  %v1424 = vunpack.c.h.b16 %v278
  %v1425 = vunpack.c.l.b16 %v279
  %v1426 = vunpack.c.h.b16 %v279
  %v1427 = vunpack.c.l.b16 %v280
  %v1428 = vunpack.c.h.b16 %v280
  %v1429 = vunpack.c.l.b16 %v281
  %v1430 = vunpack.c.h.b16 %v281
  %v1431 = vunpack.c.l.b16 %v282
  %v1432 = vunpack.c.h.b16 %v282
  %v1433 = vunpack.c.l.b16 %v283
  %v1434 = vunpack.c.h.b16 %v283
  %v1435 = vunpack.c.l.b16 %v284
  %v1436 = vunpack.c.h.b16 %v284
  %v1437 = vunpack.c.l.b16 %v285
  %v1438 = vunpack.c.h.b16 %v285
  %v1439 = vunpack.c.l.b16 %v286
  %v1440 = vunpack.c.h.b16 %v286
  %v1441 = vunpack.c.l.b16 %v287
  %v1442 = vunpack.c.h.b16 %v287
  %v1443 = vunpack.c.l.b16 %v288
  %v1444 = vunpack.c.h.b16 %v288
  %v1445 = vunpack.c.l.b16 %v289
  %v1446 = vunpack.c.h.b16 %v289
  %v1447 = vunpack.c.l.b16 %v290
  %v1448 = vunpack.c.h.b16 %v290
  %v1449 = vunpack.c.l.b16 %v291
  %v1450 = vunpack.c.h.b16 %v291
  %v1451 = vunpack.c.l.b16 %v292
  %v1452 = vunpack.c.h.b16 %v292
  %v1453 = vunpack.c.l.b16 %v293
  %v1454 = vunpack.c.h.b16 %v293
  %v1455 = vunpack.c.l.b16 %v294
  %v1456 = vunpack.c.h.b16 %v294
  %v1457 = vunpack.c.l.b16 %v295
  %v1458 = vunpack.c.h.b16 %v295
  %v1459 = vunpack.c.l.b16 %v296
  %v1460 = vunpack.c.h.b16 %v296
  %v1461 = vunpack.c.l.b16 %v297
  %v1462 = vunpack.c.h.b16 %v297
  %v1463 = vunpack.c.l.b16 %v298
  %v1464 = vunpack.c.h.b16 %v298
  %v1465 = vunpack.c.l.b16 %v299
  %v1466 = vunpack.c.h.b16 %v299
  %v1467 = vunpack.c.l.b16 %v300
  %v1468 = vunpack.c.h.b16 %v300
  %v1469 = vunpack.c.l.b16 %v301
  %v1470 = vunpack.c.h.b16 %v301
  %v1471 = vunpack.c.l.b16 %v302
  %v1472 = vunpack.c.h.b16 %v302
  %v1473 = vunpack.c.l.b16 %v303
  %v1474 = vunpack.c.h.b16 %v303
  %v1475 = vunpack.c.l.b16 %v304
  %v1476 = vunpack.c.h.b16 %v304
  %v1477 = vunpack.c.l.b16 %v305
  %v1478 = vunpack.c.h.b16 %v305
  %v1479 = vunpack.c.l.b16 %v306
  %v1480 = vunpack.c.h.b16 %v306
  %v1481 = vunpack.c.l.b16 %v307
  %v1482 = vunpack.c.h.b16 %v307
  %v1483 = vunpack.c.l.b16 %v308
  %v1484 = vunpack.c.h.b16 %v308
  %v1485 = vunpack.c.l.b16 %v309
  %v1486 = vunpack.c.h.b16 %v309
  %v1487 = vunpack.c.l.b16 %v310
  %v1488 = vunpack.c.h.b16 %v310
  %v1489 = vunpack.c.l.b16 %v311
  %v1490 = vunpack.c.h.b16 %v311
  %v1491 = vunpack.c.l.b16 %v312
  %v1492 = vunpack.c.h.b16 %v312
  %v1493 = vunpack.c.l.b16 %v313
  %v1494 = vunpack.c.h.b16 %v313
  %v1495 = vunpack.c.l.b16 %v314
  %v1496 = vunpack.c.h.b16 %v314
  %v1497 = vunpack.c.l.b16 %v315
  %v1498 = vunpack.c.h.b16 %v315
  %v1499 = vunpack.c.l.b16 %v316
  %v1500 = vunpack.c.h.b16 %v316
  %v1501 = vunpack.c.l.b16 %v317
  %v1502 = vunpack.c.h.b16 %v317
  %v1503 = vunpack.c.l.b16 %v318
  %v1504 = vunpack.c.h.b16 %v318
  %v1505 = vunpack.c.l.b16 %v319
  %v1506 = vunpack.c.h.b16 %v319
  %v1507 = vunpack.c.l.b16 %v320
  %v1508 = vunpack.c.h.b16 %v320
  %v1509 = vunpack.c.l.b16 %v321
  %v1510 = vunpack.c.h.b16 %v321
  %v1511 = vunpack.c.l.b16 %v322
  %v1512 = vunpack.c.h.b16 %v322
  %v1513 = vunpack.c.l.b16 %v323
  %v1514 = vunpack.c.h.b16 %v323
  %v1515 = vunpack.c.l.b16 %v324
  %v1516 = vunpack.c.h.b16 %v324
  %v1517 = vunpack.c.l.b16 %v325
  %v1518 = vunpack.c.h.b16 %v325
  %v1519 = vunpack.c.l.b16 %v326
  %v1520 = vunpack.c.h.b16 %v326
  %v1521 = vunpack.c.l.b16 %v327
  %v1522 = vunpack.c.h.b16 %v327
  %v1523 = vunpack.c.l.b16 %v328
  %v1524 = vunpack.c.h.b16 %v328
  %v1525 = vunpack.c.l.b16 %v329
  %v1526 = vunpack.c.h.b16 %v329
  %v1527 = vunpack.c.l.b16 %v330
  %v1528 = vunpack.c.h.b16 %v330
  %v1529 = vunpack.c.l.b16 %v331
  %v1530 = vunpack.c.h.b16 %v331
  %v1531 = vunpack.c.l.b16 %v332
  %v1532 = vunpack.c.h.b16 %v332
  %v1533 = vunpack.c.l.b16 %v333
  %v1534 = vunpack.c.h.b16 %v333
  %v1535 = vunpack.c.l.b16 %v334
  %v1536 = vunpack.c.h.b16 %v334
  %v1537 = vunpack.c.l.b16 %v335
  %v1538 = vunpack.c.h.b16 %v335
  %v1539 = vunpack.c.l.b16 %v336
  %v1540 = vunpack.c.h.b16 %v336
  %v1541 = vunpack.c.l.b16 %v337
  %v1542 = vunpack.c.h.b16 %v337
  %v1543 = vunpack.c.l.b16 %v338
  %v1544 = vunpack.c.h.b16 %v338
  %v1545 = vunpack.c.l.b16 %v339
  %v1546 = vunpack.c.h.b16 %v339
  %v1547 = vunpack.c.l.b16 %v340
  %v1548 = vunpack.c.h.b16 %v340
  %v1549 = vunpack.c.l.b16 %v341
  %v1550 = vunpack.c.h.b16 %v341
  %v1551 = vunpack.c.l.b16 %v342
  %v1552 = vunpack.c.h.b16 %v342
  %v1553 = vunpack.c.l.b16 %v343
  %v1554 = vunpack.c.h.b16 %v343
  %v1555 = vunpack.c.l.b16 %v344
  %v1556 = vunpack.c.h.b16 %v344
  %v1557 = vunpack.c.l.b16 %v345
  %v1558 = vunpack.c.h.b16 %v345
  %v1559 = vunpack.c.l.b16 %v346
  %v1560 = vunpack.c.h.b16 %v346
  %v1561 = vunpack.c.l.b16 %v347
  %v1562 = vunpack.c.h.b16 %v347
  %v1563 = vunpack.c.l.b16 %v348
  %v1564 = vunpack.c.h.b16 %v348
  %v1565 = vunpack.c.l.b16 %v349
  %v1566 = vunpack.c.h.b16 %v349
  %v1567 = vunpack.c.l.b16 %v350
  %v1568 = vunpack.c.h.b16 %v350
  %v1569 = vunpack.c.l.b16 %v351
  %v1570 = vunpack.c.h.b16 %v351
  %v1571 = vunpack.c.l.b16 %v352
  %v1572 = vunpack.c.h.b16 %v352
  %v1573 = vunpack.c.l.b16 %v353
  %v1574 = vunpack.c.h.b16 %v353
  %v1575 = vunpack.c.l.b16 %v354
  %v1576 = vunpack.c.h.b16 %v354
  %v1577 = vunpack.c.l.b16 %v355
  %v1578 = vunpack.c.h.b16 %v355
  %v1579 = vunpack.c.l.b16 %v356
  %v1580 = vunpack.c.h.b16 %v356
  %v1581 = vunpack.c.l.b16 %v357
  %v1582 = vunpack.c.h.b16 %v357
  %v1583 = vunpack.c.l.b16 %v358
  %v1584 = vunpack.c.h.b16 %v358
  %v1585 = vunpack.c.l.b16 %v359
  %v1586 = vunpack.c.h.b16 %v359
  %v1587 = vunpack.c.l.b16 %v360
  %v1588 = vunpack.c.h.b16 %v360
  %v1589 = vunpack.c.l.b16 %v361
  %v1590 = vunpack.c.h.b16 %v361
  %v1591 = vunpack.c.l.b16 %v362
  %v1592 = vunpack.c.h.b16 %v362
  %v1593 = vunpack.c.l.b16 %v363
  %v1594 = vunpack.c.h.b16 %v363
  %v1595 = vunpack.c.l.b16 %v364
  %v1596 = vunpack.c.h.b16 %v364
  %v1597 = vunpack.c.l.b16 %v365
  %v1598 = vunpack.c.h.b16 %v365
  %v1599 = vunpack.c.l.b16 %v366
  %v1600 = vunpack.c.h.b16 %v366
  %v1601 = vunpack.c.l.b16 %v367
  %v1602 = vunpack.c.h.b16 %v367
  %v1603 = vunpack.c.l.b16 %v368
  %v1604 = vunpack.c.h.b16 %v368
  %v1605 = vunpack.c.l.b16 %v369
  %v1606 = vunpack.c.h.b16 %v369
  %v1607 = vunpack.c.l.b16 %v370
  %v1608 = vunpack.c.h.b16 %v370
  %v1609 = vunpack.c.l.b16 %v371
  %v1610 = vunpack.c.h.b16 %v371
  %v1611 = vunpack.c.l.b16 %v372
  %v1612 = vunpack.c.h.b16 %v372
  %v1613 = vunpack.c.l.b16 %v373
  %v1614 = vunpack.c.h.b16 %v373
  %v1615 = vunpack.c.l.b16 %v374
  %v1616 = vunpack.c.h.b16 %v374
  %v1617 = vunpack.c.l.b16 %v375
  %v1618 = vunpack.c.h.b16 %v375
  %v1619 = vunpack.c.l.b16 %v376
  %v1620 = vunpack.c.h.b16 %v376
  %v1621 = vunpack.c.l.b16 %v377
  %v1622 = vunpack.c.h.b16 %v377
  %v1623 = vunpack.c.l.b16 %v378
  %v1624 = vunpack.c.h.b16 %v378
  %v1625 = vunpack.c.l.b16 %v379
  %v1626 = vunpack.c.h.b16 %v379
  %v1627 = vunpack.c.l.b16 %v380
  %v1628 = vunpack.c.h.b16 %v380
  %v1629 = vunpack.c.l.b16 %v381
  %v1630 = vunpack.c.h.b16 %v381
  %v1631 = vunpack.c.l.b16 %v382
  %v1632 = vunpack.c.h.b16 %v382
  %v1633 = vunpack.c.l.b16 %v383
  %v1634 = vunpack.c.h.b16 %v383
  %v1635 = vunpack.c.l.b16 %v384
  %v1636 = vunpack.c.h.b16 %v384
  %v1637 = vunpack.c.l.b16 %v385
  %v1638 = vunpack.c.h.b16 %v385
  %v1639 = vunpack.c.l.b16 %v386
  %v1640 = vunpack.c.h.b16 %v386
  %v1641 = vunpack.c.l.b16 %v387
  %v1642 = vunpack.c.h.b16 %v387
  %v1643 = vunpack.c.l.b16 %v388
  %v1644 = vunpack.c.h.b16 %v388
  %v1645 = vunpack.c.l.b16 %v389
  %v1646 = vunpack.c.h.b16 %v389
  %v1647 = vunpack.c.l.b16 %v390
  %v1648 = vunpack.c.h.b16 %v390
  %v1649 = vunpack.c.l.b16 %v391
  %v1650 = vunpack.c.h.b16 %v391
  %v1651 = vunpack.c.l.b16 %v392
  %v1652 = vunpack.c.h.b16 %v392
  %v1653 = vunpack.c.l.b16 %v393
  %v1654 = vunpack.c.h.b16 %v393
  %v1655 = vunpack.c.l.b16 %v394
  %v1656 = vunpack.c.h.b16 %v394
  %v1657 = vunpack.c.l.b16 %v395
  %v1658 = vunpack.c.h.b16 %v395
  %v1659 = vunpack.c.l.b16 %v396
  %v1660 = vunpack.c.h.b16 %v396
  %v1661 = vunpack.c.l.b16 %v397
  %v1662 = vunpack.c.h.b16 %v397
  %v1663 = vunpack.c.l.b16 %v398
  %v1664 = vunpack.c.h.b16 %v398
  %v1665 = vunpack.c.l.b16 %v399
  %v1666 = vunpack.c.h.b16 %v399
  %v1667 = vunpack.c.l.b16 %v400
  %v1668 = vunpack.c.h.b16 %v400
  %v1669 = vunpack.c.l.b16 %v401
  %v1670 = vunpack.c.h.b16 %v401
  %v1671 = vunpack.c.l.b16 %v402
  %v1672 = vunpack.c.h.b16 %v402
  %v1673 = vunpack.c.l.b16 %v403
  %v1674 = vunpack.c.h.b16 %v403
  %v1675 = vunpack.c.l.b16 %v404
  %v1676 = vunpack.c.h.b16 %v404
  %v1677 = vunpack.c.l.b16 %v405
  %v1678 = vunpack.c.h.b16 %v405
  %v1679 = vunpack.c.l.b16 %v406
  %v1680 = vunpack.c.h.b16 %v406
  %v1681 = vunpack.c.l.b16 %v407
  %v1682 = vunpack.c.h.b16 %v407
  %v1683 = vunpack.c.l.b16 %v408
  %v1684 = vunpack.c.h.b16 %v408
  %v1685 = vunpack.c.l.b16 %v409
  %v1686 = vunpack.c.h.b16 %v409
  %v1687 = vunpack.c.l.b16 %v410
  %v1688 = vunpack.c.h.b16 %v410
  %v1689 = vunpack.c.l.b16 %v411
  %v1690 = vunpack.c.h.b16 %v411
  %v1691 = vunpack.c.l.b16 %v412
  %v1692 = vunpack.c.h.b16 %v412
  %v1693 = vunpack.c.l.b16 %v413
  %v1694 = vunpack.c.h.b16 %v413
  %v1695 = vunpack.c.l.b16 %v414
  %v1696 = vunpack.c.h.b16 %v414
  %v1697 = vunpack.c.l.b16 %v415
  %v1698 = vunpack.c.h.b16 %v415
  %v1699 = vunpack.c.l.b16 %v416
  %v1700 = vunpack.c.h.b16 %v416
  %v1701 = vunpack.c.l.b16 %v417
  %v1702 = vunpack.c.h.b16 %v417
  %v1703 = vunpack.c.l.b16 %v418
  %v1704 = vunpack.c.h.b16 %v418
  %v1705 = vunpack.c.l.b16 %v419
  %v1706 = vunpack.c.h.b16 %v419
  %v1707 = vunpack.c.l.b16 %v420
  %v1708 = vunpack.c.h.b16 %v420
  %v1709 = vunpack.c.l.b16 %v421
  %v1710 = vunpack.c.h.b16 %v421
  %v1711 = vunpack.c.l.b16 %v422
  %v1712 = vunpack.c.h.b16 %v422
  %v1713 = vunpack.c.l.b16 %v423
  %v1714 = vunpack.c.h.b16 %v423
  %v1715 = vunpack.c.l.b16 %v424
  %v1716 = vunpack.c.h.b16 %v424
  %v1717 = vunpack.c.l.b16 %v425
  %v1718 = vunpack.c.h.b16 %v425
  %v1719 = vunpack.c.l.b16 %v426
  %v1720 = vunpack.c.h.b16 %v426
  %v1721 = vunpack.c.l.b16 %v427
  %v1722 = vunpack.c.h.b16 %v427
  %v1723 = vunpack.c.l.b16 %v428
  %v1724 = vunpack.c.h.b16 %v428
  %v1725 = vunpack.c.l.b16 %v429
  %v1726 = vunpack.c.h.b16 %v429
  %v1727 = vunpack.c.l.b16 %v430
  %v1728 = vunpack.c.h.b16 %v430
  %v1729 = vunpack.c.l.b16 %v431
  %v1730 = vunpack.c.h.b16 %v431
  %v1731 = vunpack.c.l.b16 %v432
  %v1732 = vunpack.c.h.b16 %v432
  %v1733 = vunpack.c.l.b16 %v433
  %v1734 = vunpack.c.h.b16 %v433
  %v1735 = vunpack.c.l.b16 %v434
  %v1736 = vunpack.c.h.b16 %v434
  %v1737 = vunpack.c.l.b16 %v435
  %v1738 = vunpack.c.h.b16 %v435
  %v1739 = vunpack.c.l.b16 %v436
  %v1740 = vunpack.c.h.b16 %v436
  %v1741 = vunpack.c.l.b16 %v437
  %v1742 = vunpack.c.h.b16 %v437
  %v1743 = vunpack.c.l.b16 %v438
  %v1744 = vunpack.c.h.b16 %v438
  %v1745 = vunpack.c.l.b16 %v439
  %v1746 = vunpack.c.h.b16 %v439
  %v1747 = vunpack.c.l.b16 %v440
  %v1748 = vunpack.c.h.b16 %v440
  %v1749 = vunpack.c.l.b16 %v441
  %v1750 = vunpack.c.h.b16 %v441
  %v1751 = vunpack.c.l.b16 %v442
  %v1752 = vunpack.c.h.b16 %v442
  %v1753 = vunpack.c.l.b16 %v443
  %v1754 = vunpack.c.h.b16 %v443
  %v1755 = vunpack.c.l.b16 %v444
  %v1756 = vunpack.c.h.b16 %v444
  %v1757 = vunpack.c.l.b16 %v445
  %v1758 = vunpack.c.h.b16 %v445
  %v1759 = vunpack.c.l.b16 %v446
  %v1760 = vunpack.c.h.b16 %v446
  %v1761 = vunpack.c.l.b16 %v447
  %v1762 = vunpack.c.h.b16 %v447
  %v1763 = vunpack.c.l.b16 %v448
  %v1764 = vunpack.c.h.b16 %v448
  %v1765 = vunpack.c.l.b16 %v449
  %v1766 = vunpack.c.h.b16 %v449
  %v1767 = vunpack.c.l.b16 %v450
  %v1768 = vunpack.c.h.b16 %v450
  %v1769 = vunpack.c.l.b16 %v451
  %v1770 = vunpack.c.h.b16 %v451
  %v1771 = vunpack.c.l.b16 %v452
  %v1772 = vunpack.c.h.b16 %v452
  %v1773 = vunpack.c.l.b16 %v453
  %v1774 = vunpack.c.h.b16 %v453
  %v1775 = vunpack.c.l.b16 %v454
  %v1776 = vunpack.c.h.b16 %v454
  %v1777 = vunpack.c.l.b16 %v455
  %v1778 = vunpack.c.h.b16 %v455
  %v1779 = vunpack.c.l.b16 %v456
  %v1780 = vunpack.c.h.b16 %v456
  %v1781 = vunpack.c.l.b16 %v457
  %v1782 = vunpack.c.h.b16 %v457
  %v1783 = vunpack.c.l.b16 %v458
  %v1784 = vunpack.c.h.b16 %v458
  %v1785 = vunpack.c.l.b16 %v459
  %v1786 = vunpack.c.h.b16 %v459
  %v1787 = vunpack.c.l.b16 %v460
  %v1788 = vunpack.c.h.b16 %v460
  %v1789 = vunpack.c.l.b16 %v461
  %v1790 = vunpack.c.h.b16 %v461
  %v1791 = vunpack.c.l.b16 %v462
  %v1792 = vunpack.c.h.b16 %v462
  %v1793 = vunpack.c.l.b16 %v463
  %v1794 = vunpack.c.h.b16 %v463
  %v1795 = vunpack.c.l.b16 %v464
  %v1796 = vunpack.c.h.b16 %v464
  %v1797 = vunpack.c.l.b16 %v465
  %v1798 = vunpack.c.h.b16 %v465
  %v1799 = vunpack.c.l.b16 %v466
  %v1800 = vunpack.c.h.b16 %v466
  %v1801 = vunpack.c.l.b16 %v467
  %v1802 = vunpack.c.h.b16 %v467
  %v1803 = vunpack.c.l.b16 %v468
  %v1804 = vunpack.c.h.b16 %v468
  %v1805 = vunpack.c.l.b16 %v469
  %v1806 = vunpack.c.h.b16 %v469
  %v1807 = vunpack.c.l.b16 %v470
  %v1808 = vunpack.c.h.b16 %v470
  %v1809 = vunpack.c.l.b16 %v471
  %v1810 = vunpack.c.h.b16 %v471
  %v1811 = vunpack.c.l.b16 %v472
  %v1812 = vunpack.c.h.b16 %v472
  %v1813 = vunpack.c.l.b16 %v473
  %v1814 = vunpack.c.h.b16 %v473
  %v1815 = vunpack.c.l.b16 %v474
  %v1816 = vunpack.c.h.b16 %v474
  %v1817 = vunpack.c.l.b16 %v475
  %v1818 = vunpack.c.h.b16 %v475
  %v1819 = vunpack.c.l.b16 %v476
  %v1820 = vunpack.c.h.b16 %v476
  %v1821 = vunpack.c.l.b16 %v477
  %v1822 = vunpack.c.h.b16 %v477
  %v1823 = vunpack.c.l.b16 %v478
  %v1824 = vunpack.c.h.b16 %v478
  %v1825 = vunpack.c.l.b16 %v479
  %v1826 = vunpack.c.h.b16 %v479
  %v1827 = vunpack.c.l.b16 %v480
  %v1828 = vunpack.c.h.b16 %v480
  %v1829 = vunpack.c.l.b16 %v481
  %v1830 = vunpack.c.h.b16 %v481
  %v1831 = vunpack.c.l.b16 %v482
  %v1832 = vunpack.c.h.b16 %v482
  %v1833 = vunpack.c.l.b16 %v483
  %v1834 = vunpack.c.h.b16 %v483
  %v1835 = vunpack.c.l.b16 %v484
  %v1836 = vunpack.c.h.b16 %v484
  %v1837 = vunpack.c.l.b16 %v485
  %v1838 = vunpack.c.h.b16 %v485
  %v1839 = vunpack.c.l.b16 %v486
  %v1840 = vunpack.c.h.b16 %v486
  %v1841 = vunpack.c.l.b16 %v487
  %v1842 = vunpack.c.h.b16 %v487
  %v1843 = vunpack.c.l.b16 %v488
  %v1844 = vunpack.c.h.b16 %v488
  %v1845 = vunpack.c.l.b16 %v489
  %v1846 = vunpack.c.h.b16 %v489
  %v1847 = vunpack.c.l.b16 %v490
  %v1848 = vunpack.c.h.b16 %v490
  %v1849 = vunpack.c.l.b16 %v491
  %v1850 = vunpack.c.h.b16 %v491
  %v1851 = vunpack.c.l.b16 %v492
  %v1852 = vunpack.c.h.b16 %v492
  %v1853 = vunpack.c.l.b16 %v493
  %v1854 = vunpack.c.h.b16 %v493
  %v1855 = vunpack.c.l.b16 %v494
  %v1856 = vunpack.c.h.b16 %v494
  %v1857 = vunpack.c.l.b16 %v495
  %v1858 = vunpack.c.h.b16 %v495
  %v1859 = vunpack.c.l.b16 %v496
  %v1860 = vunpack.c.h.b16 %v496
  %v1861 = vunpack.c.l.b16 %v497
  %v1862 = vunpack.c.h.b16 %v497
  %v1863 = vunpack.c.l.b16 %v498
  %v1864 = vunpack.c.h.b16 %v498
  %v1865 = vunpack.c.l.b16 %v499
  %v1866 = vunpack.c.h.b16 %v499
  %v1867 = vunpack.c.l.b16 %v500
  %v1868 = vunpack.c.h.b16 %v500
  %v1869 = vunpack.c.l.b16 %v501
  %v1870 = vunpack.c.h.b16 %v501
  %v1871 = vunpack.c.l.b16 %v502
  %v1872 = vunpack.c.h.b16 %v502
  %v1873 = vunpack.c.l.b16 %v503
  %v1874 = vunpack.c.h.b16 %v503
  %v1875 = vunpack.c.l.b16 %v504
  %v1876 = vunpack.c.h.b16 %v504
  %v1877 = vunpack.c.l.b16 %v505
  %v1878 = vunpack.c.h.b16 %v505
  %v1879 = vunpack.c.l.b16 %v506
  %v1880 = vunpack.c.h.b16 %v506
  %v1881 = vunpack.c.l.b16 %v507
  %v1882 = vunpack.c.h.b16 %v507
  %v1883 = vunpack.c.l.b16 %v508
  %v1884 = vunpack.c.h.b16 %v508
  %v1885 = vunpack.c.l.b16 %v509
  %v1886 = vunpack.c.h.b16 %v509
  %v1887 = vunpack.c.l.b16 %v510
  %v1888 = vunpack.c.h.b16 %v510
  %v1889 = vunpack.c.l.b16 %v511
  %v1890 = vunpack.c.h.b16 %v511
  %v1891 = vunpack.c.l.b16 %v512
  %v1892 = vunpack.c.h.b16 %v512
  %v1893 = vunpack.c.l.b16 %v513
  %v1894 = vunpack.c.h.b16 %v513
  %v1895 = vunpack.c.l.b16 %v514
  %v1896 = vunpack.c.h.b16 %v514
  %v1897 = vunpack.c.l.b16 %v515
  %v1898 = vunpack.c.h.b16 %v515
  %v1899 = vunpack.c.l.b16 %v516
  %v1900 = vunpack.c.h.b16 %v516
  %v1901 = vunpack.c.l.b16 %v517
  %v1902 = vunpack.c.h.b16 %v517
  %v1903 = vunpack.c.l.b16 %v518
  %v1904 = vunpack.c.h.b16 %v518
  %v1905 = vunpack.c.l.b16 %v519
  %v1906 = vunpack.c.h.b16 %v519
  %v1907 = vunpack.c.l.b16 %v520
  %v1908 = vunpack.c.h.b16 %v520
  %v1909 = vunpack.c.l.b16 %v521
  %v1910 = vunpack.c.h.b16 %v521
  %v1911 = vunpack.c.l.b16 %v522
  %v1912 = vunpack.c.h.b16 %v522
  %v1913 = vunpack.c.l.b16 %v523
  %v1914 = vunpack.c.h.b16 %v523
  %v1915 = vunpack.c.l.b16 %v524
  %v1916 = vunpack.c.h.b16 %v524
  %v1917 = vunpack.c.l.b16 %v525
  %v1918 = vunpack.c.h.b16 %v525
  %v1919 = vunpack.c.l.b16 %v526
  %v1920 = vunpack.c.h.b16 %v526
  %v1921 = vunpack.c.l.b16 %v527
  %v1922 = vunpack.c.h.b16 %v527
  %v1923 = vunpack.c.l.b16 %v528
  %v1924 = vunpack.c.h.b16 %v528
  %v1925 = vunpack.c.l.b16 %v529
  %v1926 = vunpack.c.h.b16 %v529
  %v1927 = vunpack.c.l.b16 %v530
  %v1928 = vunpack.c.h.b16 %v530
  %v1929 = vunpack.c.l.b16 %v531
  %v1930 = vunpack.c.h.b16 %v531
  %v1931 = vunpack.c.l.b16 %v532
  %v1932 = vunpack.c.h.b16 %v532
  %v1933 = vunpack.c.l.b16 %v533
  %v1934 = vunpack.c.h.b16 %v533
  %v1935 = vunpack.c.l.b16 %v534
  %v1936 = vunpack.c.h.b16 %v534
  %v1937 = vunpack.c.l.b16 %v535
  %v1938 = vunpack.c.h.b16 %v535
  %v1939 = vunpack.c.l.b16 %v536
  %v1940 = vunpack.c.h.b16 %v536
  %v1941 = vunpack.c.l.b16 %v537
  %v1942 = vunpack.c.h.b16 %v537
  %v1943 = vunpack.c.l.b16 %v538
  %v1944 = vunpack.c.h.b16 %v538
  %v1945 = vunpack.c.l.b16 %v539
  %v1946 = vunpack.c.h.b16 %v539
  %v1947 = vunpack.c.l.b16 %v540
  %v1948 = vunpack.c.h.b16 %v540
  %v1949 = vunpack.c.l.b16 %v541
  %v1950 = vunpack.c.h.b16 %v541
  %v1951 = vunpack.c.l.b16 %v542
  %v1952 = vunpack.c.h.b16 %v542
  %v1953 = vunpack.c.l.b16 %v543
  %v1954 = vunpack.c.h.b16 %v543
  %v1955 = vunpack.c.l.b16 %v544
  %v1956 = vunpack.c.h.b16 %v544
  %v1957 = vunpack.c.l.b16 %v545
  %v1958 = vunpack.c.h.b16 %v545
  %v1959 = vunpack.c.l.b16 %v546
  %v1960 = vunpack.c.h.b16 %v546
  %v1961 = vunpack.c.l.b16 %v547
  %v1962 = vunpack.c.h.b16 %v547
  %v1963 = vunpack.c.l.b16 %v548
  %v1964 = vunpack.c.h.b16 %v548
  %v1965 = vunpack.c.l.b16 %v549
  %v1966 = vunpack.c.h.b16 %v549
  %v1967 = vunpack.c.l.b16 %v550
  %v1968 = vunpack.c.h.b16 %v550
  %v1969 = vunpack.c.l.b16 %v551
  %v1970 = vunpack.c.h.b16 %v551
  %v1971 = vunpack.c.l.b16 %v552
  %v1972 = vunpack.c.h.b16 %v552
  %v1973 = vunpack.c.l.b16 %v553
  %v1974 = vunpack.c.h.b16 %v553
  %v1975 = vunpack.c.l.b16 %v554
  %v1976 = vunpack.c.h.b16 %v554
  %v1977 = vunpack.c.l.b16 %v555
  %v1978 = vunpack.c.h.b16 %v555
  %v1979 = vunpack.c.l.b16 %v556
  %v1980 = vunpack.c.h.b16 %v556
  %v1981 = vunpack.c.l.b16 %v557
  %v1982 = vunpack.c.h.b16 %v557
  %v1983 = vunpack.c.l.b16 %v558
  %v1984 = vunpack.c.h.b16 %v558
  %v1985 = vunpack.c.l.b16 %v559
  %v1986 = vunpack.c.h.b16 %v559
  %v1987 = vunpack.c.l.b16 %v560
  %v1988 = vunpack.c.h.b16 %v560
  %v1989 = vunpack.c.l.b16 %v561
  %v1990 = vunpack.c.h.b16 %v561
  %v1991 = vunpack.c.l.b16 %v562
  %v1992 = vunpack.c.h.b16 %v562
  %v1993 = vunpack.c.l.b16 %v563
  %v1994 = vunpack.c.h.b16 %v563
  %v1995 = vunpack.c.l.b16 %v564
  %v1996 = vunpack.c.h.b16 %v564
  %v1997 = vunpack.c.l.b16 %v565
  %v1998 = vunpack.c.h.b16 %v565
  %v1999 = vunpack.c.l.b16 %v566
  %v2000 = vunpack.c.h.b16 %v566
  %v2001 = vunpack.c.l.b16 %v567
  %v2002 = vunpack.c.h.b16 %v567
  %v2003 = vunpack.c.l.b16 %v568
  %v2004 = vunpack.c.h.b16 %v568
  %v2005 = vunpack.c.l.b16 %v569
  %v2006 = vunpack.c.h.b16 %v569
  %v2007 = vunpack.c.l.b16 %v570
  %v2008 = vunpack.c.h.b16 %v570
  %v2009 = vunpack.c.l.b16 %v571
  %v2010 = vunpack.c.h.b16 %v571
  %v2011 = vunpack.c.l.b16 %v572
  %v2012 = vunpack.c.h.b16 %v572
  %v2013 = vunpack.c.l.b16 %v573
  %v2014 = vunpack.c.h.b16 %v573
  %v2015 = vunpack.c.l.b16 %v574
  %v2016 = vunpack.c.h.b16 %v574
  %v2017 = vunpack.c.l.b16 %v575
  %v2018 = vunpack.c.h.b16 %v575
  %v2019 = vunpack.c.l.b16 %v576
  %v2020 = vunpack.c.h.b16 %v576
  %v2021 = vunpack.c.l.b16 %v577
  %v2022 = vunpack.c.h.b16 %v577
  %v2023 = vunpack.c.l.b16 %v578
  %v2024 = vunpack.c.h.b16 %v578
  %v2025 = vunpack.c.l.b16 %v579
  %v2026 = vunpack.c.h.b16 %v579
  %v2027 = vunpack.c.l.b16 %v580
  %v2028 = vunpack.c.h.b16 %v580
  %v2029 = vunpack.c.l.b16 %v581
  %v2030 = vunpack.c.h.b16 %v581
  %v2031 = vunpack.c.l.b16 %v582
  %v2032 = vunpack.c.h.b16 %v582
  %v2033 = vunpack.c.l.b16 %v583
  %v2034 = vunpack.c.h.b16 %v583
  %v2035 = vunpack.c.l.b16 %v584
  %v2036 = vunpack.c.h.b16 %v584
  %v2037 = vunpack.c.l.b16 %v585
  %v2038 = vunpack.c.h.b16 %v585
  %v2039 = vunpack.c.l.b16 %v586
  %v2040 = vunpack.c.h.b16 %v586
  %v2041 = vunpack.c.l.b16 %v587
  %v2042 = vunpack.c.h.b16 %v587
  %v2043 = vunpack.c.l.b16 %v588
  %v2044 = vunpack.c.h.b16 %v588
  %v2045 = vunpack.c.l.b16 %v589
  %v2046 = vunpack.c.h.b16 %v589
  %v2047 = vunpack.c.l.b16 %v590
  %v2048 = vunpack.c.h.b16 %v590
  %v2049 = vunpack.c.l.b16 %v591
  %v2050 = vunpack.c.h.b16 %v591
  %v2051 = vunpack.c.l.b16 %v592
  %v2052 = vunpack.c.h.b16 %v592
  %v2053 = vunpack.c.l.b16 %v593
  %v2054 = vunpack.c.h.b16 %v593
  %v2055 = vunpack.c.l.b16 %v594
  %v2056 = vunpack.c.h.b16 %v594
  %v2057 = vunpack.c.l.b16 %v595
  %v2058 = vunpack.c.h.b16 %v595
  %v2059 = vunpack.c.l.b16 %v596
  %v2060 = vunpack.c.h.b16 %v596
  %v2061 = vunpack.c.l.b16 %v597
  %v2062 = vunpack.c.h.b16 %v597
  %v2063 = vunpack.c.l.b16 %v598
  %v2064 = vunpack.c.h.b16 %v598
  %v2065 = vunpack.c.l.b16 %v599
  %v2066 = vunpack.c.h.b16 %v599
  %v2067 = vunpack.c.l.b16 %v600
  %v2068 = vunpack.c.h.b16 %v600
  %v2069 = vunpack.c.l.b16 %v601
  %v2070 = vunpack.c.h.b16 %v601
  %v2071 = vunpack.c.l.b16 %v602
  %v2072 = vunpack.c.h.b16 %v602
  %v2073 = vunpack.c.l.b16 %v603
  %v2074 = vunpack.c.h.b16 %v603
  %v2075 = vunpack.c.l.b16 %v604
  %v2076 = vunpack.c.h.b16 %v604
  %v2077 = vunpack.c.l.b16 %v605
  %v2078 = vunpack.c.h.b16 %v605
  %v2079 = vunpack.c.l.b16 %v606
  %v2080 = vunpack.c.h.b16 %v606
  %v2081 = vunpack.c.l.b16 %v607
  %v2082 = vunpack.c.h.b16 %v607
  %v2083 = vunpack.c.l.b16 %v608
  %v2084 = vunpack.c.h.b16 %v608
  %v2085 = vunpack.c.l.b16 %v609
  %v2086 = vunpack.c.h.b16 %v609
  %v2087 = vunpack.c.l.b16 %v610
  %v2088 = vunpack.c.h.b16 %v610
  %v2089 = vunpack.c.l.b16 %v611
  %v2090 = vunpack.c.h.b16 %v611
  %v2091 = vunpack.c.l.b16 %v612
  %v2092 = vunpack.c.h.b16 %v612
  %v2093 = vunpack.c.l.b16 %v613
  %v2094 = vunpack.c.h.b16 %v613
  %v2095 = vunpack.c.l.b16 %v614
  %v2096 = vunpack.c.h.b16 %v614
  %v2097 = vunpack.c.l.b16 %v615
  %v2098 = vunpack.c.h.b16 %v615
  %v2099 = vunpack.c.l.b16 %v616
  %v2100 = vunpack.c.h.b16 %v616
  %v2101 = vunpack.c.l.b16 %v617
  %v2102 = vunpack.c.h.b16 %v617
  %v2103 = vunpack.c.l.b16 %v618
  %v2104 = vunpack.c.h.b16 %v618
  %v2105 = vunpack.c.l.b16 %v619
  %v2106 = vunpack.c.h.b16 %v619
  %v2107 = vunpack.c.l.b16 %v620
  %v2108 = vunpack.c.h.b16 %v620
  %v2109 = vunpack.c.l.b16 %v621
  %v2110 = vunpack.c.h.b16 %v621
  %v2111 = vunpack.c.l.b16 %v622
  %v2112 = vunpack.c.h.b16 %v622
  %v2113 = vunpack.c.l.b16 %v623
  %v2114 = vunpack.c.h.b16 %v623
  %v2115 = vunpack.c.l.b16 %v624
  %v2116 = vunpack.c.h.b16 %v624
  %v2117 = vpack.c.b16 %v1141, %v1137
  %v2118 = vpack.c.b16 %v1142, %v1138
  %v2119 = vpack.c.b16 %v1143, %v1139
  %v2120 = vpack.c.b16 %v1144, %v1140
  %v2121 = vpack.c.b16 %v1149, %v1145
  %v2122 = vpack.c.b16 %v1150, %v1146
  %v2123 = vpack.c.b16 %v1151, %v1147
  %v2124 = vpack.c.b16 %v1152, %v1148
  %v2125 = vpack.c.b16 %v1157, %v1153
  %v2126 = vpack.c.b16 %v1158, %v1154
  %v2127 = vpack.c.b16 %v1159, %v1155
  %v2128 = vpack.c.b16 %v1160, %v1156
  %v2129 = vpack.c.b16 %v1165, %v1161
  %v2130 = vpack.c.b16 %v1166, %v1162
  %v2131 = vpack.c.b16 %v1167, %v1163
  %v2132 = vpack.c.b16 %v1168, %v1164
  %v2133 = vpack.c.b16 %v1173, %v1169
  %v2134 = vpack.c.b16 %v1174, %v1170
  %v2135 = vpack.c.b16 %v1175, %v1171
  %v2136 = vpack.c.b16 %v1176, %v1172
  %v2137 = vpack.c.b16 %v1181, %v1177
  %v2138 = vpack.c.b16 %v1182, %v1178
  %v2139 = vpack.c.b16 %v1183, %v1179
  %v2140 = vpack.c.b16 %v1184, %v1180
  %v2141 = vpack.c.b16 %v1189, %v1185
  %v2142 = vpack.c.b16 %v1190, %v1186
  %v2143 = vpack.c.b16 %v1191, %v1187
  %v2144 = vpack.c.b16 %v1192, %v1188
  %v2145 = vpack.c.b16 %v1197, %v1193
  %v2146 = vpack.c.b16 %v1198, %v1194
  %v2147 = vpack.c.b16 %v1199, %v1195
  %v2148 = vpack.c.b16 %v1200, %v1196
  %v2149 = vpack.c.b16 %v1205, %v1201
  %v2150 = vpack.c.b16 %v1206, %v1202
  %v2151 = vpack.c.b16 %v1207, %v1203
  %v2152 = vpack.c.b16 %v1208, %v1204
  %v2153 = vpack.c.b16 %v1213, %v1209
  %v2154 = vpack.c.b16 %v1214, %v1210
  %v2155 = vpack.c.b16 %v1215, %v1211
  %v2156 = vpack.c.b16 %v1216, %v1212
  %v2157 = vpack.c.b16 %v1221, %v1217
  %v2158 = vpack.c.b16 %v1222, %v1218
  %v2159 = vpack.c.b16 %v1223, %v1219
  %v2160 = vpack.c.b16 %v1224, %v1220
  %v2161 = vpack.c.b16 %v1229, %v1225
  %v2162 = vpack.c.b16 %v1230, %v1226
  %v2163 = vpack.c.b16 %v1231, %v1227
  %v2164 = vpack.c.b16 %v1232, %v1228
  %v2165 = vpack.c.b16 %v1237, %v1233
  %v2166 = vpack.c.b16 %v1238, %v1234
  %v2167 = vpack.c.b16 %v1239, %v1235
  %v2168 = vpack.c.b16 %v1240, %v1236
  %v2169 = vpack.c.b16 %v1245, %v1241
  %v2170 = vpack.c.b16 %v1246, %v1242
  %v2171 = vpack.c.b16 %v1247, %v1243
  %v2172 = vpack.c.b16 %v1248, %v1244
  %v2173 = vpack.c.b16 %v1253, %v1249
  %v2174 = vpack.c.b16 %v1254, %v1250
  %v2175 = vpack.c.b16 %v1255, %v1251
  %v2176 = vpack.c.b16 %v1256, %v1252
  %v2177 = vpack.c.b16 %v1261, %v1257
  %v2178 = vpack.c.b16 %v1262, %v1258
  %v2179 = vpack.c.b16 %v1263, %v1259
  %v2180 = vpack.c.b16 %v1264, %v1260
  %v2181 = vpack.c.b16 %v1269, %v1265
  %v2182 = vpack.c.b16 %v1270, %v1266
  %v2183 = vpack.c.b16 %v1271, %v1267
  %v2184 = vpack.c.b16 %v1272, %v1268
  %v2185 = vpack.c.b16 %v1277, %v1273
  %v2186 = vpack.c.b16 %v1278, %v1274
  %v2187 = vpack.c.b16 %v1279, %v1275
  %v2188 = vpack.c.b16 %v1280, %v1276
  %v2189 = vpack.c.b16 %v1285, %v1281
  %v2190 = vpack.c.b16 %v1286, %v1282
  %v2191 = vpack.c.b16 %v1287, %v1283
  %v2192 = vpack.c.b16 %v1288, %v1284
  %v2193 = vpack.c.b16 %v1293, %v1289
  %v2194 = vpack.c.b16 %v1294, %v1290
  %v2195 = vpack.c.b16 %v1295, %v1291
  %v2196 = vpack.c.b16 %v1296, %v1292
  %v2197 = vpack.c.b16 %v1301, %v1297
  %v2198 = vpack.c.b16 %v1302, %v1298
  %v2199 = vpack.c.b16 %v1303, %v1299
  %v2200 = vpack.c.b16 %v1304, %v1300
  %v2201 = vpack.c.b16 %v1309, %v1305
  %v2202 = vpack.c.b16 %v1310, %v1306
  %v2203 = vpack.c.b16 %v1311, %v1307
  %v2204 = vpack.c.b16 %v1312, %v1308
  %v2205 = vpack.c.b16 %v1317, %v1313
  %v2206 = vpack.c.b16 %v1318, %v1314
  %v2207 = vpack.c.b16 %v1319, %v1315
  %v2208 = vpack.c.b16 %v1320, %v1316
  %v2209 = vpack.c.b16 %v1325, %v1321
  %v2210 = vpack.c.b16 %v1326, %v1322
  %v2211 = vpack.c.b16 %v1327, %v1323
  %v2212 = vpack.c.b16 %v1328, %v1324
  %v2213 = vpack.c.b16 %v1333, %v1329
  %v2214 = vpack.c.b16 %v1334, %v1330
  %v2215 = vpack.c.b16 %v1335, %v1331
  %v2216 = vpack.c.b16 %v1336, %v1332
  %v2217 = vpack.c.b16 %v1341, %v1337
  %v2218 = vpack.c.b16 %v1342, %v1338
  %v2219 = vpack.c.b16 %v1343, %v1339
  %v2220 = vpack.c.b16 %v1344, %v1340
  %v2221 = vpack.c.b16 %v1349, %v1345
  %v2222 = vpack.c.b16 %v1350, %v1346
  %v2223 = vpack.c.b16 %v1351, %v1347
  %v2224 = vpack.c.b16 %v1352, %v1348
  %v2225 = vpack.c.b16 %v1357, %v1353
  %v2226 = vpack.c.b16 %v1358, %v1354
  %v2227 = vpack.c.b16 %v1359, %v1355
  %v2228 = vpack.c.b16 %v1360, %v1356
  %v2229 = vpack.c.b16 %v1365, %v1361
  %v2230 = vpack.c.b16 %v1366, %v1362
  %v2231 = vpack.c.b16 %v1367, %v1363
  %v2232 = vpack.c.b16 %v1368, %v1364
  %v2233 = vpack.c.b16 %v1373, %v1369
  %v2234 = vpack.c.b16 %v1374, %v1370
  %v2235 = vpack.c.b16 %v1375, %v1371
  %v2236 = vpack.c.b16 %v1376, %v1372
  %v2237 = vpack.c.b16 %v1381, %v1377
  %v2238 = vpack.c.b16 %v1382, %v1378
  %v2239 = vpack.c.b16 %v1383, %v1379
  %v2240 = vpack.c.b16 %v1384, %v1380
  %v2241 = vpack.c.b16 %v1389, %v1385
  %v2242 = vpack.c.b16 %v1390, %v1386
  %v2243 = vpack.c.b16 %v1391, %v1387
  %v2244 = vpack.c.b16 %v1392, %v1388
  %v2245 = vpack.c.b16 %v1397, %v1393
  %v2246 = vpack.c.b16 %v1398, %v1394
  %v2247 = vpack.c.b16 %v1399, %v1395
  %v2248 = vpack.c.b16 %v1400, %v1396
  %v2249 = vpack.c.b16 %v1405, %v1401
  %v2250 = vpack.c.b16 %v1406, %v1402
  %v2251 = vpack.c.b16 %v1407, %v1403
  %v2252 = vpack.c.b16 %v1408, %v1404
  %v2253 = vpack.c.b16 %v1413, %v1409
  %v2254 = vpack.c.b16 %v1414, %v1410
  %v2255 = vpack.c.b16 %v1415, %v1411
  %v2256 = vpack.c.b16 %v1416, %v1412
  %v2257 = vpack.c.b16 %v1421, %v1417
  %v2258 = vpack.c.b16 %v1422, %v1418
  %v2259 = vpack.c.b16 %v1423, %v1419
  %v2260 = vpack.c.b16 %v1424, %v1420
  %v2261 = vpack.c.b16 %v1429, %v1425
  %v2262 = vpack.c.b16 %v1430, %v1426
  %v2263 = vpack.c.b16 %v1431, %v1427
  %v2264 = vpack.c.b16 %v1432, %v1428
  %v2265 = vpack.c.b16 %v1437, %v1433
  %v2266 = vpack.c.b16 %v1438, %v1434
  %v2267 = vpack.c.b16 %v1439, %v1435
  %v2268 = vpack.c.b16 %v1440, %v1436
  %v2269 = vpack.c.b16 %v1445, %v1441
  %v2270 = vpack.c.b16 %v1446, %v1442
  %v2271 = vpack.c.b16 %v1447, %v1443
  %v2272 = vpack.c.b16 %v1448, %v1444
  %v2273 = vpack.c.b16 %v1453, %v1449
  %v2274 = vpack.c.b16 %v1454, %v1450
  %v2275 = vpack.c.b16 %v1455, %v1451
  %v2276 = vpack.c.b16 %v1456, %v1452
  %v2277 = vpack.c.b16 %v1461, %v1457
  %v2278 = vpack.c.b16 %v1462, %v1458
  %v2279 = vpack.c.b16 %v1463, %v1459
  %v2280 = vpack.c.b16 %v1464, %v1460
  %v2281 = vpack.c.b16 %v1469, %v1465
  %v2282 = vpack.c.b16 %v1470, %v1466
  %v2283 = vpack.c.b16 %v1471, %v1467
  %v2284 = vpack.c.b16 %v1472, %v1468
  %v2285 = vpack.c.b16 %v1477, %v1473
  %v2286 = vpack.c.b16 %v1478, %v1474
  %v2287 = vpack.c.b16 %v1479, %v1475
  %v2288 = vpack.c.b16 %v1480, %v1476
  %v2289 = vpack.c.b16 %v1485, %v1481
  %v2290 = vpack.c.b16 %v1486, %v1482
  %v2291 = vpack.c.b16 %v1487, %v1483
  %v2292 = vpack.c.b16 %v1488, %v1484
  %v2293 = vpack.c.b16 %v1493, %v1489
  %v2294 = vpack.c.b16 %v1494, %v1490
  %v2295 = vpack.c.b16 %v1495, %v1491
  %v2296 = vpack.c.b16 %v1496, %v1492
  %v2297 = vpack.c.b16 %v1501, %v1497
  %v2298 = vpack.c.b16 %v1502, %v1498
  %v2299 = vpack.c.b16 %v1503, %v1499
  %v2300 = vpack.c.b16 %v1504, %v1500
  %v2301 = vpack.c.b16 %v1509, %v1505
  %v2302 = vpack.c.b16 %v1510, %v1506
  %v2303 = vpack.c.b16 %v1511, %v1507
  %v2304 = vpack.c.b16 %v1512, %v1508
  %v2305 = vpack.c.b16 %v1517, %v1513
  %v2306 = vpack.c.b16 %v1518, %v1514
  %v2307 = vpack.c.b16 %v1519, %v1515
  %v2308 = vpack.c.b16 %v1520, %v1516
  %v2309 = vpack.c.b16 %v1525, %v1521
  %v2310 = vpack.c.b16 %v1526, %v1522
  %v2311 = vpack.c.b16 %v1527, %v1523
  %v2312 = vpack.c.b16 %v1528, %v1524
  %v2313 = vpack.c.b16 %v1533, %v1529
  %v2314 = vpack.c.b16 %v1534, %v1530
  %v2315 = vpack.c.b16 %v1535, %v1531
  %v2316 = vpack.c.b16 %v1536, %v1532
  %v2317 = vpack.c.b16 %v1541, %v1537
  %v2318 = vpack.c.b16 %v1542, %v1538
  %v2319 = vpack.c.b16 %v1543, %v1539
  %v2320 = vpack.c.b16 %v1544, %v1540
  %v2321 = vpack.c.b16 %v1549, %v1545
  %v2322 = vpack.c.b16 %v1550, %v1546
  %v2323 = vpack.c.b16 %v1551, %v1547
  %v2324 = vpack.c.b16 %v1552, %v1548
  %v2325 = vpack.c.b16 %v1557, %v1553
  %v2326 = vpack.c.b16 %v1558, %v1554
  %v2327 = vpack.c.b16 %v1559, %v1555
  %v2328 = vpack.c.b16 %v1560, %v1556
  %v2329 = vpack.c.b16 %v1565, %v1561
  %v2330 = vpack.c.b16 %v1566, %v1562
  %v2331 = vpack.c.b16 %v1567, %v1563
  %v2332 = vpack.c.b16 %v1568, %v1564
  %v2333 = vpack.c.b16 %v1573, %v1569
  %v2334 = vpack.c.b16 %v1574, %v1570
  %v2335 = vpack.c.b16 %v1575, %v1571
  %v2336 = vpack.c.b16 %v1576, %v1572
  %v2337 = vpack.c.b16 %v1581, %v1577
  %v2338 = vpack.c.b16 %v1582, %v1578
  %v2339 = vpack.c.b16 %v1583, %v1579
  %v2340 = vpack.c.b16 %v1584, %v1580
  %v2341 = vpack.c.b16 %v1589, %v1585
  %v2342 = vpack.c.b16 %v1590, %v1586
  %v2343 = vpack.c.b16 %v1591, %v1587
  %v2344 = vpack.c.b16 %v1592, %v1588
  %v2345 = vpack.c.b16 %v1597, %v1593
  %v2346 = vpack.c.b16 %v1598, %v1594
  %v2347 = vpack.c.b16 %v1599, %v1595
  %v2348 = vpack.c.b16 %v1600, %v1596
  %v2349 = vpack.c.b16 %v1605, %v1601
  %v2350 = vpack.c.b16 %v1606, %v1602
  %v2351 = vpack.c.b16 %v1607, %v1603
  %v2352 = vpack.c.b16 %v1608, %v1604
  %v2353 = vpack.c.b16 %v1613, %v1609
  %v2354 = vpack.c.b16 %v1614, %v1610
  %v2355 = vpack.c.b16 %v1615, %v1611
  %v2356 = vpack.c.b16 %v1616, %v1612
  %v2357 = vpack.c.b16 %v1621, %v1617
  %v2358 = vpack.c.b16 %v1622, %v1618
  %v2359 = vpack.c.b16 %v1623, %v1619
  %v2360 = vpack.c.b16 %v1624, %v1620
  %v2361 = vpack.c.b16 %v1629, %v1625
  %v2362 = vpack.c.b16 %v1630, %v1626
  %v2363 = vpack.c.b16 %v1631, %v1627
  %v2364 = vpack.c.b16 %v1632, %v1628
  %v2365 = vpack.c.b16 %v1637, %v1633
  %v2366 = vpack.c.b16 %v1638, %v1634
  %v2367 = vpack.c.b16 %v1639, %v1635
  %v2368 = vpack.c.b16 %v1640, %v1636
  %v2369 = vpack.c.b16 %v1645, %v1641
  %v2370 = vpack.c.b16 %v1646, %v1642
  %v2371 = vpack.c.b16 %v1647, %v1643
  %v2372 = vpack.c.b16 %v1648, %v1644
  %v2373 = vpack.c.b16 %v1653, %v1649
  %v2374 = vpack.c.b16 %v1654, %v1650
  %v2375 = vpack.c.b16 %v1655, %v1651
  %v2376 = vpack.c.b16 %v1656, %v1652
  %v2377 = vpack.c.b16 %v1661, %v1657
  %v2378 = vpack.c.b16 %v1662, %v1658
  %v2379 = vpack.c.b16 %v1663, %v1659
  %v2380 = vpack.c.b16 %v1664, %v1660
  %v2381 = vpack.c.b16 %v1669, %v1665
  %v2382 = vpack.c.b16 %v1670, %v1666
  %v2383 = vpack.c.b16 %v1671, %v1667
  %v2384 = vpack.c.b16 %v1672, %v1668
  %v2385 = vpack.c.b16 %v1677, %v1673
  %v2386 = vpack.c.b16 %v1678, %v1674
  %v2387 = vpack.c.b16 %v1679, %v1675
  %v2388 = vpack.c.b16 %v1680, %v1676
  %v2389 = vpack.c.b16 %v1685, %v1681
  %v2390 = vpack.c.b16 %v1686, %v1682
  %v2391 = vpack.c.b16 %v1687, %v1683
  %v2392 = vpack.c.b16 %v1688, %v1684
  %v2393 = vpack.c.b16 %v1693, %v1689
  %v2394 = vpack.c.b16 %v1694, %v1690
  %v2395 = vpack.c.b16 %v1695, %v1691
  %v2396 = vpack.c.b16 %v1696, %v1692
  %v2397 = vpack.c.b16 %v1701, %v1697
  %v2398 = vpack.c.b16 %v1702, %v1698
  %v2399 = vpack.c.b16 %v1703, %v1699
  %v2400 = vpack.c.b16 %v1704, %v1700
  %v2401 = vpack.c.b16 %v1709, %v1705
  %v2402 = vpack.c.b16 %v1710, %v1706
  %v2403 = vpack.c.b16 %v1711, %v1707
  %v2404 = vpack.c.b16 %v1712, %v1708
  %v2405 = vpack.c.b16 %v1717, %v1713
  %v2406 = vpack.c.b16 %v1718, %v1714
  %v2407 = vpack.c.b16 %v1719, %v1715
  %v2408 = vpack.c.b16 %v1720, %v1716
  %v2409 = vpack.c.b16 %v1725, %v1721
  %v2410 = vpack.c.b16 %v1726, %v1722
  %v2411 = vpack.c.b16 %v1727, %v1723
  %v2412 = vpack.c.b16 %v1728, %v1724
  %v2413 = vpack.c.b16 %v1733, %v1729
  %v2414 = vpack.c.b16 %v1734, %v1730
  %v2415 = vpack.c.b16 %v1735, %v1731
  %v2416 = vpack.c.b16 %v1736, %v1732
  %v2417 = vpack.c.b16 %v1741, %v1737
  %v2418 = vpack.c.b16 %v1742, %v1738
  %v2419 = vpack.c.b16 %v1743, %v1739
  %v2420 = vpack.c.b16 %v1744, %v1740
  %v2421 = vpack.c.b16 %v1749, %v1745
  %v2422 = vpack.c.b16 %v1750, %v1746
  %v2423 = vpack.c.b16 %v1751, %v1747
  %v2424 = vpack.c.b16 %v1752, %v1748
  %v2425 = vpack.c.b16 %v1757, %v1753
  %v2426 = vpack.c.b16 %v1758, %v1754
  %v2427 = vpack.c.b16 %v1759, %v1755
  %v2428 = vpack.c.b16 %v1760, %v1756
  %v2429 = vpack.c.b16 %v1765, %v1761
  %v2430 = vpack.c.b16 %v1766, %v1762
  %v2431 = vpack.c.b16 %v1767, %v1763
  %v2432 = vpack.c.b16 %v1768, %v1764
  %v2433 = vpack.c.b16 %v1773, %v1769
  %v2434 = vpack.c.b16 %v1774, %v1770
  %v2435 = vpack.c.b16 %v1775, %v1771
  %v2436 = vpack.c.b16 %v1776, %v1772
  %v2437 = vpack.c.b16 %v1781, %v1777
  %v2438 = vpack.c.b16 %v1782, %v1778
  %v2439 = vpack.c.b16 %v1783, %v1779
  %v2440 = vpack.c.b16 %v1784, %v1780
  %v2441 = vpack.c.b16 %v1789, %v1785
  %v2442 = vpack.c.b16 %v1790, %v1786
  %v2443 = vpack.c.b16 %v1791, %v1787
  %v2444 = vpack.c.b16 %v1792, %v1788
  %v2445 = vpack.c.b16 %v1797, %v1793
  %v2446 = vpack.c.b16 %v1798, %v1794
  %v2447 = vpack.c.b16 %v1799, %v1795
  %v2448 = vpack.c.b16 %v1800, %v1796
  %v2449 = vpack.c.b16 %v1805, %v1801
  %v2450 = vpack.c.b16 %v1806, %v1802
  %v2451 = vpack.c.b16 %v1807, %v1803
  %v2452 = vpack.c.b16 %v1808, %v1804
  %v2453 = vpack.c.b16 %v1813, %v1809
  %v2454 = vpack.c.b16 %v1814, %v1810
  %v2455 = vpack.c.b16 %v1815, %v1811
  %v2456 = vpack.c.b16 %v1816, %v1812
  %v2457 = vpack.c.b16 %v1821, %v1817
  %v2458 = vpack.c.b16 %v1822, %v1818
  %v2459 = vpack.c.b16 %v1823, %v1819
  %v2460 = vpack.c.b16 %v1824, %v1820
  %v2461 = vpack.c.b16 %v1829, %v1825
  %v2462 = vpack.c.b16 %v1830, %v1826
  %v2463 = vpack.c.b16 %v1831, %v1827
  %v2464 = vpack.c.b16 %v1832, %v1828
  %v2465 = vpack.c.b16 %v1837, %v1833
  %v2466 = vpack.c.b16 %v1838, %v1834
  %v2467 = vpack.c.b16 %v1839, %v1835
  %v2468 = vpack.c.b16 %v1840, %v1836
  %v2469 = vpack.c.b16 %v1845, %v1841
  %v2470 = vpack.c.b16 %v1846, %v1842
  %v2471 = vpack.c.b16 %v1847, %v1843
  %v2472 = vpack.c.b16 %v1848, %v1844
  %v2473 = vpack.c.b16 %v1853, %v1849
  %v2474 = vpack.c.b16 %v1854, %v1850
  %v2475 = vpack.c.b16 %v1855, %v1851
  %v2476 = vpack.c.b16 %v1856, %v1852
  %v2477 = vpack.c.b16 %v1861, %v1857
  %v2478 = vpack.c.b16 %v1862, %v1858
  %v2479 = vpack.c.b16 %v1863, %v1859
  %v2480 = vpack.c.b16 %v1864, %v1860
  %v2481 = vpack.c.b16 %v1869, %v1865
  %v2482 = vpack.c.b16 %v1870, %v1866
  %v2483 = vpack.c.b16 %v1871, %v1867
  %v2484 = vpack.c.b16 %v1872, %v1868
  %v2485 = vpack.c.b16 %v1877, %v1873
  %v2486 = vpack.c.b16 %v1878, %v1874
  %v2487 = vpack.c.b16 %v1879, %v1875
  %v2488 = vpack.c.b16 %v1880, %v1876
  %v2489 = vpack.c.b16 %v1885, %v1881
  %v2490 = vpack.c.b16 %v1886, %v1882
  %v2491 = vpack.c.b16 %v1887, %v1883
  %v2492 = vpack.c.b16 %v1888, %v1884
  %v2493 = vpack.c.b16 %v1893, %v1889
  %v2494 = vpack.c.b16 %v1894, %v1890
  %v2495 = vpack.c.b16 %v1895, %v1891
  %v2496 = vpack.c.b16 %v1896, %v1892
  %v2497 = vpack.c.b16 %v1901, %v1897
  %v2498 = vpack.c.b16 %v1902, %v1898
  %v2499 = vpack.c.b16 %v1903, %v1899
  %v2500 = vpack.c.b16 %v1904, %v1900
  %v2501 = vpack.c.b16 %v1909, %v1905
  %v2502 = vpack.c.b16 %v1910, %v1906
  %v2503 = vpack.c.b16 %v1911, %v1907
  %v2504 = vpack.c.b16 %v1912, %v1908
  %v2505 = vpack.c.b16 %v1917, %v1913
  %v2506 = vpack.c.b16 %v1918, %v1914
  %v2507 = vpack.c.b16 %v1919, %v1915
  %v2508 = vpack.c.b16 %v1920, %v1916
  %v2509 = vpack.c.b16 %v1925, %v1921
  %v2510 = vpack.c.b16 %v1926, %v1922
  %v2511 = vpack.c.b16 %v1927, %v1923
  %v2512 = vpack.c.b16 %v1928, %v1924
  %v2513 = vpack.c.b16 %v1933, %v1929
  %v2514 = vpack.c.b16 %v1934, %v1930
  %v2515 = vpack.c.b16 %v1935, %v1931
  %v2516 = vpack.c.b16 %v1936, %v1932
  %v2517 = vpack.c.b16 %v1941, %v1937
  %v2518 = vpack.c.b16 %v1942, %v1938
  %v2519 = vpack.c.b16 %v1943, %v1939
  %v2520 = vpack.c.b16 %v1944, %v1940
  %v2521 = vpack.c.b16 %v1949, %v1945
  %v2522 = vpack.c.b16 %v1950, %v1946
  %v2523 = vpack.c.b16 %v1951, %v1947
  %v2524 = vpack.c.b16 %v1952, %v1948
  %v2525 = vpack.c.b16 %v1957, %v1953
  %v2526 = vpack.c.b16 %v1958, %v1954
  %v2527 = vpack.c.b16 %v1959, %v1955
  %v2528 = vpack.c.b16 %v1960, %v1956
  %v2529 = vpack.c.b16 %v1965, %v1961
  %v2530 = vpack.c.b16 %v1966, %v1962
  %v2531 = vpack.c.b16 %v1967, %v1963
  %v2532 = vpack.c.b16 %v1968, %v1964
  %v2533 = vpack.c.b16 %v1973, %v1969
  %v2534 = vpack.c.b16 %v1974, %v1970
  %v2535 = vpack.c.b16 %v1975, %v1971
  %v2536 = vpack.c.b16 %v1976, %v1972
  %v2537 = vpack.c.b16 %v1981, %v1977
  %v2538 = vpack.c.b16 %v1982, %v1978
  %v2539 = vpack.c.b16 %v1983, %v1979
  %v2540 = vpack.c.b16 %v1984, %v1980
  %v2541 = vpack.c.b16 %v1989, %v1985
  %v2542 = vpack.c.b16 %v1990, %v1986
  %v2543 = vpack.c.b16 %v1991, %v1987
  %v2544 = vpack.c.b16 %v1992, %v1988
  %v2545 = vpack.c.b16 %v1997, %v1993
  %v2546 = vpack.c.b16 %v1998, %v1994
  %v2547 = vpack.c.b16 %v1999, %v1995
  %v2548 = vpack.c.b16 %v2000, %v1996
  %v2549 = vpack.c.b16 %v2005, %v2001
  %v2550 = vpack.c.b16 %v2006, %v2002
  %v2551 = vpack.c.b16 %v2007, %v2003
  %v2552 = vpack.c.b16 %v2008, %v2004
  %v2553 = vpack.c.b16 %v2013, %v2009
  %v2554 = vpack.c.b16 %v2014, %v2010
  %v2555 = vpack.c.b16 %v2015, %v2011
  %v2556 = vpack.c.b16 %v2016, %v2012
  %v2557 = vpack.c.b16 %v2021, %v2017
  %v2558 = vpack.c.b16 %v2022, %v2018
  %v2559 = vpack.c.b16 %v2023, %v2019
  %v2560 = vpack.c.b16 %v2024, %v2020
  %v2561 = vpack.c.b16 %v2029, %v2025
  %v2562 = vpack.c.b16 %v2030, %v2026
  %v2563 = vpack.c.b16 %v2031, %v2027
  %v2564 = vpack.c.b16 %v2032, %v2028
  %v2565 = vpack.c.b16 %v2037, %v2033
  %v2566 = vpack.c.b16 %v2038, %v2034
  %v2567 = vpack.c.b16 %v2039, %v2035
  %v2568 = vpack.c.b16 %v2040, %v2036
  %v2569 = vpack.c.b16 %v2045, %v2041
  %v2570 = vpack.c.b16 %v2046, %v2042
  %v2571 = vpack.c.b16 %v2047, %v2043
  %v2572 = vpack.c.b16 %v2048, %v2044
  %v2573 = vpack.c.b16 %v2053, %v2049
  %v2574 = vpack.c.b16 %v2054, %v2050
  %v2575 = vpack.c.b16 %v2055, %v2051
  %v2576 = vpack.c.b16 %v2056, %v2052
  %v2577 = vpack.c.b16 %v2061, %v2057
  %v2578 = vpack.c.b16 %v2062, %v2058
  %v2579 = vpack.c.b16 %v2063, %v2059
  %v2580 = vpack.c.b16 %v2064, %v2060
  %v2581 = vpack.c.b16 %v2069, %v2065
  %v2582 = vpack.c.b16 %v2070, %v2066
  %v2583 = vpack.c.b16 %v2071, %v2067
  %v2584 = vpack.c.b16 %v2072, %v2068
  %v2585 = vpack.c.b16 %v2077, %v2073
  %v2586 = vpack.c.b16 %v2078, %v2074
  %v2587 = vpack.c.b16 %v2079, %v2075
  %v2588 = vpack.c.b16 %v2080, %v2076
  %v2589 = vpack.c.b16 %v2085, %v2081
  %v2590 = vpack.c.b16 %v2086, %v2082
  %v2591 = vpack.c.b16 %v2087, %v2083
  %v2592 = vpack.c.b16 %v2088, %v2084
  %v2593 = vpack.c.b16 %v2093, %v2089
  %v2594 = vpack.c.b16 %v2094, %v2090
  %v2595 = vpack.c.b16 %v2095, %v2091
  %v2596 = vpack.c.b16 %v2096, %v2092
  %v2597 = vpack.c.b16 %v2101, %v2097
  %v2598 = vpack.c.b16 %v2102, %v2098
  %v2599 = vpack.c.b16 %v2103, %v2099
  %v2600 = vpack.c.b16 %v2104, %v2100
  %v2601 = vpack.c.b16 %v2109, %v2105
  %v2602 = vpack.c.b16 %v2110, %v2106
  %v2603 = vpack.c.b16 %v2111, %v2107
  %v2604 = vpack.c.b16 %v2112, %v2108
  %v2605 = vpack.c.b16 %v2113, %v2113
  %v2606 = vpack.c.b16 %v2114, %v2114
  %v2607 = vpack.c.b16 %v2115, %v2115
  %v2608 = vpack.c.b16 %v2116, %v2116
  %vm3097 = vcmask 326656
  %v3099 = vsel %vm3097, %v134, 0
  %vm3101 = vcmask 1043456
  %v3103 = vsel %vm3101, %v2605, 0
  %v3106 = vsel %vm3101, %v2606, 0
  %v3109 = vsel %vm3101, %v2607, 0
  %v3112 = vsel %vm3101, %v2608, 0
  %3114 = vmatprep.subr.bf16.mxu0 %v2118
  %3115 = vmatpush1.bf16.msra.mxu0 %v2117
  %3116 = vmatprep.subr.bf16.mxu0 %v2122
  %3117 = vmatpush1.bf16.msra.mxu0 %v2121
  %3118 = vmatprep.subr.bf16.mxu0 %v2126
  %3119 = vmatpush1.bf16.msra.mxu0 %v2125
  %3120 = vmatprep.subr.bf16.mxu0 %v2130
  %3121 = vmatpush1.bf16.msra.mxu0 %v2129
  %3122 = vmatprep.subr.bf16.mxu0 %v2134
  %3123 = vmatpush1.bf16.msra.mxu0 %v2133
  %3124 = vmatprep.subr.bf16.mxu0 %v2138
  %3125 = vmatpush1.bf16.msra.mxu0 %v2137
  %3126 = vmatprep.subr.bf16.mxu0 %v2142
  %3127 = vmatpush1.bf16.msra.mxu0 %v2141
  %3128 = vmatprep.subr.bf16.mxu0 %v2146
  %3129 = vmatpush1.bf16.msra.mxu0 %v2145
  %3130 = vmatprep.subr.bf16.mxu0 %v2150
  %3131 = vmatpush1.bf16.msra.mxu0 %v2149
  %3132 = vmatprep.subr.bf16.mxu0 %v2154
  %3133 = vmatpush1.bf16.msra.mxu0 %v2153
  %3134 = vmatprep.subr.bf16.mxu0 %v2158
  %3135 = vmatpush1.bf16.msra.mxu0 %v2157
  %3136 = vmatprep.subr.bf16.mxu0 %v2162
  %3137 = vmatpush1.bf16.msra.mxu0 %v2161
  %3138 = vmatprep.subr.bf16.mxu0 %v2166
  %3139 = vmatpush1.bf16.msra.mxu0 %v2165
  %3140 = vmatprep.subr.bf16.mxu0 %v2170
  %3141 = vmatpush1.bf16.msra.mxu0 %v2169
  %3142 = vmatprep.subr.bf16.mxu0 %v2174
  %3143 = vmatpush1.bf16.msra.mxu0 %v2173
  %3144 = vmatprep.subr.bf16.mxu0 %v2178
  %3145 = vmatpush1.bf16.msra.mxu0 %v2177
  %3146 = vmatprep.mubr.bf16.mxu0 %v120
  %3147 = vmatmul.mubr.bf16.gmra.mrb[0].mxu0 %v119
  %v3148 = vpop.f32.mrb[0].mxu0
  %v3149 = vadd.f32 %v630, %v3148
  %v3150 = vpop.f32.mrb[0].mxu0
  %v3151 = vadd.f32 %v634, %v3150
  %v3152 = vpop.f32.mrb[0].mxu0
  %v3153 = vpop.f32.mrb[0].mxu0
  %3154 = vdwg.mxu0
  %3155 = vmatprep.subr.bf16.mxu0 %v2182
  %3156 = vmatpush1.bf16.msra.mxu0 %v2181
  %3157 = vmatprep.subr.bf16.mxu0 %v2186
  %3158 = vmatpush1.bf16.msra.mxu0 %v2185
  %3159 = vmatprep.subr.bf16.mxu0 %v2190
  %3160 = vmatpush1.bf16.msra.mxu0 %v2189
  %3161 = vmatprep.subr.bf16.mxu0 %v2194
  %3162 = vmatpush1.bf16.msra.mxu0 %v2193
  %3163 = vmatprep.subr.bf16.mxu0 %v2198
  %3164 = vmatpush1.bf16.msra.mxu0 %v2197
  %3165 = vmatprep.subr.bf16.mxu0 %v2202
  %3166 = vmatpush1.bf16.msra.mxu0 %v2201
  %3167 = vmatprep.subr.bf16.mxu0 %v2206
  %3168 = vmatpush1.bf16.msra.mxu0 %v2205
  %3169 = vmatprep.subr.bf16.mxu0 %v2210
  %3170 = vmatpush1.bf16.msra.mxu0 %v2209
  %3171 = vmatprep.subr.bf16.mxu0 %v2214
  %3172 = vmatpush1.bf16.msra.mxu0 %v2213
  %3173 = vmatprep.subr.bf16.mxu0 %v2218
  %3174 = vmatpush1.bf16.msra.mxu0 %v2217
  %3175 = vmatprep.subr.bf16.mxu0 %v2222
  %3176 = vmatpush1.bf16.msra.mxu0 %v2221
  %3177 = vmatprep.subr.bf16.mxu0 %v2226
  %3178 = vmatpush1.bf16.msra.mxu0 %v2225
  %3179 = vmatprep.subr.bf16.mxu0 %v2230
  %3180 = vmatpush1.bf16.msra.mxu0 %v2229
  %3181 = vmatprep.subr.bf16.mxu0 %v2234
  %3182 = vmatpush1.bf16.msra.mxu0 %v2233
  %3183 = vmatprep.subr.bf16.mxu0 %v2238
  %3184 = vmatpush1.bf16.msra.mxu0 %v2237
  %3185 = vmatprep.subr.bf16.mxu0 %v2242
  %3186 = vmatpush1.bf16.msra.mxu0 %v2241
  %3187 = vmatprep.mubr.bf16.mxu0 %v122
  %3188 = vmatmul.mubr.bf16.gmra.mrb[0].mxu0 %v121
  %v3189 = vpop.f32.mrb[0].mxu0
  %v3190 = vadd.f32 %v3149, %v3189
  %v3191 = vpop.f32.mrb[0].mxu0
  %v3192 = vadd.f32 %v3151, %v3191
  %v3193 = vpop.f32.mrb[0].mxu0
  %v3194 = vpop.f32.mrb[0].mxu0
  %3195 = vdwg.mxu0
  %3196 = vmatprep.subr.bf16.mxu0 %v2246
  %3197 = vmatpush1.bf16.msra.mxu0 %v2245
  %3198 = vmatprep.subr.bf16.mxu0 %v2250
  %3199 = vmatpush1.bf16.msra.mxu0 %v2249
  %3200 = vmatprep.subr.bf16.mxu0 %v2254
  %3201 = vmatpush1.bf16.msra.mxu0 %v2253
  %3202 = vmatprep.subr.bf16.mxu0 %v2258
  %3203 = vmatpush1.bf16.msra.mxu0 %v2257
  %3204 = vmatprep.subr.bf16.mxu0 %v2262
  %3205 = vmatpush1.bf16.msra.mxu0 %v2261
  %3206 = vmatprep.subr.bf16.mxu0 %v2266
  %3207 = vmatpush1.bf16.msra.mxu0 %v2265
  %3208 = vmatprep.subr.bf16.mxu0 %v2270
  %3209 = vmatpush1.bf16.msra.mxu0 %v2269
  %3210 = vmatprep.subr.bf16.mxu0 %v2274
  %3211 = vmatpush1.bf16.msra.mxu0 %v2273
  %3212 = vmatprep.subr.bf16.mxu0 %v2278
  %3213 = vmatpush1.bf16.msra.mxu0 %v2277
  %3214 = vmatprep.subr.bf16.mxu0 %v2282
  %3215 = vmatpush1.bf16.msra.mxu0 %v2281
  %3216 = vmatprep.subr.bf16.mxu0 %v2286
  %3217 = vmatpush1.bf16.msra.mxu0 %v2285
  %3218 = vmatprep.subr.bf16.mxu0 %v2290
  %3219 = vmatpush1.bf16.msra.mxu0 %v2289
  %3220 = vmatprep.subr.bf16.mxu0 %v2294
  %3221 = vmatpush1.bf16.msra.mxu0 %v2293
  %3222 = vmatprep.subr.bf16.mxu0 %v2298
  %3223 = vmatpush1.bf16.msra.mxu0 %v2297
  %3224 = vmatprep.subr.bf16.mxu0 %v2302
  %3225 = vmatpush1.bf16.msra.mxu0 %v2301
  %3226 = vmatprep.subr.bf16.mxu0 %v2306
  %3227 = vmatpush1.bf16.msra.mxu0 %v2305
  %3228 = vmatprep.mubr.bf16.mxu0 %v124
  %3229 = vmatmul.mubr.bf16.gmra.mrb[0].mxu0 %v123
  %v3230 = vpop.f32.mrb[0].mxu0
  %v3231 = vadd.f32 %v3190, %v3230
  %v3232 = vpop.f32.mrb[0].mxu0
  %v3233 = vadd.f32 %v3192, %v3232
  %v3234 = vpop.f32.mrb[0].mxu0
  %v3235 = vpop.f32.mrb[0].mxu0
  %3236 = vdwg.mxu0
  %3237 = vmatprep.subr.bf16.mxu0 %v2310
  %3238 = vmatpush1.bf16.msra.mxu0 %v2309
  %3239 = vmatprep.subr.bf16.mxu0 %v2314
  %3240 = vmatpush1.bf16.msra.mxu0 %v2313
  %3241 = vmatprep.subr.bf16.mxu0 %v2318
  %3242 = vmatpush1.bf16.msra.mxu0 %v2317
  %3243 = vmatprep.subr.bf16.mxu0 %v2322
  %3244 = vmatpush1.bf16.msra.mxu0 %v2321
  %3245 = vmatprep.subr.bf16.mxu0 %v2326
  %3246 = vmatpush1.bf16.msra.mxu0 %v2325
  %3247 = vmatprep.subr.bf16.mxu0 %v2330
  %3248 = vmatpush1.bf16.msra.mxu0 %v2329
  %3249 = vmatprep.subr.bf16.mxu0 %v2334
  %3250 = vmatpush1.bf16.msra.mxu0 %v2333
  %3251 = vmatprep.subr.bf16.mxu0 %v2338
  %3252 = vmatpush1.bf16.msra.mxu0 %v2337
  %3253 = vmatprep.subr.bf16.mxu0 %v2342
  %3254 = vmatpush1.bf16.msra.mxu0 %v2341
  %3255 = vmatprep.subr.bf16.mxu0 %v2346
  %3256 = vmatpush1.bf16.msra.mxu0 %v2345
  %3257 = vmatprep.subr.bf16.mxu0 %v2350
  %3258 = vmatpush1.bf16.msra.mxu0 %v2349
  %3259 = vmatprep.subr.bf16.mxu0 %v2354
  %3260 = vmatpush1.bf16.msra.mxu0 %v2353
  %3261 = vmatprep.subr.bf16.mxu0 %v2358
  %3262 = vmatpush1.bf16.msra.mxu0 %v2357
  %3263 = vmatprep.subr.bf16.mxu0 %v2362
  %3264 = vmatpush1.bf16.msra.mxu0 %v2361
  %3265 = vmatprep.subr.bf16.mxu0 %v2366
  %3266 = vmatpush1.bf16.msra.mxu0 %v2365
  %3267 = vmatprep.subr.bf16.mxu0 %v2370
  %3268 = vmatpush1.bf16.msra.mxu0 %v2369
  %3269 = vmatprep.mubr.bf16.mxu0 %v126
  %3270 = vmatmul.mubr.bf16.gmra.mrb[0].mxu0 %v125
  %v3271 = vpop.f32.mrb[0].mxu0
  %v3272 = vadd.f32 %v3231, %v3271
  %v3273 = vpop.f32.mrb[0].mxu0
  %v3274 = vadd.f32 %v3233, %v3273
  %v3275 = vpop.f32.mrb[0].mxu0
  %v3276 = vpop.f32.mrb[0].mxu0
  %3277 = vdwg.mxu0
  %3278 = vmatprep.subr.bf16.mxu0 %v2374
  %3279 = vmatpush1.bf16.msra.mxu0 %v2373
  %3280 = vmatprep.subr.bf16.mxu0 %v2378
  %3281 = vmatpush1.bf16.msra.mxu0 %v2377
  %3282 = vmatprep.subr.bf16.mxu0 %v2382
  %3283 = vmatpush1.bf16.msra.mxu0 %v2381
  %3284 = vmatprep.subr.bf16.mxu0 %v2386
  %3285 = vmatpush1.bf16.msra.mxu0 %v2385
  %3286 = vmatprep.subr.bf16.mxu0 %v2390
  %3287 = vmatpush1.bf16.msra.mxu0 %v2389
  %3288 = vmatprep.subr.bf16.mxu0 %v2394
  %3289 = vmatpush1.bf16.msra.mxu0 %v2393
  %3290 = vmatprep.subr.bf16.mxu0 %v2398
  %3291 = vmatpush1.bf16.msra.mxu0 %v2397
  %3292 = vmatprep.subr.bf16.mxu0 %v2402
  %3293 = vmatpush1.bf16.msra.mxu0 %v2401
  %3294 = vmatprep.subr.bf16.mxu0 %v2406
  %3295 = vmatpush1.bf16.msra.mxu0 %v2405
  %3296 = vmatprep.subr.bf16.mxu0 %v2410
  %3297 = vmatpush1.bf16.msra.mxu0 %v2409
  %3298 = vmatprep.subr.bf16.mxu0 %v2414
  %3299 = vmatpush1.bf16.msra.mxu0 %v2413
  %3300 = vmatprep.subr.bf16.mxu0 %v2418
  %3301 = vmatpush1.bf16.msra.mxu0 %v2417
  %3302 = vmatprep.subr.bf16.mxu0 %v2422
  %3303 = vmatpush1.bf16.msra.mxu0 %v2421
  %3304 = vmatprep.subr.bf16.mxu0 %v2426
  %3305 = vmatpush1.bf16.msra.mxu0 %v2425
  %3306 = vmatprep.subr.bf16.mxu0 %v2430
  %3307 = vmatpush1.bf16.msra.mxu0 %v2429
  %3308 = vmatprep.subr.bf16.mxu0 %v2434
  %3309 = vmatpush1.bf16.msra.mxu0 %v2433
  %3310 = vmatprep.mubr.bf16.mxu0 %v128
  %3311 = vmatmul.mubr.bf16.gmra.mrb[0].mxu0 %v127
  %v3312 = vpop.f32.mrb[0].mxu0
  %v3313 = vadd.f32 %v3272, %v3312
  %v3314 = vpop.f32.mrb[0].mxu0
  %v3315 = vadd.f32 %v3274, %v3314
  %v3316 = vpop.f32.mrb[0].mxu0
  %v3317 = vpop.f32.mrb[0].mxu0
  %3318 = vdwg.mxu0
  %3319 = vmatprep.subr.bf16.mxu0 %v2438
  %3320 = vmatpush1.bf16.msra.mxu0 %v2437
  %3321 = vmatprep.subr.bf16.mxu0 %v2442
  %3322 = vmatpush1.bf16.msra.mxu0 %v2441
  %3323 = vmatprep.subr.bf16.mxu0 %v2446
  %3324 = vmatpush1.bf16.msra.mxu0 %v2445
  %3325 = vmatprep.subr.bf16.mxu0 %v2450
  %3326 = vmatpush1.bf16.msra.mxu0 %v2449
  %3327 = vmatprep.subr.bf16.mxu0 %v2454
  %3328 = vmatpush1.bf16.msra.mxu0 %v2453
  %3329 = vmatprep.subr.bf16.mxu0 %v2458
  %3330 = vmatpush1.bf16.msra.mxu0 %v2457
  %3331 = vmatprep.subr.bf16.mxu0 %v2462
  %3332 = vmatpush1.bf16.msra.mxu0 %v2461
  %3333 = vmatprep.subr.bf16.mxu0 %v2466
  %3334 = vmatpush1.bf16.msra.mxu0 %v2465
  %3335 = vmatprep.subr.bf16.mxu0 %v2470
  %3336 = vmatpush1.bf16.msra.mxu0 %v2469
  %3337 = vmatprep.subr.bf16.mxu0 %v2474
  %3338 = vmatpush1.bf16.msra.mxu0 %v2473
  %3339 = vmatprep.subr.bf16.mxu0 %v2478
  %3340 = vmatpush1.bf16.msra.mxu0 %v2477
  %3341 = vmatprep.subr.bf16.mxu0 %v2482
  %3342 = vmatpush1.bf16.msra.mxu0 %v2481
  %3343 = vmatprep.subr.bf16.mxu0 %v2486
  %3344 = vmatpush1.bf16.msra.mxu0 %v2485
  %3345 = vmatprep.subr.bf16.mxu0 %v2490
  %3346 = vmatpush1.bf16.msra.mxu0 %v2489
  %3347 = vmatprep.subr.bf16.mxu0 %v2494
  %3348 = vmatpush1.bf16.msra.mxu0 %v2493
  %3349 = vmatprep.subr.bf16.mxu0 %v2498
  %3350 = vmatpush1.bf16.msra.mxu0 %v2497
  %3351 = vmatprep.mubr.bf16.mxu0 %v130
  %3352 = vmatmul.mubr.bf16.gmra.mrb[0].mxu0 %v129
  %v3353 = vpop.f32.mrb[0].mxu0
  %v3354 = vadd.f32 %v3313, %v3353
  %v3355 = vpop.f32.mrb[0].mxu0
  %v3356 = vadd.f32 %v3315, %v3355
  %v3357 = vpop.f32.mrb[0].mxu0
  %v3358 = vpop.f32.mrb[0].mxu0
  %3359 = vdwg.mxu0
  %3360 = vmatprep.subr.bf16.mxu0 %v2502
  %3361 = vmatpush1.bf16.msra.mxu0 %v2501
  %3362 = vmatprep.subr.bf16.mxu0 %v2506
  %3363 = vmatpush1.bf16.msra.mxu0 %v2505
  %3364 = vmatprep.subr.bf16.mxu0 %v2510
  %3365 = vmatpush1.bf16.msra.mxu0 %v2509
  %3366 = vmatprep.subr.bf16.mxu0 %v2514
  %3367 = vmatpush1.bf16.msra.mxu0 %v2513
  %3368 = vmatprep.subr.bf16.mxu0 %v2518
  %3369 = vmatpush1.bf16.msra.mxu0 %v2517
  %3370 = vmatprep.subr.bf16.mxu0 %v2522
  %3371 = vmatpush1.bf16.msra.mxu0 %v2521
  %3372 = vmatprep.subr.bf16.mxu0 %v2526
  %3373 = vmatpush1.bf16.msra.mxu0 %v2525
  %3374 = vmatprep.subr.bf16.mxu0 %v2530
  %3375 = vmatpush1.bf16.msra.mxu0 %v2529
  %3376 = vmatprep.subr.bf16.mxu0 %v2534
  %3377 = vmatpush1.bf16.msra.mxu0 %v2533
  %3378 = vmatprep.subr.bf16.mxu0 %v2538
  %3379 = vmatpush1.bf16.msra.mxu0 %v2537
  %3380 = vmatprep.subr.bf16.mxu0 %v2542
  %3381 = vmatpush1.bf16.msra.mxu0 %v2541
  %3382 = vmatprep.subr.bf16.mxu0 %v2546
  %3383 = vmatpush1.bf16.msra.mxu0 %v2545
  %3384 = vmatprep.subr.bf16.mxu0 %v2550
  %3385 = vmatpush1.bf16.msra.mxu0 %v2549
  %3386 = vmatprep.subr.bf16.mxu0 %v2554
  %3387 = vmatpush1.bf16.msra.mxu0 %v2553
  %3388 = vmatprep.subr.bf16.mxu0 %v2558
  %3389 = vmatpush1.bf16.msra.mxu0 %v2557
  %3390 = vmatprep.subr.bf16.mxu0 %v2562
  %3391 = vmatpush1.bf16.msra.mxu0 %v2561
  %3392 = vmatprep.mubr.bf16.mxu0 %v132
  %3393 = vmatmul.mubr.bf16.gmra.mrb[0].mxu0 %v131
  %v3394 = vpop.f32.mrb[0].mxu0
  %v3395 = vadd.f32 %v3354, %v3394
  %v3396 = vpop.f32.mrb[0].mxu0
  %v3397 = vadd.f32 %v3356, %v3396
  %v3398 = vpop.f32.mrb[0].mxu0
  %v3399 = vpop.f32.mrb[0].mxu0
  %3400 = vdwg.mxu0
  %3401 = vmatprep.subr.bf16.mxu0 %v2566
  %3402 = vmatpush1.bf16.msra.mxu0 %v2565
  %3403 = vmatprep.subr.bf16.mxu0 %v2570
  %3404 = vmatpush1.bf16.msra.mxu0 %v2569
  %3405 = vmatprep.subr.bf16.mxu0 %v2574
  %3406 = vmatpush1.bf16.msra.mxu0 %v2573
  %3407 = vmatprep.subr.bf16.mxu0 %v2578
  %3408 = vmatpush1.bf16.msra.mxu0 %v2577
  %3409 = vmatprep.subr.bf16.mxu0 %v2582
  %3410 = vmatpush1.bf16.msra.mxu0 %v2581
  %3411 = vmatprep.subr.bf16.mxu0 %v2586
  %3412 = vmatpush1.bf16.msra.mxu0 %v2585
  %3413 = vmatprep.subr.bf16.mxu0 %v2590
  %3414 = vmatpush1.bf16.msra.mxu0 %v2589
  %3415 = vmatprep.subr.bf16.mxu0 %v2594
  %3416 = vmatpush1.bf16.msra.mxu0 %v2593
  %3417 = vmatprep.subr.bf16.mxu0 %v2598
  %3418 = vmatpush1.bf16.msra.mxu0 %v2597
  %3419 = vmatprep.subr.bf16.mxu0 %v2602
  %3420 = vmatpush1.bf16.msra.mxu0 %v2601
  %3421 = vmatprep.subr.bf16.mxu0 %v3106
  %3422 = vmatpush1.bf16.msra.mxu0 %v3103
  %3423 = vmatprep.subr.bf16.mxu0 0
  %3424 = vmatpush1.bf16.msra.mxu0 0
  %3425 = vmatprep.subr.bf16.mxu0 0
  %3426 = vmatpush1.bf16.msra.mxu0 0
  %3427 = vmatprep.subr.bf16.mxu0 0
  %3428 = vmatpush1.bf16.msra.mxu0 0
  %3429 = vmatprep.subr.bf16.mxu0 0
  %3430 = vmatpush1.bf16.msra.mxu0 0
  %3431 = vmatprep.subr.bf16.mxu0 0
  %3432 = vmatpush1.bf16.msra.mxu0 0
  %3433 = vmatprep.mubr.bf16.mxu0 %v3099
  %3434 = vmatmul.mubr.bf16.gmra.mrb[0].mxu0 %v133
  %v3435 = vpop.f32.mrb[0].mxu0
  %v3436 = vadd.f32 %v3395, %v3435
  %v3437 = vpop.f32.mrb[0].mxu0
  %v3438 = vadd.f32 %v3397, %v3437
  %v3439 = vpop.f32.mrb[0].mxu0
  %v3440 = vpop.f32.mrb[0].mxu0
  %3441 = vdwg.mxu0
  %3442 = vmatprep.subr.bf16.mxu0 %v2120
  %3443 = vmatpush1.bf16.msra.mxu0 %v2119
  %3444 = vmatprep.subr.bf16.mxu0 %v2124
  %3445 = vmatpush1.bf16.msra.mxu0 %v2123
  %3446 = vmatprep.subr.bf16.mxu0 %v2128
  %3447 = vmatpush1.bf16.msra.mxu0 %v2127
  %3448 = vmatprep.subr.bf16.mxu0 %v2132
  %3449 = vmatpush1.bf16.msra.mxu0 %v2131
  %3450 = vmatprep.subr.bf16.mxu0 %v2136
  %3451 = vmatpush1.bf16.msra.mxu0 %v2135
  %3452 = vmatprep.subr.bf16.mxu0 %v2140
  %3453 = vmatpush1.bf16.msra.mxu0 %v2139
  %3454 = vmatprep.subr.bf16.mxu0 %v2144
  %3455 = vmatpush1.bf16.msra.mxu0 %v2143
  %3456 = vmatprep.subr.bf16.mxu0 %v2148
  %3457 = vmatpush1.bf16.msra.mxu0 %v2147
  %3458 = vmatprep.subr.bf16.mxu0 %v2152
  %3459 = vmatpush1.bf16.msra.mxu0 %v2151
  %3460 = vmatprep.subr.bf16.mxu0 %v2156
  %3461 = vmatpush1.bf16.msra.mxu0 %v2155
  %3462 = vmatprep.subr.bf16.mxu0 %v2160
  %3463 = vmatpush1.bf16.msra.mxu0 %v2159
  %3464 = vmatprep.subr.bf16.mxu0 %v2164
  %3465 = vmatpush1.bf16.msra.mxu0 %v2163
  %3466 = vmatprep.subr.bf16.mxu0 %v2168
  %3467 = vmatpush1.bf16.msra.mxu0 %v2167
  %3468 = vmatprep.subr.bf16.mxu0 %v2172
  %3469 = vmatpush1.bf16.msra.mxu0 %v2171
  %3470 = vmatprep.subr.bf16.mxu0 %v2176
  %3471 = vmatpush1.bf16.msra.mxu0 %v2175
  %3472 = vmatprep.subr.bf16.mxu0 %v2180
  %3473 = vmatpush1.bf16.msra.mxu0 %v2179
  %3474 = vmatprep.mubr.bf16.mxu0 %v120
  %3475 = vmatmul.mubr.bf16.gmra.mrb[0].mxu0 %v119
  %v3476 = vpop.f32.mrb[0].mxu0
  %v3477 = vadd.f32 %v638, %v3476
  %v3478 = vpop.f32.mrb[0].mxu0
  %v3479 = vadd.f32 %v642, %v3478
  %v3480 = vpop.f32.mrb[0].mxu0
  %v3481 = vpop.f32.mrb[0].mxu0
  %3482 = vdwg.mxu0
  %3483 = vmatprep.subr.bf16.mxu0 %v2184
  %3484 = vmatpush1.bf16.msra.mxu0 %v2183
  %3485 = vmatprep.subr.bf16.mxu0 %v2188
  %3486 = vmatpush1.bf16.msra.mxu0 %v2187
  %3487 = vmatprep.subr.bf16.mxu0 %v2192
  %3488 = vmatpush1.bf16.msra.mxu0 %v2191
  %3489 = vmatprep.subr.bf16.mxu0 %v2196
  %3490 = vmatpush1.bf16.msra.mxu0 %v2195
  %3491 = vmatprep.subr.bf16.mxu0 %v2200
  %3492 = vmatpush1.bf16.msra.mxu0 %v2199
  %3493 = vmatprep.subr.bf16.mxu0 %v2204
  %3494 = vmatpush1.bf16.msra.mxu0 %v2203
  %3495 = vmatprep.subr.bf16.mxu0 %v2208
  %3496 = vmatpush1.bf16.msra.mxu0 %v2207
  %3497 = vmatprep.subr.bf16.mxu0 %v2212
  %3498 = vmatpush1.bf16.msra.mxu0 %v2211
  %3499 = vmatprep.subr.bf16.mxu0 %v2216
  %3500 = vmatpush1.bf16.msra.mxu0 %v2215
  %3501 = vmatprep.subr.bf16.mxu0 %v2220
  %3502 = vmatpush1.bf16.msra.mxu0 %v2219
  %3503 = vmatprep.subr.bf16.mxu0 %v2224
  %3504 = vmatpush1.bf16.msra.mxu0 %v2223
  %3505 = vmatprep.subr.bf16.mxu0 %v2228
  %3506 = vmatpush1.bf16.msra.mxu0 %v2227
  %3507 = vmatprep.subr.bf16.mxu0 %v2232
  %3508 = vmatpush1.bf16.msra.mxu0 %v2231
  %3509 = vmatprep.subr.bf16.mxu0 %v2236
  %3510 = vmatpush1.bf16.msra.mxu0 %v2235
  %3511 = vmatprep.subr.bf16.mxu0 %v2240
  %3512 = vmatpush1.bf16.msra.mxu0 %v2239
  %3513 = vmatprep.subr.bf16.mxu0 %v2244
  %3514 = vmatpush1.bf16.msra.mxu0 %v2243
  %3515 = vmatprep.mubr.bf16.mxu0 %v122
  %3516 = vmatmul.mubr.bf16.gmra.mrb[0].mxu0 %v121
  %v3517 = vpop.f32.mrb[0].mxu0
  %v3518 = vadd.f32 %v3477, %v3517
  %v3519 = vpop.f32.mrb[0].mxu0
  %v3520 = vadd.f32 %v3479, %v3519
  %v3521 = vpop.f32.mrb[0].mxu0
  %v3522 = vpop.f32.mrb[0].mxu0
  %3523 = vdwg.mxu0
  %3524 = vmatprep.subr.bf16.mxu0 %v2248
  %3525 = vmatpush1.bf16.msra.mxu0 %v2247
  %3526 = vmatprep.subr.bf16.mxu0 %v2252
  %3527 = vmatpush1.bf16.msra.mxu0 %v2251
  %3528 = vmatprep.subr.bf16.mxu0 %v2256
  %3529 = vmatpush1.bf16.msra.mxu0 %v2255
  %3530 = vmatprep.subr.bf16.mxu0 %v2260
  %3531 = vmatpush1.bf16.msra.mxu0 %v2259
  %3532 = vmatprep.subr.bf16.mxu0 %v2264
  %3533 = vmatpush1.bf16.msra.mxu0 %v2263
  %3534 = vmatprep.subr.bf16.mxu0 %v2268
  %3535 = vmatpush1.bf16.msra.mxu0 %v2267
  %3536 = vmatprep.subr.bf16.mxu0 %v2272
  %3537 = vmatpush1.bf16.msra.mxu0 %v2271
  %3538 = vmatprep.subr.bf16.mxu0 %v2276
  %3539 = vmatpush1.bf16.msra.mxu0 %v2275
  %3540 = vmatprep.subr.bf16.mxu0 %v2280
  %3541 = vmatpush1.bf16.msra.mxu0 %v2279
  %3542 = vmatprep.subr.bf16.mxu0 %v2284
  %3543 = vmatpush1.bf16.msra.mxu0 %v2283
  %3544 = vmatprep.subr.bf16.mxu0 %v2288
  %3545 = vmatpush1.bf16.msra.mxu0 %v2287
  %3546 = vmatprep.subr.bf16.mxu0 %v2292
  %3547 = vmatpush1.bf16.msra.mxu0 %v2291
  %3548 = vmatprep.subr.bf16.mxu0 %v2296
  %3549 = vmatpush1.bf16.msra.mxu0 %v2295
  %3550 = vmatprep.subr.bf16.mxu0 %v2300
  %3551 = vmatpush1.bf16.msra.mxu0 %v2299
  %3552 = vmatprep.subr.bf16.mxu0 %v2304
  %3553 = vmatpush1.bf16.msra.mxu0 %v2303
  %3554 = vmatprep.subr.bf16.mxu0 %v2308
  %3555 = vmatpush1.bf16.msra.mxu0 %v2307
  %3556 = vmatprep.mubr.bf16.mxu0 %v124
  %3557 = vmatmul.mubr.bf16.gmra.mrb[0].mxu0 %v123
  %v3558 = vpop.f32.mrb[0].mxu0
  %v3559 = vadd.f32 %v3518, %v3558
  %v3560 = vpop.f32.mrb[0].mxu0
  %v3561 = vadd.f32 %v3520, %v3560
  %v3562 = vpop.f32.mrb[0].mxu0
  %v3563 = vpop.f32.mrb[0].mxu0
  %3564 = vdwg.mxu0
  %3565 = vmatprep.subr.bf16.mxu0 %v2312
  %3566 = vmatpush1.bf16.msra.mxu0 %v2311
  %3567 = vmatprep.subr.bf16.mxu0 %v2316
  %3568 = vmatpush1.bf16.msra.mxu0 %v2315
  %3569 = vmatprep.subr.bf16.mxu0 %v2320
  %3570 = vmatpush1.bf16.msra.mxu0 %v2319
  %3571 = vmatprep.subr.bf16.mxu0 %v2324
  %3572 = vmatpush1.bf16.msra.mxu0 %v2323
  %3573 = vmatprep.subr.bf16.mxu0 %v2328
  %3574 = vmatpush1.bf16.msra.mxu0 %v2327
  %3575 = vmatprep.subr.bf16.mxu0 %v2332
  %3576 = vmatpush1.bf16.msra.mxu0 %v2331
  %3577 = vmatprep.subr.bf16.mxu0 %v2336
  %3578 = vmatpush1.bf16.msra.mxu0 %v2335
  %3579 = vmatprep.subr.bf16.mxu0 %v2340
  %3580 = vmatpush1.bf16.msra.mxu0 %v2339
  %3581 = vmatprep.subr.bf16.mxu0 %v2344
  %3582 = vmatpush1.bf16.msra.mxu0 %v2343
  %3583 = vmatprep.subr.bf16.mxu0 %v2348
  %3584 = vmatpush1.bf16.msra.mxu0 %v2347
  %3585 = vmatprep.subr.bf16.mxu0 %v2352
  %3586 = vmatpush1.bf16.msra.mxu0 %v2351
  %3587 = vmatprep.subr.bf16.mxu0 %v2356
  %3588 = vmatpush1.bf16.msra.mxu0 %v2355
  %3589 = vmatprep.subr.bf16.mxu0 %v2360
  %3590 = vmatpush1.bf16.msra.mxu0 %v2359
  %3591 = vmatprep.subr.bf16.mxu0 %v2364
  %3592 = vmatpush1.bf16.msra.mxu0 %v2363
  %3593 = vmatprep.subr.bf16.mxu0 %v2368
  %3594 = vmatpush1.bf16.msra.mxu0 %v2367
  %3595 = vmatprep.subr.bf16.mxu0 %v2372
  %3596 = vmatpush1.bf16.msra.mxu0 %v2371
  %3597 = vmatprep.mubr.bf16.mxu0 %v126
  %3598 = vmatmul.mubr.bf16.gmra.mrb[0].mxu0 %v125
  %v3599 = vpop.f32.mrb[0].mxu0
  %v3600 = vadd.f32 %v3559, %v3599
  %v3601 = vpop.f32.mrb[0].mxu0
  %v3602 = vadd.f32 %v3561, %v3601
  %v3603 = vpop.f32.mrb[0].mxu0
  %v3604 = vpop.f32.mrb[0].mxu0
  %3605 = vdwg.mxu0
  %3606 = vmatprep.subr.bf16.mxu0 %v2376
  %3607 = vmatpush1.bf16.msra.mxu0 %v2375
  %3608 = vmatprep.subr.bf16.mxu0 %v2380
  %3609 = vmatpush1.bf16.msra.mxu0 %v2379
  %3610 = vmatprep.subr.bf16.mxu0 %v2384
  %3611 = vmatpush1.bf16.msra.mxu0 %v2383
  %3612 = vmatprep.subr.bf16.mxu0 %v2388
  %3613 = vmatpush1.bf16.msra.mxu0 %v2387
  %3614 = vmatprep.subr.bf16.mxu0 %v2392
  %3615 = vmatpush1.bf16.msra.mxu0 %v2391
  %3616 = vmatprep.subr.bf16.mxu0 %v2396
  %3617 = vmatpush1.bf16.msra.mxu0 %v2395
  %3618 = vmatprep.subr.bf16.mxu0 %v2400
  %3619 = vmatpush1.bf16.msra.mxu0 %v2399
  %3620 = vmatprep.subr.bf16.mxu0 %v2404
  %3621 = vmatpush1.bf16.msra.mxu0 %v2403
  %3622 = vmatprep.subr.bf16.mxu0 %v2408
  %3623 = vmatpush1.bf16.msra.mxu0 %v2407
  %3624 = vmatprep.subr.bf16.mxu0 %v2412
  %3625 = vmatpush1.bf16.msra.mxu0 %v2411
  %3626 = vmatprep.subr.bf16.mxu0 %v2416
  %3627 = vmatpush1.bf16.msra.mxu0 %v2415
  %3628 = vmatprep.subr.bf16.mxu0 %v2420
  %3629 = vmatpush1.bf16.msra.mxu0 %v2419
  %3630 = vmatprep.subr.bf16.mxu0 %v2424
  %3631 = vmatpush1.bf16.msra.mxu0 %v2423
  %3632 = vmatprep.subr.bf16.mxu0 %v2428
  %3633 = vmatpush1.bf16.msra.mxu0 %v2427
  %3634 = vmatprep.subr.bf16.mxu0 %v2432
  %3635 = vmatpush1.bf16.msra.mxu0 %v2431
  %3636 = vmatprep.subr.bf16.mxu0 %v2436
  %3637 = vmatpush1.bf16.msra.mxu0 %v2435
  %3638 = vmatprep.mubr.bf16.mxu0 %v128
  %3639 = vmatmul.mubr.bf16.gmra.mrb[0].mxu0 %v127
  %v3640 = vpop.f32.mrb[0].mxu0
  %v3641 = vadd.f32 %v3600, %v3640
  %v3642 = vpop.f32.mrb[0].mxu0
  %v3643 = vadd.f32 %v3602, %v3642
  %v3644 = vpop.f32.mrb[0].mxu0
  %v3645 = vpop.f32.mrb[0].mxu0
  %3646 = vdwg.mxu0
  %3647 = vmatprep.subr.bf16.mxu0 %v2440
  %3648 = vmatpush1.bf16.msra.mxu0 %v2439
  %3649 = vmatprep.subr.bf16.mxu0 %v2444
  %3650 = vmatpush1.bf16.msra.mxu0 %v2443
  %3651 = vmatprep.subr.bf16.mxu0 %v2448
  %3652 = vmatpush1.bf16.msra.mxu0 %v2447
  %3653 = vmatprep.subr.bf16.mxu0 %v2452
  %3654 = vmatpush1.bf16.msra.mxu0 %v2451
  %3655 = vmatprep.subr.bf16.mxu0 %v2456
  %3656 = vmatpush1.bf16.msra.mxu0 %v2455
  %3657 = vmatprep.subr.bf16.mxu0 %v2460
  %3658 = vmatpush1.bf16.msra.mxu0 %v2459
  %3659 = vmatprep.subr.bf16.mxu0 %v2464
  %3660 = vmatpush1.bf16.msra.mxu0 %v2463
  %3661 = vmatprep.subr.bf16.mxu0 %v2468
  %3662 = vmatpush1.bf16.msra.mxu0 %v2467
  %3663 = vmatprep.subr.bf16.mxu0 %v2472
  %3664 = vmatpush1.bf16.msra.mxu0 %v2471
  %3665 = vmatprep.subr.bf16.mxu0 %v2476
  %3666 = vmatpush1.bf16.msra.mxu0 %v2475
  %3667 = vmatprep.subr.bf16.mxu0 %v2480
  %3668 = vmatpush1.bf16.msra.mxu0 %v2479
  %3669 = vmatprep.subr.bf16.mxu0 %v2484
  %3670 = vmatpush1.bf16.msra.mxu0 %v2483
  %3671 = vmatprep.subr.bf16.mxu0 %v2488
  %3672 = vmatpush1.bf16.msra.mxu0 %v2487
  %3673 = vmatprep.subr.bf16.mxu0 %v2492
  %3674 = vmatpush1.bf16.msra.mxu0 %v2491
  %3675 = vmatprep.subr.bf16.mxu0 %v2496
  %3676 = vmatpush1.bf16.msra.mxu0 %v2495
  %3677 = vmatprep.subr.bf16.mxu0 %v2500
  %3678 = vmatpush1.bf16.msra.mxu0 %v2499
  %3679 = vmatprep.mubr.bf16.mxu0 %v130
  %3680 = vmatmul.mubr.bf16.gmra.mrb[0].mxu0 %v129
  %v3681 = vpop.f32.mrb[0].mxu0
  %v3682 = vadd.f32 %v3641, %v3681
  %v3683 = vpop.f32.mrb[0].mxu0
  %v3684 = vadd.f32 %v3643, %v3683
  %v3685 = vpop.f32.mrb[0].mxu0
  %v3686 = vpop.f32.mrb[0].mxu0
  %3687 = vdwg.mxu0
  %3688 = vmatprep.subr.bf16.mxu0 %v2504
  %3689 = vmatpush1.bf16.msra.mxu0 %v2503
  %3690 = vmatprep.subr.bf16.mxu0 %v2508
  %3691 = vmatpush1.bf16.msra.mxu0 %v2507
  %3692 = vmatprep.subr.bf16.mxu0 %v2512
  %3693 = vmatpush1.bf16.msra.mxu0 %v2511
  %3694 = vmatprep.subr.bf16.mxu0 %v2516
  %3695 = vmatpush1.bf16.msra.mxu0 %v2515
  %3696 = vmatprep.subr.bf16.mxu0 %v2520
  %3697 = vmatpush1.bf16.msra.mxu0 %v2519
  %3698 = vmatprep.subr.bf16.mxu0 %v2524
  %3699 = vmatpush1.bf16.msra.mxu0 %v2523
  %3700 = vmatprep.subr.bf16.mxu0 %v2528
  %3701 = vmatpush1.bf16.msra.mxu0 %v2527
  %3702 = vmatprep.subr.bf16.mxu0 %v2532
  %3703 = vmatpush1.bf16.msra.mxu0 %v2531
  %3704 = vmatprep.subr.bf16.mxu0 %v2536
  %3705 = vmatpush1.bf16.msra.mxu0 %v2535
  %3706 = vmatprep.subr.bf16.mxu0 %v2540
  %3707 = vmatpush1.bf16.msra.mxu0 %v2539
  %3708 = vmatprep.subr.bf16.mxu0 %v2544
  %3709 = vmatpush1.bf16.msra.mxu0 %v2543
  %3710 = vmatprep.subr.bf16.mxu0 %v2548
  %3711 = vmatpush1.bf16.msra.mxu0 %v2547
  %3712 = vmatprep.subr.bf16.mxu0 %v2552
  %3713 = vmatpush1.bf16.msra.mxu0 %v2551
  %3714 = vmatprep.subr.bf16.mxu0 %v2556
  %3715 = vmatpush1.bf16.msra.mxu0 %v2555
  %3716 = vmatprep.subr.bf16.mxu0 %v2560
  %3717 = vmatpush1.bf16.msra.mxu0 %v2559
  %3718 = vmatprep.subr.bf16.mxu0 %v2564
  %3719 = vmatpush1.bf16.msra.mxu0 %v2563
  %3720 = vmatprep.mubr.bf16.mxu0 %v132
  %3721 = vmatmul.mubr.bf16.gmra.mrb[0].mxu0 %v131
  %v3722 = vpop.f32.mrb[0].mxu0
  %v3723 = vadd.f32 %v3682, %v3722
  %v3724 = vpop.f32.mrb[0].mxu0
  %v3725 = vadd.f32 %v3684, %v3724
  %v3726 = vpop.f32.mrb[0].mxu0
  %v3727 = vpop.f32.mrb[0].mxu0
  %3728 = vdwg.mxu0
  %3729 = vmatprep.subr.bf16.mxu0 %v2568
  %3730 = vmatpush1.bf16.msra.mxu0 %v2567
  %3731 = vmatprep.subr.bf16.mxu0 %v2572
  %3732 = vmatpush1.bf16.msra.mxu0 %v2571
  %3733 = vmatprep.subr.bf16.mxu0 %v2576
  %3734 = vmatpush1.bf16.msra.mxu0 %v2575
  %3735 = vmatprep.subr.bf16.mxu0 %v2580
  %3736 = vmatpush1.bf16.msra.mxu0 %v2579
  %3737 = vmatprep.subr.bf16.mxu0 %v2584
  %3738 = vmatpush1.bf16.msra.mxu0 %v2583
  %3739 = vmatprep.subr.bf16.mxu0 %v2588
  %3740 = vmatpush1.bf16.msra.mxu0 %v2587
  %3741 = vmatprep.subr.bf16.mxu0 %v2592
  %3742 = vmatpush1.bf16.msra.mxu0 %v2591
  %3743 = vmatprep.subr.bf16.mxu0 %v2596
  %3744 = vmatpush1.bf16.msra.mxu0 %v2595
  %3745 = vmatprep.subr.bf16.mxu0 %v2600
  %3746 = vmatpush1.bf16.msra.mxu0 %v2599
  %3747 = vmatprep.subr.bf16.mxu0 %v2604
  %3748 = vmatpush1.bf16.msra.mxu0 %v2603
  %3749 = vmatprep.subr.bf16.mxu0 %v3112
  %3750 = vmatpush1.bf16.msra.mxu0 %v3109
  %3751 = vmatprep.subr.bf16.mxu0 0
  %3752 = vmatpush1.bf16.msra.mxu0 0
  %3753 = vmatprep.subr.bf16.mxu0 0
  %3754 = vmatpush1.bf16.msra.mxu0 0
  %3755 = vmatprep.subr.bf16.mxu0 0
  %3756 = vmatpush1.bf16.msra.mxu0 0
  %3757 = vmatprep.subr.bf16.mxu0 0
  %3758 = vmatpush1.bf16.msra.mxu0 0
  %3759 = vmatprep.subr.bf16.mxu0 0
  %3760 = vmatpush1.bf16.msra.mxu0 0
  %3761 = vmatprep.mubr.bf16.mxu0 %v3099
  %3762 = vmatmul.mubr.bf16.gmra.mrb[0].mxu0 %v133
  %v3763 = vpop.f32.mrb[0].mxu0
  %v3764 = vadd.f32 %v3723, %v3763
  %v3765 = vpop.f32.mrb[0].mxu0
  %v3766 = vadd.f32 %v3725, %v3765
  %v3767 = vpop.f32.mrb[0].mxu0
  %v3768 = vpop.f32.mrb[0].mxu0
  %3769 = vdwg.mxu0
  %v3770 = vmax.f32 %v3436, 0.0
  %v3771 = vmax.f32 %v3438, 0.0
  %v3772 = vmax.f32 %v3764, 0.0
  %v3773 = vmax.f32 %v3766, 0.0
  %v3774 = vpack.c.bf16 %v3770, %v3770
  %v3775 = vpack.c.bf16 %v3771, %v3771
  %v3776 = vpack.c.bf16 %v3772, %v3772
  %v3777 = vpack.c.bf16 %v3773, %v3773
  %v3778 = vld [vmem:[%s3] sm:$0xff]
  %v3779 = vld [vmem:[%s3 + $0x8] sm:$0xff]
  %v3780 = vld [vmem:[%s3 + $0x10] sm:$0xff]
  %v3781 = vld [vmem:[%s3 + $0x18] sm:$0xff]
  %v3782 = vld [vmem:[%s3 + $0x20] sm:$0xff]
  %v3783 = vld [vmem:[%s3 + $0x28] sm:$0xff]
  %v3784 = vld [vmem:[%s3 + $0x30] sm:$0xff]
  %v3785 = vld [vmem:[%s3 + $0x38] sm:$0xff]
  %v3786 = vld [vmem:[%s3 + $0x40] sm:$0xff]
  %v3787 = vld [vmem:[%s3 + $0x48] sm:$0xff]
  %v3788 = vld [vmem:[%s3 + $0x50] sm:$0xff]
  %v3789 = vld [vmem:[%s3 + $0x58] sm:$0xff]
  %v3790 = vld [vmem:[%s3 + $0x60] sm:$0xff]
  %v3791 = vld [vmem:[%s3 + $0x68] sm:$0xff]
  %v3792 = vld [vmem:[%s3 + $0x70] sm:$0xff]
  %v3793 = vld [vmem:[%s3 + $0x78] sm:$0xff]
  %v3794 = vld [vmem:[%s3 + $0x80] sm:$0xff]
  %v3795 = vld [vmem:[%s3 + $0x88] sm:$0xff]
  %v3796 = vld [vmem:[%s3 + $0x90] sm:$0xff]
  %v3797 = vld [vmem:[%s3 + $0x98] sm:$0xff]
  %v3798 = vld [vmem:[%s3 + $0xa0] sm:$0xff]
  %v3799 = vld [vmem:[%s3 + $0xa8] sm:$0xff]
  %v3800 = vld [vmem:[%s3 + $0xb0] sm:$0xff]
  %v3801 = vld [vmem:[%s3 + $0xb8] sm:$0xff]
  %v3802 = vld [vmem:[%s3 + $0xc0] sm:$0xff]
  %v3803 = vld [vmem:[%s3 + $0xc8] sm:$0xff]
  %v3804 = vld [vmem:[%s3 + $0xd0] sm:$0xff]
  %v3805 = vld [vmem:[%s3 + $0xd8] sm:$0xff]
  %v3806 = vld [vmem:[%s3 + $0xe0] sm:$0xff]
  %v3807 = vld [vmem:[%s3 + $0xe8] sm:$0xff]
  %v3808 = vld [vmem:[%s3 + $0xf0] sm:$0xff]
  %v3809 = vld [vmem:[%s3 + $0xf8] sm:$0xff]
  %v3810 = vld [vmem:[%s3 + $0x100] sm:$0xff]
  %v3811 = vld [vmem:[%s3 + $0x108] sm:$0xff]
  %v3812 = vld [vmem:[%s3 + $0x110] sm:$0xff]
  %v3813 = vld [vmem:[%s3 + $0x118] sm:$0xff]
  %v3814 = vld [vmem:[%s3 + $0x120] sm:$0xff]
  %v3815 = vld [vmem:[%s3 + $0x128] sm:$0xff]
  %v3816 = vld [vmem:[%s3 + $0x130] sm:$0xff]
  %v3817 = vld [vmem:[%s3 + $0x138] sm:$0xff]
  %v3818 = vld [vmem:[%s3 + $0x140] sm:$0xff]
  %v3819 = vld [vmem:[%s3 + $0x148] sm:$0xff]
  %v3820 = vld [vmem:[%s3 + $0x150] sm:$0xff]
  %v3821 = vld [vmem:[%s3 + $0x158] sm:$0xff]
  %v3822 = vld [vmem:[%s3 + $0x160] sm:$0xff]
  %v3823 = vld [vmem:[%s3 + $0x168] sm:$0xff]
  %v3824 = vld [vmem:[%s3 + $0x170] sm:$0xff]
  %v3825 = vld [vmem:[%s3 + $0x178] sm:$0xff]
  %v3826 = vld [vmem:[%s3 + $0x180] sm:$0xff]
  %v3827 = vld [vmem:[%s3 + $0x188] sm:$0xff]
  %v3828 = vld [vmem:[%s3 + $0x190] sm:$0xff]
  %v3829 = vld [vmem:[%s3 + $0x198] sm:$0xff]
  %v3830 = vld [vmem:[%s3 + $0x1a0] sm:$0xff]
  %v3831 = vld [vmem:[%s3 + $0x1a8] sm:$0xff]
  %v3832 = vld [vmem:[%s3 + $0x1b0] sm:$0xff]
  %v3833 = vld [vmem:[%s3 + $0x1b8] sm:$0xff]
  %v3834 = vld [vmem:[%s3 + $0x1c0] sm:$0xff]
  %v3835 = vld [vmem:[%s3 + $0x1c8] sm:$0xff]
  %v3836 = vld [vmem:[%s3 + $0x1d0] sm:$0xff]
  %v3837 = vld [vmem:[%s3 + $0x1d8] sm:$0xff]
  %v3838 = vld [vmem:[%s3 + $0x1e0] sm:$0xff]
  %v3839 = vld [vmem:[%s3 + $0x1e8] sm:$0xff]
  %v3840 = vld [vmem:[%s3 + $0x1f0] sm:$0xff]
  %v3841 = vld [vmem:[%s3 + $0x1f8] sm:$0xff]
  %v3842 = vld [vmem:[%s4] sm:$0x3]
  %v3844 = vlaneseq
  %v3845 = vshrl.u32 %v3844, 7
  %v3846 = vsub.s32 0, %v3845
  %v3847 = vrot.slane %v3842, %v3846
  %v3848 = vlaneseq
  %v3849 = vshrl.u32 %v3848, 7
  %v3850 = vsub.s32 1, %v3849
  %v3851 = vrot.slane %v3842, %v3850
  %v3918 = vunpack.c.l.b16 %v3778
  %v3919 = vunpack.c.h.b16 %v3778
  %v3920 = vunpack.c.l.b16 %v3779
  %v3921 = vunpack.c.h.b16 %v3779
  %v3922 = vunpack.c.l.b16 %v3780
  %v3923 = vunpack.c.h.b16 %v3780
  %v3924 = vunpack.c.l.b16 %v3781
  %v3925 = vunpack.c.h.b16 %v3781
  %v3926 = vunpack.c.l.b16 %v3782
  %v3927 = vunpack.c.h.b16 %v3782
  %v3928 = vunpack.c.l.b16 %v3783
  %v3929 = vunpack.c.h.b16 %v3783
  %v3930 = vunpack.c.l.b16 %v3784
  %v3931 = vunpack.c.h.b16 %v3784
  %v3932 = vunpack.c.l.b16 %v3785
  %v3933 = vunpack.c.h.b16 %v3785
  %v3934 = vunpack.c.l.b16 %v3786
  %v3935 = vunpack.c.h.b16 %v3786
  %v3936 = vunpack.c.l.b16 %v3787
  %v3937 = vunpack.c.h.b16 %v3787
  %v3938 = vunpack.c.l.b16 %v3788
  %v3939 = vunpack.c.h.b16 %v3788
  %v3940 = vunpack.c.l.b16 %v3789
  %v3941 = vunpack.c.h.b16 %v3789
  %v3942 = vunpack.c.l.b16 %v3790
  %v3943 = vunpack.c.h.b16 %v3790
  %v3944 = vunpack.c.l.b16 %v3791
  %v3945 = vunpack.c.h.b16 %v3791
  %v3946 = vunpack.c.l.b16 %v3792
  %v3947 = vunpack.c.h.b16 %v3792
  %v3948 = vunpack.c.l.b16 %v3793
  %v3949 = vunpack.c.h.b16 %v3793
  %v3950 = vunpack.c.l.b16 %v3794
  %v3951 = vunpack.c.h.b16 %v3794
  %v3952 = vunpack.c.l.b16 %v3795
  %v3953 = vunpack.c.h.b16 %v3795
  %v3954 = vunpack.c.l.b16 %v3796
  %v3955 = vunpack.c.h.b16 %v3796
  %v3956 = vunpack.c.l.b16 %v3797
  %v3957 = vunpack.c.h.b16 %v3797
  %v3958 = vunpack.c.l.b16 %v3798
  %v3959 = vunpack.c.h.b16 %v3798
  %v3960 = vunpack.c.l.b16 %v3799
  %v3961 = vunpack.c.h.b16 %v3799
  %v3962 = vunpack.c.l.b16 %v3800
  %v3963 = vunpack.c.h.b16 %v3800
  %v3964 = vunpack.c.l.b16 %v3801
  %v3965 = vunpack.c.h.b16 %v3801
  %v3966 = vunpack.c.l.b16 %v3802
  %v3967 = vunpack.c.h.b16 %v3802
  %v3968 = vunpack.c.l.b16 %v3803
  %v3969 = vunpack.c.h.b16 %v3803
  %v3970 = vunpack.c.l.b16 %v3804
  %v3971 = vunpack.c.h.b16 %v3804
  %v3972 = vunpack.c.l.b16 %v3805
  %v3973 = vunpack.c.h.b16 %v3805
  %v3974 = vunpack.c.l.b16 %v3806
  %v3975 = vunpack.c.h.b16 %v3806
  %v3976 = vunpack.c.l.b16 %v3807
  %v3977 = vunpack.c.h.b16 %v3807
  %v3978 = vunpack.c.l.b16 %v3808
  %v3979 = vunpack.c.h.b16 %v3808
  %v3980 = vunpack.c.l.b16 %v3809
  %v3981 = vunpack.c.h.b16 %v3809
  %v3982 = vunpack.c.l.b16 %v3810
  %v3983 = vunpack.c.h.b16 %v3810
  %v3984 = vunpack.c.l.b16 %v3811
  %v3985 = vunpack.c.h.b16 %v3811
  %v3986 = vunpack.c.l.b16 %v3812
  %v3987 = vunpack.c.h.b16 %v3812
  %v3988 = vunpack.c.l.b16 %v3813
  %v3989 = vunpack.c.h.b16 %v3813
  %v3990 = vunpack.c.l.b16 %v3814
  %v3991 = vunpack.c.h.b16 %v3814
  %v3992 = vunpack.c.l.b16 %v3815
  %v3993 = vunpack.c.h.b16 %v3815
  %v3994 = vunpack.c.l.b16 %v3816
  %v3995 = vunpack.c.h.b16 %v3816
  %v3996 = vunpack.c.l.b16 %v3817
  %v3997 = vunpack.c.h.b16 %v3817
  %v3998 = vunpack.c.l.b16 %v3818
  %v3999 = vunpack.c.h.b16 %v3818
  %v4000 = vunpack.c.l.b16 %v3819
  %v4001 = vunpack.c.h.b16 %v3819
  %v4002 = vunpack.c.l.b16 %v3820
  %v4003 = vunpack.c.h.b16 %v3820
  %v4004 = vunpack.c.l.b16 %v3821
  %v4005 = vunpack.c.h.b16 %v3821
  %v4006 = vunpack.c.l.b16 %v3822
  %v4007 = vunpack.c.h.b16 %v3822
  %v4008 = vunpack.c.l.b16 %v3823
  %v4009 = vunpack.c.h.b16 %v3823
  %v4010 = vunpack.c.l.b16 %v3824
  %v4011 = vunpack.c.h.b16 %v3824
  %v4012 = vunpack.c.l.b16 %v3825
  %v4013 = vunpack.c.h.b16 %v3825
  %v4014 = vunpack.c.l.b16 %v3826
  %v4015 = vunpack.c.h.b16 %v3826
  %v4016 = vunpack.c.l.b16 %v3827
  %v4017 = vunpack.c.h.b16 %v3827
  %v4018 = vunpack.c.l.b16 %v3828
  %v4019 = vunpack.c.h.b16 %v3828
  %v4020 = vunpack.c.l.b16 %v3829
  %v4021 = vunpack.c.h.b16 %v3829
  %v4022 = vunpack.c.l.b16 %v3830
  %v4023 = vunpack.c.h.b16 %v3830
  %v4024 = vunpack.c.l.b16 %v3831
  %v4025 = vunpack.c.h.b16 %v3831
  %v4026 = vunpack.c.l.b16 %v3832
  %v4027 = vunpack.c.h.b16 %v3832
  %v4028 = vunpack.c.l.b16 %v3833
  %v4029 = vunpack.c.h.b16 %v3833
  %v4030 = vunpack.c.l.b16 %v3834
  %v4031 = vunpack.c.h.b16 %v3834
  %v4032 = vunpack.c.l.b16 %v3835
  %v4033 = vunpack.c.h.b16 %v3835
  %v4034 = vunpack.c.l.b16 %v3836
  %v4035 = vunpack.c.h.b16 %v3836
  %v4036 = vunpack.c.l.b16 %v3837
  %v4037 = vunpack.c.h.b16 %v3837
  %v4038 = vunpack.c.l.b16 %v3838
  %v4039 = vunpack.c.h.b16 %v3838
  %v4040 = vunpack.c.l.b16 %v3839
  %v4041 = vunpack.c.h.b16 %v3839
  %v4042 = vunpack.c.l.b16 %v3840
  %v4043 = vunpack.c.h.b16 %v3840
  %v4044 = vunpack.c.l.b16 %v3841
  %v4045 = vunpack.c.h.b16 %v3841
  %v4046 = vpack.c.b16 %v3920, %v3918
  %v4047 = vpack.c.b16 %v3921, %v3919
  %v4048 = vpack.c.b16 %v3924, %v3922
  %v4049 = vpack.c.b16 %v3925, %v3923
  %v4050 = vpack.c.b16 %v3928, %v3926
  %v4051 = vpack.c.b16 %v3929, %v3927
  %v4052 = vpack.c.b16 %v3932, %v3930
  %v4053 = vpack.c.b16 %v3933, %v3931
  %v4054 = vpack.c.b16 %v3936, %v3934
  %v4055 = vpack.c.b16 %v3937, %v3935
  %v4056 = vpack.c.b16 %v3940, %v3938
  %v4057 = vpack.c.b16 %v3941, %v3939
  %v4058 = vpack.c.b16 %v3944, %v3942
  %v4059 = vpack.c.b16 %v3945, %v3943
  %v4060 = vpack.c.b16 %v3948, %v3946
  %v4061 = vpack.c.b16 %v3949, %v3947
  %v4062 = vpack.c.b16 %v3952, %v3950
  %v4063 = vpack.c.b16 %v3953, %v3951
  %v4064 = vpack.c.b16 %v3956, %v3954
  %v4065 = vpack.c.b16 %v3957, %v3955
  %v4066 = vpack.c.b16 %v3960, %v3958
  %v4067 = vpack.c.b16 %v3961, %v3959
  %v4068 = vpack.c.b16 %v3964, %v3962
  %v4069 = vpack.c.b16 %v3965, %v3963
  %v4070 = vpack.c.b16 %v3968, %v3966
  %v4071 = vpack.c.b16 %v3969, %v3967
  %v4072 = vpack.c.b16 %v3972, %v3970
  %v4073 = vpack.c.b16 %v3973, %v3971
  %v4074 = vpack.c.b16 %v3976, %v3974
  %v4075 = vpack.c.b16 %v3977, %v3975
  %v4076 = vpack.c.b16 %v3980, %v3978
  %v4077 = vpack.c.b16 %v3981, %v3979
  %v4078 = vpack.c.b16 %v3984, %v3982
  %v4079 = vpack.c.b16 %v3985, %v3983
  %v4080 = vpack.c.b16 %v3988, %v3986
  %v4081 = vpack.c.b16 %v3989, %v3987
  %v4082 = vpack.c.b16 %v3992, %v3990
  %v4083 = vpack.c.b16 %v3993, %v3991
  %v4084 = vpack.c.b16 %v3996, %v3994
  %v4085 = vpack.c.b16 %v3997, %v3995
  %v4086 = vpack.c.b16 %v4000, %v3998
  %v4087 = vpack.c.b16 %v4001, %v3999
  %v4088 = vpack.c.b16 %v4004, %v4002
  %v4089 = vpack.c.b16 %v4005, %v4003
  %v4090 = vpack.c.b16 %v4008, %v4006
  %v4091 = vpack.c.b16 %v4009, %v4007
  %v4092 = vpack.c.b16 %v4012, %v4010
  %v4093 = vpack.c.b16 %v4013, %v4011
  %v4094 = vpack.c.b16 %v4016, %v4014
  %v4095 = vpack.c.b16 %v4017, %v4015
  %v4096 = vpack.c.b16 %v4020, %v4018
  %v4097 = vpack.c.b16 %v4021, %v4019
  %v4098 = vpack.c.b16 %v4024, %v4022
  %v4099 = vpack.c.b16 %v4025, %v4023
  %v4100 = vpack.c.b16 %v4028, %v4026
  %v4101 = vpack.c.b16 %v4029, %v4027
  %v4102 = vpack.c.b16 %v4032, %v4030
  %v4103 = vpack.c.b16 %v4033, %v4031
  %v4104 = vpack.c.b16 %v4036, %v4034
  %v4105 = vpack.c.b16 %v4037, %v4035
  %v4106 = vpack.c.b16 %v4040, %v4038
  %v4107 = vpack.c.b16 %v4041, %v4039
  %v4108 = vpack.c.b16 %v4044, %v4042
  %v4109 = vpack.c.b16 %v4045, %v4043
  %4174 = vmatprep.subr.bf16.mxu0 %v4047
  %4175 = vmatpush1.bf16.msra.mxu0 %v4046
  %4176 = vmatprep.subr.bf16.mxu0 %v4049
  %4177 = vmatpush1.bf16.msra.mxu0 %v4048
  %4178 = vmatprep.subr.bf16.mxu0 %v4051
  %4179 = vmatpush1.bf16.msra.mxu0 %v4050
  %4180 = vmatprep.subr.bf16.mxu0 %v4053
  %4181 = vmatpush1.bf16.msra.mxu0 %v4052
  %4182 = vmatprep.subr.bf16.mxu0 %v4055
  %4183 = vmatpush1.bf16.msra.mxu0 %v4054
  %4184 = vmatprep.subr.bf16.mxu0 %v4057
  %4185 = vmatpush1.bf16.msra.mxu0 %v4056
  %4186 = vmatprep.subr.bf16.mxu0 %v4059
  %4187 = vmatpush1.bf16.msra.mxu0 %v4058
  %4188 = vmatprep.subr.bf16.mxu0 %v4061
  %4189 = vmatpush1.bf16.msra.mxu0 %v4060
  %4190 = vmatprep.subr.bf16.mxu0 %v4063
  %4191 = vmatpush1.bf16.msra.mxu0 %v4062
  %4192 = vmatprep.subr.bf16.mxu0 %v4065
  %4193 = vmatpush1.bf16.msra.mxu0 %v4064
  %4194 = vmatprep.subr.bf16.mxu0 %v4067
  %4195 = vmatpush1.bf16.msra.mxu0 %v4066
  %4196 = vmatprep.subr.bf16.mxu0 %v4069
  %4197 = vmatpush1.bf16.msra.mxu0 %v4068
  %4198 = vmatprep.subr.bf16.mxu0 %v4071
  %4199 = vmatpush1.bf16.msra.mxu0 %v4070
  %4200 = vmatprep.subr.bf16.mxu0 %v4073
  %4201 = vmatpush1.bf16.msra.mxu0 %v4072
  %4202 = vmatprep.subr.bf16.mxu0 %v4075
  %4203 = vmatpush1.bf16.msra.mxu0 %v4074
  %4204 = vmatprep.subr.bf16.mxu0 %v4077
  %4205 = vmatpush1.bf16.msra.mxu0 %v4076
  %4206 = vmatprep.mubr.bf16.mxu0 %v3775
  %4207 = vmatmul.mubr.bf16.gmra.mrb[0].mxu0 %v3774
  %v4208 = vpop.f32.mrb[0].mxu0
  %v4209 = vadd.f32 %v3847, %v4208
  %v4210 = vpop.f32.mrb[0].mxu0
  %v4211 = vadd.f32 %v3851, %v4210
  %v4212 = vpop.f32.mrb[0].mxu0
  %v4213 = vpop.f32.mrb[0].mxu0
  %4214 = vdwg.mxu0
  %4215 = vmatprep.subr.bf16.mxu0 %v4079
  %4216 = vmatpush1.bf16.msra.mxu0 %v4078
  %4217 = vmatprep.subr.bf16.mxu0 %v4081
  %4218 = vmatpush1.bf16.msra.mxu0 %v4080
  %4219 = vmatprep.subr.bf16.mxu0 %v4083
  %4220 = vmatpush1.bf16.msra.mxu0 %v4082
  %4221 = vmatprep.subr.bf16.mxu0 %v4085
  %4222 = vmatpush1.bf16.msra.mxu0 %v4084
  %4223 = vmatprep.subr.bf16.mxu0 %v4087
  %4224 = vmatpush1.bf16.msra.mxu0 %v4086
  %4225 = vmatprep.subr.bf16.mxu0 %v4089
  %4226 = vmatpush1.bf16.msra.mxu0 %v4088
  %4227 = vmatprep.subr.bf16.mxu0 %v4091
  %4228 = vmatpush1.bf16.msra.mxu0 %v4090
  %4229 = vmatprep.subr.bf16.mxu0 %v4093
  %4230 = vmatpush1.bf16.msra.mxu0 %v4092
  %4231 = vmatprep.subr.bf16.mxu0 %v4095
  %4232 = vmatpush1.bf16.msra.mxu0 %v4094
  %4233 = vmatprep.subr.bf16.mxu0 %v4097
  %4234 = vmatpush1.bf16.msra.mxu0 %v4096
  %4235 = vmatprep.subr.bf16.mxu0 %v4099
  %4236 = vmatpush1.bf16.msra.mxu0 %v4098
  %4237 = vmatprep.subr.bf16.mxu0 %v4101
  %4238 = vmatpush1.bf16.msra.mxu0 %v4100
  %4239 = vmatprep.subr.bf16.mxu0 %v4103
  %4240 = vmatpush1.bf16.msra.mxu0 %v4102
  %4241 = vmatprep.subr.bf16.mxu0 %v4105
  %4242 = vmatpush1.bf16.msra.mxu0 %v4104
  %4243 = vmatprep.subr.bf16.mxu0 %v4107
  %4244 = vmatpush1.bf16.msra.mxu0 %v4106
  %4245 = vmatprep.subr.bf16.mxu0 %v4109
  %4246 = vmatpush1.bf16.msra.mxu0 %v4108
  %4247 = vmatprep.mubr.bf16.mxu0 %v3777
  %4248 = vmatmul.mubr.bf16.gmra.mrb[0].mxu0 %v3776
  %v4249 = vpop.f32.mrb[0].mxu0
  %v4250 = vadd.f32 %v4209, %v4249
  %v4251 = vpop.f32.mrb[0].mxu0
  %v4252 = vadd.f32 %v4211, %v4251
  %v4253 = vpop.f32.mrb[0].mxu0
  %v4254 = vpop.f32.mrb[0].mxu0
  %4255 = vdwg.mxu0
  %v4256 = vmax.f32 %v4250, 0.0
  %v4257 = vmax.f32 %v4252, 0.0
  %v4258 = vpack.c.bf16 %v4256, %v4256
  %v4259 = vpack.c.bf16 %v4257, %v4257
  %v4260 = vld [vmem:[%s5] sm:$0xf]
  %v4261 = vld [vmem:[%s5 + $0x4] sm:$0xf]
  %v4262 = vld [vmem:[%s5 + $0x8] sm:$0xf]
  %v4263 = vld [vmem:[%s5 + $0xc] sm:$0xf]
  %v4264 = vld [vmem:[%s5 + $0x10] sm:$0xf]
  %v4265 = vld [vmem:[%s5 + $0x14] sm:$0xf]
  %v4266 = vld [vmem:[%s5 + $0x18] sm:$0xf]
  %v4267 = vld [vmem:[%s5 + $0x1c] sm:$0xf]
  %v4268 = vld [vmem:[%s5 + $0x20] sm:$0xf]
  %v4269 = vld [vmem:[%s5 + $0x24] sm:$0xf]
  %v4270 = vld [vmem:[%s5 + $0x28] sm:$0xf]
  %v4271 = vld [vmem:[%s5 + $0x2c] sm:$0xf]
  %v4272 = vld [vmem:[%s5 + $0x30] sm:$0xf]
  %v4273 = vld [vmem:[%s5 + $0x34] sm:$0xf]
  %v4274 = vld [vmem:[%s5 + $0x38] sm:$0xf]
  %v4275 = vld [vmem:[%s5 + $0x3c] sm:$0xf]
  %v4276 = vld [vmem:[%s5 + $0x40] sm:$0xf]
  %v4277 = vld [vmem:[%s5 + $0x44] sm:$0xf]
  %v4278 = vld [vmem:[%s5 + $0x48] sm:$0xf]
  %v4279 = vld [vmem:[%s5 + $0x4c] sm:$0xf]
  %v4280 = vld [vmem:[%s5 + $0x50] sm:$0xf]
  %v4281 = vld [vmem:[%s5 + $0x54] sm:$0xf]
  %v4282 = vld [vmem:[%s5 + $0x58] sm:$0xf]
  %v4283 = vld [vmem:[%s5 + $0x5c] sm:$0xf]
  %v4284 = vld [vmem:[%s5 + $0x60] sm:$0xf]
  %v4285 = vld [vmem:[%s5 + $0x64] sm:$0xf]
  %v4286 = vld [vmem:[%s5 + $0x68] sm:$0xf]
  %v4287 = vld [vmem:[%s5 + $0x6c] sm:$0xf]
  %v4288 = vld [vmem:[%s5 + $0x70] sm:$0xf]
  %v4289 = vld [vmem:[%s5 + $0x74] sm:$0xf]
  %v4290 = vld [vmem:[%s5 + $0x78] sm:$0xf]
  %v4291 = vld [vmem:[%s5 + $0x7c] sm:$0xf]
  %v4292 = vld [vmem:[%s6] sm:$0x1]
  %v4294 = vlaneseq
  %v4295 = vshrl.u32 %v4294, 7
  %v4296 = vsub.s32 0, %v4295
  %v4297 = vrot.slane %v4292, %v4296
  %v4331 = vunpack.c.l.b16 %v4260
  %v4332 = vunpack.c.l.b16 %v4261
  %v4333 = vunpack.c.l.b16 %v4262
  %v4334 = vunpack.c.l.b16 %v4263
  %v4335 = vunpack.c.l.b16 %v4264
  %v4336 = vunpack.c.l.b16 %v4265
  %v4337 = vunpack.c.l.b16 %v4266
  %v4338 = vunpack.c.l.b16 %v4267
  %v4339 = vunpack.c.l.b16 %v4268
  %v4340 = vunpack.c.l.b16 %v4269
  %v4341 = vunpack.c.l.b16 %v4270
  %v4342 = vunpack.c.l.b16 %v4271
  %v4343 = vunpack.c.l.b16 %v4272
  %v4344 = vunpack.c.l.b16 %v4273
  %v4345 = vunpack.c.l.b16 %v4274
  %v4346 = vunpack.c.l.b16 %v4275
  %v4347 = vunpack.c.l.b16 %v4276
  %v4348 = vunpack.c.l.b16 %v4277
  %v4349 = vunpack.c.l.b16 %v4278
  %v4350 = vunpack.c.l.b16 %v4279
  %v4351 = vunpack.c.l.b16 %v4280
  %v4352 = vunpack.c.l.b16 %v4281
  %v4353 = vunpack.c.l.b16 %v4282
  %v4354 = vunpack.c.l.b16 %v4283
  %v4355 = vunpack.c.l.b16 %v4284
  %v4356 = vunpack.c.l.b16 %v4285
  %v4357 = vunpack.c.l.b16 %v4286
  %v4358 = vunpack.c.l.b16 %v4287
  %v4359 = vunpack.c.l.b16 %v4288
  %v4360 = vunpack.c.l.b16 %v4289
  %v4361 = vunpack.c.l.b16 %v4290
  %v4362 = vunpack.c.l.b16 %v4291
  %v4363 = vpack.c.b16 %v4332, %v4331
  %v4364 = vpack.c.b16 %v4334, %v4333
  %v4365 = vpack.c.b16 %v4336, %v4335
  %v4366 = vpack.c.b16 %v4338, %v4337
  %v4367 = vpack.c.b16 %v4340, %v4339
  %v4368 = vpack.c.b16 %v4342, %v4341
  %v4369 = vpack.c.b16 %v4344, %v4343
  %v4370 = vpack.c.b16 %v4346, %v4345
  %v4371 = vpack.c.b16 %v4348, %v4347
  %v4372 = vpack.c.b16 %v4350, %v4349
  %v4373 = vpack.c.b16 %v4352, %v4351
  %v4374 = vpack.c.b16 %v4354, %v4353
  %v4375 = vpack.c.b16 %v4356, %v4355
  %v4376 = vpack.c.b16 %v4358, %v4357
  %v4377 = vpack.c.b16 %v4360, %v4359
  %v4378 = vpack.c.b16 %v4362, %v4361
  %4395 = vmatprep.subr.bf16.mxu0 0
  %4396 = vmatpush1.bf16.msra.mxu0 %v4363
  %4397 = vmatprep.subr.bf16.mxu0 0
  %4398 = vmatpush1.bf16.msra.mxu0 %v4364
  %4399 = vmatprep.subr.bf16.mxu0 0
  %4400 = vmatpush1.bf16.msra.mxu0 %v4365
  %4401 = vmatprep.subr.bf16.mxu0 0
  %4402 = vmatpush1.bf16.msra.mxu0 %v4366
  %4403 = vmatprep.subr.bf16.mxu0 0
  %4404 = vmatpush1.bf16.msra.mxu0 %v4367
  %4405 = vmatprep.subr.bf16.mxu0 0
  %4406 = vmatpush1.bf16.msra.mxu0 %v4368
  %4407 = vmatprep.subr.bf16.mxu0 0
  %4408 = vmatpush1.bf16.msra.mxu0 %v4369
  %4409 = vmatprep.subr.bf16.mxu0 0
  %4410 = vmatpush1.bf16.msra.mxu0 %v4370
  %4411 = vmatprep.subr.bf16.mxu0 0
  %4412 = vmatpush1.bf16.msra.mxu0 %v4371
  %4413 = vmatprep.subr.bf16.mxu0 0
  %4414 = vmatpush1.bf16.msra.mxu0 %v4372
  %4415 = vmatprep.subr.bf16.mxu0 0
  %4416 = vmatpush1.bf16.msra.mxu0 %v4373
  %4417 = vmatprep.subr.bf16.mxu0 0
  %4418 = vmatpush1.bf16.msra.mxu0 %v4374
  %4419 = vmatprep.subr.bf16.mxu0 0
  %4420 = vmatpush1.bf16.msra.mxu0 %v4375
  %4421 = vmatprep.subr.bf16.mxu0 0
  %4422 = vmatpush1.bf16.msra.mxu0 %v4376
  %4423 = vmatprep.subr.bf16.mxu0 0
  %4424 = vmatpush1.bf16.msra.mxu0 %v4377
  %4425 = vmatprep.subr.bf16.mxu0 0
  %4426 = vmatpush1.bf16.msra.mxu0 %v4378
  %4427 = vmatprep.mubr.bf16.mxu0 %v4259
  %4428 = vmatmul.mubr.bf16.gmra.mrb[0].mxu0 %v4258
  %v4429 = vpop.f32.mrb[0].mxu0
  %v4430 = vadd.f32 %v4297, %v4429
  %v4431 = vpop.f32.mrb[0].mxu0
  %v4432 = vpop.f32.mrb[0].mxu0
  %v4433 = vpop.f32.mrb[0].mxu0
  %4434 = vdwg.mxu0
  %vm4435 = vcmask 25600
  %4436 = vst.msk [vmem:[%s7] sm:$0x3] %vm4435, %v4430
  // Predicated region
  $region30: #{ovrl_forward.3} parent=0 // pred_check
    _
  $region31: #{ovrl_forward.3} parent=0 // pred_check_branch
    %4438 = sbr.rel (0) target = $region33
  $region32: #{ovrl_forward.3} parent=0 // pred_region
    _
  $region33: #{ovrl_forward.3} parent=0 // pred_fallthru
    _
  // Predicated region
  $region34: #{ovrl_forward.3} parent=0 // pred_check
    _
  $region35: #{ovrl_forward.3} parent=0 // pred_check_branch
    %4440 = sbr.rel (0) target = $region37
  $region36: #{ovrl_forward.3} parent=0 // pred_region
    _
  $region37: #{ovrl_forward.3} parent=0 // pred_fallthru
    _

</llo_original>
